<compile_context>
chip_gen: v6e
topology: v6e:2x2x1
jax: 0.10.0
libtpu: 0.0.40
codegen_flags: <defaults>
</compile_context>

<pallas_src>
import functools

import jax
import jax.numpy as jnp
from jax.experimental import pallas as pl
from jax.experimental.pallas import tpu as pltpu


_WDTYPE = jnp.bfloat16
_BN_EPS = 1e-5


# ----------------------------------------------------------------------------
# In-kernel building blocks (operate on values + pytrees of parameter Refs).
# ----------------------------------------------------------------------------
def _mm(x, w_ref):
    """MXU matmul: bf16 operands, f32 accumulation (w_ref holds bf16 weights)."""
    return jnp.dot(x.astype(jnp.bfloat16), w_ref[...],
                   preferred_element_type=jnp.float32)


def _encoder_fwd(layers, x):
    # EncoderLayer: [FFL, ReLU] repeated over layer_dims, trailing ReLU removed.
    n = len(layers)
    for i, lyr in enumerate(layers):
        x = _mm(x, lyr["W"]) + lyr["b"][...]
        if i < n - 1:
            x = jnp.maximum(x, 0.0)
    return x


def _res_block_fwd(blk, x):
    # eval: out = BN2(Lin2(relu(BN1(Lin1(x))))) + (shortcut(x) if shortcut else x)
    h = jnp.maximum(_mm(x, blk["ffl"]["W"]) + blk["ffl"]["b"][...], 0.0)
    out = _mm(h, blk["lin_bn"]["W"]) + blk["lin_bn"]["b"][...]
    if blk["shortcut"] is not None:
        identity = _mm(x, blk["shortcut"]["W"]) + blk["shortcut"]["b"][...]
    else:
        identity = x
    return out + identity


def _res_layer_fwd(blocks, x):
    for blk in blocks:
        x = _res_block_fwd(blk, x)
    return x


# ----------------------------------------------------------------------------
# The single fused kernel.
# ----------------------------------------------------------------------------
def _predictor_kernel(*refs, treedef, n_flat):
    horse_ref, jockey_ref, env_ref, hf_ref, prev_ref = refs[:5]
    tree = jax.tree_util.tree_unflatten(treedef, refs[5:5 + n_flat])
    final_ref, horse_out_ref, jockey_out_ref = refs[5 + n_flat:]
    p, c = tree["params"], tree["consts"]
    num_sel = c["sel"].shape[0]

    # Encoders (dropout is identity in eval mode).
    enc_env = _encoder_fwd(p["env_encoder"], env_ref[...])
    enc_hf = _encoder_fwd(p["horse_feature_encoder"], hf_ref[...])

    # combined_horse = cat([horse, prev, enc_hf, enc_env], dim=1), built with
    # one-hot placement matmuls so no lane-axis concatenate is needed.
    combined_horse = (_mm(horse_ref[...], c["P_horse"])
                      + prev_ref[...] * c["e_prev"][...]
                      + _mm(enc_hf, c["P_hf"])
                      + _mm(enc_env, c["P_env"]))
    horse_out = _res_layer_fwd(p["horse_block"], combined_horse)

    # combined_jockey = cat([horse_out, jockey], dim=1)
    combined_jockey = (_mm(horse_out, c["P_jockey_a"])
                       + _mm(jockey_ref[...], c["P_jockey_b"]))
    jockey_out = _res_layer_fwd(p["jockey_block"], combined_jockey)

    # race_data = jockey_out.reshape(B, S*H), expressed as one-hot row-gather +
    # column-scatter matmuls (no cross-lane reshape inside the kernel).
    jo_bf = jockey_out.astype(jnp.bfloat16)
    race_data = None
    for s in range(num_sel):
        rows_s = jnp.dot(c["sel"][s], jo_bf, preferred_element_type=jnp.float32)
        part = jnp.dot(rows_s.astype(jnp.bfloat16), c["scatter"][s],
                       preferred_element_type=jnp.float32)
        race_data = part if race_data is None else race_data + part
    race_out = _res_layer_fwd(p["race_block"], race_data)

    # final_data = cat([repeat(race_out, S per batch row), jockey_out], dim=1)
    race_rep = jnp.dot(c["rep"][...], race_out.astype(jnp.bfloat16),
                       preferred_element_type=jnp.float32)
    final_data = (_mm(race_rep, c["P_final_race"])
                  + _mm(jockey_out, c["P_final_jockey"]))
    final_out = _res_layer_fwd(p["listwise_block"], final_data)

    final_ref[...] = final_out.astype(final_ref.dtype)
    horse_out_ref[...] = horse_out.astype(horse_out_ref.dtype)
    jockey_out_ref[...] = jockey_out.astype(jockey_out_ref.dtype)


# ----------------------------------------------------------------------------
# Deterministic parameter construction (BatchNorm folded, weights in bf16).
# ----------------------------------------------------------------------------
class KeyGen:
    def __init__(self, key):
        self._key = key

    def __call__(self):
        self._key, sub = jax.random.split(self._key)
        return sub


def _linear_wb(kg, din, dout):
    W = jax.random.normal(kg(), (din, dout), jnp.float32) / jnp.sqrt(
        jnp.asarray(din, jnp.float32))
    b = 0.01 * jax.random.normal(kg(), (1, dout), jnp.float32)
    return W, b


def _bn_affine(kg, dout):
    gamma = 1.0 + 0.1 * jax.random.normal(kg(), (1, dout), jnp.float32)
    beta = 0.1 * jax.random.normal(kg(), (1, dout), jnp.float32)
    mean = 0.1 * jax.random.normal(kg(), (1, dout), jnp.float32)
    var = 1.0 + 0.2 * jax.random.uniform(kg(), (1, dout), jnp.float32)
    scale = gamma / jnp.sqrt(var + _BN_EPS)
    shift = beta - mean * scale
    return scale, shift


def _linear_bn_folded(kg, din, dout):
    # Linear -> BatchNorm1d(eval) folded: y = x @ (W*scale) + (b*scale + shift)
    W, b = _linear_wb(kg, din, dout)
    scale, shift = _bn_affine(kg, dout)
    return {"W": (W * scale).astype(_WDTYPE), "b": b * scale + shift}


def _plain_linear(kg, din, dout):
    W, b = _linear_wb(kg, din, dout)
    return {"W": W.astype(_WDTYPE), "b": b}


def _encoder_params(kg, dims):
    # Mirrors EncoderLayer._build_layers: iterates over ALL of layer_dims.
    layers, din = [], dims[0]
    for dout in dims:
        layers.append(_linear_bn_folded(kg, din, dout))
        din = dout
    return layers


def _res_block_params(kg, din, dout):
    return {
        "ffl": _linear_bn_folded(kg, din, dout),      # FeedForwardLayer
        "lin_bn": _linear_bn_folded(kg, dout, dout),  # Linear + BatchNorm1d
        "shortcut": _plain_linear(kg, din, dout) if din != dout else None,
    }


def _res_layer_params(kg, dims):
    # Mirrors ResidualLayerBlock._build_layers: first block is dims[0]->dims[0].
    blocks, din = [], dims[0]
    for dout in dims:
        blocks.append(_res_block_params(kg, din, dout))
        din = dout
    return blocks


def build_params(key, hidden_size, env_in, env_out, hf_in, hf_out, num_selections):
    kg = KeyGen(key)
    cat_h = hidden_size + 1 + hf_out + env_out
    return {
        "env_encoder": _encoder_params(kg, [env_in, 32, env_out]),
        "horse_feature_encoder": _encoder_params(kg, [hf_in, 32, hf_out]),
        "horse_block": _res_layer_params(kg, [cat_h, 128, 64, hidden_size]),
        "jockey_block": _res_layer_params(kg, [hidden_size * 2, 128, 64, hidden_size]),
        "race_block": _res_layer_params(
            kg, [hidden_size * num_selections, 128, 64, hidden_size * 3]),
        "listwise_block": _res_layer_params(
            kg, [hidden_size * 4, 128, 64, 32, 16, 8]),
    }


def _build_consts(batch, num_sel, hidden, hf_out, env_out):
    """One-hot placement/gather/scatter matrices replacing concat/reshape/repeat."""
    N = batch * num_sel
    cat_h = hidden + 1 + hf_out + env_out
    f32 = jnp.float32

    def place(rows, cols, off):
        return jnp.eye(rows, cols, k=off, dtype=f32).astype(_WDTYPE)

    sel = jnp.stack([jax.nn.one_hot(jnp.arange(batch) * num_sel + s, N, dtype=f32)
                     for s in range(num_sel)]).astype(_WDTYPE)          # (S, B, N)
    scatter = jnp.stack([jnp.eye(hidden, num_sel * hidden, k=s * hidden, dtype=f32)
                         for s in range(num_sel)]).astype(_WDTYPE)      # (S, H, S*H)
    rep = jnp.repeat(jnp.eye(batch, dtype=f32), num_sel, axis=0).astype(_WDTYPE)
    return {
        "P_horse": place(hidden, cat_h, 0),
        "e_prev": jnp.eye(1, cat_h, k=hidden, dtype=f32),   # f32, used on the VPU
        "P_hf": place(hf_out, cat_h, hidden + 1),
        "P_env": place(env_out, cat_h, hidden + 1 + hf_out),
        "P_jockey_a": place(hidden, 2 * hidden, 0),
        "P_jockey_b": place(hidden, 2 * hidden, hidden),
        "sel": sel,
        "scatter": scatter,
        "rep": rep,
        "P_final_race": place(3 * hidden, 4 * hidden, 0),
        "P_final_jockey": place(hidden, 4 * hidden, 3 * hidden),
    }


# ----------------------------------------------------------------------------
# Forward wrapper: exactly one pallas_call for the whole network.
# ----------------------------------------------------------------------------
def base_horse_race_predictor_forward(params, hidden_size, num_selections,
                                      horse_data, jockey_data, env_data,
                                      horse_features, prev_race_results):
    B, S, _ = horse_data.shape
    N = B * S
    env_out = params["env_encoder"][-1]["W"].shape[1]
    hf_out = params["horse_feature_encoder"][-1]["W"].shape[1]
    consts = _build_consts(B, S, hidden_size, hf_out, env_out)

    tree = {"params": params, "consts": consts}
    flat, treedef = jax.tree_util.tree_flatten(tree)
    n_flat = len(flat)

    horse_flat = horse_data.reshape(N, hidden_size).astype(jnp.float32)
    jockey_flat = jockey_data.reshape(N, hidden_size).astype(jnp.float32)
    env_flat = env_data.reshape(N, env_data.shape[-1]).astype(jnp.float32)
    hf_flat = horse_features.reshape(N, horse_features.shape[-1]).astype(jnp.float32)
    prev_flat = prev_race_results.reshape(N, 1).astype(jnp.float32)

    vmem = pl.BlockSpec(memory_space=pltpu.MemorySpace.VMEM)
    kernel = functools.partial(_predictor_kernel, treedef=treedef, n_flat=n_flat)

    final_out, horse_out, jockey_out = pl.pallas_call(
        kernel,
        out_shape=(jax.ShapeDtypeStruct((N, 8), jnp.float32),
                   jax.ShapeDtypeStruct((N, hidden_size), jnp.float32),
                   jax.ShapeDtypeStruct((N, hidden_size), jnp.float32)),
        in_specs=[vmem] * (5 + n_flat),
        out_specs=(vmem, vmem, vmem),
    )(horse_flat, jockey_flat, env_flat, hf_flat, prev_flat, *flat)

    # TODO(synk): .detach().clone() has no autodiff/aliasing meaning here; plain reshape.
    return (final_out,
            horse_out.reshape(horse_data.shape),
            jockey_out.reshape(jockey_data.shape))


# ----------------------------------------------------------------------------
if __name__ == "__main__":
    B = 2                # batch
    NUM_SELECTIONS = 8   # seq_len == num_selections
    HIDDEN = 32
    ENV_IN, ENV_OUT = 16, 16
    HF_IN, HF_OUT = 16, 16

    root = jax.random.PRNGKey(0)
    k_in, k_par = jax.random.split(root)
    ki = KeyGen(k_in)

    horse_data = jax.random.normal(ki(), (B, NUM_SELECTIONS, HIDDEN), jnp.float32)
    jockey_data = jax.random.normal(ki(), (B, NUM_SELECTIONS, HIDDEN), jnp.float32)
    env_data = jax.random.normal(ki(), (B, NUM_SELECTIONS, ENV_IN), jnp.float32)
    horse_features = jax.random.normal(ki(), (B, NUM_SELECTIONS, HF_IN), jnp.float32)
    prev_race_results = jax.random.normal(ki(), (B, NUM_SELECTIONS), jnp.float32)

    params = build_params(k_par, HIDDEN, ENV_IN, ENV_OUT, HF_IN, HF_OUT,
                          NUM_SELECTIONS)

    fwd = jax.jit(functools.partial(
        base_horse_race_predictor_forward, params, HIDDEN, NUM_SELECTIONS))

    final_out, upd_horse, upd_jockey = fwd(
        horse_data, jockey_data, env_data, horse_features, prev_race_results)
    jax.block_until_ready((final_out, upd_horse, upd_jockey))

    assert final_out.shape == (B * NUM_SELECTIONS, 8)
    assert upd_horse.shape == horse_data.shape
    assert upd_jockey.shape == jockey_data.shape
    print("KERNEL_OK")
</pallas_src>

<mosaic_0001>
module attributes {stable_mosaic.version = 11 : i64} {
  func.func @_predictor_kernel(%arg0: memref<16x32xf32, #tpu.memory_space<vmem>>, %arg1: memref<16x32xf32, #tpu.memory_space<vmem>>, %arg2: memref<16x16xf32, #tpu.memory_space<vmem>>, %arg3: memref<16x16xf32, #tpu.memory_space<vmem>>, %arg4: memref<16x1xf32, #tpu.memory_space<vmem>>, %arg5: memref<16x65xbf16, #tpu.memory_space<vmem>>, %arg6: memref<32x128xbf16, #tpu.memory_space<vmem>>, %arg7: memref<96x128xbf16, #tpu.memory_space<vmem>>, %arg8: memref<16x65xbf16, #tpu.memory_space<vmem>>, %arg9: memref<32x65xbf16, #tpu.memory_space<vmem>>, %arg10: memref<32x64xbf16, #tpu.memory_space<vmem>>, %arg11: memref<32x64xbf16, #tpu.memory_space<vmem>>, %arg12: memref<1x65xf32, #tpu.memory_space<vmem>>, %arg13: memref<16x2xbf16, #tpu.memory_space<vmem>>, %arg14: memref<8x32x256xbf16, #tpu.memory_space<vmem>>, %arg15: memref<8x2x16xbf16, #tpu.memory_space<vmem>>, %arg16: memref<16x16xbf16, #tpu.memory_space<vmem>>, %arg17: memref<1x16xf32, #tpu.memory_space<vmem>>, %arg18: memref<16x32xbf16, #tpu.memory_space<vmem>>, %arg19: memref<1x32xf32, #tpu.memory_space<vmem>>, %arg20: memref<32x16xbf16, #tpu.memory_space<vmem>>, %arg21: memref<1x16xf32, #tpu.memory_space<vmem>>, %arg22: memref<65x65xbf16, #tpu.memory_space<vmem>>, %arg23: memref<1x65xf32, #tpu.memory_space<vmem>>, %arg24: memref<65x65xbf16, #tpu.memory_space<vmem>>, %arg25: memref<1x65xf32, #tpu.memory_space<vmem>>, %arg26: memref<65x128xbf16, #tpu.memory_space<vmem>>, %arg27: memref<1x128xf32, #tpu.memory_space<vmem>>, %arg28: memref<128x128xbf16, #tpu.memory_space<vmem>>, %arg29: memref<1x128xf32, #tpu.memory_space<vmem>>, %arg30: memref<65x128xbf16, #tpu.memory_space<vmem>>, %arg31: memref<1x128xf32, #tpu.memory_space<vmem>>, %arg32: memref<128x64xbf16, #tpu.memory_space<vmem>>, %arg33: memref<1x64xf32, #tpu.memory_space<vmem>>, %arg34: memref<64x64xbf16, #tpu.memory_space<vmem>>, %arg35: memref<1x64xf32, #tpu.memory_space<vmem>>, %arg36: memref<128x64xbf16, #tpu.memory_space<vmem>>, %arg37: memref<1x64xf32, #tpu.memory_space<vmem>>, %arg38: memref<64x32xbf16, #tpu.memory_space<vmem>>, %arg39: memref<1x32xf32, #tpu.memory_space<vmem>>, %arg40: memref<32x32xbf16, #tpu.memory_space<vmem>>, %arg41: memref<1x32xf32, #tpu.memory_space<vmem>>, %arg42: memref<64x32xbf16, #tpu.memory_space<vmem>>, %arg43: memref<1x32xf32, #tpu.memory_space<vmem>>, %arg44: memref<16x16xbf16, #tpu.memory_space<vmem>>, %arg45: memref<1x16xf32, #tpu.memory_space<vmem>>, %arg46: memref<16x32xbf16, #tpu.memory_space<vmem>>, %arg47: memref<1x32xf32, #tpu.memory_space<vmem>>, %arg48: memref<32x16xbf16, #tpu.memory_space<vmem>>, %arg49: memref<1x16xf32, #tpu.memory_space<vmem>>, %arg50: memref<64x64xbf16, #tpu.memory_space<vmem>>, %arg51: memref<1x64xf32, #tpu.memory_space<vmem>>, %arg52: memref<64x64xbf16, #tpu.memory_space<vmem>>, %arg53: memref<1x64xf32, #tpu.memory_space<vmem>>, %arg54: memref<64x128xbf16, #tpu.memory_space<vmem>>, %arg55: memref<1x128xf32, #tpu.memory_space<vmem>>, %arg56: memref<128x128xbf16, #tpu.memory_space<vmem>>, %arg57: memref<1x128xf32, #tpu.memory_space<vmem>>, %arg58: memref<64x128xbf16, #tpu.memory_space<vmem>>, %arg59: memref<1x128xf32, #tpu.memory_space<vmem>>, %arg60: memref<128x64xbf16, #tpu.memory_space<vmem>>, %arg61: memref<1x64xf32, #tpu.memory_space<vmem>>, %arg62: memref<64x64xbf16, #tpu.memory_space<vmem>>, %arg63: memref<1x64xf32, #tpu.memory_space<vmem>>, %arg64: memref<128x64xbf16, #tpu.memory_space<vmem>>, %arg65: memref<1x64xf32, #tpu.memory_space<vmem>>, %arg66: memref<64x32xbf16, #tpu.memory_space<vmem>>, %arg67: memref<1x32xf32, #tpu.memory_space<vmem>>, %arg68: memref<32x32xbf16, #tpu.memory_space<vmem>>, %arg69: memref<1x32xf32, #tpu.memory_space<vmem>>, %arg70: memref<64x32xbf16, #tpu.memory_space<vmem>>, %arg71: memref<1x32xf32, #tpu.memory_space<vmem>>, %arg72: memref<128x128xbf16, #tpu.memory_space<vmem>>, %arg73: memref<1x128xf32, #tpu.memory_space<vmem>>, %arg74: memref<128x128xbf16, #tpu.memory_space<vmem>>, %arg75: memref<1x128xf32, #tpu.memory_space<vmem>>, %arg76: memref<128x128xbf16, #tpu.memory_space<vmem>>, %arg77: memref<1x128xf32, #tpu.memory_space<vmem>>, %arg78: memref<128x128xbf16, #tpu.memory_space<vmem>>, %arg79: memref<1x128xf32, #tpu.memory_space<vmem>>, %arg80: memref<128x64xbf16, #tpu.memory_space<vmem>>, %arg81: memref<1x64xf32, #tpu.memory_space<vmem>>, %arg82: memref<64x64xbf16, #tpu.memory_space<vmem>>, %arg83: memref<1x64xf32, #tpu.memory_space<vmem>>, %arg84: memref<128x64xbf16, #tpu.memory_space<vmem>>, %arg85: memref<1x64xf32, #tpu.memory_space<vmem>>, %arg86: memref<64x32xbf16, #tpu.memory_space<vmem>>, %arg87: memref<1x32xf32, #tpu.memory_space<vmem>>, %arg88: memref<32x32xbf16, #tpu.memory_space<vmem>>, %arg89: memref<1x32xf32, #tpu.memory_space<vmem>>, %arg90: memref<64x32xbf16, #tpu.memory_space<vmem>>, %arg91: memref<1x32xf32, #tpu.memory_space<vmem>>, %arg92: memref<32x16xbf16, #tpu.memory_space<vmem>>, %arg93: memref<1x16xf32, #tpu.memory_space<vmem>>, %arg94: memref<16x16xbf16, #tpu.memory_space<vmem>>, %arg95: memref<1x16xf32, #tpu.memory_space<vmem>>, %arg96: memref<32x16xbf16, #tpu.memory_space<vmem>>, %arg97: memref<1x16xf32, #tpu.memory_space<vmem>>, %arg98: memref<16x8xbf16, #tpu.memory_space<vmem>>, %arg99: memref<1x8xf32, #tpu.memory_space<vmem>>, %arg100: memref<8x8xbf16, #tpu.memory_space<vmem>>, %arg101: memref<1x8xf32, #tpu.memory_space<vmem>>, %arg102: memref<16x8xbf16, #tpu.memory_space<vmem>>, %arg103: memref<1x8xf32, #tpu.memory_space<vmem>>, %arg104: memref<256x256xbf16, #tpu.memory_space<vmem>>, %arg105: memref<1x256xf32, #tpu.memory_space<vmem>>, %arg106: memref<256x256xbf16, #tpu.memory_space<vmem>>, %arg107: memref<1x256xf32, #tpu.memory_space<vmem>>, %arg108: memref<256x128xbf16, #tpu.memory_space<vmem>>, %arg109: memref<1x128xf32, #tpu.memory_space<vmem>>, %arg110: memref<128x128xbf16, #tpu.memory_space<vmem>>, %arg111: memref<1x128xf32, #tpu.memory_space<vmem>>, %arg112: memref<256x128xbf16, #tpu.memory_space<vmem>>, %arg113: memref<1x128xf32, #tpu.memory_space<vmem>>, %arg114: memref<128x64xbf16, #tpu.memory_space<vmem>>, %arg115: memref<1x64xf32, #tpu.memory_space<vmem>>, %arg116: memref<64x64xbf16, #tpu.memory_space<vmem>>, %arg117: memref<1x64xf32, #tpu.memory_space<vmem>>, %arg118: memref<128x64xbf16, #tpu.memory_space<vmem>>, %arg119: memref<1x64xf32, #tpu.memory_space<vmem>>, %arg120: memref<64x96xbf16, #tpu.memory_space<vmem>>, %arg121: memref<1x96xf32, #tpu.memory_space<vmem>>, %arg122: memref<96x96xbf16, #tpu.memory_space<vmem>>, %arg123: memref<1x96xf32, #tpu.memory_space<vmem>>, %arg124: memref<64x96xbf16, #tpu.memory_space<vmem>>, %arg125: memref<1x96xf32, #tpu.memory_space<vmem>>, %arg126: memref<16x8xf32, #tpu.memory_space<vmem>>, %arg127: memref<16x32xf32, #tpu.memory_space<vmem>>, %arg128: memref<16x32xf32, #tpu.memory_space<vmem>>) attributes {dimension_semantics = [], scalar_prefetch = 0 : i64, scratch_operands = 0 : i64, tpu.core_type = #tpu.core_type<tc>} {
    %c0 = arith.constant 0 : index
    %c0_0 = arith.constant 0 : index
    %0 = vector.load %arg2[%c0, %c0_0] : memref<16x16xf32, #tpu.memory_space<vmem>>, vector<16x16xf32>
    %1 = arith.truncf %0 : vector<16x16xf32> to vector<16x16xbf16>
    %c0_1 = arith.constant 0 : index
    %c0_2 = arith.constant 0 : index
    %2 = vector.load %arg16[%c0_1, %c0_2] : memref<16x16xbf16, #tpu.memory_space<vmem>>, vector<16x16xbf16>
    %cst = arith.constant dense<0.000000e+00> : vector<16x16xf32>
    %3 = tpu.matmul %1, %2, %cst {dimension_numbers = #tpu.dot_dimension_numbers<[1], [0], [0], [1], [0, 0, 1, 1], [], []>} : vector<16x16xbf16>, vector<16x16xbf16>, vector<16x16xf32> -> vector<16x16xf32>
    %c0_3 = arith.constant 0 : index
    %c0_4 = arith.constant 0 : index
    %4 = vector.load %arg17[%c0_3, %c0_4] : memref<1x16xf32, #tpu.memory_space<vmem>>, vector<1x16xf32>
    %5 = vector.broadcast %4 : vector<1x16xf32> to vector<16x16xf32>
    %6 = arith.addf %3, %5 : vector<16x16xf32>
    %cst_5 = arith.constant 0.000000e+00 : f32
    %7 = vector.broadcast %cst_5 : f32 to vector<16x16xf32>
    %8 = arith.maximumf %6, %7 : vector<16x16xf32>
    %9 = arith.truncf %8 : vector<16x16xf32> to vector<16x16xbf16>
    %c0_6 = arith.constant 0 : index
    %c0_7 = arith.constant 0 : index
    %10 = vector.load %arg18[%c0_6, %c0_7] : memref<16x32xbf16, #tpu.memory_space<vmem>>, vector<16x32xbf16>
    %cst_8 = arith.constant dense<0.000000e+00> : vector<16x32xf32>
    %11 = tpu.matmul %9, %10, %cst_8 {dimension_numbers = #tpu.dot_dimension_numbers<[1], [0], [0], [1], [0, 0, 1, 1], [], []>} : vector<16x16xbf16>, vector<16x32xbf16>, vector<16x32xf32> -> vector<16x32xf32>
    %c0_9 = arith.constant 0 : index
    %c0_10 = arith.constant 0 : index
    %12 = vector.load %arg19[%c0_9, %c0_10] : memref<1x32xf32, #tpu.memory_space<vmem>>, vector<1x32xf32>
    %13 = vector.broadcast %12 : vector<1x32xf32> to vector<16x32xf32>
    %14 = arith.addf %11, %13 : vector<16x32xf32>
    %cst_11 = arith.constant 0.000000e+00 : f32
    %15 = vector.broadcast %cst_11 : f32 to vector<16x32xf32>
    %16 = arith.maximumf %14, %15 : vector<16x32xf32>
    %17 = arith.truncf %16 : vector<16x32xf32> to vector<16x32xbf16>
    %c0_12 = arith.constant 0 : index
    %c0_13 = arith.constant 0 : index
    %18 = vector.load %arg20[%c0_12, %c0_13] : memref<32x16xbf16, #tpu.memory_space<vmem>>, vector<32x16xbf16>
    %cst_14 = arith.constant dense<0.000000e+00> : vector<16x16xf32>
    %19 = tpu.matmul %17, %18, %cst_14 {dimension_numbers = #tpu.dot_dimension_numbers<[1], [0], [0], [1], [0, 0, 1, 1], [], []>} : vector<16x32xbf16>, vector<32x16xbf16>, vector<16x16xf32> -> vector<16x16xf32>
    %c0_15 = arith.constant 0 : index
    %c0_16 = arith.constant 0 : index
    %20 = vector.load %arg21[%c0_15, %c0_16] : memref<1x16xf32, #tpu.memory_space<vmem>>, vector<1x16xf32>
    %21 = vector.broadcast %20 : vector<1x16xf32> to vector<16x16xf32>
    %22 = arith.addf %19, %21 : vector<16x16xf32>
    %c0_17 = arith.constant 0 : index
    %c0_18 = arith.constant 0 : index
    %23 = vector.load %arg3[%c0_17, %c0_18] : memref<16x16xf32, #tpu.memory_space<vmem>>, vector<16x16xf32>
    %24 = arith.truncf %23 : vector<16x16xf32> to vector<16x16xbf16>
    %c0_19 = arith.constant 0 : index
    %c0_20 = arith.constant 0 : index
    %25 = vector.load %arg44[%c0_19, %c0_20] : memref<16x16xbf16, #tpu.memory_space<vmem>>, vector<16x16xbf16>
    %cst_21 = arith.constant dense<0.000000e+00> : vector<16x16xf32>
    %26 = tpu.matmul %24, %25, %cst_21 {dimension_numbers = #tpu.dot_dimension_numbers<[1], [0], [0], [1], [0, 0, 1, 1], [], []>} : vector<16x16xbf16>, vector<16x16xbf16>, vector<16x16xf32> -> vector<16x16xf32>
    %c0_22 = arith.constant 0 : index
    %c0_23 = arith.constant 0 : index
    %27 = vector.load %arg45[%c0_22, %c0_23] : memref<1x16xf32, #tpu.memory_space<vmem>>, vector<1x16xf32>
    %28 = vector.broadcast %27 : vector<1x16xf32> to vector<16x16xf32>
    %29 = arith.addf %26, %28 : vector<16x16xf32>
    %cst_24 = arith.constant 0.000000e+00 : f32
    %30 = vector.broadcast %cst_24 : f32 to vector<16x16xf32>
    %31 = arith.maximumf %29, %30 : vector<16x16xf32>
    %32 = arith.truncf %31 : vector<16x16xf32> to vector<16x16xbf16>
    %c0_25 = arith.constant 0 : index
    %c0_26 = arith.constant 0 : index
    %33 = vector.load %arg46[%c0_25, %c0_26] : memref<16x32xbf16, #tpu.memory_space<vmem>>, vector<16x32xbf16>
    %cst_27 = arith.constant dense<0.000000e+00> : vector<16x32xf32>
    %34 = tpu.matmul %32, %33, %cst_27 {dimension_numbers = #tpu.dot_dimension_numbers<[1], [0], [0], [1], [0, 0, 1, 1], [], []>} : vector<16x16xbf16>, vector<16x32xbf16>, vector<16x32xf32> -> vector<16x32xf32>
    %c0_28 = arith.constant 0 : index
    %c0_29 = arith.constant 0 : index
    %35 = vector.load %arg47[%c0_28, %c0_29] : memref<1x32xf32, #tpu.memory_space<vmem>>, vector<1x32xf32>
    %36 = vector.broadcast %35 : vector<1x32xf32> to vector<16x32xf32>
    %37 = arith.addf %34, %36 : vector<16x32xf32>
    %cst_30 = arith.constant 0.000000e+00 : f32
    %38 = vector.broadcast %cst_30 : f32 to vector<16x32xf32>
    %39 = arith.maximumf %37, %38 : vector<16x32xf32>
    %40 = arith.truncf %39 : vector<16x32xf32> to vector<16x32xbf16>
    %c0_31 = arith.constant 0 : index
    %c0_32 = arith.constant 0 : index
    %41 = vector.load %arg48[%c0_31, %c0_32] : memref<32x16xbf16, #tpu.memory_space<vmem>>, vector<32x16xbf16>
    %cst_33 = arith.constant dense<0.000000e+00> : vector<16x16xf32>
    %42 = tpu.matmul %40, %41, %cst_33 {dimension_numbers = #tpu.dot_dimension_numbers<[1], [0], [0], [1], [0, 0, 1, 1], [], []>} : vector<16x32xbf16>, vector<32x16xbf16>, vector<16x16xf32> -> vector<16x16xf32>
    %c0_34 = arith.constant 0 : index
    %c0_35 = arith.constant 0 : index
    %43 = vector.load %arg49[%c0_34, %c0_35] : memref<1x16xf32, #tpu.memory_space<vmem>>, vector<1x16xf32>
    %44 = vector.broadcast %43 : vector<1x16xf32> to vector<16x16xf32>
    %45 = arith.addf %42, %44 : vector<16x16xf32>
    %c0_36 = arith.constant 0 : index
    %c0_37 = arith.constant 0 : index
    %46 = vector.load %arg0[%c0_36, %c0_37] : memref<16x32xf32, #tpu.memory_space<vmem>>, vector<16x32xf32>
    %47 = arith.truncf %46 : vector<16x32xf32> to vector<16x32xbf16>
    %c0_38 = arith.constant 0 : index
    %c0_39 = arith.constant 0 : index
    %48 = vector.load %arg9[%c0_38, %c0_39] : memref<32x65xbf16, #tpu.memory_space<vmem>>, vector<32x65xbf16>
    %cst_40 = arith.constant dense<0.000000e+00> : vector<16x65xf32>
    %49 = tpu.matmul %47, %48, %cst_40 {dimension_numbers = #tpu.dot_dimension_numbers<[1], [0], [0], [1], [0, 0, 1, 1], [], []>} : vector<16x32xbf16>, vector<32x65xbf16>, vector<16x65xf32> -> vector<16x65xf32>
    %c0_41 = arith.constant 0 : index
    %c0_42 = arith.constant 0 : index
    %50 = vector.load %arg4[%c0_41, %c0_42] : memref<16x1xf32, #tpu.memory_space<vmem>>, vector<16x1xf32>
    %c0_43 = arith.constant 0 : index
    %c0_44 = arith.constant 0 : index
    %51 = vector.load %arg12[%c0_43, %c0_44] : memref<1x65xf32, #tpu.memory_space<vmem>>, vector<1x65xf32>
    %52 = vector.broadcast %50 : vector<16x1xf32> to vector<16x65xf32>
    %53 = vector.broadcast %51 : vector<1x65xf32> to vector<16x65xf32>
    %54 = arith.mulf %52, %53 : vector<16x65xf32>
    %55 = arith.addf %49, %54 : vector<16x65xf32>
    %56 = arith.truncf %45 : vector<16x16xf32> to vector<16x16xbf16>
    %c0_45 = arith.constant 0 : index
    %c0_46 = arith.constant 0 : index
    %57 = vector.load %arg8[%c0_45, %c0_46] : memref<16x65xbf16, #tpu.memory_space<vmem>>, vector<16x65xbf16>
    %cst_47 = arith.constant dense<0.000000e+00> : vector<16x65xf32>
    %58 = tpu.matmul %56, %57, %cst_47 {dimension_numbers = #tpu.dot_dimension_numbers<[1], [0], [0], [1], [0, 0, 1, 1], [], []>} : vector<16x16xbf16>, vector<16x65xbf16>, vector<16x65xf32> -> vector<16x65xf32>
    %59 = arith.addf %55, %58 : vector<16x65xf32>
    %60 = arith.truncf %22 : vector<16x16xf32> to vector<16x16xbf16>
    %c0_48 = arith.constant 0 : index
    %c0_49 = arith.constant 0 : index
    %61 = vector.load %arg5[%c0_48, %c0_49] : memref<16x65xbf16, #tpu.memory_space<vmem>>, vector<16x65xbf16>
    %cst_50 = arith.constant dense<0.000000e+00> : vector<16x65xf32>
    %62 = tpu.matmul %60, %61, %cst_50 {dimension_numbers = #tpu.dot_dimension_numbers<[1], [0], [0], [1], [0, 0, 1, 1], [], []>} : vector<16x16xbf16>, vector<16x65xbf16>, vector<16x65xf32> -> vector<16x65xf32>
    %63 = arith.addf %59, %62 : vector<16x65xf32>
    %64 = arith.truncf %63 : vector<16x65xf32> to vector<16x65xbf16>
    %c0_51 = arith.constant 0 : index
    %c0_52 = arith.constant 0 : index
    %65 = vector.load %arg22[%c0_51, %c0_52] : memref<65x65xbf16, #tpu.memory_space<vmem>>, vector<65x65xbf16>
    %cst_53 = arith.constant dense<0.000000e+00> : vector<16x65xf32>
    %66 = tpu.matmul %64, %65, %cst_53 {dimension_numbers = #tpu.dot_dimension_numbers<[1], [0], [0], [1], [0, 0, 1, 1], [], []>} : vector<16x65xbf16>, vector<65x65xbf16>, vector<16x65xf32> -> vector<16x65xf32>
    %c0_54 = arith.constant 0 : index
    %c0_55 = arith.constant 0 : index
    %67 = vector.load %arg23[%c0_54, %c0_55] : memref<1x65xf32, #tpu.memory_space<vmem>>, vector<1x65xf32>
    %68 = vector.broadcast %67 : vector<1x65xf32> to vector<16x65xf32>
    %69 = arith.addf %66, %68 : vector<16x65xf32>
    %cst_56 = arith.constant 0.000000e+00 : f32
    %70 = vector.broadcast %cst_56 : f32 to vector<16x65xf32>
    %71 = arith.maximumf %69, %70 : vector<16x65xf32>
    %72 = arith.truncf %71 : vector<16x65xf32> to vector<16x65xbf16>
    %c0_57 = arith.constant 0 : index
    %c0_58 = arith.constant 0 : index
    %73 = vector.load %arg24[%c0_57, %c0_58] : memref<65x65xbf16, #tpu.memory_space<vmem>>, vector<65x65xbf16>
    %cst_59 = arith.constant dense<0.000000e+00> : vector<16x65xf32>
    %74 = tpu.matmul %72, %73, %cst_59 {dimension_numbers = #tpu.dot_dimension_numbers<[1], [0], [0], [1], [0, 0, 1, 1], [], []>} : vector<16x65xbf16>, vector<65x65xbf16>, vector<16x65xf32> -> vector<16x65xf32>
    %c0_60 = arith.constant 0 : index
    %c0_61 = arith.constant 0 : index
    %75 = vector.load %arg25[%c0_60, %c0_61] : memref<1x65xf32, #tpu.memory_space<vmem>>, vector<1x65xf32>
    %76 = vector.broadcast %75 : vector<1x65xf32> to vector<16x65xf32>
    %77 = arith.addf %74, %76 : vector<16x65xf32>
    %78 = arith.addf %77, %63 : vector<16x65xf32>
    %79 = arith.truncf %78 : vector<16x65xf32> to vector<16x65xbf16>
    %c0_62 = arith.constant 0 : index
    %c0_63 = arith.constant 0 : index
    %80 = vector.load %arg26[%c0_62, %c0_63] : memref<65x128xbf16, #tpu.memory_space<vmem>>, vector<65x128xbf16>
    %cst_64 = arith.constant dense<0.000000e+00> : vector<16x128xf32>
    %81 = tpu.matmul %79, %80, %cst_64 {dimension_numbers = #tpu.dot_dimension_numbers<[1], [0], [0], [1], [0, 0, 1, 1], [], []>} : vector<16x65xbf16>, vector<65x128xbf16>, vector<16x128xf32> -> vector<16x128xf32>
    %c0_65 = arith.constant 0 : index
    %c0_66 = arith.constant 0 : index
    %82 = vector.load %arg27[%c0_65, %c0_66] : memref<1x128xf32, #tpu.memory_space<vmem>>, vector<1x128xf32>
    %83 = vector.broadcast %82 : vector<1x128xf32> to vector<16x128xf32>
    %84 = arith.addf %81, %83 : vector<16x128xf32>
    %cst_67 = arith.constant 0.000000e+00 : f32
    %85 = vector.broadcast %cst_67 : f32 to vector<16x128xf32>
    %86 = arith.maximumf %84, %85 : vector<16x128xf32>
    %87 = arith.truncf %86 : vector<16x128xf32> to vector<16x128xbf16>
    %c0_68 = arith.constant 0 : index
    %c0_69 = arith.constant 0 : index
    %88 = vector.load %arg28[%c0_68, %c0_69] : memref<128x128xbf16, #tpu.memory_space<vmem>>, vector<128x128xbf16>
    %cst_70 = arith.constant dense<0.000000e+00> : vector<16x128xf32>
    %89 = tpu.matmul %87, %88, %cst_70 {dimension_numbers = #tpu.dot_dimension_numbers<[1], [0], [0], [1], [0, 0, 1, 1], [], []>} : vector<16x128xbf16>, vector<128x128xbf16>, vector<16x128xf32> -> vector<16x128xf32>
    %c0_71 = arith.constant 0 : index
    %c0_72 = arith.constant 0 : index
    %90 = vector.load %arg29[%c0_71, %c0_72] : memref<1x128xf32, #tpu.memory_space<vmem>>, vector<1x128xf32>
    %91 = vector.broadcast %90 : vector<1x128xf32> to vector<16x128xf32>
    %92 = arith.addf %89, %91 : vector<16x128xf32>
    %93 = arith.truncf %78 : vector<16x65xf32> to vector<16x65xbf16>
    %c0_73 = arith.constant 0 : index
    %c0_74 = arith.constant 0 : index
    %94 = vector.load %arg30[%c0_73, %c0_74] : memref<65x128xbf16, #tpu.memory_space<vmem>>, vector<65x128xbf16>
    %cst_75 = arith.constant dense<0.000000e+00> : vector<16x128xf32>
    %95 = tpu.matmul %93, %94, %cst_75 {dimension_numbers = #tpu.dot_dimension_numbers<[1], [0], [0], [1], [0, 0, 1, 1], [], []>} : vector<16x65xbf16>, vector<65x128xbf16>, vector<16x128xf32> -> vector<16x128xf32>
    %c0_76 = arith.constant 0 : index
    %c0_77 = arith.constant 0 : index
    %96 = vector.load %arg31[%c0_76, %c0_77] : memref<1x128xf32, #tpu.memory_space<vmem>>, vector<1x128xf32>
    %97 = vector.broadcast %96 : vector<1x128xf32> to vector<16x128xf32>
    %98 = arith.addf %95, %97 : vector<16x128xf32>
    %99 = arith.addf %92, %98 : vector<16x128xf32>
    %100 = arith.truncf %99 : vector<16x128xf32> to vector<16x128xbf16>
    %c0_78 = arith.constant 0 : index
    %c0_79 = arith.constant 0 : index
    %101 = vector.load %arg32[%c0_78, %c0_79] : memref<128x64xbf16, #tpu.memory_space<vmem>>, vector<128x64xbf16>
    %cst_80 = arith.constant dense<0.000000e+00> : vector<16x64xf32>
    %102 = tpu.matmul %100, %101, %cst_80 {dimension_numbers = #tpu.dot_dimension_numbers<[1], [0], [0], [1], [0, 0, 1, 1], [], []>} : vector<16x128xbf16>, vector<128x64xbf16>, vector<16x64xf32> -> vector<16x64xf32>
    %c0_81 = arith.constant 0 : index
    %c0_82 = arith.constant 0 : index
    %103 = vector.load %arg33[%c0_81, %c0_82] : memref<1x64xf32, #tpu.memory_space<vmem>>, vector<1x64xf32>
    %104 = vector.broadcast %103 : vector<1x64xf32> to vector<16x64xf32>
    %105 = arith.addf %102, %104 : vector<16x64xf32>
    %cst_83 = arith.constant 0.000000e+00 : f32
    %106 = vector.broadcast %cst_83 : f32 to vector<16x64xf32>
    %107 = arith.maximumf %105, %106 : vector<16x64xf32>
    %108 = arith.truncf %107 : vector<16x64xf32> to vector<16x64xbf16>
    %c0_84 = arith.constant 0 : index
    %c0_85 = arith.constant 0 : index
    %109 = vector.load %arg34[%c0_84, %c0_85] : memref<64x64xbf16, #tpu.memory_space<vmem>>, vector<64x64xbf16>
    %cst_86 = arith.constant dense<0.000000e+00> : vector<16x64xf32>
    %110 = tpu.matmul %108, %109, %cst_86 {dimension_numbers = #tpu.dot_dimension_numbers<[1], [0], [0], [1], [0, 0, 1, 1], [], []>} : vector<16x64xbf16>, vector<64x64xbf16>, vector<16x64xf32> -> vector<16x64xf32>
    %c0_87 = arith.constant 0 : index
    %c0_88 = arith.constant 0 : index
    %111 = vector.load %arg35[%c0_87, %c0_88] : memref<1x64xf32, #tpu.memory_space<vmem>>, vector<1x64xf32>
    %112 = vector.broadcast %111 : vector<1x64xf32> to vector<16x64xf32>
    %113 = arith.addf %110, %112 : vector<16x64xf32>
    %114 = arith.truncf %99 : vector<16x128xf32> to vector<16x128xbf16>
    %c0_89 = arith.constant 0 : index
    %c0_90 = arith.constant 0 : index
    %115 = vector.load %arg36[%c0_89, %c0_90] : memref<128x64xbf16, #tpu.memory_space<vmem>>, vector<128x64xbf16>
    %cst_91 = arith.constant dense<0.000000e+00> : vector<16x64xf32>
    %116 = tpu.matmul %114, %115, %cst_91 {dimension_numbers = #tpu.dot_dimension_numbers<[1], [0], [0], [1], [0, 0, 1, 1], [], []>} : vector<16x128xbf16>, vector<128x64xbf16>, vector<16x64xf32> -> vector<16x64xf32>
    %c0_92 = arith.constant 0 : index
    %c0_93 = arith.constant 0 : index
    %117 = vector.load %arg37[%c0_92, %c0_93] : memref<1x64xf32, #tpu.memory_space<vmem>>, vector<1x64xf32>
    %118 = vector.broadcast %117 : vector<1x64xf32> to vector<16x64xf32>
    %119 = arith.addf %116, %118 : vector<16x64xf32>
    %120 = arith.addf %113, %119 : vector<16x64xf32>
    %121 = arith.truncf %120 : vector<16x64xf32> to vector<16x64xbf16>
    %c0_94 = arith.constant 0 : index
    %c0_95 = arith.constant 0 : index
    %122 = vector.load %arg38[%c0_94, %c0_95] : memref<64x32xbf16, #tpu.memory_space<vmem>>, vector<64x32xbf16>
    %cst_96 = arith.constant dense<0.000000e+00> : vector<16x32xf32>
    %123 = tpu.matmul %121, %122, %cst_96 {dimension_numbers = #tpu.dot_dimension_numbers<[1], [0], [0], [1], [0, 0, 1, 1], [], []>} : vector<16x64xbf16>, vector<64x32xbf16>, vector<16x32xf32> -> vector<16x32xf32>
    %c0_97 = arith.constant 0 : index
    %c0_98 = arith.constant 0 : index
    %124 = vector.load %arg39[%c0_97, %c0_98] : memref<1x32xf32, #tpu.memory_space<vmem>>, vector<1x32xf32>
    %125 = vector.broadcast %124 : vector<1x32xf32> to vector<16x32xf32>
    %126 = arith.addf %123, %125 : vector<16x32xf32>
    %cst_99 = arith.constant 0.000000e+00 : f32
    %127 = vector.broadcast %cst_99 : f32 to vector<16x32xf32>
    %128 = arith.maximumf %126, %127 : vector<16x32xf32>
    %129 = arith.truncf %128 : vector<16x32xf32> to vector<16x32xbf16>
    %c0_100 = arith.constant 0 : index
    %c0_101 = arith.constant 0 : index
    %130 = vector.load %arg40[%c0_100, %c0_101] : memref<32x32xbf16, #tpu.memory_space<vmem>>, vector<32x32xbf16>
    %cst_102 = arith.constant dense<0.000000e+00> : vector<16x32xf32>
    %131 = tpu.matmul %129, %130, %cst_102 {dimension_numbers = #tpu.dot_dimension_numbers<[1], [0], [0], [1], [0, 0, 1, 1], [], []>} : vector<16x32xbf16>, vector<32x32xbf16>, vector<16x32xf32> -> vector<16x32xf32>
    %c0_103 = arith.constant 0 : index
    %c0_104 = arith.constant 0 : index
    %132 = vector.load %arg41[%c0_103, %c0_104] : memref<1x32xf32, #tpu.memory_space<vmem>>, vector<1x32xf32>
    %133 = vector.broadcast %132 : vector<1x32xf32> to vector<16x32xf32>
    %134 = arith.addf %131, %133 : vector<16x32xf32>
    %135 = arith.truncf %120 : vector<16x64xf32> to vector<16x64xbf16>
    %c0_105 = arith.constant 0 : index
    %c0_106 = arith.constant 0 : index
    %136 = vector.load %arg42[%c0_105, %c0_106] : memref<64x32xbf16, #tpu.memory_space<vmem>>, vector<64x32xbf16>
    %cst_107 = arith.constant dense<0.000000e+00> : vector<16x32xf32>
    %137 = tpu.matmul %135, %136, %cst_107 {dimension_numbers = #tpu.dot_dimension_numbers<[1], [0], [0], [1], [0, 0, 1, 1], [], []>} : vector<16x64xbf16>, vector<64x32xbf16>, vector<16x32xf32> -> vector<16x32xf32>
    %c0_108 = arith.constant 0 : index
    %c0_109 = arith.constant 0 : index
    %138 = vector.load %arg43[%c0_108, %c0_109] : memref<1x32xf32, #tpu.memory_space<vmem>>, vector<1x32xf32>
    %139 = vector.broadcast %138 : vector<1x32xf32> to vector<16x32xf32>
    %140 = arith.addf %137, %139 : vector<16x32xf32>
    %141 = arith.addf %134, %140 : vector<16x32xf32>
    %142 = arith.truncf %141 : vector<16x32xf32> to vector<16x32xbf16>
    %c0_110 = arith.constant 0 : index
    %c0_111 = arith.constant 0 : index
    %143 = vector.load %arg10[%c0_110, %c0_111] : memref<32x64xbf16, #tpu.memory_space<vmem>>, vector<32x64xbf16>
    %cst_112 = arith.constant dense<0.000000e+00> : vector<16x64xf32>
    %144 = tpu.matmul %142, %143, %cst_112 {dimension_numbers = #tpu.dot_dimension_numbers<[1], [0], [0], [1], [0, 0, 1, 1], [], []>} : vector<16x32xbf16>, vector<32x64xbf16>, vector<16x64xf32> -> vector<16x64xf32>
    %c0_113 = arith.constant 0 : index
    %c0_114 = arith.constant 0 : index
    %145 = vector.load %arg1[%c0_113, %c0_114] : memref<16x32xf32, #tpu.memory_space<vmem>>, vector<16x32xf32>
    %146 = arith.truncf %145 : vector<16x32xf32> to vector<16x32xbf16>
    %c0_115 = arith.constant 0 : index
    %c0_116 = arith.constant 0 : index
    %147 = vector.load %arg11[%c0_115, %c0_116] : memref<32x64xbf16, #tpu.memory_space<vmem>>, vector<32x64xbf16>
    %cst_117 = arith.constant dense<0.000000e+00> : vector<16x64xf32>
    %148 = tpu.matmul %146, %147, %cst_117 {dimension_numbers = #tpu.dot_dimension_numbers<[1], [0], [0], [1], [0, 0, 1, 1], [], []>} : vector<16x32xbf16>, vector<32x64xbf16>, vector<16x64xf32> -> vector<16x64xf32>
    %149 = arith.addf %144, %148 : vector<16x64xf32>
    %150 = arith.truncf %149 : vector<16x64xf32> to vector<16x64xbf16>
    %c0_118 = arith.constant 0 : index
    %c0_119 = arith.constant 0 : index
    %151 = vector.load %arg50[%c0_118, %c0_119] : memref<64x64xbf16, #tpu.memory_space<vmem>>, vector<64x64xbf16>
    %cst_120 = arith.constant dense<0.000000e+00> : vector<16x64xf32>
    %152 = tpu.matmul %150, %151, %cst_120 {dimension_numbers = #tpu.dot_dimension_numbers<[1], [0], [0], [1], [0, 0, 1, 1], [], []>} : vector<16x64xbf16>, vector<64x64xbf16>, vector<16x64xf32> -> vector<16x64xf32>
    %c0_121 = arith.constant 0 : index
    %c0_122 = arith.constant 0 : index
    %153 = vector.load %arg51[%c0_121, %c0_122] : memref<1x64xf32, #tpu.memory_space<vmem>>, vector<1x64xf32>
    %154 = vector.broadcast %153 : vector<1x64xf32> to vector<16x64xf32>
    %155 = arith.addf %152, %154 : vector<16x64xf32>
    %cst_123 = arith.constant 0.000000e+00 : f32
    %156 = vector.broadcast %cst_123 : f32 to vector<16x64xf32>
    %157 = arith.maximumf %155, %156 : vector<16x64xf32>
    %158 = arith.truncf %157 : vector<16x64xf32> to vector<16x64xbf16>
    %c0_124 = arith.constant 0 : index
    %c0_125 = arith.constant 0 : index
    %159 = vector.load %arg52[%c0_124, %c0_125] : memref<64x64xbf16, #tpu.memory_space<vmem>>, vector<64x64xbf16>
    %cst_126 = arith.constant dense<0.000000e+00> : vector<16x64xf32>
    %160 = tpu.matmul %158, %159, %cst_126 {dimension_numbers = #tpu.dot_dimension_numbers<[1], [0], [0], [1], [0, 0, 1, 1], [], []>} : vector<16x64xbf16>, vector<64x64xbf16>, vector<16x64xf32> -> vector<16x64xf32>
    %c0_127 = arith.constant 0 : index
    %c0_128 = arith.constant 0 : index
    %161 = vector.load %arg53[%c0_127, %c0_128] : memref<1x64xf32, #tpu.memory_space<vmem>>, vector<1x64xf32>
    %162 = vector.broadcast %161 : vector<1x64xf32> to vector<16x64xf32>
    %163 = arith.addf %160, %162 : vector<16x64xf32>
    %164 = arith.addf %163, %149 : vector<16x64xf32>
    %165 = arith.truncf %164 : vector<16x64xf32> to vector<16x64xbf16>
    %c0_129 = arith.constant 0 : index
    %c0_130 = arith.constant 0 : index
    %166 = vector.load %arg54[%c0_129, %c0_130] : memref<64x128xbf16, #tpu.memory_space<vmem>>, vector<64x128xbf16>
    %cst_131 = arith.constant dense<0.000000e+00> : vector<16x128xf32>
    %167 = tpu.matmul %165, %166, %cst_131 {dimension_numbers = #tpu.dot_dimension_numbers<[1], [0], [0], [1], [0, 0, 1, 1], [], []>} : vector<16x64xbf16>, vector<64x128xbf16>, vector<16x128xf32> -> vector<16x128xf32>
    %c0_132 = arith.constant 0 : index
    %c0_133 = arith.constant 0 : index
    %168 = vector.load %arg55[%c0_132, %c0_133] : memref<1x128xf32, #tpu.memory_space<vmem>>, vector<1x128xf32>
    %169 = vector.broadcast %168 : vector<1x128xf32> to vector<16x128xf32>
    %170 = arith.addf %167, %169 : vector<16x128xf32>
    %cst_134 = arith.constant 0.000000e+00 : f32
    %171 = vector.broadcast %cst_134 : f32 to vector<16x128xf32>
    %172 = arith.maximumf %170, %171 : vector<16x128xf32>
    %173 = arith.truncf %172 : vector<16x128xf32> to vector<16x128xbf16>
    %c0_135 = arith.constant 0 : index
    %c0_136 = arith.constant 0 : index
    %174 = vector.load %arg56[%c0_135, %c0_136] : memref<128x128xbf16, #tpu.memory_space<vmem>>, vector<128x128xbf16>
    %cst_137 = arith.constant dense<0.000000e+00> : vector<16x128xf32>
    %175 = tpu.matmul %173, %174, %cst_137 {dimension_numbers = #tpu.dot_dimension_numbers<[1], [0], [0], [1], [0, 0, 1, 1], [], []>} : vector<16x128xbf16>, vector<128x128xbf16>, vector<16x128xf32> -> vector<16x128xf32>
    %c0_138 = arith.constant 0 : index
    %c0_139 = arith.constant 0 : index
    %176 = vector.load %arg57[%c0_138, %c0_139] : memref<1x128xf32, #tpu.memory_space<vmem>>, vector<1x128xf32>
    %177 = vector.broadcast %176 : vector<1x128xf32> to vector<16x128xf32>
    %178 = arith.addf %175, %177 : vector<16x128xf32>
    %179 = arith.truncf %164 : vector<16x64xf32> to vector<16x64xbf16>
    %c0_140 = arith.constant 0 : index
    %c0_141 = arith.constant 0 : index
    %180 = vector.load %arg58[%c0_140, %c0_141] : memref<64x128xbf16, #tpu.memory_space<vmem>>, vector<64x128xbf16>
    %cst_142 = arith.constant dense<0.000000e+00> : vector<16x128xf32>
    %181 = tpu.matmul %179, %180, %cst_142 {dimension_numbers = #tpu.dot_dimension_numbers<[1], [0], [0], [1], [0, 0, 1, 1], [], []>} : vector<16x64xbf16>, vector<64x128xbf16>, vector<16x128xf32> -> vector<16x128xf32>
    %c0_143 = arith.constant 0 : index
    %c0_144 = arith.constant 0 : index
    %182 = vector.load %arg59[%c0_143, %c0_144] : memref<1x128xf32, #tpu.memory_space<vmem>>, vector<1x128xf32>
    %183 = vector.broadcast %182 : vector<1x128xf32> to vector<16x128xf32>
    %184 = arith.addf %181, %183 : vector<16x128xf32>
    %185 = arith.addf %178, %184 : vector<16x128xf32>
    %186 = arith.truncf %185 : vector<16x128xf32> to vector<16x128xbf16>
    %c0_145 = arith.constant 0 : index
    %c0_146 = arith.constant 0 : index
    %187 = vector.load %arg60[%c0_145, %c0_146] : memref<128x64xbf16, #tpu.memory_space<vmem>>, vector<128x64xbf16>
    %cst_147 = arith.constant dense<0.000000e+00> : vector<16x64xf32>
    %188 = tpu.matmul %186, %187, %cst_147 {dimension_numbers = #tpu.dot_dimension_numbers<[1], [0], [0], [1], [0, 0, 1, 1], [], []>} : vector<16x128xbf16>, vector<128x64xbf16>, vector<16x64xf32> -> vector<16x64xf32>
    %c0_148 = arith.constant 0 : index
    %c0_149 = arith.constant 0 : index
    %189 = vector.load %arg61[%c0_148, %c0_149] : memref<1x64xf32, #tpu.memory_space<vmem>>, vector<1x64xf32>
    %190 = vector.broadcast %189 : vector<1x64xf32> to vector<16x64xf32>
    %191 = arith.addf %188, %190 : vector<16x64xf32>
    %cst_150 = arith.constant 0.000000e+00 : f32
    %192 = vector.broadcast %cst_150 : f32 to vector<16x64xf32>
    %193 = arith.maximumf %191, %192 : vector<16x64xf32>
    %194 = arith.truncf %193 : vector<16x64xf32> to vector<16x64xbf16>
    %c0_151 = arith.constant 0 : index
    %c0_152 = arith.constant 0 : index
    %195 = vector.load %arg62[%c0_151, %c0_152] : memref<64x64xbf16, #tpu.memory_space<vmem>>, vector<64x64xbf16>
    %cst_153 = arith.constant dense<0.000000e+00> : vector<16x64xf32>
    %196 = tpu.matmul %194, %195, %cst_153 {dimension_numbers = #tpu.dot_dimension_numbers<[1], [0], [0], [1], [0, 0, 1, 1], [], []>} : vector<16x64xbf16>, vector<64x64xbf16>, vector<16x64xf32> -> vector<16x64xf32>
    %c0_154 = arith.constant 0 : index
    %c0_155 = arith.constant 0 : index
    %197 = vector.load %arg63[%c0_154, %c0_155] : memref<1x64xf32, #tpu.memory_space<vmem>>, vector<1x64xf32>
    %198 = vector.broadcast %197 : vector<1x64xf32> to vector<16x64xf32>
    %199 = arith.addf %196, %198 : vector<16x64xf32>
    %200 = arith.truncf %185 : vector<16x128xf32> to vector<16x128xbf16>
    %c0_156 = arith.constant 0 : index
    %c0_157 = arith.constant 0 : index
    %201 = vector.load %arg64[%c0_156, %c0_157] : memref<128x64xbf16, #tpu.memory_space<vmem>>, vector<128x64xbf16>
    %cst_158 = arith.constant dense<0.000000e+00> : vector<16x64xf32>
    %202 = tpu.matmul %200, %201, %cst_158 {dimension_numbers = #tpu.dot_dimension_numbers<[1], [0], [0], [1], [0, 0, 1, 1], [], []>} : vector<16x128xbf16>, vector<128x64xbf16>, vector<16x64xf32> -> vector<16x64xf32>
    %c0_159 = arith.constant 0 : index
    %c0_160 = arith.constant 0 : index
    %203 = vector.load %arg65[%c0_159, %c0_160] : memref<1x64xf32, #tpu.memory_space<vmem>>, vector<1x64xf32>
    %204 = vector.broadcast %203 : vector<1x64xf32> to vector<16x64xf32>
    %205 = arith.addf %202, %204 : vector<16x64xf32>
    %206 = arith.addf %199, %205 : vector<16x64xf32>
    %207 = arith.truncf %206 : vector<16x64xf32> to vector<16x64xbf16>
    %c0_161 = arith.constant 0 : index
    %c0_162 = arith.constant 0 : index
    %208 = vector.load %arg66[%c0_161, %c0_162] : memref<64x32xbf16, #tpu.memory_space<vmem>>, vector<64x32xbf16>
    %cst_163 = arith.constant dense<0.000000e+00> : vector<16x32xf32>
    %209 = tpu.matmul %207, %208, %cst_163 {dimension_numbers = #tpu.dot_dimension_numbers<[1], [0], [0], [1], [0, 0, 1, 1], [], []>} : vector<16x64xbf16>, vector<64x32xbf16>, vector<16x32xf32> -> vector<16x32xf32>
    %c0_164 = arith.constant 0 : index
    %c0_165 = arith.constant 0 : index
    %210 = vector.load %arg67[%c0_164, %c0_165] : memref<1x32xf32, #tpu.memory_space<vmem>>, vector<1x32xf32>
    %211 = vector.broadcast %210 : vector<1x32xf32> to vector<16x32xf32>
    %212 = arith.addf %209, %211 : vector<16x32xf32>
    %cst_166 = arith.constant 0.000000e+00 : f32
    %213 = vector.broadcast %cst_166 : f32 to vector<16x32xf32>
    %214 = arith.maximumf %212, %213 : vector<16x32xf32>
    %215 = arith.truncf %214 : vector<16x32xf32> to vector<16x32xbf16>
    %c0_167 = arith.constant 0 : index
    %c0_168 = arith.constant 0 : index
    %216 = vector.load %arg68[%c0_167, %c0_168] : memref<32x32xbf16, #tpu.memory_space<vmem>>, vector<32x32xbf16>
    %cst_169 = arith.constant dense<0.000000e+00> : vector<16x32xf32>
    %217 = tpu.matmul %215, %216, %cst_169 {dimension_numbers = #tpu.dot_dimension_numbers<[1], [0], [0], [1], [0, 0, 1, 1], [], []>} : vector<16x32xbf16>, vector<32x32xbf16>, vector<16x32xf32> -> vector<16x32xf32>
    %c0_170 = arith.constant 0 : index
    %c0_171 = arith.constant 0 : index
    %218 = vector.load %arg69[%c0_170, %c0_171] : memref<1x32xf32, #tpu.memory_space<vmem>>, vector<1x32xf32>
    %219 = vector.broadcast %218 : vector<1x32xf32> to vector<16x32xf32>
    %220 = arith.addf %217, %219 : vector<16x32xf32>
    %221 = arith.truncf %206 : vector<16x64xf32> to vector<16x64xbf16>
    %c0_172 = arith.constant 0 : index
    %c0_173 = arith.constant 0 : index
    %222 = vector.load %arg70[%c0_172, %c0_173] : memref<64x32xbf16, #tpu.memory_space<vmem>>, vector<64x32xbf16>
    %cst_174 = arith.constant dense<0.000000e+00> : vector<16x32xf32>
    %223 = tpu.matmul %221, %222, %cst_174 {dimension_numbers = #tpu.dot_dimension_numbers<[1], [0], [0], [1], [0, 0, 1, 1], [], []>} : vector<16x64xbf16>, vector<64x32xbf16>, vector<16x32xf32> -> vector<16x32xf32>
    %c0_175 = arith.constant 0 : index
    %c0_176 = arith.constant 0 : index
    %224 = vector.load %arg71[%c0_175, %c0_176] : memref<1x32xf32, #tpu.memory_space<vmem>>, vector<1x32xf32>
    %225 = vector.broadcast %224 : vector<1x32xf32> to vector<16x32xf32>
    %226 = arith.addf %223, %225 : vector<16x32xf32>
    %227 = arith.addf %220, %226 : vector<16x32xf32>
    %228 = arith.truncf %227 : vector<16x32xf32> to vector<16x32xbf16>
    %c0_177 = arith.constant 0 : index
    %c0_178 = arith.constant 0 : index
    %c0_179 = arith.constant 0 : index
    %229 = vector.load %arg15[%c0_177, %c0_178, %c0_179] : memref<8x2x16xbf16, #tpu.memory_space<vmem>>, vector<1x2x16xbf16>
    %230 = vector.shape_cast %229 : vector<1x2x16xbf16> to vector<2x16xbf16>
    %cst_180 = arith.constant dense<0.000000e+00> : vector<2x32xf32>
    %231 = tpu.matmul %230, %228, %cst_180 {dimension_numbers = #tpu.dot_dimension_numbers<[1], [0], [0], [1], [0, 0, 1, 1], [], []>} : vector<2x16xbf16>, vector<16x32xbf16>, vector<2x32xf32> -> vector<2x32xf32>
    %232 = arith.truncf %231 : vector<2x32xf32> to vector<2x32xbf16>
    %c0_181 = arith.constant 0 : index
    %c0_182 = arith.constant 0 : index
    %c0_183 = arith.constant 0 : index
    %233 = vector.load %arg14[%c0_181, %c0_182, %c0_183] : memref<8x32x256xbf16, #tpu.memory_space<vmem>>, vector<1x32x256xbf16>
    %234 = vector.shape_cast %233 : vector<1x32x256xbf16> to vector<32x256xbf16>
    %cst_184 = arith.constant dense<0.000000e+00> : vector<2x256xf32>
    %235 = tpu.matmul %232, %234, %cst_184 {dimension_numbers = #tpu.dot_dimension_numbers<[1], [0], [0], [1], [0, 0, 1, 1], [], []>} : vector<2x32xbf16>, vector<32x256xbf16>, vector<2x256xf32> -> vector<2x256xf32>
    %c1 = arith.constant 1 : index
    %c0_185 = arith.constant 0 : index
    %c0_186 = arith.constant 0 : index
    %236 = vector.load %arg15[%c1, %c0_185, %c0_186] : memref<8x2x16xbf16, #tpu.memory_space<vmem>>, vector<1x2x16xbf16>
    %237 = vector.shape_cast %236 : vector<1x2x16xbf16> to vector<2x16xbf16>
    %cst_187 = arith.constant dense<0.000000e+00> : vector<2x32xf32>
    %238 = tpu.matmul %237, %228, %cst_187 {dimension_numbers = #tpu.dot_dimension_numbers<[1], [0], [0], [1], [0, 0, 1, 1], [], []>} : vector<2x16xbf16>, vector<16x32xbf16>, vector<2x32xf32> -> vector<2x32xf32>
    %239 = arith.truncf %238 : vector<2x32xf32> to vector<2x32xbf16>
    %c1_188 = arith.constant 1 : index
    %c0_189 = arith.constant 0 : index
    %c0_190 = arith.constant 0 : index
    %240 = vector.load %arg14[%c1_188, %c0_189, %c0_190] : memref<8x32x256xbf16, #tpu.memory_space<vmem>>, vector<1x32x256xbf16>
    %241 = vector.shape_cast %240 : vector<1x32x256xbf16> to vector<32x256xbf16>
    %cst_191 = arith.constant dense<0.000000e+00> : vector<2x256xf32>
    %242 = tpu.matmul %239, %241, %cst_191 {dimension_numbers = #tpu.dot_dimension_numbers<[1], [0], [0], [1], [0, 0, 1, 1], [], []>} : vector<2x32xbf16>, vector<32x256xbf16>, vector<2x256xf32> -> vector<2x256xf32>
    %243 = arith.addf %235, %242 : vector<2x256xf32>
    %c2 = arith.constant 2 : index
    %c0_192 = arith.constant 0 : index
    %c0_193 = arith.constant 0 : index
    %244 = vector.load %arg15[%c2, %c0_192, %c0_193] : memref<8x2x16xbf16, #tpu.memory_space<vmem>>, vector<1x2x16xbf16>
    %245 = vector.shape_cast %244 : vector<1x2x16xbf16> to vector<2x16xbf16>
    %cst_194 = arith.constant dense<0.000000e+00> : vector<2x32xf32>
    %246 = tpu.matmul %245, %228, %cst_194 {dimension_numbers = #tpu.dot_dimension_numbers<[1], [0], [0], [1], [0, 0, 1, 1], [], []>} : vector<2x16xbf16>, vector<16x32xbf16>, vector<2x32xf32> -> vector<2x32xf32>
    %247 = arith.truncf %246 : vector<2x32xf32> to vector<2x32xbf16>
    %c2_195 = arith.constant 2 : index
    %c0_196 = arith.constant 0 : index
    %c0_197 = arith.constant 0 : index
    %248 = vector.load %arg14[%c2_195, %c0_196, %c0_197] : memref<8x32x256xbf16, #tpu.memory_space<vmem>>, vector<1x32x256xbf16>
    %249 = vector.shape_cast %248 : vector<1x32x256xbf16> to vector<32x256xbf16>
    %cst_198 = arith.constant dense<0.000000e+00> : vector<2x256xf32>
    %250 = tpu.matmul %247, %249, %cst_198 {dimension_numbers = #tpu.dot_dimension_numbers<[1], [0], [0], [1], [0, 0, 1, 1], [], []>} : vector<2x32xbf16>, vector<32x256xbf16>, vector<2x256xf32> -> vector<2x256xf32>
    %251 = arith.addf %243, %250 : vector<2x256xf32>
    %c3 = arith.constant 3 : index
    %c0_199 = arith.constant 0 : index
    %c0_200 = arith.constant 0 : index
    %252 = vector.load %arg15[%c3, %c0_199, %c0_200] : memref<8x2x16xbf16, #tpu.memory_space<vmem>>, vector<1x2x16xbf16>
    %253 = vector.shape_cast %252 : vector<1x2x16xbf16> to vector<2x16xbf16>
    %cst_201 = arith.constant dense<0.000000e+00> : vector<2x32xf32>
    %254 = tpu.matmul %253, %228, %cst_201 {dimension_numbers = #tpu.dot_dimension_numbers<[1], [0], [0], [1], [0, 0, 1, 1], [], []>} : vector<2x16xbf16>, vector<16x32xbf16>, vector<2x32xf32> -> vector<2x32xf32>
    %255 = arith.truncf %254 : vector<2x32xf32> to vector<2x32xbf16>
    %c3_202 = arith.constant 3 : index
    %c0_203 = arith.constant 0 : index
    %c0_204 = arith.constant 0 : index
    %256 = vector.load %arg14[%c3_202, %c0_203, %c0_204] : memref<8x32x256xbf16, #tpu.memory_space<vmem>>, vector<1x32x256xbf16>
    %257 = vector.shape_cast %256 : vector<1x32x256xbf16> to vector<32x256xbf16>
    %cst_205 = arith.constant dense<0.000000e+00> : vector<2x256xf32>
    %258 = tpu.matmul %255, %257, %cst_205 {dimension_numbers = #tpu.dot_dimension_numbers<[1], [0], [0], [1], [0, 0, 1, 1], [], []>} : vector<2x32xbf16>, vector<32x256xbf16>, vector<2x256xf32> -> vector<2x256xf32>
    %259 = arith.addf %251, %258 : vector<2x256xf32>
    %c4 = arith.constant 4 : index
    %c0_206 = arith.constant 0 : index
    %c0_207 = arith.constant 0 : index
    %260 = vector.load %arg15[%c4, %c0_206, %c0_207] : memref<8x2x16xbf16, #tpu.memory_space<vmem>>, vector<1x2x16xbf16>
    %261 = vector.shape_cast %260 : vector<1x2x16xbf16> to vector<2x16xbf16>
    %cst_208 = arith.constant dense<0.000000e+00> : vector<2x32xf32>
    %262 = tpu.matmul %261, %228, %cst_208 {dimension_numbers = #tpu.dot_dimension_numbers<[1], [0], [0], [1], [0, 0, 1, 1], [], []>} : vector<2x16xbf16>, vector<16x32xbf16>, vector<2x32xf32> -> vector<2x32xf32>
    %263 = arith.truncf %262 : vector<2x32xf32> to vector<2x32xbf16>
    %c4_209 = arith.constant 4 : index
    %c0_210 = arith.constant 0 : index
    %c0_211 = arith.constant 0 : index
    %264 = vector.load %arg14[%c4_209, %c0_210, %c0_211] : memref<8x32x256xbf16, #tpu.memory_space<vmem>>, vector<1x32x256xbf16>
    %265 = vector.shape_cast %264 : vector<1x32x256xbf16> to vector<32x256xbf16>
    %cst_212 = arith.constant dense<0.000000e+00> : vector<2x256xf32>
    %266 = tpu.matmul %263, %265, %cst_212 {dimension_numbers = #tpu.dot_dimension_numbers<[1], [0], [0], [1], [0, 0, 1, 1], [], []>} : vector<2x32xbf16>, vector<32x256xbf16>, vector<2x256xf32> -> vector<2x256xf32>
    %267 = arith.addf %259, %266 : vector<2x256xf32>
    %c5 = arith.constant 5 : index
    %c0_213 = arith.constant 0 : index
    %c0_214 = arith.constant 0 : index
    %268 = vector.load %arg15[%c5, %c0_213, %c0_214] : memref<8x2x16xbf16, #tpu.memory_space<vmem>>, vector<1x2x16xbf16>
    %269 = vector.shape_cast %268 : vector<1x2x16xbf16> to vector<2x16xbf16>
    %cst_215 = arith.constant dense<0.000000e+00> : vector<2x32xf32>
    %270 = tpu.matmul %269, %228, %cst_215 {dimension_numbers = #tpu.dot_dimension_numbers<[1], [0], [0], [1], [0, 0, 1, 1], [], []>} : vector<2x16xbf16>, vector<16x32xbf16>, vector<2x32xf32> -> vector<2x32xf32>
    %271 = arith.truncf %270 : vector<2x32xf32> to vector<2x32xbf16>
    %c5_216 = arith.constant 5 : index
    %c0_217 = arith.constant 0 : index
    %c0_218 = arith.constant 0 : index
    %272 = vector.load %arg14[%c5_216, %c0_217, %c0_218] : memref<8x32x256xbf16, #tpu.memory_space<vmem>>, vector<1x32x256xbf16>
    %273 = vector.shape_cast %272 : vector<1x32x256xbf16> to vector<32x256xbf16>
    %cst_219 = arith.constant dense<0.000000e+00> : vector<2x256xf32>
    %274 = tpu.matmul %271, %273, %cst_219 {dimension_numbers = #tpu.dot_dimension_numbers<[1], [0], [0], [1], [0, 0, 1, 1], [], []>} : vector<2x32xbf16>, vector<32x256xbf16>, vector<2x256xf32> -> vector<2x256xf32>
    %275 = arith.addf %267, %274 : vector<2x256xf32>
    %c6 = arith.constant 6 : index
    %c0_220 = arith.constant 0 : index
    %c0_221 = arith.constant 0 : index
    %276 = vector.load %arg15[%c6, %c0_220, %c0_221] : memref<8x2x16xbf16, #tpu.memory_space<vmem>>, vector<1x2x16xbf16>
    %277 = vector.shape_cast %276 : vector<1x2x16xbf16> to vector<2x16xbf16>
    %cst_222 = arith.constant dense<0.000000e+00> : vector<2x32xf32>
    %278 = tpu.matmul %277, %228, %cst_222 {dimension_numbers = #tpu.dot_dimension_numbers<[1], [0], [0], [1], [0, 0, 1, 1], [], []>} : vector<2x16xbf16>, vector<16x32xbf16>, vector<2x32xf32> -> vector<2x32xf32>
    %279 = arith.truncf %278 : vector<2x32xf32> to vector<2x32xbf16>
    %c6_223 = arith.constant 6 : index
    %c0_224 = arith.constant 0 : index
    %c0_225 = arith.constant 0 : index
    %280 = vector.load %arg14[%c6_223, %c0_224, %c0_225] : memref<8x32x256xbf16, #tpu.memory_space<vmem>>, vector<1x32x256xbf16>
    %281 = vector.shape_cast %280 : vector<1x32x256xbf16> to vector<32x256xbf16>
    %cst_226 = arith.constant dense<0.000000e+00> : vector<2x256xf32>
    %282 = tpu.matmul %279, %281, %cst_226 {dimension_numbers = #tpu.dot_dimension_numbers<[1], [0], [0], [1], [0, 0, 1, 1], [], []>} : vector<2x32xbf16>, vector<32x256xbf16>, vector<2x256xf32> -> vector<2x256xf32>
    %283 = arith.addf %275, %282 : vector<2x256xf32>
    %c7 = arith.constant 7 : index
    %c0_227 = arith.constant 0 : index
    %c0_228 = arith.constant 0 : index
    %284 = vector.load %arg15[%c7, %c0_227, %c0_228] : memref<8x2x16xbf16, #tpu.memory_space<vmem>>, vector<1x2x16xbf16>
    %285 = vector.shape_cast %284 : vector<1x2x16xbf16> to vector<2x16xbf16>
    %cst_229 = arith.constant dense<0.000000e+00> : vector<2x32xf32>
    %286 = tpu.matmul %285, %228, %cst_229 {dimension_numbers = #tpu.dot_dimension_numbers<[1], [0], [0], [1], [0, 0, 1, 1], [], []>} : vector<2x16xbf16>, vector<16x32xbf16>, vector<2x32xf32> -> vector<2x32xf32>
    %287 = arith.truncf %286 : vector<2x32xf32> to vector<2x32xbf16>
    %c7_230 = arith.constant 7 : index
    %c0_231 = arith.constant 0 : index
    %c0_232 = arith.constant 0 : index
    %288 = vector.load %arg14[%c7_230, %c0_231, %c0_232] : memref<8x32x256xbf16, #tpu.memory_space<vmem>>, vector<1x32x256xbf16>
    %289 = vector.shape_cast %288 : vector<1x32x256xbf16> to vector<32x256xbf16>
    %cst_233 = arith.constant dense<0.000000e+00> : vector<2x256xf32>
    %290 = tpu.matmul %287, %289, %cst_233 {dimension_numbers = #tpu.dot_dimension_numbers<[1], [0], [0], [1], [0, 0, 1, 1], [], []>} : vector<2x32xbf16>, vector<32x256xbf16>, vector<2x256xf32> -> vector<2x256xf32>
    %291 = arith.addf %283, %290 : vector<2x256xf32>
    %292 = arith.truncf %291 : vector<2x256xf32> to vector<2x256xbf16>
    %c0_234 = arith.constant 0 : index
    %c0_235 = arith.constant 0 : index
    %293 = vector.load %arg104[%c0_234, %c0_235] : memref<256x256xbf16, #tpu.memory_space<vmem>>, vector<256x256xbf16>
    %cst_236 = arith.constant dense<0.000000e+00> : vector<2x256xf32>
    %294 = tpu.matmul %292, %293, %cst_236 {dimension_numbers = #tpu.dot_dimension_numbers<[1], [0], [0], [1], [0, 0, 1, 1], [], []>} : vector<2x256xbf16>, vector<256x256xbf16>, vector<2x256xf32> -> vector<2x256xf32>
    %c0_237 = arith.constant 0 : index
    %c0_238 = arith.constant 0 : index
    %295 = vector.load %arg105[%c0_237, %c0_238] : memref<1x256xf32, #tpu.memory_space<vmem>>, vector<1x256xf32>
    %296 = vector.broadcast %295 : vector<1x256xf32> to vector<2x256xf32>
    %297 = arith.addf %294, %296 : vector<2x256xf32>
    %cst_239 = arith.constant 0.000000e+00 : f32
    %298 = vector.broadcast %cst_239 : f32 to vector<2x256xf32>
    %299 = arith.maximumf %297, %298 : vector<2x256xf32>
    %300 = arith.truncf %299 : vector<2x256xf32> to vector<2x256xbf16>
    %c0_240 = arith.constant 0 : index
    %c0_241 = arith.constant 0 : index
    %301 = vector.load %arg106[%c0_240, %c0_241] : memref<256x256xbf16, #tpu.memory_space<vmem>>, vector<256x256xbf16>
    %cst_242 = arith.constant dense<0.000000e+00> : vector<2x256xf32>
    %302 = tpu.matmul %300, %301, %cst_242 {dimension_numbers = #tpu.dot_dimension_numbers<[1], [0], [0], [1], [0, 0, 1, 1], [], []>} : vector<2x256xbf16>, vector<256x256xbf16>, vector<2x256xf32> -> vector<2x256xf32>
    %c0_243 = arith.constant 0 : index
    %c0_244 = arith.constant 0 : index
    %303 = vector.load %arg107[%c0_243, %c0_244] : memref<1x256xf32, #tpu.memory_space<vmem>>, vector<1x256xf32>
    %304 = vector.broadcast %303 : vector<1x256xf32> to vector<2x256xf32>
    %305 = arith.addf %302, %304 : vector<2x256xf32>
    %306 = arith.addf %305, %291 : vector<2x256xf32>
    %307 = arith.truncf %306 : vector<2x256xf32> to vector<2x256xbf16>
    %c0_245 = arith.constant 0 : index
    %c0_246 = arith.constant 0 : index
    %308 = vector.load %arg108[%c0_245, %c0_246] : memref<256x128xbf16, #tpu.memory_space<vmem>>, vector<256x128xbf16>
    %cst_247 = arith.constant dense<0.000000e+00> : vector<2x128xf32>
    %309 = tpu.matmul %307, %308, %cst_247 {dimension_numbers = #tpu.dot_dimension_numbers<[1], [0], [0], [1], [0, 0, 1, 1], [], []>} : vector<2x256xbf16>, vector<256x128xbf16>, vector<2x128xf32> -> vector<2x128xf32>
    %c0_248 = arith.constant 0 : index
    %c0_249 = arith.constant 0 : index
    %310 = vector.load %arg109[%c0_248, %c0_249] : memref<1x128xf32, #tpu.memory_space<vmem>>, vector<1x128xf32>
    %311 = vector.broadcast %310 : vector<1x128xf32> to vector<2x128xf32>
    %312 = arith.addf %309, %311 : vector<2x128xf32>
    %cst_250 = arith.constant 0.000000e+00 : f32
    %313 = vector.broadcast %cst_250 : f32 to vector<2x128xf32>
    %314 = arith.maximumf %312, %313 : vector<2x128xf32>
    %315 = arith.truncf %314 : vector<2x128xf32> to vector<2x128xbf16>
    %c0_251 = arith.constant 0 : index
    %c0_252 = arith.constant 0 : index
    %316 = vector.load %arg110[%c0_251, %c0_252] : memref<128x128xbf16, #tpu.memory_space<vmem>>, vector<128x128xbf16>
    %cst_253 = arith.constant dense<0.000000e+00> : vector<2x128xf32>
    %317 = tpu.matmul %315, %316, %cst_253 {dimension_numbers = #tpu.dot_dimension_numbers<[1], [0], [0], [1], [0, 0, 1, 1], [], []>} : vector<2x128xbf16>, vector<128x128xbf16>, vector<2x128xf32> -> vector<2x128xf32>
    %c0_254 = arith.constant 0 : index
    %c0_255 = arith.constant 0 : index
    %318 = vector.load %arg111[%c0_254, %c0_255] : memref<1x128xf32, #tpu.memory_space<vmem>>, vector<1x128xf32>
    %319 = vector.broadcast %318 : vector<1x128xf32> to vector<2x128xf32>
    %320 = arith.addf %317, %319 : vector<2x128xf32>
    %321 = arith.truncf %306 : vector<2x256xf32> to vector<2x256xbf16>
    %c0_256 = arith.constant 0 : index
    %c0_257 = arith.constant 0 : index
    %322 = vector.load %arg112[%c0_256, %c0_257] : memref<256x128xbf16, #tpu.memory_space<vmem>>, vector<256x128xbf16>
    %cst_258 = arith.constant dense<0.000000e+00> : vector<2x128xf32>
    %323 = tpu.matmul %321, %322, %cst_258 {dimension_numbers = #tpu.dot_dimension_numbers<[1], [0], [0], [1], [0, 0, 1, 1], [], []>} : vector<2x256xbf16>, vector<256x128xbf16>, vector<2x128xf32> -> vector<2x128xf32>
    %c0_259 = arith.constant 0 : index
    %c0_260 = arith.constant 0 : index
    %324 = vector.load %arg113[%c0_259, %c0_260] : memref<1x128xf32, #tpu.memory_space<vmem>>, vector<1x128xf32>
    %325 = vector.broadcast %324 : vector<1x128xf32> to vector<2x128xf32>
    %326 = arith.addf %323, %325 : vector<2x128xf32>
    %327 = arith.addf %320, %326 : vector<2x128xf32>
    %328 = arith.truncf %327 : vector<2x128xf32> to vector<2x128xbf16>
    %c0_261 = arith.constant 0 : index
    %c0_262 = arith.constant 0 : index
    %329 = vector.load %arg114[%c0_261, %c0_262] : memref<128x64xbf16, #tpu.memory_space<vmem>>, vector<128x64xbf16>
    %cst_263 = arith.constant dense<0.000000e+00> : vector<2x64xf32>
    %330 = tpu.matmul %328, %329, %cst_263 {dimension_numbers = #tpu.dot_dimension_numbers<[1], [0], [0], [1], [0, 0, 1, 1], [], []>} : vector<2x128xbf16>, vector<128x64xbf16>, vector<2x64xf32> -> vector<2x64xf32>
    %c0_264 = arith.constant 0 : index
    %c0_265 = arith.constant 0 : index
    %331 = vector.load %arg115[%c0_264, %c0_265] : memref<1x64xf32, #tpu.memory_space<vmem>>, vector<1x64xf32>
    %332 = vector.broadcast %331 : vector<1x64xf32> to vector<2x64xf32>
    %333 = arith.addf %330, %332 : vector<2x64xf32>
    %cst_266 = arith.constant 0.000000e+00 : f32
    %334 = vector.broadcast %cst_266 : f32 to vector<2x64xf32>
    %335 = arith.maximumf %333, %334 : vector<2x64xf32>
    %336 = arith.truncf %335 : vector<2x64xf32> to vector<2x64xbf16>
    %c0_267 = arith.constant 0 : index
    %c0_268 = arith.constant 0 : index
    %337 = vector.load %arg116[%c0_267, %c0_268] : memref<64x64xbf16, #tpu.memory_space<vmem>>, vector<64x64xbf16>
    %cst_269 = arith.constant dense<0.000000e+00> : vector<2x64xf32>
    %338 = tpu.matmul %336, %337, %cst_269 {dimension_numbers = #tpu.dot_dimension_numbers<[1], [0], [0], [1], [0, 0, 1, 1], [], []>} : vector<2x64xbf16>, vector<64x64xbf16>, vector<2x64xf32> -> vector<2x64xf32>
    %c0_270 = arith.constant 0 : index
    %c0_271 = arith.constant 0 : index
    %339 = vector.load %arg117[%c0_270, %c0_271] : memref<1x64xf32, #tpu.memory_space<vmem>>, vector<1x64xf32>
    %340 = vector.broadcast %339 : vector<1x64xf32> to vector<2x64xf32>
    %341 = arith.addf %338, %340 : vector<2x64xf32>
    %342 = arith.truncf %327 : vector<2x128xf32> to vector<2x128xbf16>
    %c0_272 = arith.constant 0 : index
    %c0_273 = arith.constant 0 : index
    %343 = vector.load %arg118[%c0_272, %c0_273] : memref<128x64xbf16, #tpu.memory_space<vmem>>, vector<128x64xbf16>
    %cst_274 = arith.constant dense<0.000000e+00> : vector<2x64xf32>
    %344 = tpu.matmul %342, %343, %cst_274 {dimension_numbers = #tpu.dot_dimension_numbers<[1], [0], [0], [1], [0, 0, 1, 1], [], []>} : vector<2x128xbf16>, vector<128x64xbf16>, vector<2x64xf32> -> vector<2x64xf32>
    %c0_275 = arith.constant 0 : index
    %c0_276 = arith.constant 0 : index
    %345 = vector.load %arg119[%c0_275, %c0_276] : memref<1x64xf32, #tpu.memory_space<vmem>>, vector<1x64xf32>
    %346 = vector.broadcast %345 : vector<1x64xf32> to vector<2x64xf32>
    %347 = arith.addf %344, %346 : vector<2x64xf32>
    %348 = arith.addf %341, %347 : vector<2x64xf32>
    %349 = arith.truncf %348 : vector<2x64xf32> to vector<2x64xbf16>
    %c0_277 = arith.constant 0 : index
    %c0_278 = arith.constant 0 : index
    %350 = vector.load %arg120[%c0_277, %c0_278] : memref<64x96xbf16, #tpu.memory_space<vmem>>, vector<64x96xbf16>
    %cst_279 = arith.constant dense<0.000000e+00> : vector<2x96xf32>
    %351 = tpu.matmul %349, %350, %cst_279 {dimension_numbers = #tpu.dot_dimension_numbers<[1], [0], [0], [1], [0, 0, 1, 1], [], []>} : vector<2x64xbf16>, vector<64x96xbf16>, vector<2x96xf32> -> vector<2x96xf32>
    %c0_280 = arith.constant 0 : index
    %c0_281 = arith.constant 0 : index
    %352 = vector.load %arg121[%c0_280, %c0_281] : memref<1x96xf32, #tpu.memory_space<vmem>>, vector<1x96xf32>
    %353 = vector.broadcast %352 : vector<1x96xf32> to vector<2x96xf32>
    %354 = arith.addf %351, %353 : vector<2x96xf32>
    %cst_282 = arith.constant 0.000000e+00 : f32
    %355 = vector.broadcast %cst_282 : f32 to vector<2x96xf32>
    %356 = arith.maximumf %354, %355 : vector<2x96xf32>
    %357 = arith.truncf %356 : vector<2x96xf32> to vector<2x96xbf16>
    %c0_283 = arith.constant 0 : index
    %c0_284 = arith.constant 0 : index
    %358 = vector.load %arg122[%c0_283, %c0_284] : memref<96x96xbf16, #tpu.memory_space<vmem>>, vector<96x96xbf16>
    %cst_285 = arith.constant dense<0.000000e+00> : vector<2x96xf32>
    %359 = tpu.matmul %357, %358, %cst_285 {dimension_numbers = #tpu.dot_dimension_numbers<[1], [0], [0], [1], [0, 0, 1, 1], [], []>} : vector<2x96xbf16>, vector<96x96xbf16>, vector<2x96xf32> -> vector<2x96xf32>
    %c0_286 = arith.constant 0 : index
    %c0_287 = arith.constant 0 : index
    %360 = vector.load %arg123[%c0_286, %c0_287] : memref<1x96xf32, #tpu.memory_space<vmem>>, vector<1x96xf32>
    %361 = vector.broadcast %360 : vector<1x96xf32> to vector<2x96xf32>
    %362 = arith.addf %359, %361 : vector<2x96xf32>
    %363 = arith.truncf %348 : vector<2x64xf32> to vector<2x64xbf16>
    %c0_288 = arith.constant 0 : index
    %c0_289 = arith.constant 0 : index
    %364 = vector.load %arg124[%c0_288, %c0_289] : memref<64x96xbf16, #tpu.memory_space<vmem>>, vector<64x96xbf16>
    %cst_290 = arith.constant dense<0.000000e+00> : vector<2x96xf32>
    %365 = tpu.matmul %363, %364, %cst_290 {dimension_numbers = #tpu.dot_dimension_numbers<[1], [0], [0], [1], [0, 0, 1, 1], [], []>} : vector<2x64xbf16>, vector<64x96xbf16>, vector<2x96xf32> -> vector<2x96xf32>
    %c0_291 = arith.constant 0 : index
    %c0_292 = arith.constant 0 : index
    %366 = vector.load %arg125[%c0_291, %c0_292] : memref<1x96xf32, #tpu.memory_space<vmem>>, vector<1x96xf32>
    %367 = vector.broadcast %366 : vector<1x96xf32> to vector<2x96xf32>
    %368 = arith.addf %365, %367 : vector<2x96xf32>
    %369 = arith.addf %362, %368 : vector<2x96xf32>
    %c0_293 = arith.constant 0 : index
    %c0_294 = arith.constant 0 : index
    %370 = vector.load %arg13[%c0_293, %c0_294] : memref<16x2xbf16, #tpu.memory_space<vmem>>, vector<16x2xbf16>
    %371 = arith.truncf %369 : vector<2x96xf32> to vector<2x96xbf16>
    %cst_295 = arith.constant dense<0.000000e+00> : vector<16x96xf32>
    %372 = tpu.matmul %370, %371, %cst_295 {dimension_numbers = #tpu.dot_dimension_numbers<[1], [0], [0], [1], [0, 0, 1, 1], [], []>} : vector<16x2xbf16>, vector<2x96xbf16>, vector<16x96xf32> -> vector<16x96xf32>
    %373 = arith.truncf %372 : vector<16x96xf32> to vector<16x96xbf16>
    %c0_296 = arith.constant 0 : index
    %c0_297 = arith.constant 0 : index
    %374 = vector.load %arg7[%c0_296, %c0_297] : memref<96x128xbf16, #tpu.memory_space<vmem>>, vector<96x128xbf16>
    %cst_298 = arith.constant dense<0.000000e+00> : vector<16x128xf32>
    %375 = tpu.matmul %373, %374, %cst_298 {dimension_numbers = #tpu.dot_dimension_numbers<[1], [0], [0], [1], [0, 0, 1, 1], [], []>} : vector<16x96xbf16>, vector<96x128xbf16>, vector<16x128xf32> -> vector<16x128xf32>
    %376 = arith.truncf %227 : vector<16x32xf32> to vector<16x32xbf16>
    %c0_299 = arith.constant 0 : index
    %c0_300 = arith.constant 0 : index
    %377 = vector.load %arg6[%c0_299, %c0_300] : memref<32x128xbf16, #tpu.memory_space<vmem>>, vector<32x128xbf16>
    %cst_301 = arith.constant dense<0.000000e+00> : vector<16x128xf32>
    %378 = tpu.matmul %376, %377, %cst_301 {dimension_numbers = #tpu.dot_dimension_numbers<[1], [0], [0], [1], [0, 0, 1, 1], [], []>} : vector<16x32xbf16>, vector<32x128xbf16>, vector<16x128xf32> -> vector<16x128xf32>
    %379 = arith.addf %375, %378 : vector<16x128xf32>
    %380 = arith.truncf %379 : vector<16x128xf32> to vector<16x128xbf16>
    %c0_302 = arith.constant 0 : index
    %c0_303 = arith.constant 0 : index
    %381 = vector.load %arg72[%c0_302, %c0_303] : memref<128x128xbf16, #tpu.memory_space<vmem>>, vector<128x128xbf16>
    %cst_304 = arith.constant dense<0.000000e+00> : vector<16x128xf32>
    %382 = tpu.matmul %380, %381, %cst_304 {dimension_numbers = #tpu.dot_dimension_numbers<[1], [0], [0], [1], [0, 0, 1, 1], [], []>} : vector<16x128xbf16>, vector<128x128xbf16>, vector<16x128xf32> -> vector<16x128xf32>
    %c0_305 = arith.constant 0 : index
    %c0_306 = arith.constant 0 : index
    %383 = vector.load %arg73[%c0_305, %c0_306] : memref<1x128xf32, #tpu.memory_space<vmem>>, vector<1x128xf32>
    %384 = vector.broadcast %383 : vector<1x128xf32> to vector<16x128xf32>
    %385 = arith.addf %382, %384 : vector<16x128xf32>
    %cst_307 = arith.constant 0.000000e+00 : f32
    %386 = vector.broadcast %cst_307 : f32 to vector<16x128xf32>
    %387 = arith.maximumf %385, %386 : vector<16x128xf32>
    %388 = arith.truncf %387 : vector<16x128xf32> to vector<16x128xbf16>
    %c0_308 = arith.constant 0 : index
    %c0_309 = arith.constant 0 : index
    %389 = vector.load %arg74[%c0_308, %c0_309] : memref<128x128xbf16, #tpu.memory_space<vmem>>, vector<128x128xbf16>
    %cst_310 = arith.constant dense<0.000000e+00> : vector<16x128xf32>
    %390 = tpu.matmul %388, %389, %cst_310 {dimension_numbers = #tpu.dot_dimension_numbers<[1], [0], [0], [1], [0, 0, 1, 1], [], []>} : vector<16x128xbf16>, vector<128x128xbf16>, vector<16x128xf32> -> vector<16x128xf32>
    %c0_311 = arith.constant 0 : index
    %c0_312 = arith.constant 0 : index
    %391 = vector.load %arg75[%c0_311, %c0_312] : memref<1x128xf32, #tpu.memory_space<vmem>>, vector<1x128xf32>
    %392 = vector.broadcast %391 : vector<1x128xf32> to vector<16x128xf32>
    %393 = arith.addf %390, %392 : vector<16x128xf32>
    %394 = arith.addf %393, %379 : vector<16x128xf32>
    %395 = arith.truncf %394 : vector<16x128xf32> to vector<16x128xbf16>
    %c0_313 = arith.constant 0 : index
    %c0_314 = arith.constant 0 : index
    %396 = vector.load %arg76[%c0_313, %c0_314] : memref<128x128xbf16, #tpu.memory_space<vmem>>, vector<128x128xbf16>
    %cst_315 = arith.constant dense<0.000000e+00> : vector<16x128xf32>
    %397 = tpu.matmul %395, %396, %cst_315 {dimension_numbers = #tpu.dot_dimension_numbers<[1], [0], [0], [1], [0, 0, 1, 1], [], []>} : vector<16x128xbf16>, vector<128x128xbf16>, vector<16x128xf32> -> vector<16x128xf32>
    %c0_316 = arith.constant 0 : index
    %c0_317 = arith.constant 0 : index
    %398 = vector.load %arg77[%c0_316, %c0_317] : memref<1x128xf32, #tpu.memory_space<vmem>>, vector<1x128xf32>
    %399 = vector.broadcast %398 : vector<1x128xf32> to vector<16x128xf32>
    %400 = arith.addf %397, %399 : vector<16x128xf32>
    %cst_318 = arith.constant 0.000000e+00 : f32
    %401 = vector.broadcast %cst_318 : f32 to vector<16x128xf32>
    %402 = arith.maximumf %400, %401 : vector<16x128xf32>
    %403 = arith.truncf %402 : vector<16x128xf32> to vector<16x128xbf16>
    %c0_319 = arith.constant 0 : index
    %c0_320 = arith.constant 0 : index
    %404 = vector.load %arg78[%c0_319, %c0_320] : memref<128x128xbf16, #tpu.memory_space<vmem>>, vector<128x128xbf16>
    %cst_321 = arith.constant dense<0.000000e+00> : vector<16x128xf32>
    %405 = tpu.matmul %403, %404, %cst_321 {dimension_numbers = #tpu.dot_dimension_numbers<[1], [0], [0], [1], [0, 0, 1, 1], [], []>} : vector<16x128xbf16>, vector<128x128xbf16>, vector<16x128xf32> -> vector<16x128xf32>
    %c0_322 = arith.constant 0 : index
    %c0_323 = arith.constant 0 : index
    %406 = vector.load %arg79[%c0_322, %c0_323] : memref<1x128xf32, #tpu.memory_space<vmem>>, vector<1x128xf32>
    %407 = vector.broadcast %406 : vector<1x128xf32> to vector<16x128xf32>
    %408 = arith.addf %405, %407 : vector<16x128xf32>
    %409 = arith.addf %408, %394 : vector<16x128xf32>
    %410 = arith.truncf %409 : vector<16x128xf32> to vector<16x128xbf16>
    %c0_324 = arith.constant 0 : index
    %c0_325 = arith.constant 0 : index
    %411 = vector.load %arg80[%c0_324, %c0_325] : memref<128x64xbf16, #tpu.memory_space<vmem>>, vector<128x64xbf16>
    %cst_326 = arith.constant dense<0.000000e+00> : vector<16x64xf32>
    %412 = tpu.matmul %410, %411, %cst_326 {dimension_numbers = #tpu.dot_dimension_numbers<[1], [0], [0], [1], [0, 0, 1, 1], [], []>} : vector<16x128xbf16>, vector<128x64xbf16>, vector<16x64xf32> -> vector<16x64xf32>
    %c0_327 = arith.constant 0 : index
    %c0_328 = arith.constant 0 : index
    %413 = vector.load %arg81[%c0_327, %c0_328] : memref<1x64xf32, #tpu.memory_space<vmem>>, vector<1x64xf32>
    %414 = vector.broadcast %413 : vector<1x64xf32> to vector<16x64xf32>
    %415 = arith.addf %412, %414 : vector<16x64xf32>
    %cst_329 = arith.constant 0.000000e+00 : f32
    %416 = vector.broadcast %cst_329 : f32 to vector<16x64xf32>
    %417 = arith.maximumf %415, %416 : vector<16x64xf32>
    %418 = arith.truncf %417 : vector<16x64xf32> to vector<16x64xbf16>
    %c0_330 = arith.constant 0 : index
    %c0_331 = arith.constant 0 : index
    %419 = vector.load %arg82[%c0_330, %c0_331] : memref<64x64xbf16, #tpu.memory_space<vmem>>, vector<64x64xbf16>
    %cst_332 = arith.constant dense<0.000000e+00> : vector<16x64xf32>
    %420 = tpu.matmul %418, %419, %cst_332 {dimension_numbers = #tpu.dot_dimension_numbers<[1], [0], [0], [1], [0, 0, 1, 1], [], []>} : vector<16x64xbf16>, vector<64x64xbf16>, vector<16x64xf32> -> vector<16x64xf32>
    %c0_333 = arith.constant 0 : index
    %c0_334 = arith.constant 0 : index
    %421 = vector.load %arg83[%c0_333, %c0_334] : memref<1x64xf32, #tpu.memory_space<vmem>>, vector<1x64xf32>
    %422 = vector.broadcast %421 : vector<1x64xf32> to vector<16x64xf32>
    %423 = arith.addf %420, %422 : vector<16x64xf32>
    %424 = arith.truncf %409 : vector<16x128xf32> to vector<16x128xbf16>
    %c0_335 = arith.constant 0 : index
    %c0_336 = arith.constant 0 : index
    %425 = vector.load %arg84[%c0_335, %c0_336] : memref<128x64xbf16, #tpu.memory_space<vmem>>, vector<128x64xbf16>
    %cst_337 = arith.constant dense<0.000000e+00> : vector<16x64xf32>
    %426 = tpu.matmul %424, %425, %cst_337 {dimension_numbers = #tpu.dot_dimension_numbers<[1], [0], [0], [1], [0, 0, 1, 1], [], []>} : vector<16x128xbf16>, vector<128x64xbf16>, vector<16x64xf32> -> vector<16x64xf32>
    %c0_338 = arith.constant 0 : index
    %c0_339 = arith.constant 0 : index
    %427 = vector.load %arg85[%c0_338, %c0_339] : memref<1x64xf32, #tpu.memory_space<vmem>>, vector<1x64xf32>
    %428 = vector.broadcast %427 : vector<1x64xf32> to vector<16x64xf32>
    %429 = arith.addf %426, %428 : vector<16x64xf32>
    %430 = arith.addf %423, %429 : vector<16x64xf32>
    %431 = arith.truncf %430 : vector<16x64xf32> to vector<16x64xbf16>
    %c0_340 = arith.constant 0 : index
    %c0_341 = arith.constant 0 : index
    %432 = vector.load %arg86[%c0_340, %c0_341] : memref<64x32xbf16, #tpu.memory_space<vmem>>, vector<64x32xbf16>
    %cst_342 = arith.constant dense<0.000000e+00> : vector<16x32xf32>
    %433 = tpu.matmul %431, %432, %cst_342 {dimension_numbers = #tpu.dot_dimension_numbers<[1], [0], [0], [1], [0, 0, 1, 1], [], []>} : vector<16x64xbf16>, vector<64x32xbf16>, vector<16x32xf32> -> vector<16x32xf32>
    %c0_343 = arith.constant 0 : index
    %c0_344 = arith.constant 0 : index
    %434 = vector.load %arg87[%c0_343, %c0_344] : memref<1x32xf32, #tpu.memory_space<vmem>>, vector<1x32xf32>
    %435 = vector.broadcast %434 : vector<1x32xf32> to vector<16x32xf32>
    %436 = arith.addf %433, %435 : vector<16x32xf32>
    %cst_345 = arith.constant 0.000000e+00 : f32
    %437 = vector.broadcast %cst_345 : f32 to vector<16x32xf32>
    %438 = arith.maximumf %436, %437 : vector<16x32xf32>
    %439 = arith.truncf %438 : vector<16x32xf32> to vector<16x32xbf16>
    %c0_346 = arith.constant 0 : index
    %c0_347 = arith.constant 0 : index
    %440 = vector.load %arg88[%c0_346, %c0_347] : memref<32x32xbf16, #tpu.memory_space<vmem>>, vector<32x32xbf16>
    %cst_348 = arith.constant dense<0.000000e+00> : vector<16x32xf32>
    %441 = tpu.matmul %439, %440, %cst_348 {dimension_numbers = #tpu.dot_dimension_numbers<[1], [0], [0], [1], [0, 0, 1, 1], [], []>} : vector<16x32xbf16>, vector<32x32xbf16>, vector<16x32xf32> -> vector<16x32xf32>
    %c0_349 = arith.constant 0 : index
    %c0_350 = arith.constant 0 : index
    %442 = vector.load %arg89[%c0_349, %c0_350] : memref<1x32xf32, #tpu.memory_space<vmem>>, vector<1x32xf32>
    %443 = vector.broadcast %442 : vector<1x32xf32> to vector<16x32xf32>
    %444 = arith.addf %441, %443 : vector<16x32xf32>
    %445 = arith.truncf %430 : vector<16x64xf32> to vector<16x64xbf16>
    %c0_351 = arith.constant 0 : index
    %c0_352 = arith.constant 0 : index
    %446 = vector.load %arg90[%c0_351, %c0_352] : memref<64x32xbf16, #tpu.memory_space<vmem>>, vector<64x32xbf16>
    %cst_353 = arith.constant dense<0.000000e+00> : vector<16x32xf32>
    %447 = tpu.matmul %445, %446, %cst_353 {dimension_numbers = #tpu.dot_dimension_numbers<[1], [0], [0], [1], [0, 0, 1, 1], [], []>} : vector<16x64xbf16>, vector<64x32xbf16>, vector<16x32xf32> -> vector<16x32xf32>
    %c0_354 = arith.constant 0 : index
    %c0_355 = arith.constant 0 : index
    %448 = vector.load %arg91[%c0_354, %c0_355] : memref<1x32xf32, #tpu.memory_space<vmem>>, vector<1x32xf32>
    %449 = vector.broadcast %448 : vector<1x32xf32> to vector<16x32xf32>
    %450 = arith.addf %447, %449 : vector<16x32xf32>
    %451 = arith.addf %444, %450 : vector<16x32xf32>
    %452 = arith.truncf %451 : vector<16x32xf32> to vector<16x32xbf16>
    %c0_356 = arith.constant 0 : index
    %c0_357 = arith.constant 0 : index
    %453 = vector.load %arg92[%c0_356, %c0_357] : memref<32x16xbf16, #tpu.memory_space<vmem>>, vector<32x16xbf16>
    %cst_358 = arith.constant dense<0.000000e+00> : vector<16x16xf32>
    %454 = tpu.matmul %452, %453, %cst_358 {dimension_numbers = #tpu.dot_dimension_numbers<[1], [0], [0], [1], [0, 0, 1, 1], [], []>} : vector<16x32xbf16>, vector<32x16xbf16>, vector<16x16xf32> -> vector<16x16xf32>
    %c0_359 = arith.constant 0 : index
    %c0_360 = arith.constant 0 : index
    %455 = vector.load %arg93[%c0_359, %c0_360] : memref<1x16xf32, #tpu.memory_space<vmem>>, vector<1x16xf32>
    %456 = vector.broadcast %455 : vector<1x16xf32> to vector<16x16xf32>
    %457 = arith.addf %454, %456 : vector<16x16xf32>
    %cst_361 = arith.constant 0.000000e+00 : f32
    %458 = vector.broadcast %cst_361 : f32 to vector<16x16xf32>
    %459 = arith.maximumf %457, %458 : vector<16x16xf32>
    %460 = arith.truncf %459 : vector<16x16xf32> to vector<16x16xbf16>
    %c0_362 = arith.constant 0 : index
    %c0_363 = arith.constant 0 : index
    %461 = vector.load %arg94[%c0_362, %c0_363] : memref<16x16xbf16, #tpu.memory_space<vmem>>, vector<16x16xbf16>
    %cst_364 = arith.constant dense<0.000000e+00> : vector<16x16xf32>
    %462 = tpu.matmul %460, %461, %cst_364 {dimension_numbers = #tpu.dot_dimension_numbers<[1], [0], [0], [1], [0, 0, 1, 1], [], []>} : vector<16x16xbf16>, vector<16x16xbf16>, vector<16x16xf32> -> vector<16x16xf32>
    %c0_365 = arith.constant 0 : index
    %c0_366 = arith.constant 0 : index
    %463 = vector.load %arg95[%c0_365, %c0_366] : memref<1x16xf32, #tpu.memory_space<vmem>>, vector<1x16xf32>
    %464 = vector.broadcast %463 : vector<1x16xf32> to vector<16x16xf32>
    %465 = arith.addf %462, %464 : vector<16x16xf32>
    %466 = arith.truncf %451 : vector<16x32xf32> to vector<16x32xbf16>
    %c0_367 = arith.constant 0 : index
    %c0_368 = arith.constant 0 : index
    %467 = vector.load %arg96[%c0_367, %c0_368] : memref<32x16xbf16, #tpu.memory_space<vmem>>, vector<32x16xbf16>
    %cst_369 = arith.constant dense<0.000000e+00> : vector<16x16xf32>
    %468 = tpu.matmul %466, %467, %cst_369 {dimension_numbers = #tpu.dot_dimension_numbers<[1], [0], [0], [1], [0, 0, 1, 1], [], []>} : vector<16x32xbf16>, vector<32x16xbf16>, vector<16x16xf32> -> vector<16x16xf32>
    %c0_370 = arith.constant 0 : index
    %c0_371 = arith.constant 0 : index
    %469 = vector.load %arg97[%c0_370, %c0_371] : memref<1x16xf32, #tpu.memory_space<vmem>>, vector<1x16xf32>
    %470 = vector.broadcast %469 : vector<1x16xf32> to vector<16x16xf32>
    %471 = arith.addf %468, %470 : vector<16x16xf32>
    %472 = arith.addf %465, %471 : vector<16x16xf32>
    %473 = arith.truncf %472 : vector<16x16xf32> to vector<16x16xbf16>
    %c0_372 = arith.constant 0 : index
    %c0_373 = arith.constant 0 : index
    %474 = vector.load %arg98[%c0_372, %c0_373] : memref<16x8xbf16, #tpu.memory_space<vmem>>, vector<16x8xbf16>
    %cst_374 = arith.constant dense<0.000000e+00> : vector<16x8xf32>
    %475 = tpu.matmul %473, %474, %cst_374 {dimension_numbers = #tpu.dot_dimension_numbers<[1], [0], [0], [1], [0, 0, 1, 1], [], []>} : vector<16x16xbf16>, vector<16x8xbf16>, vector<16x8xf32> -> vector<16x8xf32>
    %c0_375 = arith.constant 0 : index
    %c0_376 = arith.constant 0 : index
    %476 = vector.load %arg99[%c0_375, %c0_376] : memref<1x8xf32, #tpu.memory_space<vmem>>, vector<1x8xf32>
    %477 = vector.broadcast %476 : vector<1x8xf32> to vector<16x8xf32>
    %478 = arith.addf %475, %477 : vector<16x8xf32>
    %cst_377 = arith.constant 0.000000e+00 : f32
    %479 = vector.broadcast %cst_377 : f32 to vector<16x8xf32>
    %480 = arith.maximumf %478, %479 : vector<16x8xf32>
    %481 = arith.truncf %480 : vector<16x8xf32> to vector<16x8xbf16>
    %c0_378 = arith.constant 0 : index
    %c0_379 = arith.constant 0 : index
    %482 = vector.load %arg100[%c0_378, %c0_379] : memref<8x8xbf16, #tpu.memory_space<vmem>>, vector<8x8xbf16>
    %cst_380 = arith.constant dense<0.000000e+00> : vector<16x8xf32>
    %483 = tpu.matmul %481, %482, %cst_380 {dimension_numbers = #tpu.dot_dimension_numbers<[1], [0], [0], [1], [0, 0, 1, 1], [], []>} : vector<16x8xbf16>, vector<8x8xbf16>, vector<16x8xf32> -> vector<16x8xf32>
    %c0_381 = arith.constant 0 : index
    %c0_382 = arith.constant 0 : index
    %484 = vector.load %arg101[%c0_381, %c0_382] : memref<1x8xf32, #tpu.memory_space<vmem>>, vector<1x8xf32>
    %485 = vector.broadcast %484 : vector<1x8xf32> to vector<16x8xf32>
    %486 = arith.addf %483, %485 : vector<16x8xf32>
    %487 = arith.truncf %472 : vector<16x16xf32> to vector<16x16xbf16>
    %c0_383 = arith.constant 0 : index
    %c0_384 = arith.constant 0 : index
    %488 = vector.load %arg102[%c0_383, %c0_384] : memref<16x8xbf16, #tpu.memory_space<vmem>>, vector<16x8xbf16>
    %cst_385 = arith.constant dense<0.000000e+00> : vector<16x8xf32>
    %489 = tpu.matmul %487, %488, %cst_385 {dimension_numbers = #tpu.dot_dimension_numbers<[1], [0], [0], [1], [0, 0, 1, 1], [], []>} : vector<16x16xbf16>, vector<16x8xbf16>, vector<16x8xf32> -> vector<16x8xf32>
    %c0_386 = arith.constant 0 : index
    %c0_387 = arith.constant 0 : index
    %490 = vector.load %arg103[%c0_386, %c0_387] : memref<1x8xf32, #tpu.memory_space<vmem>>, vector<1x8xf32>
    %491 = vector.broadcast %490 : vector<1x8xf32> to vector<16x8xf32>
    %492 = arith.addf %489, %491 : vector<16x8xf32>
    %493 = arith.addf %486, %492 : vector<16x8xf32>
    %c0_388 = arith.constant 0 : index
    %c0_389 = arith.constant 0 : index
    %494 = vector.load %arg126[%c0_388, %c0_389] : memref<16x8xf32, #tpu.memory_space<vmem>>, vector<16x8xf32>
    tpu.vector_store %arg126[%c0_388, %c0_389], %493 {strides = array<i32>} : memref<16x8xf32, #tpu.memory_space<vmem>>, vector<16x8xf32>,
    %c0_390 = arith.constant 0 : index
    %c0_391 = arith.constant 0 : index
    %495 = vector.load %arg127[%c0_390, %c0_391] : memref<16x32xf32, #tpu.memory_space<vmem>>, vector<16x32xf32>
    tpu.vector_store %arg127[%c0_390, %c0_391], %141 {strides = array<i32>} : memref<16x32xf32, #tpu.memory_space<vmem>>, vector<16x32xf32>,
    %c0_392 = arith.constant 0 : index
    %c0_393 = arith.constant 0 : index
    %496 = vector.load %arg128[%c0_392, %c0_393] : memref<16x32xf32, #tpu.memory_space<vmem>>, vector<16x32xf32>
    tpu.vector_store %arg128[%c0_392, %c0_393], %227 {strides = array<i32>} : memref<16x32xf32, #tpu.memory_space<vmem>>, vector<16x32xf32>,
    return
  }
}

</mosaic_0001>

<llo_original>
// kernel: base_horse_race_predictor_forward.1
$region0: #{base_horse_race_predictor_forward.1}
  #allocation0 [shape = 'u32[]', space=smem, size = 0x4, offset = 0x4, fixed_abs, tag = 'smem constant byte address 0x4 - core index']
  #allocation1 [shape = 'u32[144,128]{1,0:T(1,128)}', space=vmem, size = 0x12000, scoped, tag = 'internal scratch']
  %s0 = inlined_call_operand.smem [shape: u32[129], index: -1, kind: input, shape index: {}]
  %s1 = sld [smem:[%s0]]
  %s2 = scalar_lea.smem %s0, 1
  %s3 = sld [smem:[%s2]]
  %s4 = scalar_lea.smem %s0, 2
  %s5 = sld [smem:[%s4]]
  %s6 = scalar_lea.smem %s0, 3
  %s7 = sld [smem:[%s6]]
  %s8 = scalar_lea.smem %s0, 4
  %s9 = sld [smem:[%s8]]
  %s10 = scalar_lea.smem %s0, 5
  %s11 = sld [smem:[%s10]]
  %s12 = scalar_lea.smem %s0, 6
  %s13 = sld [smem:[%s12]]
  %s14 = scalar_lea.smem %s0, 7
  %s15 = sld [smem:[%s14]]
  %s16 = scalar_lea.smem %s0, 8
  %s17 = sld [smem:[%s16]]
  %s18 = scalar_lea.smem %s0, 9
  %s19 = sld [smem:[%s18]]
  %s20 = scalar_lea.smem %s0, 10
  %s21 = sld [smem:[%s20]]
  %s22 = scalar_lea.smem %s0, 11
  %s23 = sld [smem:[%s22]]
  %s24 = scalar_lea.smem %s0, 12
  %s25 = sld [smem:[%s24]]
  %s26 = scalar_lea.smem %s0, 13
  %s27 = sld [smem:[%s26]]
  %s28 = scalar_lea.smem %s0, 14
  %s29 = sld [smem:[%s28]]
  %s30 = scalar_lea.smem %s0, 15
  %s31 = sld [smem:[%s30]]
  %s32 = scalar_lea.smem %s0, 16
  %s33 = sld [smem:[%s32]]
  %s34 = scalar_lea.smem %s0, 17
  %s35 = sld [smem:[%s34]]
  %s36 = scalar_lea.smem %s0, 18
  %s37 = sld [smem:[%s36]]
  %s38 = scalar_lea.smem %s0, 19
  %s39 = sld [smem:[%s38]]
  %s40 = scalar_lea.smem %s0, 20
  %s41 = sld [smem:[%s40]]
  %s42 = scalar_lea.smem %s0, 21
  %s43 = sld [smem:[%s42]]
  %s44 = scalar_lea.smem %s0, 22
  %s45 = sld [smem:[%s44]]
  %s46 = scalar_lea.smem %s0, 23
  %s47 = sld [smem:[%s46]]
  %s48 = scalar_lea.smem %s0, 24
  %s49 = sld [smem:[%s48]]
  %s50 = scalar_lea.smem %s0, 25
  %s51 = sld [smem:[%s50]]
  %s52 = scalar_lea.smem %s0, 26
  %s53 = sld [smem:[%s52]]
  %s54 = scalar_lea.smem %s0, 27
  %s55 = sld [smem:[%s54]]
  %s56 = scalar_lea.smem %s0, 28
  %s57 = sld [smem:[%s56]]
  %s58 = scalar_lea.smem %s0, 29
  %s59 = sld [smem:[%s58]]
  %s60 = scalar_lea.smem %s0, 30
  %s61 = sld [smem:[%s60]]
  %s62 = scalar_lea.smem %s0, 31
  %s63 = sld [smem:[%s62]]
  %s64 = scalar_lea.smem %s0, 32
  %s65 = sld [smem:[%s64]]
  %s66 = scalar_lea.smem %s0, 33
  %s67 = sld [smem:[%s66]]
  %s68 = scalar_lea.smem %s0, 34
  %s69 = sld [smem:[%s68]]
  %s70 = scalar_lea.smem %s0, 35
  %s71 = sld [smem:[%s70]]
  %s72 = scalar_lea.smem %s0, 36
  %s73 = sld [smem:[%s72]]
  %s74 = scalar_lea.smem %s0, 37
  %s75 = sld [smem:[%s74]]
  %s76 = scalar_lea.smem %s0, 38
  %s77 = sld [smem:[%s76]]
  %s78 = scalar_lea.smem %s0, 39
  %s79 = sld [smem:[%s78]]
  %s80 = scalar_lea.smem %s0, 40
  %s81 = sld [smem:[%s80]]
  %s82 = scalar_lea.smem %s0, 41
  %s83 = sld [smem:[%s82]]
  %s84 = scalar_lea.smem %s0, 42
  %s85 = sld [smem:[%s84]]
  %s86 = scalar_lea.smem %s0, 43
  %s87 = sld [smem:[%s86]]
  %s88 = scalar_lea.smem %s0, 44
  %s89 = sld [smem:[%s88]]
  %s90 = scalar_lea.smem %s0, 45
  %s91 = sld [smem:[%s90]]
  %s92 = scalar_lea.smem %s0, 46
  %s93 = sld [smem:[%s92]]
  %s94 = scalar_lea.smem %s0, 47
  %s95 = sld [smem:[%s94]]
  %s96 = scalar_lea.smem %s0, 48
  %s97 = sld [smem:[%s96]]
  %s98 = scalar_lea.smem %s0, 49
  %s99 = sld [smem:[%s98]]
  %s100 = scalar_lea.smem %s0, 50
  %s101 = sld [smem:[%s100]]
  %s102 = scalar_lea.smem %s0, 51
  %s103 = sld [smem:[%s102]]
  %s104 = scalar_lea.smem %s0, 52
  %s105 = sld [smem:[%s104]]
  %s106 = scalar_lea.smem %s0, 53
  %s107 = sld [smem:[%s106]]
  %s108 = scalar_lea.smem %s0, 54
  %s109 = sld [smem:[%s108]]
  %s110 = scalar_lea.smem %s0, 55
  %s111 = sld [smem:[%s110]]
  %s112 = scalar_lea.smem %s0, 56
  %s113 = sld [smem:[%s112]]
  %s114 = scalar_lea.smem %s0, 57
  %s115 = sld [smem:[%s114]]
  %s116 = scalar_lea.smem %s0, 58
  %s117 = sld [smem:[%s116]]
  %s118 = scalar_lea.smem %s0, 59
  %s119 = sld [smem:[%s118]]
  %s120 = scalar_lea.smem %s0, 60
  %s121 = sld [smem:[%s120]]
  %s122 = scalar_lea.smem %s0, 61
  %s123 = sld [smem:[%s122]]
  %s124 = scalar_lea.smem %s0, 62
  %s125 = sld [smem:[%s124]]
  %s126 = scalar_lea.smem %s0, 63
  %s127 = sld [smem:[%s126]]
  %s128 = scalar_lea.smem %s0, 64
  %s129 = sld [smem:[%s128]]
  %s130 = scalar_lea.smem %s0, 65
  %s131 = sld [smem:[%s130]]
  %s132 = scalar_lea.smem %s0, 66
  %s133 = sld [smem:[%s132]]
  %s134 = scalar_lea.smem %s0, 67
  %s135 = sld [smem:[%s134]]
  %s136 = scalar_lea.smem %s0, 68
  %s137 = sld [smem:[%s136]]
  %s138 = scalar_lea.smem %s0, 69
  %s139 = sld [smem:[%s138]]
  %s140 = scalar_lea.smem %s0, 70
  %s141 = sld [smem:[%s140]]
  %s142 = scalar_lea.smem %s0, 71
  %s143 = sld [smem:[%s142]]
  %s144 = scalar_lea.smem %s0, 72
  %s145 = sld [smem:[%s144]]
  %s146 = scalar_lea.smem %s0, 73
  %s147 = sld [smem:[%s146]]
  %s148 = scalar_lea.smem %s0, 74
  %s149 = sld [smem:[%s148]]
  %s150 = scalar_lea.smem %s0, 75
  %s151 = sld [smem:[%s150]]
  %s152 = scalar_lea.smem %s0, 76
  %s153 = sld [smem:[%s152]]
  %s154 = scalar_lea.smem %s0, 77
  %s155 = sld [smem:[%s154]]
  %s156 = scalar_lea.smem %s0, 78
  %s157 = sld [smem:[%s156]]
  %s158 = scalar_lea.smem %s0, 79
  %s159 = sld [smem:[%s158]]
  %s160 = scalar_lea.smem %s0, 80
  %s161 = sld [smem:[%s160]]
  %s162 = scalar_lea.smem %s0, 81
  %s163 = sld [smem:[%s162]]
  %s164 = scalar_lea.smem %s0, 82
  %s165 = sld [smem:[%s164]]
  %s166 = scalar_lea.smem %s0, 83
  %s167 = sld [smem:[%s166]]
  %s168 = scalar_lea.smem %s0, 84
  %s169 = sld [smem:[%s168]]
  %s170 = scalar_lea.smem %s0, 85
  %s171 = sld [smem:[%s170]]
  %s172 = scalar_lea.smem %s0, 86
  %s173 = sld [smem:[%s172]]
  %s174 = scalar_lea.smem %s0, 87
  %s175 = sld [smem:[%s174]]
  %s176 = scalar_lea.smem %s0, 88
  %s177 = sld [smem:[%s176]]
  %s178 = scalar_lea.smem %s0, 89
  %s179 = sld [smem:[%s178]]
  %s180 = scalar_lea.smem %s0, 90
  %s181 = sld [smem:[%s180]]
  %s182 = scalar_lea.smem %s0, 91
  %s183 = sld [smem:[%s182]]
  %s184 = scalar_lea.smem %s0, 92
  %s185 = sld [smem:[%s184]]
  %s186 = scalar_lea.smem %s0, 93
  %s187 = sld [smem:[%s186]]
  %s188 = scalar_lea.smem %s0, 94
  %s189 = sld [smem:[%s188]]
  %s190 = scalar_lea.smem %s0, 95
  %s191 = sld [smem:[%s190]]
  %s192 = scalar_lea.smem %s0, 96
  %s193 = sld [smem:[%s192]]
  %s194 = scalar_lea.smem %s0, 97
  %s195 = sld [smem:[%s194]]
  %s196 = scalar_lea.smem %s0, 98
  %s197 = sld [smem:[%s196]]
  %s198 = scalar_lea.smem %s0, 99
  %s199 = sld [smem:[%s198]]
  %s200 = scalar_lea.smem %s0, 100
  %s201 = sld [smem:[%s200]]
  %s202 = scalar_lea.smem %s0, 101
  %s203 = sld [smem:[%s202]]
  %s204 = scalar_lea.smem %s0, 102
  %s205 = sld [smem:[%s204]]
  %s206 = scalar_lea.smem %s0, 103
  %s207 = sld [smem:[%s206]]
  %s208 = scalar_lea.smem %s0, 104
  %s209 = sld [smem:[%s208]]
  %s210 = scalar_lea.smem %s0, 105
  %s211 = sld [smem:[%s210]]
  %s212 = scalar_lea.smem %s0, 106
  %s213 = sld [smem:[%s212]]
  %s214 = scalar_lea.smem %s0, 107
  %s215 = sld [smem:[%s214]]
  %s216 = scalar_lea.smem %s0, 108
  %s217 = sld [smem:[%s216]]
  %s218 = scalar_lea.smem %s0, 109
  %s219 = sld [smem:[%s218]]
  %s220 = scalar_lea.smem %s0, 110
  %s221 = sld [smem:[%s220]]
  %s222 = scalar_lea.smem %s0, 111
  %s223 = sld [smem:[%s222]]
  %s224 = scalar_lea.smem %s0, 112
  %s225 = sld [smem:[%s224]]
  %s226 = scalar_lea.smem %s0, 113
  %s227 = sld [smem:[%s226]]
  %s228 = scalar_lea.smem %s0, 114
  %s229 = sld [smem:[%s228]]
  %s230 = scalar_lea.smem %s0, 115
  %s231 = sld [smem:[%s230]]
  %s232 = scalar_lea.smem %s0, 116
  %s233 = sld [smem:[%s232]]
  %s234 = scalar_lea.smem %s0, 117
  %s235 = sld [smem:[%s234]]
  %s236 = scalar_lea.smem %s0, 118
  %s237 = sld [smem:[%s236]]
  %s238 = scalar_lea.smem %s0, 119
  %s239 = sld [smem:[%s238]]
  %s240 = scalar_lea.smem %s0, 120
  %s241 = sld [smem:[%s240]]
  %s242 = scalar_lea.smem %s0, 121
  %s243 = sld [smem:[%s242]]
  %s244 = scalar_lea.smem %s0, 122
  %s245 = sld [smem:[%s244]]
  %s246 = scalar_lea.smem %s0, 123
  %s247 = sld [smem:[%s246]]
  %s248 = scalar_lea.smem %s0, 124
  %s249 = sld [smem:[%s248]]
  %s250 = scalar_lea.smem %s0, 125
  %s251 = sld [smem:[%s250]]
  %s252 = scalar_lea.smem %s0, 126
  %s253 = sld [smem:[%s252]]
  %s254 = scalar_lea.smem %s0, 127
  %s255 = sld [smem:[%s254]]
  %s256 = scalar_lea.smem %s0, 128
  %s257 = sld [smem:[%s256]]
  %258 = xla_tuple %s253, %s255, %s257
  %s259 = sld [smem:[#allocation0]]
  $region946: #{base_horse_race_predictor_forward.1} parent=0
    _
  %s261 = ssub.s32 1, %s259
  %s262 = scalar_select 0, %s261, %s259
  $region1: #{base_horse_race_predictor_forward.1} parent=0
    #allocation2 [shape = 'u8[8192]{0}', space=vmem, size = 0x2000, scoped, tag = 'input window, operand 0, single buffered']
    #allocation3 [shape = 's32[1]{0}', space=sflag, size = 0x4, scoped, tag = 'scoped memory for base_horse_race_predictor_forward.1']
    #allocation4 [shape = 's32[1]{0}', space=sflag, size = 0x4, scoped, tag = 'scoped memory for base_horse_race_predictor_forward.1']
    #allocation5 [shape = 'u8[8192]{0}', space=vmem, size = 0x2000, scoped, tag = 'input window, operand 1, single buffered']
    #allocation6 [shape = 's32[1]{0}', space=sflag, size = 0x4, scoped, tag = 'scoped memory for base_horse_race_predictor_forward.1']
    #allocation7 [shape = 'u8[8192]{0}', space=vmem, size = 0x2000, scoped, tag = 'input window, operand 2, single buffered']
    #allocation8 [shape = 'u8[8192]{0}', space=vmem, size = 0x2000, scoped, tag = 'input window, operand 3, single buffered']
    #allocation9 [shape = 's32[1]{0}', space=sflag, size = 0x4, scoped, tag = 'scoped memory for base_horse_race_predictor_forward.1']
    #allocation10 [shape = 'u8[4096]{0}', space=vmem, size = 0x1000, scoped, tag = 'input window, operand 18, single buffered']
    #allocation11 [shape = 'u8[512]{0}', space=vmem, size = 0x400, scoped, tag = 'input window, operand 19, single buffered']
    #allocation12 [shape = 's32[1]{0}', space=sflag, size = 0x4, scoped, tag = 'scoped memory for base_horse_race_predictor_forward.1']
    #allocation13 [shape = 'u8[512]{0}', space=vmem, size = 0x400, scoped, tag = 'input window, operand 21, single buffered']
    #allocation14 [shape = 'u8[512]{0}', space=vmem, size = 0x400, scoped, tag = 'input window, operand 23, single buffered']
    #allocation15 [shape = 's32[1]{0}', space=sflag, size = 0x4, scoped, tag = 'scoped memory for base_horse_race_predictor_forward.1']
    #allocation16 [shape = 'u8[18432]{0}', space=vmem, size = 0x4800, scoped, tag = 'input window, operand 24, single buffered']
    #allocation17 [shape = 'u8[512]{0}', space=vmem, size = 0x400, scoped, tag = 'input window, operand 25, single buffered']
    #allocation18 [shape = 's32[1]{0}', space=sflag, size = 0x4, scoped, tag = 'scoped memory for base_horse_race_predictor_forward.1']
    #allocation19 [shape = 'u8[18432]{0}', space=vmem, size = 0x4800, scoped, tag = 'input window, operand 26, single buffered']
    #allocation20 [shape = 'u8[512]{0}', space=vmem, size = 0x400, scoped, tag = 'input window, operand 27, single buffered']
    #allocation21 [shape = 's32[1]{0}', space=sflag, size = 0x4, scoped, tag = 'scoped memory for base_horse_race_predictor_forward.1']
    #allocation22 [shape = 'u8[512]{0}', space=vmem, size = 0x400, scoped, tag = 'input window, operand 29, single buffered']
    #allocation23 [shape = 'u8[18432]{0}', space=vmem, size = 0x4800, scoped, tag = 'input window, operand 30, single buffered']
    #allocation24 [shape = 's32[1]{0}', space=sflag, size = 0x4, scoped, tag = 'scoped memory for base_horse_race_predictor_forward.1']
    #allocation25 [shape = 'u8[512]{0}', space=vmem, size = 0x400, scoped, tag = 'input window, operand 31, single buffered']
    #allocation26 [shape = 'u8[512]{0}', space=vmem, size = 0x400, scoped, tag = 'input window, operand 33, single buffered']
    #allocation27 [shape = 's32[1]{0}', space=sflag, size = 0x4, scoped, tag = 'scoped memory for base_horse_race_predictor_forward.1']
    #allocation28 [shape = 'u8[16384]{0}', space=vmem, size = 0x4000, scoped, tag = 'input window, operand 34, single buffered']
    #allocation29 [shape = 'u8[512]{0}', space=vmem, size = 0x400, scoped, tag = 'input window, operand 35, single buffered']
    #allocation30 [shape = 's32[1]{0}', space=sflag, size = 0x4, scoped, tag = 'scoped memory for base_horse_race_predictor_forward.1']
    #allocation31 [shape = 'u8[32768]{0}', space=vmem, size = 0x8000, scoped, tag = 'input window, operand 36, single buffered']
    #allocation32 [shape = 'u8[512]{0}', space=vmem, size = 0x400, scoped, tag = 'input window, operand 37, single buffered']
    #allocation33 [shape = 's32[1]{0}', space=sflag, size = 0x4, scoped, tag = 'scoped memory for base_horse_race_predictor_forward.1']
    #allocation34 [shape = 'u8[16384]{0}', space=vmem, size = 0x4000, scoped, tag = 'input window, operand 38, single buffered']
    #allocation35 [shape = 'u8[512]{0}', space=vmem, size = 0x400, scoped, tag = 'input window, operand 39, single buffered']
    #allocation36 [shape = 's32[1]{0}', space=sflag, size = 0x4, scoped, tag = 'scoped memory for base_horse_race_predictor_forward.1']
    #allocation37 [shape = 'u8[8192]{0}', space=vmem, size = 0x2000, scoped, tag = 'input window, operand 40, single buffered']
    #allocation38 [shape = 'u8[512]{0}', space=vmem, size = 0x400, scoped, tag = 'input window, operand 41, single buffered']
    #allocation39 [shape = 's32[1]{0}', space=sflag, size = 0x4, scoped, tag = 'scoped memory for base_horse_race_predictor_forward.1']
    #allocation40 [shape = 'u8[16384]{0}', space=vmem, size = 0x4000, scoped, tag = 'input window, operand 42, single buffered']
    #allocation41 [shape = 'u8[512]{0}', space=vmem, size = 0x400, scoped, tag = 'input window, operand 43, single buffered']
    #allocation42 [shape = 's32[1]{0}', space=sflag, size = 0x4, scoped, tag = 'scoped memory for base_horse_race_predictor_forward.1']
    #allocation43 [shape = 'u8[4096]{0}', space=vmem, size = 0x1000, scoped, tag = 'input window, operand 44, single buffered']
    #allocation44 [shape = 'u8[512]{0}', space=vmem, size = 0x400, scoped, tag = 'input window, operand 45, single buffered']
    #allocation45 [shape = 's32[1]{0}', space=sflag, size = 0x4, scoped, tag = 'scoped memory for base_horse_race_predictor_forward.1']
    #allocation46 [shape = 'u8[4096]{0}', space=vmem, size = 0x1000, scoped, tag = 'input window, operand 46, single buffered']
    #allocation47 [shape = 'u8[512]{0}', space=vmem, size = 0x400, scoped, tag = 'input window, operand 47, single buffered']
    #allocation48 [shape = 's32[1]{0}', space=sflag, size = 0x4, scoped, tag = 'scoped memory for base_horse_race_predictor_forward.1']
    #allocation49 [shape = 'u8[8192]{0}', space=vmem, size = 0x2000, scoped, tag = 'input window, operand 48, single buffered']
    #allocation50 [shape = 'u8[512]{0}', space=vmem, size = 0x400, scoped, tag = 'input window, operand 49, single buffered']
    #allocation51 [shape = 's32[1]{0}', space=sflag, size = 0x4, scoped, tag = 'scoped memory for base_horse_race_predictor_forward.1']
    #allocation52 [shape = 'u8[16384]{0}', space=vmem, size = 0x4000, scoped, tag = 'input window, operand 50, single buffered']
    #allocation53 [shape = 'u8[512]{0}', space=vmem, size = 0x400, scoped, tag = 'input window, operand 51, single buffered']
    #allocation54 [shape = 's32[1]{0}', space=sflag, size = 0x4, scoped, tag = 'scoped memory for base_horse_race_predictor_forward.1']
    #allocation55 [shape = 'u8[16384]{0}', space=vmem, size = 0x4000, scoped, tag = 'input window, operand 52, single buffered']
    #allocation56 [shape = 'u8[512]{0}', space=vmem, size = 0x400, scoped, tag = 'input window, operand 53, single buffered']
    #allocation57 [shape = 's32[1]{0}', space=sflag, size = 0x4, scoped, tag = 'scoped memory for base_horse_race_predictor_forward.1']
    #allocation58 [shape = 'u8[16384]{0}', space=vmem, size = 0x4000, scoped, tag = 'input window, operand 54, single buffered']
    #allocation59 [shape = 'u8[512]{0}', space=vmem, size = 0x400, scoped, tag = 'input window, operand 55, single buffered']
    #allocation60 [shape = 's32[1]{0}', space=sflag, size = 0x4, scoped, tag = 'scoped memory for base_horse_race_predictor_forward.1']
    #allocation61 [shape = 'u8[32768]{0}', space=vmem, size = 0x8000, scoped, tag = 'input window, operand 56, single buffered']
    #allocation62 [shape = 'u8[512]{0}', space=vmem, size = 0x400, scoped, tag = 'input window, operand 57, single buffered']
    #allocation63 [shape = 's32[1]{0}', space=sflag, size = 0x4, scoped, tag = 'scoped memory for base_horse_race_predictor_forward.1']
    #allocation64 [shape = 'u8[16384]{0}', space=vmem, size = 0x4000, scoped, tag = 'input window, operand 58, single buffered']
    #allocation65 [shape = 'u8[512]{0}', space=vmem, size = 0x400, scoped, tag = 'input window, operand 59, single buffered']
    #allocation66 [shape = 's32[1]{0}', space=sflag, size = 0x4, scoped, tag = 'scoped memory for base_horse_race_predictor_forward.1']
    #allocation67 [shape = 'u8[32768]{0}', space=vmem, size = 0x8000, scoped, tag = 'input window, operand 60, single buffered']
    #allocation68 [shape = 'u8[512]{0}', space=vmem, size = 0x400, scoped, tag = 'input window, operand 61, single buffered']
    #allocation69 [shape = 's32[1]{0}', space=sflag, size = 0x4, scoped, tag = 'scoped memory for base_horse_race_predictor_forward.1']
    #allocation70 [shape = 'u8[16384]{0}', space=vmem, size = 0x4000, scoped, tag = 'input window, operand 62, single buffered']
    #allocation71 [shape = 'u8[512]{0}', space=vmem, size = 0x400, scoped, tag = 'input window, operand 63, single buffered']
    #allocation72 [shape = 's32[1]{0}', space=sflag, size = 0x4, scoped, tag = 'scoped memory for base_horse_race_predictor_forward.1']
    #allocation73 [shape = 'u8[32768]{0}', space=vmem, size = 0x8000, scoped, tag = 'input window, operand 64, single buffered']
    #allocation74 [shape = 'u8[512]{0}', space=vmem, size = 0x400, scoped, tag = 'input window, operand 65, single buffered']
    #allocation75 [shape = 's32[1]{0}', space=sflag, size = 0x4, scoped, tag = 'scoped memory for base_horse_race_predictor_forward.1']
    #allocation76 [shape = 'u8[16384]{0}', space=vmem, size = 0x4000, scoped, tag = 'input window, operand 66, single buffered']
    #allocation77 [shape = 'u8[512]{0}', space=vmem, size = 0x400, scoped, tag = 'input window, operand 67, single buffered']
    #allocation78 [shape = 's32[1]{0}', space=sflag, size = 0x4, scoped, tag = 'scoped memory for base_horse_race_predictor_forward.1']
    #allocation79 [shape = 'u8[8192]{0}', space=vmem, size = 0x2000, scoped, tag = 'input window, operand 68, single buffered']
    #allocation80 [shape = 'u8[512]{0}', space=vmem, size = 0x400, scoped, tag = 'input window, operand 69, single buffered']
    #allocation81 [shape = 's32[1]{0}', space=sflag, size = 0x4, scoped, tag = 'scoped memory for base_horse_race_predictor_forward.1']
    #allocation82 [shape = 'u8[16384]{0}', space=vmem, size = 0x4000, scoped, tag = 'input window, operand 70, single buffered']
    #allocation83 [shape = 'u8[512]{0}', space=vmem, size = 0x400, scoped, tag = 'input window, operand 71, single buffered']
    #allocation84 [shape = 's32[1]{0}', space=sflag, size = 0x4, scoped, tag = 'scoped memory for base_horse_race_predictor_forward.1']
    #allocation85 [shape = 'u8[32768]{0}', space=vmem, size = 0x8000, scoped, tag = 'input window, operand 72, single buffered']
    #allocation86 [shape = 'u8[512]{0}', space=vmem, size = 0x400, scoped, tag = 'input window, operand 73, single buffered']
    #allocation87 [shape = 's32[1]{0}', space=sflag, size = 0x4, scoped, tag = 'scoped memory for base_horse_race_predictor_forward.1']
    #allocation88 [shape = 'u8[32768]{0}', space=vmem, size = 0x8000, scoped, tag = 'input window, operand 74, single buffered']
    #allocation89 [shape = 'u8[512]{0}', space=vmem, size = 0x400, scoped, tag = 'input window, operand 75, single buffered']
    #allocation90 [shape = 's32[1]{0}', space=sflag, size = 0x4, scoped, tag = 'scoped memory for base_horse_race_predictor_forward.1']
    #allocation91 [shape = 'u8[32768]{0}', space=vmem, size = 0x8000, scoped, tag = 'input window, operand 76, single buffered']
    #allocation92 [shape = 'u8[512]{0}', space=vmem, size = 0x400, scoped, tag = 'input window, operand 77, single buffered']
    #allocation93 [shape = 's32[1]{0}', space=sflag, size = 0x4, scoped, tag = 'scoped memory for base_horse_race_predictor_forward.1']
    #allocation94 [shape = 'u8[32768]{0}', space=vmem, size = 0x8000, scoped, tag = 'input window, operand 78, single buffered']
    #allocation95 [shape = 'u8[512]{0}', space=vmem, size = 0x400, scoped, tag = 'input window, operand 79, single buffered']
    #allocation96 [shape = 's32[1]{0}', space=sflag, size = 0x4, scoped, tag = 'scoped memory for base_horse_race_predictor_forward.1']
    #allocation97 [shape = 'u8[32768]{0}', space=vmem, size = 0x8000, scoped, tag = 'input window, operand 80, single buffered']
    #allocation98 [shape = 'u8[512]{0}', space=vmem, size = 0x400, scoped, tag = 'input window, operand 81, single buffered']
    #allocation99 [shape = 's32[1]{0}', space=sflag, size = 0x4, scoped, tag = 'scoped memory for base_horse_race_predictor_forward.1']
    #allocation100 [shape = 'u8[16384]{0}', space=vmem, size = 0x4000, scoped, tag = 'input window, operand 82, single buffered']
    #allocation101 [shape = 'u8[512]{0}', space=vmem, size = 0x400, scoped, tag = 'input window, operand 83, single buffered']
    #allocation102 [shape = 's32[1]{0}', space=sflag, size = 0x4, scoped, tag = 'scoped memory for base_horse_race_predictor_forward.1']
    #allocation103 [shape = 'u8[32768]{0}', space=vmem, size = 0x8000, scoped, tag = 'input window, operand 84, single buffered']
    #allocation104 [shape = 'u8[512]{0}', space=vmem, size = 0x400, scoped, tag = 'input window, operand 85, single buffered']
    #allocation105 [shape = 's32[1]{0}', space=sflag, size = 0x4, scoped, tag = 'scoped memory for base_horse_race_predictor_forward.1']
    #allocation106 [shape = 'u8[16384]{0}', space=vmem, size = 0x4000, scoped, tag = 'input window, operand 86, single buffered']
    #allocation107 [shape = 'u8[512]{0}', space=vmem, size = 0x400, scoped, tag = 'input window, operand 87, single buffered']
    #allocation108 [shape = 's32[1]{0}', space=sflag, size = 0x4, scoped, tag = 'scoped memory for base_horse_race_predictor_forward.1']
    #allocation109 [shape = 'u8[8192]{0}', space=vmem, size = 0x2000, scoped, tag = 'input window, operand 88, single buffered']
    #allocation110 [shape = 'u8[512]{0}', space=vmem, size = 0x400, scoped, tag = 'input window, operand 89, single buffered']
    #allocation111 [shape = 's32[1]{0}', space=sflag, size = 0x4, scoped, tag = 'scoped memory for base_horse_race_predictor_forward.1']
    #allocation112 [shape = 'u8[16384]{0}', space=vmem, size = 0x4000, scoped, tag = 'input window, operand 90, single buffered']
    #allocation113 [shape = 'u8[512]{0}', space=vmem, size = 0x400, scoped, tag = 'input window, operand 91, single buffered']
    #allocation114 [shape = 's32[1]{0}', space=sflag, size = 0x4, scoped, tag = 'scoped memory for base_horse_race_predictor_forward.1']
    #allocation115 [shape = 'u8[8192]{0}', space=vmem, size = 0x2000, scoped, tag = 'input window, operand 92, single buffered']
    #allocation116 [shape = 'u8[512]{0}', space=vmem, size = 0x400, scoped, tag = 'input window, operand 93, single buffered']
    #allocation117 [shape = 's32[1]{0}', space=sflag, size = 0x4, scoped, tag = 'scoped memory for base_horse_race_predictor_forward.1']
    #allocation118 [shape = 'u8[4096]{0}', space=vmem, size = 0x1000, scoped, tag = 'input window, operand 94, single buffered']
    #allocation119 [shape = 'u8[512]{0}', space=vmem, size = 0x400, scoped, tag = 'input window, operand 95, single buffered']
    #allocation120 [shape = 's32[1]{0}', space=sflag, size = 0x4, scoped, tag = 'scoped memory for base_horse_race_predictor_forward.1']
    #allocation121 [shape = 'u8[8192]{0}', space=vmem, size = 0x2000, scoped, tag = 'input window, operand 96, single buffered']
    #allocation122 [shape = 'u8[512]{0}', space=vmem, size = 0x400, scoped, tag = 'input window, operand 97, single buffered']
    #allocation123 [shape = 's32[1]{0}', space=sflag, size = 0x4, scoped, tag = 'scoped memory for base_horse_race_predictor_forward.1']
    #allocation124 [shape = 'u8[4096]{0}', space=vmem, size = 0x1000, scoped, tag = 'input window, operand 98, single buffered']
    #allocation125 [shape = 'u8[512]{0}', space=vmem, size = 0x400, scoped, tag = 'input window, operand 99, single buffered']
    #allocation126 [shape = 's32[1]{0}', space=sflag, size = 0x4, scoped, tag = 'scoped memory for base_horse_race_predictor_forward.1']
    #allocation127 [shape = 'u8[2048]{0}', space=vmem, size = 0x800, scoped, tag = 'input window, operand 100, single buffered']
    #allocation128 [shape = 'u8[512]{0}', space=vmem, size = 0x400, scoped, tag = 'input window, operand 101, single buffered']
    #allocation129 [shape = 's32[1]{0}', space=sflag, size = 0x4, scoped, tag = 'scoped memory for base_horse_race_predictor_forward.1']
    #allocation130 [shape = 'u8[4096]{0}', space=vmem, size = 0x1000, scoped, tag = 'input window, operand 102, single buffered']
    #allocation131 [shape = 'u8[512]{0}', space=vmem, size = 0x400, scoped, tag = 'input window, operand 103, single buffered']
    #allocation132 [shape = 's32[1]{0}', space=sflag, size = 0x4, scoped, tag = 'scoped memory for base_horse_race_predictor_forward.1']
    #allocation133 [shape = 'u8[1024]{0}', space=vmem, size = 0x400, scoped, tag = 'input window, operand 105, single buffered']
    #allocation134 [shape = 'u8[1024]{0}', space=vmem, size = 0x400, scoped, tag = 'input window, operand 107, single buffered']
    #allocation135 [shape = 's32[1]{0}', space=sflag, size = 0x4, scoped, tag = 'scoped memory for base_horse_race_predictor_forward.1']
    #allocation136 [shape = 'u8[512]{0}', space=vmem, size = 0x400, scoped, tag = 'input window, operand 109, single buffered']
    #allocation137 [shape = 'u8[32768]{0}', space=vmem, size = 0x8000, scoped, tag = 'input window, operand 110, single buffered']
    #allocation138 [shape = 's32[1]{0}', space=sflag, size = 0x4, scoped, tag = 'scoped memory for base_horse_race_predictor_forward.1']
    #allocation139 [shape = 'u8[512]{0}', space=vmem, size = 0x400, scoped, tag = 'input window, operand 111, single buffered']
    #allocation140 [shape = 'u8[512]{0}', space=vmem, size = 0x400, scoped, tag = 'input window, operand 113, single buffered']
    #allocation141 [shape = 's32[1]{0}', space=sflag, size = 0x4, scoped, tag = 'scoped memory for base_horse_race_predictor_forward.1']
    #allocation142 [shape = 'u8[32768]{0}', space=vmem, size = 0x8000, scoped, tag = 'input window, operand 114, single buffered']
    #allocation143 [shape = 'u8[512]{0}', space=vmem, size = 0x400, scoped, tag = 'input window, operand 115, single buffered']
    #allocation144 [shape = 's32[1]{0}', space=sflag, size = 0x4, scoped, tag = 'scoped memory for base_horse_race_predictor_forward.1']
    #allocation145 [shape = 'u8[16384]{0}', space=vmem, size = 0x4000, scoped, tag = 'input window, operand 116, single buffered']
    #allocation146 [shape = 'u8[512]{0}', space=vmem, size = 0x400, scoped, tag = 'input window, operand 117, single buffered']
    #allocation147 [shape = 's32[1]{0}', space=sflag, size = 0x4, scoped, tag = 'scoped memory for base_horse_race_predictor_forward.1']
    #allocation148 [shape = 'u8[32768]{0}', space=vmem, size = 0x8000, scoped, tag = 'input window, operand 118, single buffered']
    #allocation149 [shape = 'u8[512]{0}', space=vmem, size = 0x400, scoped, tag = 'input window, operand 119, single buffered']
    #allocation150 [shape = 's32[1]{0}', space=sflag, size = 0x4, scoped, tag = 'scoped memory for base_horse_race_predictor_forward.1']
    #allocation151 [shape = 'u8[16384]{0}', space=vmem, size = 0x4000, scoped, tag = 'input window, operand 120, single buffered']
    #allocation152 [shape = 'u8[512]{0}', space=vmem, size = 0x400, scoped, tag = 'input window, operand 121, single buffered']
    #allocation153 [shape = 'u8[24576]{0}', space=vmem, size = 0x6000, scoped, tag = 'input window, operand 122, single buffered']
    #allocation154 [shape = 'u8[512]{0}', space=vmem, size = 0x400, scoped, tag = 'input window, operand 123, single buffered']
    #allocation155 [shape = 'u8[16384]{0}', space=vmem, size = 0x4000, scoped, tag = 'input window, operand 124, single buffered']
    #allocation156 [shape = 'u8[512]{0}', space=vmem, size = 0x400, scoped, tag = 'input window, operand 125, single buffered']
    #allocation157 [shape = 'u8[8192]{0}', space=vmem, size = 0x2000, scoped, tag = 'output window, operand 1, single buffered']
    #allocation158 [shape = 'u8[8192]{0}', space=vmem, size = 0x2000, scoped, tag = 'output window, operand 2, single buffered']
    %263 = vsyncpa [#allocation3], 0
    %264 = vsyncpa [#allocation6], 0
    %265 = vsyncpa [#allocation9], 0
    %266 = vsyncpa [#allocation12], 0
    %267 = vsyncpa [#allocation15], 0
    %268 = vsyncpa [#allocation18], 0
    %269 = vsyncpa [#allocation21], 0
    %270 = vsyncpa [#allocation24], 0
    %271 = vsyncpa [#allocation27], 0
    %272 = vsyncpa [#allocation30], 0
    %273 = vsyncpa [#allocation33], 0
    %274 = vsyncpa [#allocation36], 0
    %275 = vsyncpa [#allocation39], 0
    %276 = vsyncpa [#allocation42], 0
    %277 = vsyncpa [#allocation45], 0
    %278 = vsyncpa [#allocation48], 0
    %279 = vsyncpa [#allocation51], 0
    %280 = vsyncpa [#allocation54], 0
    %281 = vsyncpa [#allocation57], 0
    %282 = vsyncpa [#allocation60], 0
    %283 = vsyncpa [#allocation63], 0
    %284 = vsyncpa [#allocation66], 0
    %285 = vsyncpa [#allocation69], 0
    %286 = vsyncpa [#allocation72], 0
    %287 = vsyncpa [#allocation75], 0
    %288 = vsyncpa [#allocation78], 0
    %289 = vsyncpa [#allocation81], 0
    %290 = vsyncpa [#allocation84], 0
    %291 = vsyncpa [#allocation87], 0
    %292 = vsyncpa [#allocation90], 0
    %293 = vsyncpa [#allocation93], 0
    %294 = vsyncpa [#allocation96], 0
    %295 = vsyncpa [#allocation99], 0
    %296 = vsyncpa [#allocation102], 0
    %297 = vsyncpa [#allocation105], 0
    %298 = vsyncpa [#allocation108], 0
    %299 = vsyncpa [#allocation111], 0
    %300 = vsyncpa [#allocation114], 0
    %301 = vsyncpa [#allocation117], 0
    %302 = vsyncpa [#allocation120], 0
    %303 = vsyncpa [#allocation123], 0
    %304 = vsyncpa [#allocation126], 0
    %305 = vsyncpa [#allocation129], 0
    %306 = vsyncpa [#allocation132], 0
    %307 = vsyncpa [#allocation135], 0
    %308 = vsyncpa [#allocation138], 0
    %309 = vsyncpa [#allocation141], 0
    %310 = vsyncpa [#allocation144], 0
    %311 = vsyncpa [#allocation147], 0
    %312 = vsyncpa [#allocation150], 0
    %313 = vsyncpa [#allocation4], 0
    // Predicated region
    $region2: #{base_horse_race_predictor_forward.1} parent=1 // pred_check
      _
    $region3: #{base_horse_race_predictor_forward.1} parent=1 // pred_check_branch
      %315 = sbr.rel (0) target = $region5
    $region4: #{base_horse_race_predictor_forward.1} parent=1 // pred_region
      %s317 = ssub.s32 256, 256
      %318 = vsyncadd [#allocation3], %s317
      %s319 = sshll.u32 [#allocation2], 4
      %s320 = int_to_ptr.vmem [resolvable:$true] %s319
      %325 = dma.hbm_to_vmem [thread:$0]  %s1, 256, %s320, [#allocation3], 128, 128, 8
    $region5: #{base_horse_race_predictor_forward.1} parent=1 // pred_fallthru
      _
    // Predicated region
    $region6: #{base_horse_race_predictor_forward.1} parent=1 // pred_check
      _
    $region7: #{base_horse_race_predictor_forward.1} parent=1 // pred_check_branch
      %327 = sbr.rel (0) target = $region9
    $region8: #{base_horse_race_predictor_forward.1} parent=1 // pred_region
      %s329 = ssub.s32 256, 256
      %330 = vsyncadd [#allocation6], %s329
      %s331 = sshll.u32 [#allocation5], 4
      %s332 = int_to_ptr.vmem [resolvable:$true] %s331
      %337 = dma.hbm_to_vmem [thread:$0]  %s3, 256, %s332, [#allocation6], 128, 128, 8
    $region9: #{base_horse_race_predictor_forward.1} parent=1 // pred_fallthru
      _
    // Predicated region
    $region10: #{base_horse_race_predictor_forward.1} parent=1 // pred_check
      _
    $region11: #{base_horse_race_predictor_forward.1} parent=1 // pred_check_branch
      %339 = sbr.rel (0) target = $region13
    $region12: #{base_horse_race_predictor_forward.1} parent=1 // pred_region
      %s341 = ssub.s32 256, 256
      %342 = vsyncadd [#allocation6], %s341
      %s343 = sshll.u32 [#allocation7], 4
      %s344 = int_to_ptr.vmem [resolvable:$true] %s343
      %349 = dma.hbm_to_vmem [thread:$0]  %s5, 256, %s344, [#allocation6], 128, 128, 8
    $region13: #{base_horse_race_predictor_forward.1} parent=1 // pred_fallthru
      _
    // Predicated region
    $region14: #{base_horse_race_predictor_forward.1} parent=1 // pred_check
      _
    $region15: #{base_horse_race_predictor_forward.1} parent=1 // pred_check_branch
      %351 = sbr.rel (0) target = $region17
    $region16: #{base_horse_race_predictor_forward.1} parent=1 // pred_region
      %s353 = ssub.s32 256, 256
      %354 = vsyncadd [#allocation9], %s353
      %s355 = sshll.u32 [#allocation8], 4
      %s356 = int_to_ptr.vmem [resolvable:$true] %s355
      %361 = dma.hbm_to_vmem [thread:$0]  %s7, 256, %s356, [#allocation9], 128, 128, 8
    $region17: #{base_horse_race_predictor_forward.1} parent=1 // pred_fallthru
      _
    // Predicated region
    $region18: #{base_horse_race_predictor_forward.1} parent=1 // pred_check
      _
    $region19: #{base_horse_race_predictor_forward.1} parent=1 // pred_check_branch
      %363 = sbr.rel (0) target = $region21
    $region20: #{base_horse_race_predictor_forward.1} parent=1 // pred_region
      _
    $region21: #{base_horse_race_predictor_forward.1} parent=1 // pred_fallthru
      _
    // Predicated region
    $region22: #{base_horse_race_predictor_forward.1} parent=1 // pred_check
      _
    $region23: #{base_horse_race_predictor_forward.1} parent=1 // pred_check_branch
      %365 = sbr.rel (0) target = $region25
    $region24: #{base_horse_race_predictor_forward.1} parent=1 // pred_region
      _
    $region25: #{base_horse_race_predictor_forward.1} parent=1 // pred_fallthru
      _
    // Predicated region
    $region26: #{base_horse_race_predictor_forward.1} parent=1 // pred_check
      _
    $region27: #{base_horse_race_predictor_forward.1} parent=1 // pred_check_branch
      %367 = sbr.rel (0) target = $region29
    $region28: #{base_horse_race_predictor_forward.1} parent=1 // pred_region
      _
    $region29: #{base_horse_race_predictor_forward.1} parent=1 // pred_fallthru
      _
    // Predicated region
    $region30: #{base_horse_race_predictor_forward.1} parent=1 // pred_check
      _
    $region31: #{base_horse_race_predictor_forward.1} parent=1 // pred_check_branch
      %369 = sbr.rel (0) target = $region33
    $region32: #{base_horse_race_predictor_forward.1} parent=1 // pred_region
      _
    $region33: #{base_horse_race_predictor_forward.1} parent=1 // pred_fallthru
      _
    // Predicated region
    $region34: #{base_horse_race_predictor_forward.1} parent=1 // pred_check
      _
    $region35: #{base_horse_race_predictor_forward.1} parent=1 // pred_check_branch
      %371 = sbr.rel (0) target = $region37
    $region36: #{base_horse_race_predictor_forward.1} parent=1 // pred_region
      _
    $region37: #{base_horse_race_predictor_forward.1} parent=1 // pred_fallthru
      _
    // Predicated region
    $region38: #{base_horse_race_predictor_forward.1} parent=1 // pred_check
      _
    $region39: #{base_horse_race_predictor_forward.1} parent=1 // pred_check_branch
      %373 = sbr.rel (0) target = $region41
    $region40: #{base_horse_race_predictor_forward.1} parent=1 // pred_region
      _
    $region41: #{base_horse_race_predictor_forward.1} parent=1 // pred_fallthru
      _
    // Predicated region
    $region42: #{base_horse_race_predictor_forward.1} parent=1 // pred_check
      _
    $region43: #{base_horse_race_predictor_forward.1} parent=1 // pred_check_branch
      %375 = sbr.rel (0) target = $region45
    $region44: #{base_horse_race_predictor_forward.1} parent=1 // pred_region
      _
    $region45: #{base_horse_race_predictor_forward.1} parent=1 // pred_fallthru
      _
    // Predicated region
    $region46: #{base_horse_race_predictor_forward.1} parent=1 // pred_check
      _
    $region47: #{base_horse_race_predictor_forward.1} parent=1 // pred_check_branch
      %377 = sbr.rel (0) target = $region49
    $region48: #{base_horse_race_predictor_forward.1} parent=1 // pred_region
      _
    $region49: #{base_horse_race_predictor_forward.1} parent=1 // pred_fallthru
      _
    // Predicated region
    $region50: #{base_horse_race_predictor_forward.1} parent=1 // pred_check
      _
    $region51: #{base_horse_race_predictor_forward.1} parent=1 // pred_check_branch
      %379 = sbr.rel (0) target = $region53
    $region52: #{base_horse_race_predictor_forward.1} parent=1 // pred_region
      _
    $region53: #{base_horse_race_predictor_forward.1} parent=1 // pred_fallthru
      _
    // Predicated region
    $region54: #{base_horse_race_predictor_forward.1} parent=1 // pred_check
      _
    $region55: #{base_horse_race_predictor_forward.1} parent=1 // pred_check_branch
      %381 = sbr.rel (0) target = $region57
    $region56: #{base_horse_race_predictor_forward.1} parent=1 // pred_region
      _
    $region57: #{base_horse_race_predictor_forward.1} parent=1 // pred_fallthru
      _
    // Predicated region
    $region58: #{base_horse_race_predictor_forward.1} parent=1 // pred_check
      _
    $region59: #{base_horse_race_predictor_forward.1} parent=1 // pred_check_branch
      %383 = sbr.rel (0) target = $region61
    $region60: #{base_horse_race_predictor_forward.1} parent=1 // pred_region
      _
    $region61: #{base_horse_race_predictor_forward.1} parent=1 // pred_fallthru
      _
    // Predicated region
    $region62: #{base_horse_race_predictor_forward.1} parent=1 // pred_check
      _
    $region63: #{base_horse_race_predictor_forward.1} parent=1 // pred_check_branch
      %385 = sbr.rel (0) target = $region65
    $region64: #{base_horse_race_predictor_forward.1} parent=1 // pred_region
      _
    $region65: #{base_horse_race_predictor_forward.1} parent=1 // pred_fallthru
      _
    // Predicated region
    $region66: #{base_horse_race_predictor_forward.1} parent=1 // pred_check
      _
    $region67: #{base_horse_race_predictor_forward.1} parent=1 // pred_check_branch
      %387 = sbr.rel (0) target = $region69
    $region68: #{base_horse_race_predictor_forward.1} parent=1 // pred_region
      _
    $region69: #{base_horse_race_predictor_forward.1} parent=1 // pred_fallthru
      _
    // Predicated region
    $region70: #{base_horse_race_predictor_forward.1} parent=1 // pred_check
      _
    $region71: #{base_horse_race_predictor_forward.1} parent=1 // pred_check_branch
      %389 = sbr.rel (0) target = $region73
    $region72: #{base_horse_race_predictor_forward.1} parent=1 // pred_region
      _
    $region73: #{base_horse_race_predictor_forward.1} parent=1 // pred_fallthru
      _
    // Predicated region
    $region74: #{base_horse_race_predictor_forward.1} parent=1 // pred_check
      _
    $region75: #{base_horse_race_predictor_forward.1} parent=1 // pred_check_branch
      %391 = sbr.rel (0) target = $region77
    $region76: #{base_horse_race_predictor_forward.1} parent=1 // pred_region
      %s393 = ssub.s32 128, 128
      %394 = vsyncadd [#allocation9], %s393
      %s395 = sshll.u32 [#allocation10], 4
      %s396 = int_to_ptr.vmem [resolvable:$true] %s395
      %401 = dma.hbm_to_vmem [thread:$0]  %s37, 128, %s396, [#allocation9], 64, 64, 4
    $region77: #{base_horse_race_predictor_forward.1} parent=1 // pred_fallthru
      _
    // Predicated region
    $region78: #{base_horse_race_predictor_forward.1} parent=1 // pred_check
      _
    $region79: #{base_horse_race_predictor_forward.1} parent=1 // pred_check_branch
      %403 = sbr.rel (0) target = $region81
    $region80: #{base_horse_race_predictor_forward.1} parent=1 // pred_region
      %s405 = ssub.s32 16, 16
      %406 = vsyncadd [#allocation12], %s405
      %s408 = sshll.u32 [#allocation11], 4
      %s409 = int_to_ptr.vmem [resolvable:$true] %s408
      %411 = dma.hbm_to_vmem [thread:$0]  %s39, 16, %s409, [#allocation12]
    $region81: #{base_horse_race_predictor_forward.1} parent=1 // pred_fallthru
      _
    // Predicated region
    $region82: #{base_horse_race_predictor_forward.1} parent=1 // pred_check
      _
    $region83: #{base_horse_race_predictor_forward.1} parent=1 // pred_check_branch
      %413 = sbr.rel (0) target = $region85
    $region84: #{base_horse_race_predictor_forward.1} parent=1 // pred_region
      _
    $region85: #{base_horse_race_predictor_forward.1} parent=1 // pred_fallthru
      _
    // Predicated region
    $region86: #{base_horse_race_predictor_forward.1} parent=1 // pred_check
      _
    $region87: #{base_horse_race_predictor_forward.1} parent=1 // pred_check_branch
      %415 = sbr.rel (0) target = $region89
    $region88: #{base_horse_race_predictor_forward.1} parent=1 // pred_region
      %s417 = ssub.s32 16, 16
      %418 = vsyncadd [#allocation12], %s417
      %s420 = sshll.u32 [#allocation13], 4
      %s421 = int_to_ptr.vmem [resolvable:$true] %s420
      %423 = dma.hbm_to_vmem [thread:$0]  %s43, 16, %s421, [#allocation12]
    $region89: #{base_horse_race_predictor_forward.1} parent=1 // pred_fallthru
      _
    // Predicated region
    $region90: #{base_horse_race_predictor_forward.1} parent=1 // pred_check
      _
    $region91: #{base_horse_race_predictor_forward.1} parent=1 // pred_check_branch
      %425 = sbr.rel (0) target = $region93
    $region92: #{base_horse_race_predictor_forward.1} parent=1 // pred_region
      _
    $region93: #{base_horse_race_predictor_forward.1} parent=1 // pred_fallthru
      _
    // Predicated region
    $region94: #{base_horse_race_predictor_forward.1} parent=1 // pred_check
      _
    $region95: #{base_horse_race_predictor_forward.1} parent=1 // pred_check_branch
      %427 = sbr.rel (0) target = $region97
    $region96: #{base_horse_race_predictor_forward.1} parent=1 // pred_region
      %s429 = ssub.s32 16, 16
      %430 = vsyncadd [#allocation15], %s429
      %s432 = sshll.u32 [#allocation14], 4
      %s433 = int_to_ptr.vmem [resolvable:$true] %s432
      %435 = dma.hbm_to_vmem [thread:$0]  %s47, 16, %s433, [#allocation15]
    $region97: #{base_horse_race_predictor_forward.1} parent=1 // pred_fallthru
      _
    // Predicated region
    $region98: #{base_horse_race_predictor_forward.1} parent=1 // pred_check
      _
    $region99: #{base_horse_race_predictor_forward.1} parent=1 // pred_check_branch
      %437 = sbr.rel (0) target = $region101
    $region100: #{base_horse_race_predictor_forward.1} parent=1 // pred_region
      %s439 = ssub.s32 576, 576
      %440 = vsyncadd [#allocation15], %s439
      %s441 = sshll.u32 [#allocation16], 4
      %s442 = int_to_ptr.vmem [resolvable:$true] %s441
      %447 = dma.hbm_to_vmem [thread:$0]  %s49, 576, %s442, [#allocation15], 64, 64, 4
    $region101: #{base_horse_race_predictor_forward.1} parent=1 // pred_fallthru
      _
    // Predicated region
    $region102: #{base_horse_race_predictor_forward.1} parent=1 // pred_check
      _
    $region103: #{base_horse_race_predictor_forward.1} parent=1 // pred_check_branch
      %449 = sbr.rel (0) target = $region105
    $region104: #{base_horse_race_predictor_forward.1} parent=1 // pred_region
      %s451 = ssub.s32 16, 16
      %452 = vsyncadd [#allocation18], %s451
      %s454 = sshll.u32 [#allocation17], 4
      %s455 = int_to_ptr.vmem [resolvable:$true] %s454
      %457 = dma.hbm_to_vmem [thread:$0]  %s51, 16, %s455, [#allocation18]
    $region105: #{base_horse_race_predictor_forward.1} parent=1 // pred_fallthru
      _
    // Predicated region
    $region106: #{base_horse_race_predictor_forward.1} parent=1 // pred_check
      _
    $region107: #{base_horse_race_predictor_forward.1} parent=1 // pred_check_branch
      %459 = sbr.rel (0) target = $region109
    $region108: #{base_horse_race_predictor_forward.1} parent=1 // pred_region
      %s461 = ssub.s32 576, 576
      %462 = vsyncadd [#allocation18], %s461
      %s463 = sshll.u32 [#allocation19], 4
      %s464 = int_to_ptr.vmem [resolvable:$true] %s463
      %469 = dma.hbm_to_vmem [thread:$0]  %s53, 576, %s464, [#allocation18], 64, 64, 4
    $region109: #{base_horse_race_predictor_forward.1} parent=1 // pred_fallthru
      _
    // Predicated region
    $region110: #{base_horse_race_predictor_forward.1} parent=1 // pred_check
      _
    $region111: #{base_horse_race_predictor_forward.1} parent=1 // pred_check_branch
      %471 = sbr.rel (0) target = $region113
    $region112: #{base_horse_race_predictor_forward.1} parent=1 // pred_region
      %s473 = ssub.s32 16, 16
      %474 = vsyncadd [#allocation21], %s473
      %s476 = sshll.u32 [#allocation20], 4
      %s477 = int_to_ptr.vmem [resolvable:$true] %s476
      %479 = dma.hbm_to_vmem [thread:$0]  %s55, 16, %s477, [#allocation21]
    $region113: #{base_horse_race_predictor_forward.1} parent=1 // pred_fallthru
      _
    // Predicated region
    $region114: #{base_horse_race_predictor_forward.1} parent=1 // pred_check
      _
    $region115: #{base_horse_race_predictor_forward.1} parent=1 // pred_check_branch
      %481 = sbr.rel (0) target = $region117
    $region116: #{base_horse_race_predictor_forward.1} parent=1 // pred_region
      _
    $region117: #{base_horse_race_predictor_forward.1} parent=1 // pred_fallthru
      _
    // Predicated region
    $region118: #{base_horse_race_predictor_forward.1} parent=1 // pred_check
      _
    $region119: #{base_horse_race_predictor_forward.1} parent=1 // pred_check_branch
      %483 = sbr.rel (0) target = $region121
    $region120: #{base_horse_race_predictor_forward.1} parent=1 // pred_region
      %s485 = ssub.s32 16, 16
      %486 = vsyncadd [#allocation21], %s485
      %s488 = sshll.u32 [#allocation22], 4
      %s489 = int_to_ptr.vmem [resolvable:$true] %s488
      %491 = dma.hbm_to_vmem [thread:$0]  %s59, 16, %s489, [#allocation21]
    $region121: #{base_horse_race_predictor_forward.1} parent=1 // pred_fallthru
      _
    // Predicated region
    $region122: #{base_horse_race_predictor_forward.1} parent=1 // pred_check
      _
    $region123: #{base_horse_race_predictor_forward.1} parent=1 // pred_check_branch
      %493 = sbr.rel (0) target = $region125
    $region124: #{base_horse_race_predictor_forward.1} parent=1 // pred_region
      %s495 = ssub.s32 576, 576
      %496 = vsyncadd [#allocation24], %s495
      %s497 = sshll.u32 [#allocation23], 4
      %s498 = int_to_ptr.vmem [resolvable:$true] %s497
      %503 = dma.hbm_to_vmem [thread:$0]  %s61, 576, %s498, [#allocation24], 64, 64, 4
    $region125: #{base_horse_race_predictor_forward.1} parent=1 // pred_fallthru
      _
    // Predicated region
    $region126: #{base_horse_race_predictor_forward.1} parent=1 // pred_check
      _
    $region127: #{base_horse_race_predictor_forward.1} parent=1 // pred_check_branch
      %505 = sbr.rel (0) target = $region129
    $region128: #{base_horse_race_predictor_forward.1} parent=1 // pred_region
      %s507 = ssub.s32 16, 16
      %508 = vsyncadd [#allocation24], %s507
      %s510 = sshll.u32 [#allocation25], 4
      %s511 = int_to_ptr.vmem [resolvable:$true] %s510
      %513 = dma.hbm_to_vmem [thread:$0]  %s63, 16, %s511, [#allocation24]
    $region129: #{base_horse_race_predictor_forward.1} parent=1 // pred_fallthru
      _
    // Predicated region
    $region130: #{base_horse_race_predictor_forward.1} parent=1 // pred_check
      _
    $region131: #{base_horse_race_predictor_forward.1} parent=1 // pred_check_branch
      %515 = sbr.rel (0) target = $region133
    $region132: #{base_horse_race_predictor_forward.1} parent=1 // pred_region
      _
    $region133: #{base_horse_race_predictor_forward.1} parent=1 // pred_fallthru
      _
    // Predicated region
    $region134: #{base_horse_race_predictor_forward.1} parent=1 // pred_check
      _
    $region135: #{base_horse_race_predictor_forward.1} parent=1 // pred_check_branch
      %517 = sbr.rel (0) target = $region137
    $region136: #{base_horse_race_predictor_forward.1} parent=1 // pred_region
      %s519 = ssub.s32 16, 16
      %520 = vsyncadd [#allocation27], %s519
      %s522 = sshll.u32 [#allocation26], 4
      %s523 = int_to_ptr.vmem [resolvable:$true] %s522
      %525 = dma.hbm_to_vmem [thread:$0]  %s67, 16, %s523, [#allocation27]
    $region137: #{base_horse_race_predictor_forward.1} parent=1 // pred_fallthru
      _
    // Predicated region
    $region138: #{base_horse_race_predictor_forward.1} parent=1 // pred_check
      _
    $region139: #{base_horse_race_predictor_forward.1} parent=1 // pred_check_branch
      %527 = sbr.rel (0) target = $region141
    $region140: #{base_horse_race_predictor_forward.1} parent=1 // pred_region
      %s529 = ssub.s32 512, 512
      %530 = vsyncadd [#allocation27], %s529
      %s531 = sshll.u32 [#allocation28], 4
      %s532 = int_to_ptr.vmem [resolvable:$true] %s531
      %537 = dma.hbm_to_vmem [thread:$0]  %s69, 512, %s532, [#allocation27], 64, 64, 4
    $region141: #{base_horse_race_predictor_forward.1} parent=1 // pred_fallthru
      _
    // Predicated region
    $region142: #{base_horse_race_predictor_forward.1} parent=1 // pred_check
      _
    $region143: #{base_horse_race_predictor_forward.1} parent=1 // pred_check_branch
      %539 = sbr.rel (0) target = $region145
    $region144: #{base_horse_race_predictor_forward.1} parent=1 // pred_region
      %s541 = ssub.s32 16, 16
      %542 = vsyncadd [#allocation30], %s541
      %s544 = sshll.u32 [#allocation29], 4
      %s545 = int_to_ptr.vmem [resolvable:$true] %s544
      %547 = dma.hbm_to_vmem [thread:$0]  %s71, 16, %s545, [#allocation30]
    $region145: #{base_horse_race_predictor_forward.1} parent=1 // pred_fallthru
      _
    // Predicated region
    $region146: #{base_horse_race_predictor_forward.1} parent=1 // pred_check
      _
    $region147: #{base_horse_race_predictor_forward.1} parent=1 // pred_check_branch
      %549 = sbr.rel (0) target = $region149
    $region148: #{base_horse_race_predictor_forward.1} parent=1 // pred_region
      %s551 = ssub.s32 1024, 1024
      %552 = vsyncadd [#allocation30], %s551
      %s553 = sshll.u32 [#allocation31], 4
      %s554 = int_to_ptr.vmem [resolvable:$true] %s553
      %559 = dma.hbm_to_vmem [thread:$0]  %s73, 1024, %s554, [#allocation30], 64, 64, 4
    $region149: #{base_horse_race_predictor_forward.1} parent=1 // pred_fallthru
      _
    // Predicated region
    $region150: #{base_horse_race_predictor_forward.1} parent=1 // pred_check
      _
    $region151: #{base_horse_race_predictor_forward.1} parent=1 // pred_check_branch
      %561 = sbr.rel (0) target = $region153
    $region152: #{base_horse_race_predictor_forward.1} parent=1 // pred_region
      %s563 = ssub.s32 16, 16
      %564 = vsyncadd [#allocation33], %s563
      %s566 = sshll.u32 [#allocation32], 4
      %s567 = int_to_ptr.vmem [resolvable:$true] %s566
      %569 = dma.hbm_to_vmem [thread:$0]  %s75, 16, %s567, [#allocation33]
    $region153: #{base_horse_race_predictor_forward.1} parent=1 // pred_fallthru
      _
    // Predicated region
    $region154: #{base_horse_race_predictor_forward.1} parent=1 // pred_check
      _
    $region155: #{base_horse_race_predictor_forward.1} parent=1 // pred_check_branch
      %571 = sbr.rel (0) target = $region157
    $region156: #{base_horse_race_predictor_forward.1} parent=1 // pred_region
      %s573 = ssub.s32 512, 512
      %574 = vsyncadd [#allocation33], %s573
      %s575 = sshll.u32 [#allocation34], 4
      %s576 = int_to_ptr.vmem [resolvable:$true] %s575
      %581 = dma.hbm_to_vmem [thread:$0]  %s77, 512, %s576, [#allocation33], 64, 64, 4
    $region157: #{base_horse_race_predictor_forward.1} parent=1 // pred_fallthru
      _
    // Predicated region
    $region158: #{base_horse_race_predictor_forward.1} parent=1 // pred_check
      _
    $region159: #{base_horse_race_predictor_forward.1} parent=1 // pred_check_branch
      %583 = sbr.rel (0) target = $region161
    $region160: #{base_horse_race_predictor_forward.1} parent=1 // pred_region
      %s585 = ssub.s32 16, 16
      %586 = vsyncadd [#allocation36], %s585
      %s588 = sshll.u32 [#allocation35], 4
      %s589 = int_to_ptr.vmem [resolvable:$true] %s588
      %591 = dma.hbm_to_vmem [thread:$0]  %s79, 16, %s589, [#allocation36]
    $region161: #{base_horse_race_predictor_forward.1} parent=1 // pred_fallthru
      _
    // Predicated region
    $region162: #{base_horse_race_predictor_forward.1} parent=1 // pred_check
      _
    $region163: #{base_horse_race_predictor_forward.1} parent=1 // pred_check_branch
      %593 = sbr.rel (0) target = $region165
    $region164: #{base_horse_race_predictor_forward.1} parent=1 // pred_region
      %s595 = ssub.s32 256, 256
      %596 = vsyncadd [#allocation36], %s595
      %s597 = sshll.u32 [#allocation37], 4
      %s598 = int_to_ptr.vmem [resolvable:$true] %s597
      %603 = dma.hbm_to_vmem [thread:$0]  %s81, 256, %s598, [#allocation36], 64, 64, 4
    $region165: #{base_horse_race_predictor_forward.1} parent=1 // pred_fallthru
      _
    // Predicated region
    $region166: #{base_horse_race_predictor_forward.1} parent=1 // pred_check
      _
    $region167: #{base_horse_race_predictor_forward.1} parent=1 // pred_check_branch
      %605 = sbr.rel (0) target = $region169
    $region168: #{base_horse_race_predictor_forward.1} parent=1 // pred_region
      %s607 = ssub.s32 16, 16
      %608 = vsyncadd [#allocation39], %s607
      %s610 = sshll.u32 [#allocation38], 4
      %s611 = int_to_ptr.vmem [resolvable:$true] %s610
      %613 = dma.hbm_to_vmem [thread:$0]  %s83, 16, %s611, [#allocation39]
    $region169: #{base_horse_race_predictor_forward.1} parent=1 // pred_fallthru
      _
    // Predicated region
    $region170: #{base_horse_race_predictor_forward.1} parent=1 // pred_check
      _
    $region171: #{base_horse_race_predictor_forward.1} parent=1 // pred_check_branch
      %615 = sbr.rel (0) target = $region173
    $region172: #{base_horse_race_predictor_forward.1} parent=1 // pred_region
      %s617 = ssub.s32 512, 512
      %618 = vsyncadd [#allocation39], %s617
      %s619 = sshll.u32 [#allocation40], 4
      %s620 = int_to_ptr.vmem [resolvable:$true] %s619
      %625 = dma.hbm_to_vmem [thread:$0]  %s85, 512, %s620, [#allocation39], 64, 64, 4
    $region173: #{base_horse_race_predictor_forward.1} parent=1 // pred_fallthru
      _
    // Predicated region
    $region174: #{base_horse_race_predictor_forward.1} parent=1 // pred_check
      _
    $region175: #{base_horse_race_predictor_forward.1} parent=1 // pred_check_branch
      %627 = sbr.rel (0) target = $region177
    $region176: #{base_horse_race_predictor_forward.1} parent=1 // pred_region
      %s629 = ssub.s32 16, 16
      %630 = vsyncadd [#allocation42], %s629
      %s632 = sshll.u32 [#allocation41], 4
      %s633 = int_to_ptr.vmem [resolvable:$true] %s632
      %635 = dma.hbm_to_vmem [thread:$0]  %s87, 16, %s633, [#allocation42]
    $region177: #{base_horse_race_predictor_forward.1} parent=1 // pred_fallthru
      _
    // Predicated region
    $region178: #{base_horse_race_predictor_forward.1} parent=1 // pred_check
      _
    $region179: #{base_horse_race_predictor_forward.1} parent=1 // pred_check_branch
      %637 = sbr.rel (0) target = $region181
    $region180: #{base_horse_race_predictor_forward.1} parent=1 // pred_region
      %s639 = ssub.s32 128, 128
      %640 = vsyncadd [#allocation42], %s639
      %s641 = sshll.u32 [#allocation43], 4
      %s642 = int_to_ptr.vmem [resolvable:$true] %s641
      %647 = dma.hbm_to_vmem [thread:$0]  %s89, 128, %s642, [#allocation42], 64, 64, 4
    $region181: #{base_horse_race_predictor_forward.1} parent=1 // pred_fallthru
      _
    // Predicated region
    $region182: #{base_horse_race_predictor_forward.1} parent=1 // pred_check
      _
    $region183: #{base_horse_race_predictor_forward.1} parent=1 // pred_check_branch
      %649 = sbr.rel (0) target = $region185
    $region184: #{base_horse_race_predictor_forward.1} parent=1 // pred_region
      %s651 = ssub.s32 16, 16
      %652 = vsyncadd [#allocation45], %s651
      %s654 = sshll.u32 [#allocation44], 4
      %s655 = int_to_ptr.vmem [resolvable:$true] %s654
      %657 = dma.hbm_to_vmem [thread:$0]  %s91, 16, %s655, [#allocation45]
    $region185: #{base_horse_race_predictor_forward.1} parent=1 // pred_fallthru
      _
    // Predicated region
    $region186: #{base_horse_race_predictor_forward.1} parent=1 // pred_check
      _
    $region187: #{base_horse_race_predictor_forward.1} parent=1 // pred_check_branch
      %659 = sbr.rel (0) target = $region189
    $region188: #{base_horse_race_predictor_forward.1} parent=1 // pred_region
      %s661 = ssub.s32 128, 128
      %662 = vsyncadd [#allocation45], %s661
      %s663 = sshll.u32 [#allocation46], 4
      %s664 = int_to_ptr.vmem [resolvable:$true] %s663
      %669 = dma.hbm_to_vmem [thread:$0]  %s93, 128, %s664, [#allocation45], 64, 64, 4
    $region189: #{base_horse_race_predictor_forward.1} parent=1 // pred_fallthru
      _
    // Predicated region
    $region190: #{base_horse_race_predictor_forward.1} parent=1 // pred_check
      _
    $region191: #{base_horse_race_predictor_forward.1} parent=1 // pred_check_branch
      %671 = sbr.rel (0) target = $region193
    $region192: #{base_horse_race_predictor_forward.1} parent=1 // pred_region
      %s673 = ssub.s32 16, 16
      %674 = vsyncadd [#allocation48], %s673
      %s676 = sshll.u32 [#allocation47], 4
      %s677 = int_to_ptr.vmem [resolvable:$true] %s676
      %679 = dma.hbm_to_vmem [thread:$0]  %s95, 16, %s677, [#allocation48]
    $region193: #{base_horse_race_predictor_forward.1} parent=1 // pred_fallthru
      _
    // Predicated region
    $region194: #{base_horse_race_predictor_forward.1} parent=1 // pred_check
      _
    $region195: #{base_horse_race_predictor_forward.1} parent=1 // pred_check_branch
      %681 = sbr.rel (0) target = $region197
    $region196: #{base_horse_race_predictor_forward.1} parent=1 // pred_region
      %s683 = ssub.s32 256, 256
      %684 = vsyncadd [#allocation48], %s683
      %s685 = sshll.u32 [#allocation49], 4
      %s686 = int_to_ptr.vmem [resolvable:$true] %s685
      %691 = dma.hbm_to_vmem [thread:$0]  %s97, 256, %s686, [#allocation48], 64, 64, 4
    $region197: #{base_horse_race_predictor_forward.1} parent=1 // pred_fallthru
      _
    // Predicated region
    $region198: #{base_horse_race_predictor_forward.1} parent=1 // pred_check
      _
    $region199: #{base_horse_race_predictor_forward.1} parent=1 // pred_check_branch
      %693 = sbr.rel (0) target = $region201
    $region200: #{base_horse_race_predictor_forward.1} parent=1 // pred_region
      %s695 = ssub.s32 16, 16
      %696 = vsyncadd [#allocation51], %s695
      %s698 = sshll.u32 [#allocation50], 4
      %s699 = int_to_ptr.vmem [resolvable:$true] %s698
      %701 = dma.hbm_to_vmem [thread:$0]  %s99, 16, %s699, [#allocation51]
    $region201: #{base_horse_race_predictor_forward.1} parent=1 // pred_fallthru
      _
    // Predicated region
    $region202: #{base_horse_race_predictor_forward.1} parent=1 // pred_check
      _
    $region203: #{base_horse_race_predictor_forward.1} parent=1 // pred_check_branch
      %703 = sbr.rel (0) target = $region205
    $region204: #{base_horse_race_predictor_forward.1} parent=1 // pred_region
      %s705 = ssub.s32 512, 512
      %706 = vsyncadd [#allocation51], %s705
      %s707 = sshll.u32 [#allocation52], 4
      %s708 = int_to_ptr.vmem [resolvable:$true] %s707
      %713 = dma.hbm_to_vmem [thread:$0]  %s101, 512, %s708, [#allocation51], 64, 64, 4
    $region205: #{base_horse_race_predictor_forward.1} parent=1 // pred_fallthru
      _
    // Predicated region
    $region206: #{base_horse_race_predictor_forward.1} parent=1 // pred_check
      _
    $region207: #{base_horse_race_predictor_forward.1} parent=1 // pred_check_branch
      %715 = sbr.rel (0) target = $region209
    $region208: #{base_horse_race_predictor_forward.1} parent=1 // pred_region
      %s717 = ssub.s32 16, 16
      %718 = vsyncadd [#allocation54], %s717
      %s720 = sshll.u32 [#allocation53], 4
      %s721 = int_to_ptr.vmem [resolvable:$true] %s720
      %723 = dma.hbm_to_vmem [thread:$0]  %s103, 16, %s721, [#allocation54]
    $region209: #{base_horse_race_predictor_forward.1} parent=1 // pred_fallthru
      _
    // Predicated region
    $region210: #{base_horse_race_predictor_forward.1} parent=1 // pred_check
      _
    $region211: #{base_horse_race_predictor_forward.1} parent=1 // pred_check_branch
      %725 = sbr.rel (0) target = $region213
    $region212: #{base_horse_race_predictor_forward.1} parent=1 // pred_region
      %s727 = ssub.s32 512, 512
      %728 = vsyncadd [#allocation54], %s727
      %s729 = sshll.u32 [#allocation55], 4
      %s730 = int_to_ptr.vmem [resolvable:$true] %s729
      %735 = dma.hbm_to_vmem [thread:$0]  %s105, 512, %s730, [#allocation54], 64, 64, 4
    $region213: #{base_horse_race_predictor_forward.1} parent=1 // pred_fallthru
      _
    // Predicated region
    $region214: #{base_horse_race_predictor_forward.1} parent=1 // pred_check
      _
    $region215: #{base_horse_race_predictor_forward.1} parent=1 // pred_check_branch
      %737 = sbr.rel (0) target = $region217
    $region216: #{base_horse_race_predictor_forward.1} parent=1 // pred_region
      %s739 = ssub.s32 16, 16
      %740 = vsyncadd [#allocation57], %s739
      %s742 = sshll.u32 [#allocation56], 4
      %s743 = int_to_ptr.vmem [resolvable:$true] %s742
      %745 = dma.hbm_to_vmem [thread:$0]  %s107, 16, %s743, [#allocation57]
    $region217: #{base_horse_race_predictor_forward.1} parent=1 // pred_fallthru
      _
    // Predicated region
    $region218: #{base_horse_race_predictor_forward.1} parent=1 // pred_check
      _
    $region219: #{base_horse_race_predictor_forward.1} parent=1 // pred_check_branch
      %747 = sbr.rel (0) target = $region221
    $region220: #{base_horse_race_predictor_forward.1} parent=1 // pred_region
      %s749 = ssub.s32 512, 512
      %750 = vsyncadd [#allocation57], %s749
      %s751 = sshll.u32 [#allocation58], 4
      %s752 = int_to_ptr.vmem [resolvable:$true] %s751
      %757 = dma.hbm_to_vmem [thread:$0]  %s109, 512, %s752, [#allocation57], 64, 64, 4
    $region221: #{base_horse_race_predictor_forward.1} parent=1 // pred_fallthru
      _
    // Predicated region
    $region222: #{base_horse_race_predictor_forward.1} parent=1 // pred_check
      _
    $region223: #{base_horse_race_predictor_forward.1} parent=1 // pred_check_branch
      %759 = sbr.rel (0) target = $region225
    $region224: #{base_horse_race_predictor_forward.1} parent=1 // pred_region
      %s761 = ssub.s32 16, 16
      %762 = vsyncadd [#allocation60], %s761
      %s764 = sshll.u32 [#allocation59], 4
      %s765 = int_to_ptr.vmem [resolvable:$true] %s764
      %767 = dma.hbm_to_vmem [thread:$0]  %s111, 16, %s765, [#allocation60]
    $region225: #{base_horse_race_predictor_forward.1} parent=1 // pred_fallthru
      _
    // Predicated region
    $region226: #{base_horse_race_predictor_forward.1} parent=1 // pred_check
      _
    $region227: #{base_horse_race_predictor_forward.1} parent=1 // pred_check_branch
      %769 = sbr.rel (0) target = $region229
    $region228: #{base_horse_race_predictor_forward.1} parent=1 // pred_region
      %s771 = ssub.s32 1024, 1024
      %772 = vsyncadd [#allocation60], %s771
      %s773 = sshll.u32 [#allocation61], 4
      %s774 = int_to_ptr.vmem [resolvable:$true] %s773
      %779 = dma.hbm_to_vmem [thread:$0]  %s113, 1024, %s774, [#allocation60], 64, 64, 4
    $region229: #{base_horse_race_predictor_forward.1} parent=1 // pred_fallthru
      _
    // Predicated region
    $region230: #{base_horse_race_predictor_forward.1} parent=1 // pred_check
      _
    $region231: #{base_horse_race_predictor_forward.1} parent=1 // pred_check_branch
      %781 = sbr.rel (0) target = $region233
    $region232: #{base_horse_race_predictor_forward.1} parent=1 // pred_region
      %s783 = ssub.s32 16, 16
      %784 = vsyncadd [#allocation63], %s783
      %s786 = sshll.u32 [#allocation62], 4
      %s787 = int_to_ptr.vmem [resolvable:$true] %s786
      %789 = dma.hbm_to_vmem [thread:$0]  %s115, 16, %s787, [#allocation63]
    $region233: #{base_horse_race_predictor_forward.1} parent=1 // pred_fallthru
      _
    // Predicated region
    $region234: #{base_horse_race_predictor_forward.1} parent=1 // pred_check
      _
    $region235: #{base_horse_race_predictor_forward.1} parent=1 // pred_check_branch
      %791 = sbr.rel (0) target = $region237
    $region236: #{base_horse_race_predictor_forward.1} parent=1 // pred_region
      %s793 = ssub.s32 512, 512
      %794 = vsyncadd [#allocation63], %s793
      %s795 = sshll.u32 [#allocation64], 4
      %s796 = int_to_ptr.vmem [resolvable:$true] %s795
      %801 = dma.hbm_to_vmem [thread:$0]  %s117, 512, %s796, [#allocation63], 64, 64, 4
    $region237: #{base_horse_race_predictor_forward.1} parent=1 // pred_fallthru
      _
    // Predicated region
    $region238: #{base_horse_race_predictor_forward.1} parent=1 // pred_check
      _
    $region239: #{base_horse_race_predictor_forward.1} parent=1 // pred_check_branch
      %803 = sbr.rel (0) target = $region241
    $region240: #{base_horse_race_predictor_forward.1} parent=1 // pred_region
      %s805 = ssub.s32 16, 16
      %806 = vsyncadd [#allocation66], %s805
      %s808 = sshll.u32 [#allocation65], 4
      %s809 = int_to_ptr.vmem [resolvable:$true] %s808
      %811 = dma.hbm_to_vmem [thread:$0]  %s119, 16, %s809, [#allocation66]
    $region241: #{base_horse_race_predictor_forward.1} parent=1 // pred_fallthru
      _
    // Predicated region
    $region242: #{base_horse_race_predictor_forward.1} parent=1 // pred_check
      _
    $region243: #{base_horse_race_predictor_forward.1} parent=1 // pred_check_branch
      %813 = sbr.rel (0) target = $region245
    $region244: #{base_horse_race_predictor_forward.1} parent=1 // pred_region
      %s815 = ssub.s32 1024, 1024
      %816 = vsyncadd [#allocation66], %s815
      %s817 = sshll.u32 [#allocation67], 4
      %s818 = int_to_ptr.vmem [resolvable:$true] %s817
      %823 = dma.hbm_to_vmem [thread:$0]  %s121, 1024, %s818, [#allocation66], 64, 64, 4
    $region245: #{base_horse_race_predictor_forward.1} parent=1 // pred_fallthru
      _
    // Predicated region
    $region246: #{base_horse_race_predictor_forward.1} parent=1 // pred_check
      _
    $region247: #{base_horse_race_predictor_forward.1} parent=1 // pred_check_branch
      %825 = sbr.rel (0) target = $region249
    $region248: #{base_horse_race_predictor_forward.1} parent=1 // pred_region
      %s827 = ssub.s32 16, 16
      %828 = vsyncadd [#allocation69], %s827
      %s830 = sshll.u32 [#allocation68], 4
      %s831 = int_to_ptr.vmem [resolvable:$true] %s830
      %833 = dma.hbm_to_vmem [thread:$0]  %s123, 16, %s831, [#allocation69]
    $region249: #{base_horse_race_predictor_forward.1} parent=1 // pred_fallthru
      _
    // Predicated region
    $region250: #{base_horse_race_predictor_forward.1} parent=1 // pred_check
      _
    $region251: #{base_horse_race_predictor_forward.1} parent=1 // pred_check_branch
      %835 = sbr.rel (0) target = $region253
    $region252: #{base_horse_race_predictor_forward.1} parent=1 // pred_region
      %s837 = ssub.s32 512, 512
      %838 = vsyncadd [#allocation69], %s837
      %s839 = sshll.u32 [#allocation70], 4
      %s840 = int_to_ptr.vmem [resolvable:$true] %s839
      %845 = dma.hbm_to_vmem [thread:$0]  %s125, 512, %s840, [#allocation69], 64, 64, 4
    $region253: #{base_horse_race_predictor_forward.1} parent=1 // pred_fallthru
      _
    // Predicated region
    $region254: #{base_horse_race_predictor_forward.1} parent=1 // pred_check
      _
    $region255: #{base_horse_race_predictor_forward.1} parent=1 // pred_check_branch
      %847 = sbr.rel (0) target = $region257
    $region256: #{base_horse_race_predictor_forward.1} parent=1 // pred_region
      %s849 = ssub.s32 16, 16
      %850 = vsyncadd [#allocation72], %s849
      %s852 = sshll.u32 [#allocation71], 4
      %s853 = int_to_ptr.vmem [resolvable:$true] %s852
      %855 = dma.hbm_to_vmem [thread:$0]  %s127, 16, %s853, [#allocation72]
    $region257: #{base_horse_race_predictor_forward.1} parent=1 // pred_fallthru
      _
    // Predicated region
    $region258: #{base_horse_race_predictor_forward.1} parent=1 // pred_check
      _
    $region259: #{base_horse_race_predictor_forward.1} parent=1 // pred_check_branch
      %857 = sbr.rel (0) target = $region261
    $region260: #{base_horse_race_predictor_forward.1} parent=1 // pred_region
      %s859 = ssub.s32 1024, 1024
      %860 = vsyncadd [#allocation72], %s859
      %s861 = sshll.u32 [#allocation73], 4
      %s862 = int_to_ptr.vmem [resolvable:$true] %s861
      %867 = dma.hbm_to_vmem [thread:$0]  %s129, 1024, %s862, [#allocation72], 64, 64, 4
    $region261: #{base_horse_race_predictor_forward.1} parent=1 // pred_fallthru
      _
    // Predicated region
    $region262: #{base_horse_race_predictor_forward.1} parent=1 // pred_check
      _
    $region263: #{base_horse_race_predictor_forward.1} parent=1 // pred_check_branch
      %869 = sbr.rel (0) target = $region265
    $region264: #{base_horse_race_predictor_forward.1} parent=1 // pred_region
      %s871 = ssub.s32 16, 16
      %872 = vsyncadd [#allocation75], %s871
      %s874 = sshll.u32 [#allocation74], 4
      %s875 = int_to_ptr.vmem [resolvable:$true] %s874
      %877 = dma.hbm_to_vmem [thread:$0]  %s131, 16, %s875, [#allocation75]
    $region265: #{base_horse_race_predictor_forward.1} parent=1 // pred_fallthru
      _
    // Predicated region
    $region266: #{base_horse_race_predictor_forward.1} parent=1 // pred_check
      _
    $region267: #{base_horse_race_predictor_forward.1} parent=1 // pred_check_branch
      %879 = sbr.rel (0) target = $region269
    $region268: #{base_horse_race_predictor_forward.1} parent=1 // pred_region
      %s881 = ssub.s32 512, 512
      %882 = vsyncadd [#allocation75], %s881
      %s883 = sshll.u32 [#allocation76], 4
      %s884 = int_to_ptr.vmem [resolvable:$true] %s883
      %889 = dma.hbm_to_vmem [thread:$0]  %s133, 512, %s884, [#allocation75], 64, 64, 4
    $region269: #{base_horse_race_predictor_forward.1} parent=1 // pred_fallthru
      _
    // Predicated region
    $region270: #{base_horse_race_predictor_forward.1} parent=1 // pred_check
      _
    $region271: #{base_horse_race_predictor_forward.1} parent=1 // pred_check_branch
      %891 = sbr.rel (0) target = $region273
    $region272: #{base_horse_race_predictor_forward.1} parent=1 // pred_region
      %s893 = ssub.s32 16, 16
      %894 = vsyncadd [#allocation78], %s893
      %s896 = sshll.u32 [#allocation77], 4
      %s897 = int_to_ptr.vmem [resolvable:$true] %s896
      %899 = dma.hbm_to_vmem [thread:$0]  %s135, 16, %s897, [#allocation78]
    $region273: #{base_horse_race_predictor_forward.1} parent=1 // pred_fallthru
      _
    // Predicated region
    $region274: #{base_horse_race_predictor_forward.1} parent=1 // pred_check
      _
    $region275: #{base_horse_race_predictor_forward.1} parent=1 // pred_check_branch
      %901 = sbr.rel (0) target = $region277
    $region276: #{base_horse_race_predictor_forward.1} parent=1 // pred_region
      %s903 = ssub.s32 256, 256
      %904 = vsyncadd [#allocation78], %s903
      %s905 = sshll.u32 [#allocation79], 4
      %s906 = int_to_ptr.vmem [resolvable:$true] %s905
      %911 = dma.hbm_to_vmem [thread:$0]  %s137, 256, %s906, [#allocation78], 64, 64, 4
    $region277: #{base_horse_race_predictor_forward.1} parent=1 // pred_fallthru
      _
    // Predicated region
    $region278: #{base_horse_race_predictor_forward.1} parent=1 // pred_check
      _
    $region279: #{base_horse_race_predictor_forward.1} parent=1 // pred_check_branch
      %913 = sbr.rel (0) target = $region281
    $region280: #{base_horse_race_predictor_forward.1} parent=1 // pred_region
      %s915 = ssub.s32 16, 16
      %916 = vsyncadd [#allocation81], %s915
      %s918 = sshll.u32 [#allocation80], 4
      %s919 = int_to_ptr.vmem [resolvable:$true] %s918
      %921 = dma.hbm_to_vmem [thread:$0]  %s139, 16, %s919, [#allocation81]
    $region281: #{base_horse_race_predictor_forward.1} parent=1 // pred_fallthru
      _
    // Predicated region
    $region282: #{base_horse_race_predictor_forward.1} parent=1 // pred_check
      _
    $region283: #{base_horse_race_predictor_forward.1} parent=1 // pred_check_branch
      %923 = sbr.rel (0) target = $region285
    $region284: #{base_horse_race_predictor_forward.1} parent=1 // pred_region
      %s925 = ssub.s32 512, 512
      %926 = vsyncadd [#allocation81], %s925
      %s927 = sshll.u32 [#allocation82], 4
      %s928 = int_to_ptr.vmem [resolvable:$true] %s927
      %933 = dma.hbm_to_vmem [thread:$0]  %s141, 512, %s928, [#allocation81], 64, 64, 4
    $region285: #{base_horse_race_predictor_forward.1} parent=1 // pred_fallthru
      _
    // Predicated region
    $region286: #{base_horse_race_predictor_forward.1} parent=1 // pred_check
      _
    $region287: #{base_horse_race_predictor_forward.1} parent=1 // pred_check_branch
      %935 = sbr.rel (0) target = $region289
    $region288: #{base_horse_race_predictor_forward.1} parent=1 // pred_region
      %s937 = ssub.s32 16, 16
      %938 = vsyncadd [#allocation84], %s937
      %s940 = sshll.u32 [#allocation83], 4
      %s941 = int_to_ptr.vmem [resolvable:$true] %s940
      %943 = dma.hbm_to_vmem [thread:$0]  %s143, 16, %s941, [#allocation84]
    $region289: #{base_horse_race_predictor_forward.1} parent=1 // pred_fallthru
      _
    // Predicated region
    $region290: #{base_horse_race_predictor_forward.1} parent=1 // pred_check
      _
    $region291: #{base_horse_race_predictor_forward.1} parent=1 // pred_check_branch
      %945 = sbr.rel (0) target = $region293
    $region292: #{base_horse_race_predictor_forward.1} parent=1 // pred_region
      %s947 = ssub.s32 1024, 1024
      %948 = vsyncadd [#allocation84], %s947
      %s949 = sshll.u32 [#allocation85], 4
      %s950 = int_to_ptr.vmem [resolvable:$true] %s949
      %955 = dma.hbm_to_vmem [thread:$0]  %s145, 1024, %s950, [#allocation84], 64, 64, 4
    $region293: #{base_horse_race_predictor_forward.1} parent=1 // pred_fallthru
      _
    // Predicated region
    $region294: #{base_horse_race_predictor_forward.1} parent=1 // pred_check
      _
    $region295: #{base_horse_race_predictor_forward.1} parent=1 // pred_check_branch
      %957 = sbr.rel (0) target = $region297
    $region296: #{base_horse_race_predictor_forward.1} parent=1 // pred_region
      %s959 = ssub.s32 16, 16
      %960 = vsyncadd [#allocation87], %s959
      %s962 = sshll.u32 [#allocation86], 4
      %s963 = int_to_ptr.vmem [resolvable:$true] %s962
      %965 = dma.hbm_to_vmem [thread:$0]  %s147, 16, %s963, [#allocation87]
    $region297: #{base_horse_race_predictor_forward.1} parent=1 // pred_fallthru
      _
    // Predicated region
    $region298: #{base_horse_race_predictor_forward.1} parent=1 // pred_check
      _
    $region299: #{base_horse_race_predictor_forward.1} parent=1 // pred_check_branch
      %967 = sbr.rel (0) target = $region301
    $region300: #{base_horse_race_predictor_forward.1} parent=1 // pred_region
      %s969 = ssub.s32 1024, 1024
      %970 = vsyncadd [#allocation87], %s969
      %s971 = sshll.u32 [#allocation88], 4
      %s972 = int_to_ptr.vmem [resolvable:$true] %s971
      %977 = dma.hbm_to_vmem [thread:$0]  %s149, 1024, %s972, [#allocation87], 64, 64, 4
    $region301: #{base_horse_race_predictor_forward.1} parent=1 // pred_fallthru
      _
    // Predicated region
    $region302: #{base_horse_race_predictor_forward.1} parent=1 // pred_check
      _
    $region303: #{base_horse_race_predictor_forward.1} parent=1 // pred_check_branch
      %979 = sbr.rel (0) target = $region305
    $region304: #{base_horse_race_predictor_forward.1} parent=1 // pred_region
      %s981 = ssub.s32 16, 16
      %982 = vsyncadd [#allocation90], %s981
      %s984 = sshll.u32 [#allocation89], 4
      %s985 = int_to_ptr.vmem [resolvable:$true] %s984
      %987 = dma.hbm_to_vmem [thread:$0]  %s151, 16, %s985, [#allocation90]
    $region305: #{base_horse_race_predictor_forward.1} parent=1 // pred_fallthru
      _
    // Predicated region
    $region306: #{base_horse_race_predictor_forward.1} parent=1 // pred_check
      _
    $region307: #{base_horse_race_predictor_forward.1} parent=1 // pred_check_branch
      %989 = sbr.rel (0) target = $region309
    $region308: #{base_horse_race_predictor_forward.1} parent=1 // pred_region
      %s991 = ssub.s32 1024, 1024
      %992 = vsyncadd [#allocation90], %s991
      %s993 = sshll.u32 [#allocation91], 4
      %s994 = int_to_ptr.vmem [resolvable:$true] %s993
      %999 = dma.hbm_to_vmem [thread:$0]  %s153, 1024, %s994, [#allocation90], 64, 64, 4
    $region309: #{base_horse_race_predictor_forward.1} parent=1 // pred_fallthru
      _
    // Predicated region
    $region310: #{base_horse_race_predictor_forward.1} parent=1 // pred_check
      _
    $region311: #{base_horse_race_predictor_forward.1} parent=1 // pred_check_branch
      %1001 = sbr.rel (0) target = $region313
    $region312: #{base_horse_race_predictor_forward.1} parent=1 // pred_region
      %s1003 = ssub.s32 16, 16
      %1004 = vsyncadd [#allocation93], %s1003
      %s1006 = sshll.u32 [#allocation92], 4
      %s1007 = int_to_ptr.vmem [resolvable:$true] %s1006
      %1009 = dma.hbm_to_vmem [thread:$0]  %s155, 16, %s1007, [#allocation93]
    $region313: #{base_horse_race_predictor_forward.1} parent=1 // pred_fallthru
      _
    // Predicated region
    $region314: #{base_horse_race_predictor_forward.1} parent=1 // pred_check
      _
    $region315: #{base_horse_race_predictor_forward.1} parent=1 // pred_check_branch
      %1011 = sbr.rel (0) target = $region317
    $region316: #{base_horse_race_predictor_forward.1} parent=1 // pred_region
      %s1013 = ssub.s32 1024, 1024
      %1014 = vsyncadd [#allocation93], %s1013
      %s1015 = sshll.u32 [#allocation94], 4
      %s1016 = int_to_ptr.vmem [resolvable:$true] %s1015
      %1021 = dma.hbm_to_vmem [thread:$0]  %s157, 1024, %s1016, [#allocation93], 64, 64, 4
    $region317: #{base_horse_race_predictor_forward.1} parent=1 // pred_fallthru
      _
    // Predicated region
    $region318: #{base_horse_race_predictor_forward.1} parent=1 // pred_check
      _
    $region319: #{base_horse_race_predictor_forward.1} parent=1 // pred_check_branch
      %1023 = sbr.rel (0) target = $region321
    $region320: #{base_horse_race_predictor_forward.1} parent=1 // pred_region
      %s1025 = ssub.s32 16, 16
      %1026 = vsyncadd [#allocation96], %s1025
      %s1028 = sshll.u32 [#allocation95], 4
      %s1029 = int_to_ptr.vmem [resolvable:$true] %s1028
      %1031 = dma.hbm_to_vmem [thread:$0]  %s159, 16, %s1029, [#allocation96]
    $region321: #{base_horse_race_predictor_forward.1} parent=1 // pred_fallthru
      _
    // Predicated region
    $region322: #{base_horse_race_predictor_forward.1} parent=1 // pred_check
      _
    $region323: #{base_horse_race_predictor_forward.1} parent=1 // pred_check_branch
      %1033 = sbr.rel (0) target = $region325
    $region324: #{base_horse_race_predictor_forward.1} parent=1 // pred_region
      %s1035 = ssub.s32 1024, 1024
      %1036 = vsyncadd [#allocation96], %s1035
      %s1037 = sshll.u32 [#allocation97], 4
      %s1038 = int_to_ptr.vmem [resolvable:$true] %s1037
      %1043 = dma.hbm_to_vmem [thread:$0]  %s161, 1024, %s1038, [#allocation96], 64, 64, 4
    $region325: #{base_horse_race_predictor_forward.1} parent=1 // pred_fallthru
      _
    // Predicated region
    $region326: #{base_horse_race_predictor_forward.1} parent=1 // pred_check
      _
    $region327: #{base_horse_race_predictor_forward.1} parent=1 // pred_check_branch
      %1045 = sbr.rel (0) target = $region329
    $region328: #{base_horse_race_predictor_forward.1} parent=1 // pred_region
      %s1047 = ssub.s32 16, 16
      %1048 = vsyncadd [#allocation99], %s1047
      %s1050 = sshll.u32 [#allocation98], 4
      %s1051 = int_to_ptr.vmem [resolvable:$true] %s1050
      %1053 = dma.hbm_to_vmem [thread:$0]  %s163, 16, %s1051, [#allocation99]
    $region329: #{base_horse_race_predictor_forward.1} parent=1 // pred_fallthru
      _
    // Predicated region
    $region330: #{base_horse_race_predictor_forward.1} parent=1 // pred_check
      _
    $region331: #{base_horse_race_predictor_forward.1} parent=1 // pred_check_branch
      %1055 = sbr.rel (0) target = $region333
    $region332: #{base_horse_race_predictor_forward.1} parent=1 // pred_region
      %s1057 = ssub.s32 512, 512
      %1058 = vsyncadd [#allocation99], %s1057
      %s1059 = sshll.u32 [#allocation100], 4
      %s1060 = int_to_ptr.vmem [resolvable:$true] %s1059
      %1065 = dma.hbm_to_vmem [thread:$0]  %s165, 512, %s1060, [#allocation99], 64, 64, 4
    $region333: #{base_horse_race_predictor_forward.1} parent=1 // pred_fallthru
      _
    // Predicated region
    $region334: #{base_horse_race_predictor_forward.1} parent=1 // pred_check
      _
    $region335: #{base_horse_race_predictor_forward.1} parent=1 // pred_check_branch
      %1067 = sbr.rel (0) target = $region337
    $region336: #{base_horse_race_predictor_forward.1} parent=1 // pred_region
      %s1069 = ssub.s32 16, 16
      %1070 = vsyncadd [#allocation102], %s1069
      %s1072 = sshll.u32 [#allocation101], 4
      %s1073 = int_to_ptr.vmem [resolvable:$true] %s1072
      %1075 = dma.hbm_to_vmem [thread:$0]  %s167, 16, %s1073, [#allocation102]
    $region337: #{base_horse_race_predictor_forward.1} parent=1 // pred_fallthru
      _
    // Predicated region
    $region338: #{base_horse_race_predictor_forward.1} parent=1 // pred_check
      _
    $region339: #{base_horse_race_predictor_forward.1} parent=1 // pred_check_branch
      %1077 = sbr.rel (0) target = $region341
    $region340: #{base_horse_race_predictor_forward.1} parent=1 // pred_region
      %s1079 = ssub.s32 1024, 1024
      %1080 = vsyncadd [#allocation102], %s1079
      %s1081 = sshll.u32 [#allocation103], 4
      %s1082 = int_to_ptr.vmem [resolvable:$true] %s1081
      %1087 = dma.hbm_to_vmem [thread:$0]  %s169, 1024, %s1082, [#allocation102], 64, 64, 4
    $region341: #{base_horse_race_predictor_forward.1} parent=1 // pred_fallthru
      _
    // Predicated region
    $region342: #{base_horse_race_predictor_forward.1} parent=1 // pred_check
      _
    $region343: #{base_horse_race_predictor_forward.1} parent=1 // pred_check_branch
      %1089 = sbr.rel (0) target = $region345
    $region344: #{base_horse_race_predictor_forward.1} parent=1 // pred_region
      %s1091 = ssub.s32 16, 16
      %1092 = vsyncadd [#allocation105], %s1091
      %s1094 = sshll.u32 [#allocation104], 4
      %s1095 = int_to_ptr.vmem [resolvable:$true] %s1094
      %1097 = dma.hbm_to_vmem [thread:$0]  %s171, 16, %s1095, [#allocation105]
    $region345: #{base_horse_race_predictor_forward.1} parent=1 // pred_fallthru
      _
    // Predicated region
    $region346: #{base_horse_race_predictor_forward.1} parent=1 // pred_check
      _
    $region347: #{base_horse_race_predictor_forward.1} parent=1 // pred_check_branch
      %1099 = sbr.rel (0) target = $region349
    $region348: #{base_horse_race_predictor_forward.1} parent=1 // pred_region
      %s1101 = ssub.s32 512, 512
      %1102 = vsyncadd [#allocation105], %s1101
      %s1103 = sshll.u32 [#allocation106], 4
      %s1104 = int_to_ptr.vmem [resolvable:$true] %s1103
      %1109 = dma.hbm_to_vmem [thread:$0]  %s173, 512, %s1104, [#allocation105], 64, 64, 4
    $region349: #{base_horse_race_predictor_forward.1} parent=1 // pred_fallthru
      _
    // Predicated region
    $region350: #{base_horse_race_predictor_forward.1} parent=1 // pred_check
      _
    $region351: #{base_horse_race_predictor_forward.1} parent=1 // pred_check_branch
      %1111 = sbr.rel (0) target = $region353
    $region352: #{base_horse_race_predictor_forward.1} parent=1 // pred_region
      %s1113 = ssub.s32 16, 16
      %1114 = vsyncadd [#allocation108], %s1113
      %s1116 = sshll.u32 [#allocation107], 4
      %s1117 = int_to_ptr.vmem [resolvable:$true] %s1116
      %1119 = dma.hbm_to_vmem [thread:$0]  %s175, 16, %s1117, [#allocation108]
    $region353: #{base_horse_race_predictor_forward.1} parent=1 // pred_fallthru
      _
    // Predicated region
    $region354: #{base_horse_race_predictor_forward.1} parent=1 // pred_check
      _
    $region355: #{base_horse_race_predictor_forward.1} parent=1 // pred_check_branch
      %1121 = sbr.rel (0) target = $region357
    $region356: #{base_horse_race_predictor_forward.1} parent=1 // pred_region
      %s1123 = ssub.s32 256, 256
      %1124 = vsyncadd [#allocation108], %s1123
      %s1125 = sshll.u32 [#allocation109], 4
      %s1126 = int_to_ptr.vmem [resolvable:$true] %s1125
      %1131 = dma.hbm_to_vmem [thread:$0]  %s177, 256, %s1126, [#allocation108], 64, 64, 4
    $region357: #{base_horse_race_predictor_forward.1} parent=1 // pred_fallthru
      _
    // Predicated region
    $region358: #{base_horse_race_predictor_forward.1} parent=1 // pred_check
      _
    $region359: #{base_horse_race_predictor_forward.1} parent=1 // pred_check_branch
      %1133 = sbr.rel (0) target = $region361
    $region360: #{base_horse_race_predictor_forward.1} parent=1 // pred_region
      %s1135 = ssub.s32 16, 16
      %1136 = vsyncadd [#allocation111], %s1135
      %s1138 = sshll.u32 [#allocation110], 4
      %s1139 = int_to_ptr.vmem [resolvable:$true] %s1138
      %1141 = dma.hbm_to_vmem [thread:$0]  %s179, 16, %s1139, [#allocation111]
    $region361: #{base_horse_race_predictor_forward.1} parent=1 // pred_fallthru
      _
    // Predicated region
    $region362: #{base_horse_race_predictor_forward.1} parent=1 // pred_check
      _
    $region363: #{base_horse_race_predictor_forward.1} parent=1 // pred_check_branch
      %1143 = sbr.rel (0) target = $region365
    $region364: #{base_horse_race_predictor_forward.1} parent=1 // pred_region
      %s1145 = ssub.s32 512, 512
      %1146 = vsyncadd [#allocation111], %s1145
      %s1147 = sshll.u32 [#allocation112], 4
      %s1148 = int_to_ptr.vmem [resolvable:$true] %s1147
      %1153 = dma.hbm_to_vmem [thread:$0]  %s181, 512, %s1148, [#allocation111], 64, 64, 4
    $region365: #{base_horse_race_predictor_forward.1} parent=1 // pred_fallthru
      _
    // Predicated region
    $region366: #{base_horse_race_predictor_forward.1} parent=1 // pred_check
      _
    $region367: #{base_horse_race_predictor_forward.1} parent=1 // pred_check_branch
      %1155 = sbr.rel (0) target = $region369
    $region368: #{base_horse_race_predictor_forward.1} parent=1 // pred_region
      %s1157 = ssub.s32 16, 16
      %1158 = vsyncadd [#allocation114], %s1157
      %s1160 = sshll.u32 [#allocation113], 4
      %s1161 = int_to_ptr.vmem [resolvable:$true] %s1160
      %1163 = dma.hbm_to_vmem [thread:$0]  %s183, 16, %s1161, [#allocation114]
    $region369: #{base_horse_race_predictor_forward.1} parent=1 // pred_fallthru
      _
    // Predicated region
    $region370: #{base_horse_race_predictor_forward.1} parent=1 // pred_check
      _
    $region371: #{base_horse_race_predictor_forward.1} parent=1 // pred_check_branch
      %1165 = sbr.rel (0) target = $region373
    $region372: #{base_horse_race_predictor_forward.1} parent=1 // pred_region
      %s1167 = ssub.s32 256, 256
      %1168 = vsyncadd [#allocation114], %s1167
      %s1169 = sshll.u32 [#allocation115], 4
      %s1170 = int_to_ptr.vmem [resolvable:$true] %s1169
      %1175 = dma.hbm_to_vmem [thread:$0]  %s185, 256, %s1170, [#allocation114], 64, 64, 4
    $region373: #{base_horse_race_predictor_forward.1} parent=1 // pred_fallthru
      _
    // Predicated region
    $region374: #{base_horse_race_predictor_forward.1} parent=1 // pred_check
      _
    $region375: #{base_horse_race_predictor_forward.1} parent=1 // pred_check_branch
      %1177 = sbr.rel (0) target = $region377
    $region376: #{base_horse_race_predictor_forward.1} parent=1 // pred_region
      %s1179 = ssub.s32 16, 16
      %1180 = vsyncadd [#allocation117], %s1179
      %s1182 = sshll.u32 [#allocation116], 4
      %s1183 = int_to_ptr.vmem [resolvable:$true] %s1182
      %1185 = dma.hbm_to_vmem [thread:$0]  %s187, 16, %s1183, [#allocation117]
    $region377: #{base_horse_race_predictor_forward.1} parent=1 // pred_fallthru
      _
    // Predicated region
    $region378: #{base_horse_race_predictor_forward.1} parent=1 // pred_check
      _
    $region379: #{base_horse_race_predictor_forward.1} parent=1 // pred_check_branch
      %1187 = sbr.rel (0) target = $region381
    $region380: #{base_horse_race_predictor_forward.1} parent=1 // pred_region
      %s1189 = ssub.s32 128, 128
      %1190 = vsyncadd [#allocation117], %s1189
      %s1191 = sshll.u32 [#allocation118], 4
      %s1192 = int_to_ptr.vmem [resolvable:$true] %s1191
      %1197 = dma.hbm_to_vmem [thread:$0]  %s189, 128, %s1192, [#allocation117], 64, 64, 4
    $region381: #{base_horse_race_predictor_forward.1} parent=1 // pred_fallthru
      _
    // Predicated region
    $region382: #{base_horse_race_predictor_forward.1} parent=1 // pred_check
      _
    $region383: #{base_horse_race_predictor_forward.1} parent=1 // pred_check_branch
      %1199 = sbr.rel (0) target = $region385
    $region384: #{base_horse_race_predictor_forward.1} parent=1 // pred_region
      %s1201 = ssub.s32 16, 16
      %1202 = vsyncadd [#allocation120], %s1201
      %s1204 = sshll.u32 [#allocation119], 4
      %s1205 = int_to_ptr.vmem [resolvable:$true] %s1204
      %1207 = dma.hbm_to_vmem [thread:$0]  %s191, 16, %s1205, [#allocation120]
    $region385: #{base_horse_race_predictor_forward.1} parent=1 // pred_fallthru
      _
    // Predicated region
    $region386: #{base_horse_race_predictor_forward.1} parent=1 // pred_check
      _
    $region387: #{base_horse_race_predictor_forward.1} parent=1 // pred_check_branch
      %1209 = sbr.rel (0) target = $region389
    $region388: #{base_horse_race_predictor_forward.1} parent=1 // pred_region
      %s1211 = ssub.s32 256, 256
      %1212 = vsyncadd [#allocation120], %s1211
      %s1213 = sshll.u32 [#allocation121], 4
      %s1214 = int_to_ptr.vmem [resolvable:$true] %s1213
      %1219 = dma.hbm_to_vmem [thread:$0]  %s193, 256, %s1214, [#allocation120], 64, 64, 4
    $region389: #{base_horse_race_predictor_forward.1} parent=1 // pred_fallthru
      _
    // Predicated region
    $region390: #{base_horse_race_predictor_forward.1} parent=1 // pred_check
      _
    $region391: #{base_horse_race_predictor_forward.1} parent=1 // pred_check_branch
      %1221 = sbr.rel (0) target = $region393
    $region392: #{base_horse_race_predictor_forward.1} parent=1 // pred_region
      %s1223 = ssub.s32 16, 16
      %1224 = vsyncadd [#allocation123], %s1223
      %s1226 = sshll.u32 [#allocation122], 4
      %s1227 = int_to_ptr.vmem [resolvable:$true] %s1226
      %1229 = dma.hbm_to_vmem [thread:$0]  %s195, 16, %s1227, [#allocation123]
    $region393: #{base_horse_race_predictor_forward.1} parent=1 // pred_fallthru
      _
    // Predicated region
    $region394: #{base_horse_race_predictor_forward.1} parent=1 // pred_check
      _
    $region395: #{base_horse_race_predictor_forward.1} parent=1 // pred_check_branch
      %1231 = sbr.rel (0) target = $region397
    $region396: #{base_horse_race_predictor_forward.1} parent=1 // pred_region
      %s1233 = ssub.s32 128, 128
      %1234 = vsyncadd [#allocation123], %s1233
      %s1235 = sshll.u32 [#allocation124], 4
      %s1236 = int_to_ptr.vmem [resolvable:$true] %s1235
      %1241 = dma.hbm_to_vmem [thread:$0]  %s197, 128, %s1236, [#allocation123], 64, 64, 4
    $region397: #{base_horse_race_predictor_forward.1} parent=1 // pred_fallthru
      _
    // Predicated region
    $region398: #{base_horse_race_predictor_forward.1} parent=1 // pred_check
      _
    $region399: #{base_horse_race_predictor_forward.1} parent=1 // pred_check_branch
      %1243 = sbr.rel (0) target = $region401
    $region400: #{base_horse_race_predictor_forward.1} parent=1 // pred_region
      %s1245 = ssub.s32 16, 16
      %1246 = vsyncadd [#allocation126], %s1245
      %s1248 = sshll.u32 [#allocation125], 4
      %s1249 = int_to_ptr.vmem [resolvable:$true] %s1248
      %1251 = dma.hbm_to_vmem [thread:$0]  %s199, 16, %s1249, [#allocation126]
    $region401: #{base_horse_race_predictor_forward.1} parent=1 // pred_fallthru
      _
    // Predicated region
    $region402: #{base_horse_race_predictor_forward.1} parent=1 // pred_check
      _
    $region403: #{base_horse_race_predictor_forward.1} parent=1 // pred_check_branch
      %1253 = sbr.rel (0) target = $region405
    $region404: #{base_horse_race_predictor_forward.1} parent=1 // pred_region
      %s1255 = ssub.s32 64, 64
      %1256 = vsyncadd [#allocation126], %s1255
      %s1258 = sshll.u32 [#allocation127], 4
      %s1259 = int_to_ptr.vmem [resolvable:$true] %s1258
      %1261 = dma.hbm_to_vmem [thread:$0]  %s201, 64, %s1259, [#allocation126]
    $region405: #{base_horse_race_predictor_forward.1} parent=1 // pred_fallthru
      _
    // Predicated region
    $region406: #{base_horse_race_predictor_forward.1} parent=1 // pred_check
      _
    $region407: #{base_horse_race_predictor_forward.1} parent=1 // pred_check_branch
      %1263 = sbr.rel (0) target = $region409
    $region408: #{base_horse_race_predictor_forward.1} parent=1 // pred_region
      %s1265 = ssub.s32 16, 16
      %1266 = vsyncadd [#allocation129], %s1265
      %s1268 = sshll.u32 [#allocation128], 4
      %s1269 = int_to_ptr.vmem [resolvable:$true] %s1268
      %1271 = dma.hbm_to_vmem [thread:$0]  %s203, 16, %s1269, [#allocation129]
    $region409: #{base_horse_race_predictor_forward.1} parent=1 // pred_fallthru
      _
    // Predicated region
    $region410: #{base_horse_race_predictor_forward.1} parent=1 // pred_check
      _
    $region411: #{base_horse_race_predictor_forward.1} parent=1 // pred_check_branch
      %1273 = sbr.rel (0) target = $region413
    $region412: #{base_horse_race_predictor_forward.1} parent=1 // pred_region
      %s1275 = ssub.s32 128, 128
      %1276 = vsyncadd [#allocation129], %s1275
      %s1277 = sshll.u32 [#allocation130], 4
      %s1278 = int_to_ptr.vmem [resolvable:$true] %s1277
      %1283 = dma.hbm_to_vmem [thread:$0]  %s205, 128, %s1278, [#allocation129], 64, 64, 4
    $region413: #{base_horse_race_predictor_forward.1} parent=1 // pred_fallthru
      _
    // Predicated region
    $region414: #{base_horse_race_predictor_forward.1} parent=1 // pred_check
      _
    $region415: #{base_horse_race_predictor_forward.1} parent=1 // pred_check_branch
      %1285 = sbr.rel (0) target = $region417
    $region416: #{base_horse_race_predictor_forward.1} parent=1 // pred_region
      %s1287 = ssub.s32 16, 16
      %1288 = vsyncadd [#allocation132], %s1287
      %s1290 = sshll.u32 [#allocation131], 4
      %s1291 = int_to_ptr.vmem [resolvable:$true] %s1290
      %1293 = dma.hbm_to_vmem [thread:$0]  %s207, 16, %s1291, [#allocation132]
    $region417: #{base_horse_race_predictor_forward.1} parent=1 // pred_fallthru
      _
    // Predicated region
    $region418: #{base_horse_race_predictor_forward.1} parent=1 // pred_check
      _
    $region419: #{base_horse_race_predictor_forward.1} parent=1 // pred_check_branch
      %1295 = sbr.rel (0) target = $region421
    $region420: #{base_horse_race_predictor_forward.1} parent=1 // pred_region
      _
    $region421: #{base_horse_race_predictor_forward.1} parent=1 // pred_fallthru
      _
    // Predicated region
    $region422: #{base_horse_race_predictor_forward.1} parent=1 // pred_check
      _
    $region423: #{base_horse_race_predictor_forward.1} parent=1 // pred_check_branch
      %1297 = sbr.rel (0) target = $region425
    $region424: #{base_horse_race_predictor_forward.1} parent=1 // pred_region
      %s1299 = ssub.s32 32, 32
      %1300 = vsyncadd [#allocation132], %s1299
      %s1302 = sshll.u32 [#allocation133], 4
      %s1303 = int_to_ptr.vmem [resolvable:$true] %s1302
      %1305 = dma.hbm_to_vmem [thread:$0]  %s211, 32, %s1303, [#allocation132]
    $region425: #{base_horse_race_predictor_forward.1} parent=1 // pred_fallthru
      _
    // Predicated region
    $region426: #{base_horse_race_predictor_forward.1} parent=1 // pred_check
      _
    $region427: #{base_horse_race_predictor_forward.1} parent=1 // pred_check_branch
      %1307 = sbr.rel (0) target = $region429
    $region428: #{base_horse_race_predictor_forward.1} parent=1 // pred_region
      _
    $region429: #{base_horse_race_predictor_forward.1} parent=1 // pred_fallthru
      _
    // Predicated region
    $region430: #{base_horse_race_predictor_forward.1} parent=1 // pred_check
      _
    $region431: #{base_horse_race_predictor_forward.1} parent=1 // pred_check_branch
      %1309 = sbr.rel (0) target = $region433
    $region432: #{base_horse_race_predictor_forward.1} parent=1 // pred_region
      %s1311 = ssub.s32 32, 32
      %1312 = vsyncadd [#allocation135], %s1311
      %s1314 = sshll.u32 [#allocation134], 4
      %s1315 = int_to_ptr.vmem [resolvable:$true] %s1314
      %1317 = dma.hbm_to_vmem [thread:$0]  %s215, 32, %s1315, [#allocation135]
    $region433: #{base_horse_race_predictor_forward.1} parent=1 // pred_fallthru
      _
    // Predicated region
    $region434: #{base_horse_race_predictor_forward.1} parent=1 // pred_check
      _
    $region435: #{base_horse_race_predictor_forward.1} parent=1 // pred_check_branch
      %1319 = sbr.rel (0) target = $region437
    $region436: #{base_horse_race_predictor_forward.1} parent=1 // pred_region
      _
    $region437: #{base_horse_race_predictor_forward.1} parent=1 // pred_fallthru
      _
    // Predicated region
    $region438: #{base_horse_race_predictor_forward.1} parent=1 // pred_check
      _
    $region439: #{base_horse_race_predictor_forward.1} parent=1 // pred_check_branch
      %1321 = sbr.rel (0) target = $region441
    $region440: #{base_horse_race_predictor_forward.1} parent=1 // pred_region
      %s1323 = ssub.s32 16, 16
      %1324 = vsyncadd [#allocation135], %s1323
      %s1326 = sshll.u32 [#allocation136], 4
      %s1327 = int_to_ptr.vmem [resolvable:$true] %s1326
      %1329 = dma.hbm_to_vmem [thread:$0]  %s219, 16, %s1327, [#allocation135]
    $region441: #{base_horse_race_predictor_forward.1} parent=1 // pred_fallthru
      _
    // Predicated region
    $region442: #{base_horse_race_predictor_forward.1} parent=1 // pred_check
      _
    $region443: #{base_horse_race_predictor_forward.1} parent=1 // pred_check_branch
      %1331 = sbr.rel (0) target = $region445
    $region444: #{base_horse_race_predictor_forward.1} parent=1 // pred_region
      %s1333 = ssub.s32 1024, 1024
      %1334 = vsyncadd [#allocation138], %s1333
      %s1335 = sshll.u32 [#allocation137], 4
      %s1336 = int_to_ptr.vmem [resolvable:$true] %s1335
      %1341 = dma.hbm_to_vmem [thread:$0]  %s221, 1024, %s1336, [#allocation138], 64, 64, 4
    $region445: #{base_horse_race_predictor_forward.1} parent=1 // pred_fallthru
      _
    // Predicated region
    $region446: #{base_horse_race_predictor_forward.1} parent=1 // pred_check
      _
    $region447: #{base_horse_race_predictor_forward.1} parent=1 // pred_check_branch
      %1343 = sbr.rel (0) target = $region449
    $region448: #{base_horse_race_predictor_forward.1} parent=1 // pred_region
      %s1345 = ssub.s32 16, 16
      %1346 = vsyncadd [#allocation138], %s1345
      %s1348 = sshll.u32 [#allocation139], 4
      %s1349 = int_to_ptr.vmem [resolvable:$true] %s1348
      %1351 = dma.hbm_to_vmem [thread:$0]  %s223, 16, %s1349, [#allocation138]
    $region449: #{base_horse_race_predictor_forward.1} parent=1 // pred_fallthru
      _
    // Predicated region
    $region450: #{base_horse_race_predictor_forward.1} parent=1 // pred_check
      _
    $region451: #{base_horse_race_predictor_forward.1} parent=1 // pred_check_branch
      %1353 = sbr.rel (0) target = $region453
    $region452: #{base_horse_race_predictor_forward.1} parent=1 // pred_region
      _
    $region453: #{base_horse_race_predictor_forward.1} parent=1 // pred_fallthru
      _
    // Predicated region
    $region454: #{base_horse_race_predictor_forward.1} parent=1 // pred_check
      _
    $region455: #{base_horse_race_predictor_forward.1} parent=1 // pred_check_branch
      %1355 = sbr.rel (0) target = $region457
    $region456: #{base_horse_race_predictor_forward.1} parent=1 // pred_region
      %s1357 = ssub.s32 16, 16
      %1358 = vsyncadd [#allocation141], %s1357
      %s1360 = sshll.u32 [#allocation140], 4
      %s1361 = int_to_ptr.vmem [resolvable:$true] %s1360
      %1363 = dma.hbm_to_vmem [thread:$0]  %s227, 16, %s1361, [#allocation141]
    $region457: #{base_horse_race_predictor_forward.1} parent=1 // pred_fallthru
      _
    // Predicated region
    $region458: #{base_horse_race_predictor_forward.1} parent=1 // pred_check
      _
    $region459: #{base_horse_race_predictor_forward.1} parent=1 // pred_check_branch
      %1365 = sbr.rel (0) target = $region461
    $region460: #{base_horse_race_predictor_forward.1} parent=1 // pred_region
      %s1367 = ssub.s32 1024, 1024
      %1368 = vsyncadd [#allocation141], %s1367
      %s1369 = sshll.u32 [#allocation142], 4
      %s1370 = int_to_ptr.vmem [resolvable:$true] %s1369
      %1375 = dma.hbm_to_vmem [thread:$0]  %s229, 1024, %s1370, [#allocation141], 64, 64, 4
    $region461: #{base_horse_race_predictor_forward.1} parent=1 // pred_fallthru
      _
    // Predicated region
    $region462: #{base_horse_race_predictor_forward.1} parent=1 // pred_check
      _
    $region463: #{base_horse_race_predictor_forward.1} parent=1 // pred_check_branch
      %1377 = sbr.rel (0) target = $region465
    $region464: #{base_horse_race_predictor_forward.1} parent=1 // pred_region
      %s1379 = ssub.s32 16, 16
      %1380 = vsyncadd [#allocation144], %s1379
      %s1382 = sshll.u32 [#allocation143], 4
      %s1383 = int_to_ptr.vmem [resolvable:$true] %s1382
      %1385 = dma.hbm_to_vmem [thread:$0]  %s231, 16, %s1383, [#allocation144]
    $region465: #{base_horse_race_predictor_forward.1} parent=1 // pred_fallthru
      _
    // Predicated region
    $region466: #{base_horse_race_predictor_forward.1} parent=1 // pred_check
      _
    $region467: #{base_horse_race_predictor_forward.1} parent=1 // pred_check_branch
      %1387 = sbr.rel (0) target = $region469
    $region468: #{base_horse_race_predictor_forward.1} parent=1 // pred_region
      %s1389 = ssub.s32 512, 512
      %1390 = vsyncadd [#allocation144], %s1389
      %s1391 = sshll.u32 [#allocation145], 4
      %s1392 = int_to_ptr.vmem [resolvable:$true] %s1391
      %1397 = dma.hbm_to_vmem [thread:$0]  %s233, 512, %s1392, [#allocation144], 64, 64, 4
    $region469: #{base_horse_race_predictor_forward.1} parent=1 // pred_fallthru
      _
    // Predicated region
    $region470: #{base_horse_race_predictor_forward.1} parent=1 // pred_check
      _
    $region471: #{base_horse_race_predictor_forward.1} parent=1 // pred_check_branch
      %1399 = sbr.rel (0) target = $region473
    $region472: #{base_horse_race_predictor_forward.1} parent=1 // pred_region
      %s1401 = ssub.s32 16, 16
      %1402 = vsyncadd [#allocation147], %s1401
      %s1404 = sshll.u32 [#allocation146], 4
      %s1405 = int_to_ptr.vmem [resolvable:$true] %s1404
      %1407 = dma.hbm_to_vmem [thread:$0]  %s235, 16, %s1405, [#allocation147]
    $region473: #{base_horse_race_predictor_forward.1} parent=1 // pred_fallthru
      _
    // Predicated region
    $region474: #{base_horse_race_predictor_forward.1} parent=1 // pred_check
      _
    $region475: #{base_horse_race_predictor_forward.1} parent=1 // pred_check_branch
      %1409 = sbr.rel (0) target = $region477
    $region476: #{base_horse_race_predictor_forward.1} parent=1 // pred_region
      %s1411 = ssub.s32 1024, 1024
      %1412 = vsyncadd [#allocation147], %s1411
      %s1413 = sshll.u32 [#allocation148], 4
      %s1414 = int_to_ptr.vmem [resolvable:$true] %s1413
      %1419 = dma.hbm_to_vmem [thread:$0]  %s237, 1024, %s1414, [#allocation147], 64, 64, 4
    $region477: #{base_horse_race_predictor_forward.1} parent=1 // pred_fallthru
      _
    // Predicated region
    $region478: #{base_horse_race_predictor_forward.1} parent=1 // pred_check
      _
    $region479: #{base_horse_race_predictor_forward.1} parent=1 // pred_check_branch
      %1421 = sbr.rel (0) target = $region481
    $region480: #{base_horse_race_predictor_forward.1} parent=1 // pred_region
      %s1423 = ssub.s32 16, 16
      %1424 = vsyncadd [#allocation150], %s1423
      %s1426 = sshll.u32 [#allocation149], 4
      %s1427 = int_to_ptr.vmem [resolvable:$true] %s1426
      %1429 = dma.hbm_to_vmem [thread:$0]  %s239, 16, %s1427, [#allocation150]
    $region481: #{base_horse_race_predictor_forward.1} parent=1 // pred_fallthru
      _
    // Predicated region
    $region482: #{base_horse_race_predictor_forward.1} parent=1 // pred_check
      _
    $region483: #{base_horse_race_predictor_forward.1} parent=1 // pred_check_branch
      %1431 = sbr.rel (0) target = $region485
    $region484: #{base_horse_race_predictor_forward.1} parent=1 // pred_region
      %s1433 = ssub.s32 512, 512
      %1434 = vsyncadd [#allocation150], %s1433
      %s1435 = sshll.u32 [#allocation151], 4
      %s1436 = int_to_ptr.vmem [resolvable:$true] %s1435
      %1441 = dma.hbm_to_vmem [thread:$0]  %s241, 512, %s1436, [#allocation150], 64, 64, 4
    $region485: #{base_horse_race_predictor_forward.1} parent=1 // pred_fallthru
      _
    // Predicated region
    $region486: #{base_horse_race_predictor_forward.1} parent=1 // pred_check
      _
    $region487: #{base_horse_race_predictor_forward.1} parent=1 // pred_check_branch
      %1443 = sbr.rel (0) target = $region489
    $region488: #{base_horse_race_predictor_forward.1} parent=1 // pred_region
      %s1445 = ssub.s32 16, 16
      %1446 = vsyncadd [#allocation3], %s1445
      %s1448 = sshll.u32 [#allocation152], 4
      %s1449 = int_to_ptr.vmem [resolvable:$true] %s1448
      %1451 = dma.hbm_to_vmem [thread:$0]  %s243, 16, %s1449, [#allocation3]
    $region489: #{base_horse_race_predictor_forward.1} parent=1 // pred_fallthru
      _
    // Predicated region
    $region490: #{base_horse_race_predictor_forward.1} parent=1 // pred_check
      _
    $region491: #{base_horse_race_predictor_forward.1} parent=1 // pred_check_branch
      %1453 = sbr.rel (0) target = $region493
    $region492: #{base_horse_race_predictor_forward.1} parent=1 // pred_region
      %s1455 = ssub.s32 768, 768
      %1456 = vsyncadd [#allocation6], %s1455
      %s1457 = sshll.u32 [#allocation153], 4
      %s1458 = int_to_ptr.vmem [resolvable:$true] %s1457
      %1463 = dma.hbm_to_vmem [thread:$0]  %s245, 768, %s1458, [#allocation6], 64, 64, 4
    $region493: #{base_horse_race_predictor_forward.1} parent=1 // pred_fallthru
      _
    // Predicated region
    $region494: #{base_horse_race_predictor_forward.1} parent=1 // pred_check
      _
    $region495: #{base_horse_race_predictor_forward.1} parent=1 // pred_check_branch
      %1465 = sbr.rel (0) target = $region497
    $region496: #{base_horse_race_predictor_forward.1} parent=1 // pred_region
      %s1467 = ssub.s32 16, 16
      %1468 = vsyncadd [#allocation9], %s1467
      %s1470 = sshll.u32 [#allocation154], 4
      %s1471 = int_to_ptr.vmem [resolvable:$true] %s1470
      %1473 = dma.hbm_to_vmem [thread:$0]  %s247, 16, %s1471, [#allocation9]
    $region497: #{base_horse_race_predictor_forward.1} parent=1 // pred_fallthru
      _
    // Predicated region
    $region498: #{base_horse_race_predictor_forward.1} parent=1 // pred_check
      _
    $region499: #{base_horse_race_predictor_forward.1} parent=1 // pred_check_branch
      %1475 = sbr.rel (0) target = $region501
    $region500: #{base_horse_race_predictor_forward.1} parent=1 // pred_region
      %s1477 = ssub.s32 512, 512
      %1478 = vsyncadd [#allocation12], %s1477
      %s1479 = sshll.u32 [#allocation155], 4
      %s1480 = int_to_ptr.vmem [resolvable:$true] %s1479
      %1485 = dma.hbm_to_vmem [thread:$0]  %s249, 512, %s1480, [#allocation12], 64, 64, 4
    $region501: #{base_horse_race_predictor_forward.1} parent=1 // pred_fallthru
      _
    // Predicated region
    $region502: #{base_horse_race_predictor_forward.1} parent=1 // pred_check
      _
    $region503: #{base_horse_race_predictor_forward.1} parent=1 // pred_check_branch
      %1487 = sbr.rel (0) target = $region505
    $region504: #{base_horse_race_predictor_forward.1} parent=1 // pred_region
      %s1489 = ssub.s32 16, 16
      %1490 = vsyncadd [#allocation15], %s1489
      %s1492 = sshll.u32 [#allocation156], 4
      %s1493 = int_to_ptr.vmem [resolvable:$true] %s1492
      %1495 = dma.hbm_to_vmem [thread:$0]  %s251, 16, %s1493, [#allocation15]
    $region505: #{base_horse_race_predictor_forward.1} parent=1 // pred_fallthru
      _
    // Predicated region
    $region506: #{base_horse_race_predictor_forward.1} parent=1 // pred_check
      _
    $region507: #{base_horse_race_predictor_forward.1} parent=1 // pred_check_branch
      %1497 = sbr.rel (0) target = $region509
    $region508: #{base_horse_race_predictor_forward.1} parent=1 // pred_region
      %1498 = dma.done [#allocation3], 256
    $region509: #{base_horse_race_predictor_forward.1} parent=1 // pred_fallthru
      _
    // Predicated region
    $region510: #{base_horse_race_predictor_forward.1} parent=1 // pred_check
      _
    $region511: #{base_horse_race_predictor_forward.1} parent=1 // pred_check_branch
      %1500 = sbr.rel (0) target = $region513
    $region512: #{base_horse_race_predictor_forward.1} parent=1 // pred_region
      %1501 = dma.done [#allocation6], 256
    $region513: #{base_horse_race_predictor_forward.1} parent=1 // pred_fallthru
      _
    // Predicated region
    $region514: #{base_horse_race_predictor_forward.1} parent=1 // pred_check
      _
    $region515: #{base_horse_race_predictor_forward.1} parent=1 // pred_check_branch
      %1503 = sbr.rel (0) target = $region517
    $region516: #{base_horse_race_predictor_forward.1} parent=1 // pred_region
      %1504 = dma.done [#allocation6], 256
    $region517: #{base_horse_race_predictor_forward.1} parent=1 // pred_fallthru
      _
    // Predicated region
    $region518: #{base_horse_race_predictor_forward.1} parent=1 // pred_check
      _
    $region519: #{base_horse_race_predictor_forward.1} parent=1 // pred_check_branch
      %1506 = sbr.rel (0) target = $region521
    $region520: #{base_horse_race_predictor_forward.1} parent=1 // pred_region
      %1507 = dma.done [#allocation9], 256
    $region521: #{base_horse_race_predictor_forward.1} parent=1 // pred_fallthru
      _
    // Predicated region
    $region522: #{base_horse_race_predictor_forward.1} parent=1 // pred_check
      _
    $region523: #{base_horse_race_predictor_forward.1} parent=1 // pred_check_branch
      %1509 = sbr.rel (0) target = $region525
    $region524: #{base_horse_race_predictor_forward.1} parent=1 // pred_region
      %1510 = dma.done [#allocation9], 128
    $region525: #{base_horse_race_predictor_forward.1} parent=1 // pred_fallthru
      _
    // Predicated region
    $region526: #{base_horse_race_predictor_forward.1} parent=1 // pred_check
      _
    $region527: #{base_horse_race_predictor_forward.1} parent=1 // pred_check_branch
      %1512 = sbr.rel (0) target = $region529
    $region528: #{base_horse_race_predictor_forward.1} parent=1 // pred_region
      %1513 = dma.done [#allocation12], 16
    $region529: #{base_horse_race_predictor_forward.1} parent=1 // pred_fallthru
      _
    // Predicated region
    $region530: #{base_horse_race_predictor_forward.1} parent=1 // pred_check
      _
    $region531: #{base_horse_race_predictor_forward.1} parent=1 // pred_check_branch
      %1515 = sbr.rel (0) target = $region533
    $region532: #{base_horse_race_predictor_forward.1} parent=1 // pred_region
      %1516 = dma.done [#allocation12], 16
    $region533: #{base_horse_race_predictor_forward.1} parent=1 // pred_fallthru
      _
    // Predicated region
    $region534: #{base_horse_race_predictor_forward.1} parent=1 // pred_check
      _
    $region535: #{base_horse_race_predictor_forward.1} parent=1 // pred_check_branch
      %1518 = sbr.rel (0) target = $region537
    $region536: #{base_horse_race_predictor_forward.1} parent=1 // pred_region
      %1519 = dma.done [#allocation15], 16
    $region537: #{base_horse_race_predictor_forward.1} parent=1 // pred_fallthru
      _
    // Predicated region
    $region538: #{base_horse_race_predictor_forward.1} parent=1 // pred_check
      _
    $region539: #{base_horse_race_predictor_forward.1} parent=1 // pred_check_branch
      %1521 = sbr.rel (0) target = $region541
    $region540: #{base_horse_race_predictor_forward.1} parent=1 // pred_region
      %1522 = dma.done [#allocation15], 576
    $region541: #{base_horse_race_predictor_forward.1} parent=1 // pred_fallthru
      _
    // Predicated region
    $region542: #{base_horse_race_predictor_forward.1} parent=1 // pred_check
      _
    $region543: #{base_horse_race_predictor_forward.1} parent=1 // pred_check_branch
      %1524 = sbr.rel (0) target = $region545
    $region544: #{base_horse_race_predictor_forward.1} parent=1 // pred_region
      %1525 = dma.done [#allocation18], 16
    $region545: #{base_horse_race_predictor_forward.1} parent=1 // pred_fallthru
      _
    // Predicated region
    $region546: #{base_horse_race_predictor_forward.1} parent=1 // pred_check
      _
    $region547: #{base_horse_race_predictor_forward.1} parent=1 // pred_check_branch
      %1527 = sbr.rel (0) target = $region549
    $region548: #{base_horse_race_predictor_forward.1} parent=1 // pred_region
      %1528 = dma.done [#allocation18], 576
    $region549: #{base_horse_race_predictor_forward.1} parent=1 // pred_fallthru
      _
    // Predicated region
    $region550: #{base_horse_race_predictor_forward.1} parent=1 // pred_check
      _
    $region551: #{base_horse_race_predictor_forward.1} parent=1 // pred_check_branch
      %1530 = sbr.rel (0) target = $region553
    $region552: #{base_horse_race_predictor_forward.1} parent=1 // pred_region
      %1531 = dma.done [#allocation21], 16
    $region553: #{base_horse_race_predictor_forward.1} parent=1 // pred_fallthru
      _
    // Predicated region
    $region554: #{base_horse_race_predictor_forward.1} parent=1 // pred_check
      _
    $region555: #{base_horse_race_predictor_forward.1} parent=1 // pred_check_branch
      %1533 = sbr.rel (0) target = $region557
    $region556: #{base_horse_race_predictor_forward.1} parent=1 // pred_region
      %1534 = dma.done [#allocation21], 16
    $region557: #{base_horse_race_predictor_forward.1} parent=1 // pred_fallthru
      _
    // Predicated region
    $region558: #{base_horse_race_predictor_forward.1} parent=1 // pred_check
      _
    $region559: #{base_horse_race_predictor_forward.1} parent=1 // pred_check_branch
      %1536 = sbr.rel (0) target = $region561
    $region560: #{base_horse_race_predictor_forward.1} parent=1 // pred_region
      %1537 = dma.done [#allocation24], 576
    $region561: #{base_horse_race_predictor_forward.1} parent=1 // pred_fallthru
      _
    // Predicated region
    $region562: #{base_horse_race_predictor_forward.1} parent=1 // pred_check
      _
    $region563: #{base_horse_race_predictor_forward.1} parent=1 // pred_check_branch
      %1539 = sbr.rel (0) target = $region565
    $region564: #{base_horse_race_predictor_forward.1} parent=1 // pred_region
      %1540 = dma.done [#allocation24], 16
    $region565: #{base_horse_race_predictor_forward.1} parent=1 // pred_fallthru
      _
    // Predicated region
    $region566: #{base_horse_race_predictor_forward.1} parent=1 // pred_check
      _
    $region567: #{base_horse_race_predictor_forward.1} parent=1 // pred_check_branch
      %1542 = sbr.rel (0) target = $region569
    $region568: #{base_horse_race_predictor_forward.1} parent=1 // pred_region
      %1543 = dma.done [#allocation27], 16
    $region569: #{base_horse_race_predictor_forward.1} parent=1 // pred_fallthru
      _
    // Predicated region
    $region570: #{base_horse_race_predictor_forward.1} parent=1 // pred_check
      _
    $region571: #{base_horse_race_predictor_forward.1} parent=1 // pred_check_branch
      %1545 = sbr.rel (0) target = $region573
    $region572: #{base_horse_race_predictor_forward.1} parent=1 // pred_region
      %1546 = dma.done [#allocation27], 512
    $region573: #{base_horse_race_predictor_forward.1} parent=1 // pred_fallthru
      _
    // Predicated region
    $region574: #{base_horse_race_predictor_forward.1} parent=1 // pred_check
      _
    $region575: #{base_horse_race_predictor_forward.1} parent=1 // pred_check_branch
      %1548 = sbr.rel (0) target = $region577
    $region576: #{base_horse_race_predictor_forward.1} parent=1 // pred_region
      %1549 = dma.done [#allocation30], 16
    $region577: #{base_horse_race_predictor_forward.1} parent=1 // pred_fallthru
      _
    // Predicated region
    $region578: #{base_horse_race_predictor_forward.1} parent=1 // pred_check
      _
    $region579: #{base_horse_race_predictor_forward.1} parent=1 // pred_check_branch
      %1551 = sbr.rel (0) target = $region581
    $region580: #{base_horse_race_predictor_forward.1} parent=1 // pred_region
      %1552 = dma.done [#allocation30], 1024
    $region581: #{base_horse_race_predictor_forward.1} parent=1 // pred_fallthru
      _
    // Predicated region
    $region582: #{base_horse_race_predictor_forward.1} parent=1 // pred_check
      _
    $region583: #{base_horse_race_predictor_forward.1} parent=1 // pred_check_branch
      %1554 = sbr.rel (0) target = $region585
    $region584: #{base_horse_race_predictor_forward.1} parent=1 // pred_region
      %1555 = dma.done [#allocation33], 16
    $region585: #{base_horse_race_predictor_forward.1} parent=1 // pred_fallthru
      _
    // Predicated region
    $region586: #{base_horse_race_predictor_forward.1} parent=1 // pred_check
      _
    $region587: #{base_horse_race_predictor_forward.1} parent=1 // pred_check_branch
      %1557 = sbr.rel (0) target = $region589
    $region588: #{base_horse_race_predictor_forward.1} parent=1 // pred_region
      %1558 = dma.done [#allocation33], 512
    $region589: #{base_horse_race_predictor_forward.1} parent=1 // pred_fallthru
      _
    // Predicated region
    $region590: #{base_horse_race_predictor_forward.1} parent=1 // pred_check
      _
    $region591: #{base_horse_race_predictor_forward.1} parent=1 // pred_check_branch
      %1560 = sbr.rel (0) target = $region593
    $region592: #{base_horse_race_predictor_forward.1} parent=1 // pred_region
      %1561 = dma.done [#allocation36], 16
    $region593: #{base_horse_race_predictor_forward.1} parent=1 // pred_fallthru
      _
    // Predicated region
    $region594: #{base_horse_race_predictor_forward.1} parent=1 // pred_check
      _
    $region595: #{base_horse_race_predictor_forward.1} parent=1 // pred_check_branch
      %1563 = sbr.rel (0) target = $region597
    $region596: #{base_horse_race_predictor_forward.1} parent=1 // pred_region
      %1564 = dma.done [#allocation36], 256
    $region597: #{base_horse_race_predictor_forward.1} parent=1 // pred_fallthru
      _
    // Predicated region
    $region598: #{base_horse_race_predictor_forward.1} parent=1 // pred_check
      _
    $region599: #{base_horse_race_predictor_forward.1} parent=1 // pred_check_branch
      %1566 = sbr.rel (0) target = $region601
    $region600: #{base_horse_race_predictor_forward.1} parent=1 // pred_region
      %1567 = dma.done [#allocation39], 16
    $region601: #{base_horse_race_predictor_forward.1} parent=1 // pred_fallthru
      _
    // Predicated region
    $region602: #{base_horse_race_predictor_forward.1} parent=1 // pred_check
      _
    $region603: #{base_horse_race_predictor_forward.1} parent=1 // pred_check_branch
      %1569 = sbr.rel (0) target = $region605
    $region604: #{base_horse_race_predictor_forward.1} parent=1 // pred_region
      %1570 = dma.done [#allocation39], 512
    $region605: #{base_horse_race_predictor_forward.1} parent=1 // pred_fallthru
      _
    // Predicated region
    $region606: #{base_horse_race_predictor_forward.1} parent=1 // pred_check
      _
    $region607: #{base_horse_race_predictor_forward.1} parent=1 // pred_check_branch
      %1572 = sbr.rel (0) target = $region609
    $region608: #{base_horse_race_predictor_forward.1} parent=1 // pred_region
      %1573 = dma.done [#allocation42], 16
    $region609: #{base_horse_race_predictor_forward.1} parent=1 // pred_fallthru
      _
    // Predicated region
    $region610: #{base_horse_race_predictor_forward.1} parent=1 // pred_check
      _
    $region611: #{base_horse_race_predictor_forward.1} parent=1 // pred_check_branch
      %1575 = sbr.rel (0) target = $region613
    $region612: #{base_horse_race_predictor_forward.1} parent=1 // pred_region
      %1576 = dma.done [#allocation42], 128
    $region613: #{base_horse_race_predictor_forward.1} parent=1 // pred_fallthru
      _
    // Predicated region
    $region614: #{base_horse_race_predictor_forward.1} parent=1 // pred_check
      _
    $region615: #{base_horse_race_predictor_forward.1} parent=1 // pred_check_branch
      %1578 = sbr.rel (0) target = $region617
    $region616: #{base_horse_race_predictor_forward.1} parent=1 // pred_region
      %1579 = dma.done [#allocation45], 16
    $region617: #{base_horse_race_predictor_forward.1} parent=1 // pred_fallthru
      _
    // Predicated region
    $region618: #{base_horse_race_predictor_forward.1} parent=1 // pred_check
      _
    $region619: #{base_horse_race_predictor_forward.1} parent=1 // pred_check_branch
      %1581 = sbr.rel (0) target = $region621
    $region620: #{base_horse_race_predictor_forward.1} parent=1 // pred_region
      %1582 = dma.done [#allocation45], 128
    $region621: #{base_horse_race_predictor_forward.1} parent=1 // pred_fallthru
      _
    // Predicated region
    $region622: #{base_horse_race_predictor_forward.1} parent=1 // pred_check
      _
    $region623: #{base_horse_race_predictor_forward.1} parent=1 // pred_check_branch
      %1584 = sbr.rel (0) target = $region625
    $region624: #{base_horse_race_predictor_forward.1} parent=1 // pred_region
      %1585 = dma.done [#allocation48], 16
    $region625: #{base_horse_race_predictor_forward.1} parent=1 // pred_fallthru
      _
    // Predicated region
    $region626: #{base_horse_race_predictor_forward.1} parent=1 // pred_check
      _
    $region627: #{base_horse_race_predictor_forward.1} parent=1 // pred_check_branch
      %1587 = sbr.rel (0) target = $region629
    $region628: #{base_horse_race_predictor_forward.1} parent=1 // pred_region
      %1588 = dma.done [#allocation48], 256
    $region629: #{base_horse_race_predictor_forward.1} parent=1 // pred_fallthru
      _
    // Predicated region
    $region630: #{base_horse_race_predictor_forward.1} parent=1 // pred_check
      _
    $region631: #{base_horse_race_predictor_forward.1} parent=1 // pred_check_branch
      %1590 = sbr.rel (0) target = $region633
    $region632: #{base_horse_race_predictor_forward.1} parent=1 // pred_region
      %1591 = dma.done [#allocation51], 16
    $region633: #{base_horse_race_predictor_forward.1} parent=1 // pred_fallthru
      _
    // Predicated region
    $region634: #{base_horse_race_predictor_forward.1} parent=1 // pred_check
      _
    $region635: #{base_horse_race_predictor_forward.1} parent=1 // pred_check_branch
      %1593 = sbr.rel (0) target = $region637
    $region636: #{base_horse_race_predictor_forward.1} parent=1 // pred_region
      %1594 = dma.done [#allocation51], 512
    $region637: #{base_horse_race_predictor_forward.1} parent=1 // pred_fallthru
      _
    // Predicated region
    $region638: #{base_horse_race_predictor_forward.1} parent=1 // pred_check
      _
    $region639: #{base_horse_race_predictor_forward.1} parent=1 // pred_check_branch
      %1596 = sbr.rel (0) target = $region641
    $region640: #{base_horse_race_predictor_forward.1} parent=1 // pred_region
      %1597 = dma.done [#allocation54], 16
    $region641: #{base_horse_race_predictor_forward.1} parent=1 // pred_fallthru
      _
    // Predicated region
    $region642: #{base_horse_race_predictor_forward.1} parent=1 // pred_check
      _
    $region643: #{base_horse_race_predictor_forward.1} parent=1 // pred_check_branch
      %1599 = sbr.rel (0) target = $region645
    $region644: #{base_horse_race_predictor_forward.1} parent=1 // pred_region
      %1600 = dma.done [#allocation54], 512
    $region645: #{base_horse_race_predictor_forward.1} parent=1 // pred_fallthru
      _
    // Predicated region
    $region646: #{base_horse_race_predictor_forward.1} parent=1 // pred_check
      _
    $region647: #{base_horse_race_predictor_forward.1} parent=1 // pred_check_branch
      %1602 = sbr.rel (0) target = $region649
    $region648: #{base_horse_race_predictor_forward.1} parent=1 // pred_region
      %1603 = dma.done [#allocation57], 16
    $region649: #{base_horse_race_predictor_forward.1} parent=1 // pred_fallthru
      _
    // Predicated region
    $region650: #{base_horse_race_predictor_forward.1} parent=1 // pred_check
      _
    $region651: #{base_horse_race_predictor_forward.1} parent=1 // pred_check_branch
      %1605 = sbr.rel (0) target = $region653
    $region652: #{base_horse_race_predictor_forward.1} parent=1 // pred_region
      %1606 = dma.done [#allocation57], 512
    $region653: #{base_horse_race_predictor_forward.1} parent=1 // pred_fallthru
      _
    // Predicated region
    $region654: #{base_horse_race_predictor_forward.1} parent=1 // pred_check
      _
    $region655: #{base_horse_race_predictor_forward.1} parent=1 // pred_check_branch
      %1608 = sbr.rel (0) target = $region657
    $region656: #{base_horse_race_predictor_forward.1} parent=1 // pred_region
      %1609 = dma.done [#allocation60], 16
    $region657: #{base_horse_race_predictor_forward.1} parent=1 // pred_fallthru
      _
    // Predicated region
    $region658: #{base_horse_race_predictor_forward.1} parent=1 // pred_check
      _
    $region659: #{base_horse_race_predictor_forward.1} parent=1 // pred_check_branch
      %1611 = sbr.rel (0) target = $region661
    $region660: #{base_horse_race_predictor_forward.1} parent=1 // pred_region
      %1612 = dma.done [#allocation60], 1024
    $region661: #{base_horse_race_predictor_forward.1} parent=1 // pred_fallthru
      _
    // Predicated region
    $region662: #{base_horse_race_predictor_forward.1} parent=1 // pred_check
      _
    $region663: #{base_horse_race_predictor_forward.1} parent=1 // pred_check_branch
      %1614 = sbr.rel (0) target = $region665
    $region664: #{base_horse_race_predictor_forward.1} parent=1 // pred_region
      %1615 = dma.done [#allocation63], 16
    $region665: #{base_horse_race_predictor_forward.1} parent=1 // pred_fallthru
      _
    // Predicated region
    $region666: #{base_horse_race_predictor_forward.1} parent=1 // pred_check
      _
    $region667: #{base_horse_race_predictor_forward.1} parent=1 // pred_check_branch
      %1617 = sbr.rel (0) target = $region669
    $region668: #{base_horse_race_predictor_forward.1} parent=1 // pred_region
      %1618 = dma.done [#allocation63], 512
    $region669: #{base_horse_race_predictor_forward.1} parent=1 // pred_fallthru
      _
    // Predicated region
    $region670: #{base_horse_race_predictor_forward.1} parent=1 // pred_check
      _
    $region671: #{base_horse_race_predictor_forward.1} parent=1 // pred_check_branch
      %1620 = sbr.rel (0) target = $region673
    $region672: #{base_horse_race_predictor_forward.1} parent=1 // pred_region
      %1621 = dma.done [#allocation66], 16
    $region673: #{base_horse_race_predictor_forward.1} parent=1 // pred_fallthru
      _
    // Predicated region
    $region674: #{base_horse_race_predictor_forward.1} parent=1 // pred_check
      _
    $region675: #{base_horse_race_predictor_forward.1} parent=1 // pred_check_branch
      %1623 = sbr.rel (0) target = $region677
    $region676: #{base_horse_race_predictor_forward.1} parent=1 // pred_region
      %1624 = dma.done [#allocation66], 1024
    $region677: #{base_horse_race_predictor_forward.1} parent=1 // pred_fallthru
      _
    // Predicated region
    $region678: #{base_horse_race_predictor_forward.1} parent=1 // pred_check
      _
    $region679: #{base_horse_race_predictor_forward.1} parent=1 // pred_check_branch
      %1626 = sbr.rel (0) target = $region681
    $region680: #{base_horse_race_predictor_forward.1} parent=1 // pred_region
      %1627 = dma.done [#allocation69], 16
    $region681: #{base_horse_race_predictor_forward.1} parent=1 // pred_fallthru
      _
    // Predicated region
    $region682: #{base_horse_race_predictor_forward.1} parent=1 // pred_check
      _
    $region683: #{base_horse_race_predictor_forward.1} parent=1 // pred_check_branch
      %1629 = sbr.rel (0) target = $region685
    $region684: #{base_horse_race_predictor_forward.1} parent=1 // pred_region
      %1630 = dma.done [#allocation69], 512
    $region685: #{base_horse_race_predictor_forward.1} parent=1 // pred_fallthru
      _
    // Predicated region
    $region686: #{base_horse_race_predictor_forward.1} parent=1 // pred_check
      _
    $region687: #{base_horse_race_predictor_forward.1} parent=1 // pred_check_branch
      %1632 = sbr.rel (0) target = $region689
    $region688: #{base_horse_race_predictor_forward.1} parent=1 // pred_region
      %1633 = dma.done [#allocation72], 16
    $region689: #{base_horse_race_predictor_forward.1} parent=1 // pred_fallthru
      _
    // Predicated region
    $region690: #{base_horse_race_predictor_forward.1} parent=1 // pred_check
      _
    $region691: #{base_horse_race_predictor_forward.1} parent=1 // pred_check_branch
      %1635 = sbr.rel (0) target = $region693
    $region692: #{base_horse_race_predictor_forward.1} parent=1 // pred_region
      %1636 = dma.done [#allocation72], 1024
    $region693: #{base_horse_race_predictor_forward.1} parent=1 // pred_fallthru
      _
    // Predicated region
    $region694: #{base_horse_race_predictor_forward.1} parent=1 // pred_check
      _
    $region695: #{base_horse_race_predictor_forward.1} parent=1 // pred_check_branch
      %1638 = sbr.rel (0) target = $region697
    $region696: #{base_horse_race_predictor_forward.1} parent=1 // pred_region
      %1639 = dma.done [#allocation75], 16
    $region697: #{base_horse_race_predictor_forward.1} parent=1 // pred_fallthru
      _
    // Predicated region
    $region698: #{base_horse_race_predictor_forward.1} parent=1 // pred_check
      _
    $region699: #{base_horse_race_predictor_forward.1} parent=1 // pred_check_branch
      %1641 = sbr.rel (0) target = $region701
    $region700: #{base_horse_race_predictor_forward.1} parent=1 // pred_region
      %1642 = dma.done [#allocation75], 512
    $region701: #{base_horse_race_predictor_forward.1} parent=1 // pred_fallthru
      _
    // Predicated region
    $region702: #{base_horse_race_predictor_forward.1} parent=1 // pred_check
      _
    $region703: #{base_horse_race_predictor_forward.1} parent=1 // pred_check_branch
      %1644 = sbr.rel (0) target = $region705
    $region704: #{base_horse_race_predictor_forward.1} parent=1 // pred_region
      %1645 = dma.done [#allocation78], 16
    $region705: #{base_horse_race_predictor_forward.1} parent=1 // pred_fallthru
      _
    // Predicated region
    $region706: #{base_horse_race_predictor_forward.1} parent=1 // pred_check
      _
    $region707: #{base_horse_race_predictor_forward.1} parent=1 // pred_check_branch
      %1647 = sbr.rel (0) target = $region709
    $region708: #{base_horse_race_predictor_forward.1} parent=1 // pred_region
      %1648 = dma.done [#allocation78], 256
    $region709: #{base_horse_race_predictor_forward.1} parent=1 // pred_fallthru
      _
    // Predicated region
    $region710: #{base_horse_race_predictor_forward.1} parent=1 // pred_check
      _
    $region711: #{base_horse_race_predictor_forward.1} parent=1 // pred_check_branch
      %1650 = sbr.rel (0) target = $region713
    $region712: #{base_horse_race_predictor_forward.1} parent=1 // pred_region
      %1651 = dma.done [#allocation81], 16
    $region713: #{base_horse_race_predictor_forward.1} parent=1 // pred_fallthru
      _
    // Predicated region
    $region714: #{base_horse_race_predictor_forward.1} parent=1 // pred_check
      _
    $region715: #{base_horse_race_predictor_forward.1} parent=1 // pred_check_branch
      %1653 = sbr.rel (0) target = $region717
    $region716: #{base_horse_race_predictor_forward.1} parent=1 // pred_region
      %1654 = dma.done [#allocation81], 512
    $region717: #{base_horse_race_predictor_forward.1} parent=1 // pred_fallthru
      _
    // Predicated region
    $region718: #{base_horse_race_predictor_forward.1} parent=1 // pred_check
      _
    $region719: #{base_horse_race_predictor_forward.1} parent=1 // pred_check_branch
      %1656 = sbr.rel (0) target = $region721
    $region720: #{base_horse_race_predictor_forward.1} parent=1 // pred_region
      %1657 = dma.done [#allocation84], 16
    $region721: #{base_horse_race_predictor_forward.1} parent=1 // pred_fallthru
      _
    // Predicated region
    $region722: #{base_horse_race_predictor_forward.1} parent=1 // pred_check
      _
    $region723: #{base_horse_race_predictor_forward.1} parent=1 // pred_check_branch
      %1659 = sbr.rel (0) target = $region725
    $region724: #{base_horse_race_predictor_forward.1} parent=1 // pred_region
      %1660 = dma.done [#allocation84], 1024
    $region725: #{base_horse_race_predictor_forward.1} parent=1 // pred_fallthru
      _
    // Predicated region
    $region726: #{base_horse_race_predictor_forward.1} parent=1 // pred_check
      _
    $region727: #{base_horse_race_predictor_forward.1} parent=1 // pred_check_branch
      %1662 = sbr.rel (0) target = $region729
    $region728: #{base_horse_race_predictor_forward.1} parent=1 // pred_region
      %1663 = dma.done [#allocation87], 16
    $region729: #{base_horse_race_predictor_forward.1} parent=1 // pred_fallthru
      _
    // Predicated region
    $region730: #{base_horse_race_predictor_forward.1} parent=1 // pred_check
      _
    $region731: #{base_horse_race_predictor_forward.1} parent=1 // pred_check_branch
      %1665 = sbr.rel (0) target = $region733
    $region732: #{base_horse_race_predictor_forward.1} parent=1 // pred_region
      %1666 = dma.done [#allocation87], 1024
    $region733: #{base_horse_race_predictor_forward.1} parent=1 // pred_fallthru
      _
    // Predicated region
    $region734: #{base_horse_race_predictor_forward.1} parent=1 // pred_check
      _
    $region735: #{base_horse_race_predictor_forward.1} parent=1 // pred_check_branch
      %1668 = sbr.rel (0) target = $region737
    $region736: #{base_horse_race_predictor_forward.1} parent=1 // pred_region
      %1669 = dma.done [#allocation90], 16
    $region737: #{base_horse_race_predictor_forward.1} parent=1 // pred_fallthru
      _
    // Predicated region
    $region738: #{base_horse_race_predictor_forward.1} parent=1 // pred_check
      _
    $region739: #{base_horse_race_predictor_forward.1} parent=1 // pred_check_branch
      %1671 = sbr.rel (0) target = $region741
    $region740: #{base_horse_race_predictor_forward.1} parent=1 // pred_region
      %1672 = dma.done [#allocation90], 1024
    $region741: #{base_horse_race_predictor_forward.1} parent=1 // pred_fallthru
      _
    // Predicated region
    $region742: #{base_horse_race_predictor_forward.1} parent=1 // pred_check
      _
    $region743: #{base_horse_race_predictor_forward.1} parent=1 // pred_check_branch
      %1674 = sbr.rel (0) target = $region745
    $region744: #{base_horse_race_predictor_forward.1} parent=1 // pred_region
      %1675 = dma.done [#allocation93], 16
    $region745: #{base_horse_race_predictor_forward.1} parent=1 // pred_fallthru
      _
    // Predicated region
    $region746: #{base_horse_race_predictor_forward.1} parent=1 // pred_check
      _
    $region747: #{base_horse_race_predictor_forward.1} parent=1 // pred_check_branch
      %1677 = sbr.rel (0) target = $region749
    $region748: #{base_horse_race_predictor_forward.1} parent=1 // pred_region
      %1678 = dma.done [#allocation93], 1024
    $region749: #{base_horse_race_predictor_forward.1} parent=1 // pred_fallthru
      _
    // Predicated region
    $region750: #{base_horse_race_predictor_forward.1} parent=1 // pred_check
      _
    $region751: #{base_horse_race_predictor_forward.1} parent=1 // pred_check_branch
      %1680 = sbr.rel (0) target = $region753
    $region752: #{base_horse_race_predictor_forward.1} parent=1 // pred_region
      %1681 = dma.done [#allocation96], 16
    $region753: #{base_horse_race_predictor_forward.1} parent=1 // pred_fallthru
      _
    // Predicated region
    $region754: #{base_horse_race_predictor_forward.1} parent=1 // pred_check
      _
    $region755: #{base_horse_race_predictor_forward.1} parent=1 // pred_check_branch
      %1683 = sbr.rel (0) target = $region757
    $region756: #{base_horse_race_predictor_forward.1} parent=1 // pred_region
      %1684 = dma.done [#allocation96], 1024
    $region757: #{base_horse_race_predictor_forward.1} parent=1 // pred_fallthru
      _
    // Predicated region
    $region758: #{base_horse_race_predictor_forward.1} parent=1 // pred_check
      _
    $region759: #{base_horse_race_predictor_forward.1} parent=1 // pred_check_branch
      %1686 = sbr.rel (0) target = $region761
    $region760: #{base_horse_race_predictor_forward.1} parent=1 // pred_region
      %1687 = dma.done [#allocation99], 16
    $region761: #{base_horse_race_predictor_forward.1} parent=1 // pred_fallthru
      _
    // Predicated region
    $region762: #{base_horse_race_predictor_forward.1} parent=1 // pred_check
      _
    $region763: #{base_horse_race_predictor_forward.1} parent=1 // pred_check_branch
      %1689 = sbr.rel (0) target = $region765
    $region764: #{base_horse_race_predictor_forward.1} parent=1 // pred_region
      %1690 = dma.done [#allocation99], 512
    $region765: #{base_horse_race_predictor_forward.1} parent=1 // pred_fallthru
      _
    // Predicated region
    $region766: #{base_horse_race_predictor_forward.1} parent=1 // pred_check
      _
    $region767: #{base_horse_race_predictor_forward.1} parent=1 // pred_check_branch
      %1692 = sbr.rel (0) target = $region769
    $region768: #{base_horse_race_predictor_forward.1} parent=1 // pred_region
      %1693 = dma.done [#allocation102], 16
    $region769: #{base_horse_race_predictor_forward.1} parent=1 // pred_fallthru
      _
    // Predicated region
    $region770: #{base_horse_race_predictor_forward.1} parent=1 // pred_check
      _
    $region771: #{base_horse_race_predictor_forward.1} parent=1 // pred_check_branch
      %1695 = sbr.rel (0) target = $region773
    $region772: #{base_horse_race_predictor_forward.1} parent=1 // pred_region
      %1696 = dma.done [#allocation102], 1024
    $region773: #{base_horse_race_predictor_forward.1} parent=1 // pred_fallthru
      _
    // Predicated region
    $region774: #{base_horse_race_predictor_forward.1} parent=1 // pred_check
      _
    $region775: #{base_horse_race_predictor_forward.1} parent=1 // pred_check_branch
      %1698 = sbr.rel (0) target = $region777
    $region776: #{base_horse_race_predictor_forward.1} parent=1 // pred_region
      %1699 = dma.done [#allocation105], 16
    $region777: #{base_horse_race_predictor_forward.1} parent=1 // pred_fallthru
      _
    // Predicated region
    $region778: #{base_horse_race_predictor_forward.1} parent=1 // pred_check
      _
    $region779: #{base_horse_race_predictor_forward.1} parent=1 // pred_check_branch
      %1701 = sbr.rel (0) target = $region781
    $region780: #{base_horse_race_predictor_forward.1} parent=1 // pred_region
      %1702 = dma.done [#allocation105], 512
    $region781: #{base_horse_race_predictor_forward.1} parent=1 // pred_fallthru
      _
    // Predicated region
    $region782: #{base_horse_race_predictor_forward.1} parent=1 // pred_check
      _
    $region783: #{base_horse_race_predictor_forward.1} parent=1 // pred_check_branch
      %1704 = sbr.rel (0) target = $region785
    $region784: #{base_horse_race_predictor_forward.1} parent=1 // pred_region
      %1705 = dma.done [#allocation108], 16
    $region785: #{base_horse_race_predictor_forward.1} parent=1 // pred_fallthru
      _
    // Predicated region
    $region786: #{base_horse_race_predictor_forward.1} parent=1 // pred_check
      _
    $region787: #{base_horse_race_predictor_forward.1} parent=1 // pred_check_branch
      %1707 = sbr.rel (0) target = $region789
    $region788: #{base_horse_race_predictor_forward.1} parent=1 // pred_region
      %1708 = dma.done [#allocation108], 256
    $region789: #{base_horse_race_predictor_forward.1} parent=1 // pred_fallthru
      _
    // Predicated region
    $region790: #{base_horse_race_predictor_forward.1} parent=1 // pred_check
      _
    $region791: #{base_horse_race_predictor_forward.1} parent=1 // pred_check_branch
      %1710 = sbr.rel (0) target = $region793
    $region792: #{base_horse_race_predictor_forward.1} parent=1 // pred_region
      %1711 = dma.done [#allocation111], 16
    $region793: #{base_horse_race_predictor_forward.1} parent=1 // pred_fallthru
      _
    // Predicated region
    $region794: #{base_horse_race_predictor_forward.1} parent=1 // pred_check
      _
    $region795: #{base_horse_race_predictor_forward.1} parent=1 // pred_check_branch
      %1713 = sbr.rel (0) target = $region797
    $region796: #{base_horse_race_predictor_forward.1} parent=1 // pred_region
      %1714 = dma.done [#allocation111], 512
    $region797: #{base_horse_race_predictor_forward.1} parent=1 // pred_fallthru
      _
    // Predicated region
    $region798: #{base_horse_race_predictor_forward.1} parent=1 // pred_check
      _
    $region799: #{base_horse_race_predictor_forward.1} parent=1 // pred_check_branch
      %1716 = sbr.rel (0) target = $region801
    $region800: #{base_horse_race_predictor_forward.1} parent=1 // pred_region
      %1717 = dma.done [#allocation114], 16
    $region801: #{base_horse_race_predictor_forward.1} parent=1 // pred_fallthru
      _
    // Predicated region
    $region802: #{base_horse_race_predictor_forward.1} parent=1 // pred_check
      _
    $region803: #{base_horse_race_predictor_forward.1} parent=1 // pred_check_branch
      %1719 = sbr.rel (0) target = $region805
    $region804: #{base_horse_race_predictor_forward.1} parent=1 // pred_region
      %1720 = dma.done [#allocation114], 256
    $region805: #{base_horse_race_predictor_forward.1} parent=1 // pred_fallthru
      _
    // Predicated region
    $region806: #{base_horse_race_predictor_forward.1} parent=1 // pred_check
      _
    $region807: #{base_horse_race_predictor_forward.1} parent=1 // pred_check_branch
      %1722 = sbr.rel (0) target = $region809
    $region808: #{base_horse_race_predictor_forward.1} parent=1 // pred_region
      %1723 = dma.done [#allocation117], 16
    $region809: #{base_horse_race_predictor_forward.1} parent=1 // pred_fallthru
      _
    // Predicated region
    $region810: #{base_horse_race_predictor_forward.1} parent=1 // pred_check
      _
    $region811: #{base_horse_race_predictor_forward.1} parent=1 // pred_check_branch
      %1725 = sbr.rel (0) target = $region813
    $region812: #{base_horse_race_predictor_forward.1} parent=1 // pred_region
      %1726 = dma.done [#allocation117], 128
    $region813: #{base_horse_race_predictor_forward.1} parent=1 // pred_fallthru
      _
    // Predicated region
    $region814: #{base_horse_race_predictor_forward.1} parent=1 // pred_check
      _
    $region815: #{base_horse_race_predictor_forward.1} parent=1 // pred_check_branch
      %1728 = sbr.rel (0) target = $region817
    $region816: #{base_horse_race_predictor_forward.1} parent=1 // pred_region
      %1729 = dma.done [#allocation120], 16
    $region817: #{base_horse_race_predictor_forward.1} parent=1 // pred_fallthru
      _
    // Predicated region
    $region818: #{base_horse_race_predictor_forward.1} parent=1 // pred_check
      _
    $region819: #{base_horse_race_predictor_forward.1} parent=1 // pred_check_branch
      %1731 = sbr.rel (0) target = $region821
    $region820: #{base_horse_race_predictor_forward.1} parent=1 // pred_region
      %1732 = dma.done [#allocation120], 256
    $region821: #{base_horse_race_predictor_forward.1} parent=1 // pred_fallthru
      _
    // Predicated region
    $region822: #{base_horse_race_predictor_forward.1} parent=1 // pred_check
      _
    $region823: #{base_horse_race_predictor_forward.1} parent=1 // pred_check_branch
      %1734 = sbr.rel (0) target = $region825
    $region824: #{base_horse_race_predictor_forward.1} parent=1 // pred_region
      %1735 = dma.done [#allocation123], 16
    $region825: #{base_horse_race_predictor_forward.1} parent=1 // pred_fallthru
      _
    // Predicated region
    $region826: #{base_horse_race_predictor_forward.1} parent=1 // pred_check
      _
    $region827: #{base_horse_race_predictor_forward.1} parent=1 // pred_check_branch
      %1737 = sbr.rel (0) target = $region829
    $region828: #{base_horse_race_predictor_forward.1} parent=1 // pred_region
      %1738 = dma.done [#allocation123], 128
    $region829: #{base_horse_race_predictor_forward.1} parent=1 // pred_fallthru
      _
    // Predicated region
    $region830: #{base_horse_race_predictor_forward.1} parent=1 // pred_check
      _
    $region831: #{base_horse_race_predictor_forward.1} parent=1 // pred_check_branch
      %1740 = sbr.rel (0) target = $region833
    $region832: #{base_horse_race_predictor_forward.1} parent=1 // pred_region
      %1741 = dma.done [#allocation126], 16
    $region833: #{base_horse_race_predictor_forward.1} parent=1 // pred_fallthru
      _
    // Predicated region
    $region834: #{base_horse_race_predictor_forward.1} parent=1 // pred_check
      _
    $region835: #{base_horse_race_predictor_forward.1} parent=1 // pred_check_branch
      %1743 = sbr.rel (0) target = $region837
    $region836: #{base_horse_race_predictor_forward.1} parent=1 // pred_region
      %1744 = dma.done [#allocation126], 64
    $region837: #{base_horse_race_predictor_forward.1} parent=1 // pred_fallthru
      _
    // Predicated region
    $region838: #{base_horse_race_predictor_forward.1} parent=1 // pred_check
      _
    $region839: #{base_horse_race_predictor_forward.1} parent=1 // pred_check_branch
      %1746 = sbr.rel (0) target = $region841
    $region840: #{base_horse_race_predictor_forward.1} parent=1 // pred_region
      %1747 = dma.done [#allocation129], 16
    $region841: #{base_horse_race_predictor_forward.1} parent=1 // pred_fallthru
      _
    // Predicated region
    $region842: #{base_horse_race_predictor_forward.1} parent=1 // pred_check
      _
    $region843: #{base_horse_race_predictor_forward.1} parent=1 // pred_check_branch
      %1749 = sbr.rel (0) target = $region845
    $region844: #{base_horse_race_predictor_forward.1} parent=1 // pred_region
      %1750 = dma.done [#allocation129], 128
    $region845: #{base_horse_race_predictor_forward.1} parent=1 // pred_fallthru
      _
    // Predicated region
    $region846: #{base_horse_race_predictor_forward.1} parent=1 // pred_check
      _
    $region847: #{base_horse_race_predictor_forward.1} parent=1 // pred_check_branch
      %1752 = sbr.rel (0) target = $region849
    $region848: #{base_horse_race_predictor_forward.1} parent=1 // pred_region
      %1753 = dma.done [#allocation132], 16
    $region849: #{base_horse_race_predictor_forward.1} parent=1 // pred_fallthru
      _
    // Predicated region
    $region850: #{base_horse_race_predictor_forward.1} parent=1 // pred_check
      _
    $region851: #{base_horse_race_predictor_forward.1} parent=1 // pred_check_branch
      %1755 = sbr.rel (0) target = $region853
    $region852: #{base_horse_race_predictor_forward.1} parent=1 // pred_region
      %1756 = dma.done [#allocation132], 32
    $region853: #{base_horse_race_predictor_forward.1} parent=1 // pred_fallthru
      _
    // Predicated region
    $region854: #{base_horse_race_predictor_forward.1} parent=1 // pred_check
      _
    $region855: #{base_horse_race_predictor_forward.1} parent=1 // pred_check_branch
      %1758 = sbr.rel (0) target = $region857
    $region856: #{base_horse_race_predictor_forward.1} parent=1 // pred_region
      %1759 = dma.done [#allocation135], 32
    $region857: #{base_horse_race_predictor_forward.1} parent=1 // pred_fallthru
      _
    // Predicated region
    $region858: #{base_horse_race_predictor_forward.1} parent=1 // pred_check
      _
    $region859: #{base_horse_race_predictor_forward.1} parent=1 // pred_check_branch
      %1761 = sbr.rel (0) target = $region861
    $region860: #{base_horse_race_predictor_forward.1} parent=1 // pred_region
      %1762 = dma.done [#allocation135], 16
    $region861: #{base_horse_race_predictor_forward.1} parent=1 // pred_fallthru
      _
    // Predicated region
    $region862: #{base_horse_race_predictor_forward.1} parent=1 // pred_check
      _
    $region863: #{base_horse_race_predictor_forward.1} parent=1 // pred_check_branch
      %1764 = sbr.rel (0) target = $region865
    $region864: #{base_horse_race_predictor_forward.1} parent=1 // pred_region
      %1765 = dma.done [#allocation138], 1024
    $region865: #{base_horse_race_predictor_forward.1} parent=1 // pred_fallthru
      _
    // Predicated region
    $region866: #{base_horse_race_predictor_forward.1} parent=1 // pred_check
      _
    $region867: #{base_horse_race_predictor_forward.1} parent=1 // pred_check_branch
      %1767 = sbr.rel (0) target = $region869
    $region868: #{base_horse_race_predictor_forward.1} parent=1 // pred_region
      %1768 = dma.done [#allocation138], 16
    $region869: #{base_horse_race_predictor_forward.1} parent=1 // pred_fallthru
      _
    // Predicated region
    $region870: #{base_horse_race_predictor_forward.1} parent=1 // pred_check
      _
    $region871: #{base_horse_race_predictor_forward.1} parent=1 // pred_check_branch
      %1770 = sbr.rel (0) target = $region873
    $region872: #{base_horse_race_predictor_forward.1} parent=1 // pred_region
      %1771 = dma.done [#allocation141], 16
    $region873: #{base_horse_race_predictor_forward.1} parent=1 // pred_fallthru
      _
    // Predicated region
    $region874: #{base_horse_race_predictor_forward.1} parent=1 // pred_check
      _
    $region875: #{base_horse_race_predictor_forward.1} parent=1 // pred_check_branch
      %1773 = sbr.rel (0) target = $region877
    $region876: #{base_horse_race_predictor_forward.1} parent=1 // pred_region
      %1774 = dma.done [#allocation141], 1024
    $region877: #{base_horse_race_predictor_forward.1} parent=1 // pred_fallthru
      _
    // Predicated region
    $region878: #{base_horse_race_predictor_forward.1} parent=1 // pred_check
      _
    $region879: #{base_horse_race_predictor_forward.1} parent=1 // pred_check_branch
      %1776 = sbr.rel (0) target = $region881
    $region880: #{base_horse_race_predictor_forward.1} parent=1 // pred_region
      %1777 = dma.done [#allocation144], 16
    $region881: #{base_horse_race_predictor_forward.1} parent=1 // pred_fallthru
      _
    // Predicated region
    $region882: #{base_horse_race_predictor_forward.1} parent=1 // pred_check
      _
    $region883: #{base_horse_race_predictor_forward.1} parent=1 // pred_check_branch
      %1779 = sbr.rel (0) target = $region885
    $region884: #{base_horse_race_predictor_forward.1} parent=1 // pred_region
      %1780 = dma.done [#allocation144], 512
    $region885: #{base_horse_race_predictor_forward.1} parent=1 // pred_fallthru
      _
    // Predicated region
    $region886: #{base_horse_race_predictor_forward.1} parent=1 // pred_check
      _
    $region887: #{base_horse_race_predictor_forward.1} parent=1 // pred_check_branch
      %1782 = sbr.rel (0) target = $region889
    $region888: #{base_horse_race_predictor_forward.1} parent=1 // pred_region
      %1783 = dma.done [#allocation147], 16
    $region889: #{base_horse_race_predictor_forward.1} parent=1 // pred_fallthru
      _
    // Predicated region
    $region890: #{base_horse_race_predictor_forward.1} parent=1 // pred_check
      _
    $region891: #{base_horse_race_predictor_forward.1} parent=1 // pred_check_branch
      %1785 = sbr.rel (0) target = $region893
    $region892: #{base_horse_race_predictor_forward.1} parent=1 // pred_region
      %1786 = dma.done [#allocation147], 1024
    $region893: #{base_horse_race_predictor_forward.1} parent=1 // pred_fallthru
      _
    // Predicated region
    $region894: #{base_horse_race_predictor_forward.1} parent=1 // pred_check
      _
    $region895: #{base_horse_race_predictor_forward.1} parent=1 // pred_check_branch
      %1788 = sbr.rel (0) target = $region897
    $region896: #{base_horse_race_predictor_forward.1} parent=1 // pred_region
      %1789 = dma.done [#allocation150], 16
    $region897: #{base_horse_race_predictor_forward.1} parent=1 // pred_fallthru
      _
    // Predicated region
    $region898: #{base_horse_race_predictor_forward.1} parent=1 // pred_check
      _
    $region899: #{base_horse_race_predictor_forward.1} parent=1 // pred_check_branch
      %1791 = sbr.rel (0) target = $region901
    $region900: #{base_horse_race_predictor_forward.1} parent=1 // pred_region
      %1792 = dma.done [#allocation150], 512
    $region901: #{base_horse_race_predictor_forward.1} parent=1 // pred_fallthru
      _
    // Predicated region
    $region902: #{base_horse_race_predictor_forward.1} parent=1 // pred_check
      _
    $region903: #{base_horse_race_predictor_forward.1} parent=1 // pred_check_branch
      %1794 = sbr.rel (0) target = $region905
    $region904: #{base_horse_race_predictor_forward.1} parent=1 // pred_region
      %1795 = dma.done [#allocation3], 16
    $region905: #{base_horse_race_predictor_forward.1} parent=1 // pred_fallthru
      _
    // Predicated region
    $region906: #{base_horse_race_predictor_forward.1} parent=1 // pred_check
      _
    $region907: #{base_horse_race_predictor_forward.1} parent=1 // pred_check_branch
      %1797 = sbr.rel (0) target = $region909
    $region908: #{base_horse_race_predictor_forward.1} parent=1 // pred_region
      %1798 = dma.done [#allocation6], 768
    $region909: #{base_horse_race_predictor_forward.1} parent=1 // pred_fallthru
      _
    // Predicated region
    $region910: #{base_horse_race_predictor_forward.1} parent=1 // pred_check
      _
    $region911: #{base_horse_race_predictor_forward.1} parent=1 // pred_check_branch
      %1800 = sbr.rel (0) target = $region913
    $region912: #{base_horse_race_predictor_forward.1} parent=1 // pred_region
      %1801 = dma.done [#allocation9], 16
    $region913: #{base_horse_race_predictor_forward.1} parent=1 // pred_fallthru
      _
    // Predicated region
    $region914: #{base_horse_race_predictor_forward.1} parent=1 // pred_check
      _
    $region915: #{base_horse_race_predictor_forward.1} parent=1 // pred_check_branch
      %1803 = sbr.rel (0) target = $region917
    $region916: #{base_horse_race_predictor_forward.1} parent=1 // pred_region
      %1804 = dma.done [#allocation12], 512
    $region917: #{base_horse_race_predictor_forward.1} parent=1 // pred_fallthru
      _
    // Predicated region
    $region918: #{base_horse_race_predictor_forward.1} parent=1 // pred_check
      _
    $region919: #{base_horse_race_predictor_forward.1} parent=1 // pred_check_branch
      %1806 = sbr.rel (0) target = $region921
    $region920: #{base_horse_race_predictor_forward.1} parent=1 // pred_region
      %1807 = dma.done [#allocation15], 16
    $region921: #{base_horse_race_predictor_forward.1} parent=1 // pred_fallthru
      _
    %v1809 = vld [vmem:[#allocation7] sm:$0xff]
    %v1810 = vld [vmem:[#allocation7 + $0x8] sm:$0xff]
    %v1811 = vpack.c.bf16 %v1810, %v1809
    %v1812 = vld [vmem:[%s33] sm:$0xf]
    %v1813 = vld [vmem:[%s33 + $0x4] sm:$0xf]
    %v1814 = vld [vmem:[%s35] sm:$0x1]
    %v1816 = vlaneseq
    %v1817 = vshrl.u32 %v1816, 7
    %v1818 = vsub.s32 0, %v1817
    %v1819 = vrot.slane %v1814, %v1818
    %v1823 = vunpack.c.l.b16 %v1812
    %v1824 = vunpack.c.l.b16 %v1813
    %v1825 = vpack.c.b16 %v1824, %v1823
    %vm1827 = vcmask 130048
    %v1829 = vsel %vm1827, %v1811, 0
    %1831 = vmatprep.subr.bf16.mxu0 0
    %1832 = vmatpush1.bf16.msra.mxu0 0
    %1833 = vmatprep.subr.bf16.mxu0 0
    %1834 = vmatpush1.bf16.msra.mxu0 0
    %1835 = vmatprep.subr.bf16.mxu0 0
    %1836 = vmatpush1.bf16.msra.mxu0 0
    %1837 = vmatprep.subr.bf16.mxu0 0
    %1838 = vmatpush1.bf16.msra.mxu0 0
    %1839 = vmatprep.subr.bf16.mxu0 0
    %1840 = vmatpush1.bf16.msra.mxu0 0
    %1841 = vmatprep.subr.bf16.mxu0 0
    %1842 = vmatpush1.bf16.msra.mxu0 0
    %1843 = vmatprep.subr.bf16.mxu0 0
    %1844 = vmatpush1.bf16.msra.mxu0 0
    %1845 = vmatprep.subr.bf16.mxu0 0
    %1846 = vmatpush1.bf16.msra.mxu0 %v1825
    %1847 = vmatprep.subr.bf16.mxu0 0
    %1848 = vmatpush2.bf16.msra.mxu0 0
    %1849 = vmatprep.subr.bf16.mxu0 0
    %1850 = vmatpush2.bf16.msra.mxu0 0
    %1851 = vmatprep.subr.bf16.mxu0 0
    %1852 = vmatpush2.bf16.msra.mxu0 0
    %1853 = vmatprep.subr.bf16.mxu0 0
    %1854 = vmatpush2.bf16.msra.mxu0 0
    %1855 = vmatprep.subr.bf16.mxu0 0
    %1856 = vmatpush2.bf16.msra.mxu0 0
    %1857 = vmatprep.subr.bf16.mxu0 0
    %1858 = vmatpush2.bf16.msra.mxu0 0
    %1859 = vmatprep.subr.bf16.mxu0 0
    %1860 = vmatpush2.bf16.msra.mxu0 0
    %1861 = vmatprep.subr.bf16.mxu0 0
    %1862 = vmatpush2.bf16.msra.mxu0 0
    %1863 = vmatprep.mubr.bf16.mxu0 0
    %1864 = vmatmul.mubr.bf16.gmra.mxu0 %v1829
    %v1865 = vpop.f32.mrf.mxu0
    %v1866 = vadd.f32 %v1819, %v1865
    %v1867 = vpop.f32.mrf.mxu0
    %v1868 = vpop.f32.mrf.mxu0
    %v1869 = vadd.f32 %v1819, %v1868
    %v1870 = vpop.f32.mrf.mxu0
    %1871 = vdwg.mxu0
    %v1872 = vmax.f32 %v1866, 0.0
    %v1873 = vmax.f32 %v1869, 0.0
    %v1874 = vpack.c.bf16 %v1873, %v1872
    %v1875 = vld [vmem:[#allocation10] sm:$0xf]
    %v1876 = vld [vmem:[#allocation10 + $0x4] sm:$0xf]
    %v1877 = vld [vmem:[#allocation11] sm:$0x1]
    %v1879 = vlaneseq
    %v1880 = vshrl.u32 %v1879, 7
    %v1881 = vsub.s32 0, %v1880
    %v1882 = vrot.slane %v1877, %v1881
    %v1886 = vunpack.c.l.b16 %v1875
    %v1887 = vunpack.c.l.b16 %v1876
    %v1888 = vpack.c.b16 %v1887, %v1886
    %v1891 = vsel %vm1827, %v1874, 0
    %1893 = vmatprep.subr.bf16.mxu0 0
    %1894 = vmatpush1.bf16.msra.mxu0 0
    %1895 = vmatprep.subr.bf16.mxu0 0
    %1896 = vmatpush1.bf16.msra.mxu0 0
    %1897 = vmatprep.subr.bf16.mxu0 0
    %1898 = vmatpush1.bf16.msra.mxu0 0
    %1899 = vmatprep.subr.bf16.mxu0 0
    %1900 = vmatpush1.bf16.msra.mxu0 0
    %1901 = vmatprep.subr.bf16.mxu0 0
    %1902 = vmatpush1.bf16.msra.mxu0 0
    %1903 = vmatprep.subr.bf16.mxu0 0
    %1904 = vmatpush1.bf16.msra.mxu0 0
    %1905 = vmatprep.subr.bf16.mxu0 0
    %1906 = vmatpush1.bf16.msra.mxu0 0
    %1907 = vmatprep.subr.bf16.mxu0 0
    %1908 = vmatpush1.bf16.msra.mxu0 %v1888
    %1909 = vmatprep.subr.bf16.mxu0 0
    %1910 = vmatpush2.bf16.msra.mxu0 0
    %1911 = vmatprep.subr.bf16.mxu0 0
    %1912 = vmatpush2.bf16.msra.mxu0 0
    %1913 = vmatprep.subr.bf16.mxu0 0
    %1914 = vmatpush2.bf16.msra.mxu0 0
    %1915 = vmatprep.subr.bf16.mxu0 0
    %1916 = vmatpush2.bf16.msra.mxu0 0
    %1917 = vmatprep.subr.bf16.mxu0 0
    %1918 = vmatpush2.bf16.msra.mxu0 0
    %1919 = vmatprep.subr.bf16.mxu0 0
    %1920 = vmatpush2.bf16.msra.mxu0 0
    %1921 = vmatprep.subr.bf16.mxu0 0
    %1922 = vmatpush2.bf16.msra.mxu0 0
    %1923 = vmatprep.subr.bf16.mxu0 0
    %1924 = vmatpush2.bf16.msra.mxu0 0
    %1925 = vmatprep.mubr.bf16.mxu0 0
    %1926 = vmatmul.mubr.bf16.gmra.mxu0 %v1891
    %v1927 = vpop.f32.mrf.mxu0
    %v1928 = vadd.f32 %v1882, %v1927
    %v1929 = vpop.f32.mrf.mxu0
    %v1930 = vpop.f32.mrf.mxu0
    %v1931 = vadd.f32 %v1882, %v1930
    %v1932 = vpop.f32.mrf.mxu0
    %1933 = vdwg.mxu0
    %v1934 = vmax.f32 %v1928, 0.0
    %v1935 = vmax.f32 %v1931, 0.0
    %v1936 = vpack.c.bf16 %v1935, %v1934
    %v1937 = vld [vmem:[%s41] sm:$0xf]
    %v1938 = vld [vmem:[%s41 + $0x4] sm:$0xf]
    %v1939 = vld [vmem:[%s41 + $0x8] sm:$0xf]
    %v1940 = vld [vmem:[%s41 + $0xc] sm:$0xf]
    %v1941 = vld [vmem:[#allocation13] sm:$0x1]
    %v1943 = vlaneseq
    %v1944 = vshrl.u32 %v1943, 7
    %v1945 = vsub.s32 0, %v1944
    %v1946 = vrot.slane %v1941, %v1945
    %v1952 = vunpack.c.l.b16 %v1937
    %v1953 = vunpack.c.l.b16 %v1938
    %v1954 = vunpack.c.l.b16 %v1939
    %v1955 = vunpack.c.l.b16 %v1940
    %v1956 = vpack.c.b16 %v1953, %v1952
    %v1957 = vpack.c.b16 %v1955, %v1954
    %vm1960 = vcmask 261120
    %v1962 = vsel %vm1960, %v1936, 0
    %1964 = vmatprep.subr.bf16.mxu0 0
    %1965 = vmatpush1.bf16.msra.mxu0 0
    %1966 = vmatprep.subr.bf16.mxu0 0
    %1967 = vmatpush1.bf16.msra.mxu0 0
    %1968 = vmatprep.subr.bf16.mxu0 0
    %1969 = vmatpush1.bf16.msra.mxu0 0
    %1970 = vmatprep.subr.bf16.mxu0 0
    %1971 = vmatpush1.bf16.msra.mxu0 0
    %1972 = vmatprep.subr.bf16.mxu0 0
    %1973 = vmatpush1.bf16.msra.mxu0 0
    %1974 = vmatprep.subr.bf16.mxu0 0
    %1975 = vmatpush1.bf16.msra.mxu0 0
    %1976 = vmatprep.subr.bf16.mxu0 0
    %1977 = vmatpush1.bf16.msra.mxu0 %v1957
    %1978 = vmatprep.subr.bf16.mxu0 0
    %1979 = vmatpush1.bf16.msra.mxu0 %v1956
    %1980 = vmatprep.subr.bf16.mxu0 0
    %1981 = vmatpush2.bf16.msra.mxu0 0
    %1982 = vmatprep.subr.bf16.mxu0 0
    %1983 = vmatpush2.bf16.msra.mxu0 0
    %1984 = vmatprep.subr.bf16.mxu0 0
    %1985 = vmatpush2.bf16.msra.mxu0 0
    %1986 = vmatprep.subr.bf16.mxu0 0
    %1987 = vmatpush2.bf16.msra.mxu0 0
    %1988 = vmatprep.subr.bf16.mxu0 0
    %1989 = vmatpush2.bf16.msra.mxu0 0
    %1990 = vmatprep.subr.bf16.mxu0 0
    %1991 = vmatpush2.bf16.msra.mxu0 0
    %1992 = vmatprep.subr.bf16.mxu0 0
    %1993 = vmatpush2.bf16.msra.mxu0 0
    %1994 = vmatprep.subr.bf16.mxu0 0
    %1995 = vmatpush2.bf16.msra.mxu0 0
    %1996 = vmatprep.mubr.bf16.mxu0 0
    %1997 = vmatmul.mubr.bf16.gmra.mxu0 %v1962
    %v1998 = vpop.f32.mrf.mxu0
    %v1999 = vadd.f32 %v1946, %v1998
    %v2000 = vpop.f32.mrf.mxu0
    %v2001 = vpop.f32.mrf.mxu0
    %v2002 = vadd.f32 %v1946, %v2001
    %v2003 = vpop.f32.mrf.mxu0
    %2004 = vdwg.mxu0
    %v2005 = vld [vmem:[#allocation8] sm:$0xff]
    %v2006 = vld [vmem:[#allocation8 + $0x8] sm:$0xff]
    %v2007 = vpack.c.bf16 %v2006, %v2005
    %v2008 = vld [vmem:[#allocation43] sm:$0xf]
    %v2009 = vld [vmem:[#allocation43 + $0x4] sm:$0xf]
    %v2010 = vld [vmem:[#allocation44] sm:$0x1]
    %v2012 = vlaneseq
    %v2013 = vshrl.u32 %v2012, 7
    %v2014 = vsub.s32 0, %v2013
    %v2015 = vrot.slane %v2010, %v2014
    %v2019 = vunpack.c.l.b16 %v2008
    %v2020 = vunpack.c.l.b16 %v2009
    %v2021 = vpack.c.b16 %v2020, %v2019
    %v2024 = vsel %vm1827, %v2007, 0
    %2026 = vmatprep.subr.bf16.mxu0 0
    %2027 = vmatpush1.bf16.msra.mxu0 0
    %2028 = vmatprep.subr.bf16.mxu0 0
    %2029 = vmatpush1.bf16.msra.mxu0 0
    %2030 = vmatprep.subr.bf16.mxu0 0
    %2031 = vmatpush1.bf16.msra.mxu0 0
    %2032 = vmatprep.subr.bf16.mxu0 0
    %2033 = vmatpush1.bf16.msra.mxu0 0
    %2034 = vmatprep.subr.bf16.mxu0 0
    %2035 = vmatpush1.bf16.msra.mxu0 0
    %2036 = vmatprep.subr.bf16.mxu0 0
    %2037 = vmatpush1.bf16.msra.mxu0 0
    %2038 = vmatprep.subr.bf16.mxu0 0
    %2039 = vmatpush1.bf16.msra.mxu0 0
    %2040 = vmatprep.subr.bf16.mxu0 0
    %2041 = vmatpush1.bf16.msra.mxu0 %v2021
    %2042 = vmatprep.subr.bf16.mxu0 0
    %2043 = vmatpush2.bf16.msra.mxu0 0
    %2044 = vmatprep.subr.bf16.mxu0 0
    %2045 = vmatpush2.bf16.msra.mxu0 0
    %2046 = vmatprep.subr.bf16.mxu0 0
    %2047 = vmatpush2.bf16.msra.mxu0 0
    %2048 = vmatprep.subr.bf16.mxu0 0
    %2049 = vmatpush2.bf16.msra.mxu0 0
    %2050 = vmatprep.subr.bf16.mxu0 0
    %2051 = vmatpush2.bf16.msra.mxu0 0
    %2052 = vmatprep.subr.bf16.mxu0 0
    %2053 = vmatpush2.bf16.msra.mxu0 0
    %2054 = vmatprep.subr.bf16.mxu0 0
    %2055 = vmatpush2.bf16.msra.mxu0 0
    %2056 = vmatprep.subr.bf16.mxu0 0
    %2057 = vmatpush2.bf16.msra.mxu0 0
    %2058 = vmatprep.mubr.bf16.mxu0 0
    %2059 = vmatmul.mubr.bf16.gmra.mxu0 %v2024
    %v2060 = vpop.f32.mrf.mxu0
    %v2061 = vadd.f32 %v2015, %v2060
    %v2062 = vpop.f32.mrf.mxu0
    %v2063 = vpop.f32.mrf.mxu0
    %v2064 = vadd.f32 %v2015, %v2063
    %v2065 = vpop.f32.mrf.mxu0
    %2066 = vdwg.mxu0
    %v2067 = vmax.f32 %v2061, 0.0
    %v2068 = vmax.f32 %v2064, 0.0
    %v2069 = vpack.c.bf16 %v2068, %v2067
    %v2070 = vld [vmem:[#allocation46] sm:$0xf]
    %v2071 = vld [vmem:[#allocation46 + $0x4] sm:$0xf]
    %v2072 = vld [vmem:[#allocation47] sm:$0x1]
    %v2074 = vlaneseq
    %v2075 = vshrl.u32 %v2074, 7
    %v2076 = vsub.s32 0, %v2075
    %v2077 = vrot.slane %v2072, %v2076
    %v2081 = vunpack.c.l.b16 %v2070
    %v2082 = vunpack.c.l.b16 %v2071
    %v2083 = vpack.c.b16 %v2082, %v2081
    %v2086 = vsel %vm1827, %v2069, 0
    %2088 = vmatprep.subr.bf16.mxu0 0
    %2089 = vmatpush1.bf16.msra.mxu0 0
    %2090 = vmatprep.subr.bf16.mxu0 0
    %2091 = vmatpush1.bf16.msra.mxu0 0
    %2092 = vmatprep.subr.bf16.mxu0 0
    %2093 = vmatpush1.bf16.msra.mxu0 0
    %2094 = vmatprep.subr.bf16.mxu0 0
    %2095 = vmatpush1.bf16.msra.mxu0 0
    %2096 = vmatprep.subr.bf16.mxu0 0
    %2097 = vmatpush1.bf16.msra.mxu0 0
    %2098 = vmatprep.subr.bf16.mxu0 0
    %2099 = vmatpush1.bf16.msra.mxu0 0
    %2100 = vmatprep.subr.bf16.mxu0 0
    %2101 = vmatpush1.bf16.msra.mxu0 0
    %2102 = vmatprep.subr.bf16.mxu0 0
    %2103 = vmatpush1.bf16.msra.mxu0 %v2083
    %2104 = vmatprep.subr.bf16.mxu0 0
    %2105 = vmatpush2.bf16.msra.mxu0 0
    %2106 = vmatprep.subr.bf16.mxu0 0
    %2107 = vmatpush2.bf16.msra.mxu0 0
    %2108 = vmatprep.subr.bf16.mxu0 0
    %2109 = vmatpush2.bf16.msra.mxu0 0
    %2110 = vmatprep.subr.bf16.mxu0 0
    %2111 = vmatpush2.bf16.msra.mxu0 0
    %2112 = vmatprep.subr.bf16.mxu0 0
    %2113 = vmatpush2.bf16.msra.mxu0 0
    %2114 = vmatprep.subr.bf16.mxu0 0
    %2115 = vmatpush2.bf16.msra.mxu0 0
    %2116 = vmatprep.subr.bf16.mxu0 0
    %2117 = vmatpush2.bf16.msra.mxu0 0
    %2118 = vmatprep.subr.bf16.mxu0 0
    %2119 = vmatpush2.bf16.msra.mxu0 0
    %2120 = vmatprep.mubr.bf16.mxu0 0
    %2121 = vmatmul.mubr.bf16.gmra.mxu0 %v2086
    %v2122 = vpop.f32.mrf.mxu0
    %v2123 = vadd.f32 %v2077, %v2122
    %v2124 = vpop.f32.mrf.mxu0
    %v2125 = vpop.f32.mrf.mxu0
    %v2126 = vadd.f32 %v2077, %v2125
    %v2127 = vpop.f32.mrf.mxu0
    %2128 = vdwg.mxu0
    %v2129 = vmax.f32 %v2123, 0.0
    %v2130 = vmax.f32 %v2126, 0.0
    %v2131 = vpack.c.bf16 %v2130, %v2129
    %v2132 = vld [vmem:[#allocation49] sm:$0xf]
    %v2133 = vld [vmem:[#allocation49 + $0x4] sm:$0xf]
    %v2134 = vld [vmem:[#allocation49 + $0x8] sm:$0xf]
    %v2135 = vld [vmem:[#allocation49 + $0xc] sm:$0xf]
    %v2136 = vld [vmem:[#allocation50] sm:$0x1]
    %v2138 = vlaneseq
    %v2139 = vshrl.u32 %v2138, 7
    %v2140 = vsub.s32 0, %v2139
    %v2141 = vrot.slane %v2136, %v2140
    %v2147 = vunpack.c.l.b16 %v2132
    %v2148 = vunpack.c.l.b16 %v2133
    %v2149 = vunpack.c.l.b16 %v2134
    %v2150 = vunpack.c.l.b16 %v2135
    %v2151 = vpack.c.b16 %v2148, %v2147
    %v2152 = vpack.c.b16 %v2150, %v2149
    %v2156 = vsel %vm1960, %v2131, 0
    %2158 = vmatprep.subr.bf16.mxu0 0
    %2159 = vmatpush1.bf16.msra.mxu0 0
    %2160 = vmatprep.subr.bf16.mxu0 0
    %2161 = vmatpush1.bf16.msra.mxu0 0
    %2162 = vmatprep.subr.bf16.mxu0 0
    %2163 = vmatpush1.bf16.msra.mxu0 0
    %2164 = vmatprep.subr.bf16.mxu0 0
    %2165 = vmatpush1.bf16.msra.mxu0 0
    %2166 = vmatprep.subr.bf16.mxu0 0
    %2167 = vmatpush1.bf16.msra.mxu0 0
    %2168 = vmatprep.subr.bf16.mxu0 0
    %2169 = vmatpush1.bf16.msra.mxu0 0
    %2170 = vmatprep.subr.bf16.mxu0 0
    %2171 = vmatpush1.bf16.msra.mxu0 %v2152
    %2172 = vmatprep.subr.bf16.mxu0 0
    %2173 = vmatpush1.bf16.msra.mxu0 %v2151
    %2174 = vmatprep.subr.bf16.mxu0 0
    %2175 = vmatpush2.bf16.msra.mxu0 0
    %2176 = vmatprep.subr.bf16.mxu0 0
    %2177 = vmatpush2.bf16.msra.mxu0 0
    %2178 = vmatprep.subr.bf16.mxu0 0
    %2179 = vmatpush2.bf16.msra.mxu0 0
    %2180 = vmatprep.subr.bf16.mxu0 0
    %2181 = vmatpush2.bf16.msra.mxu0 0
    %2182 = vmatprep.subr.bf16.mxu0 0
    %2183 = vmatpush2.bf16.msra.mxu0 0
    %2184 = vmatprep.subr.bf16.mxu0 0
    %2185 = vmatpush2.bf16.msra.mxu0 0
    %2186 = vmatprep.subr.bf16.mxu0 0
    %2187 = vmatpush2.bf16.msra.mxu0 0
    %2188 = vmatprep.subr.bf16.mxu0 0
    %2189 = vmatpush2.bf16.msra.mxu0 0
    %2190 = vmatprep.mubr.bf16.mxu0 0
    %2191 = vmatmul.mubr.bf16.gmra.mxu0 %v2156
    %v2192 = vpop.f32.mrf.mxu0
    %v2193 = vadd.f32 %v2141, %v2192
    %v2194 = vpop.f32.mrf.mxu0
    %v2195 = vpop.f32.mrf.mxu0
    %v2196 = vadd.f32 %v2141, %v2195
    %v2197 = vpop.f32.mrf.mxu0
    %2198 = vdwg.mxu0
    %v2199 = vld [vmem:[#allocation2] sm:$0xff]
    %v2200 = vld [vmem:[#allocation2 + $0x8] sm:$0xff]
    %v2201 = vpack.c.bf16 %v2200, %v2199
    %v2202 = vld [vmem:[%s19] sm:$0xf]
    %v2203 = vld [vmem:[%s19 + $0x4] sm:$0xf]
    %v2204 = vld [vmem:[%s19 + $0x8] sm:$0xf]
    %v2205 = vld [vmem:[%s19 + $0xc] sm:$0xf]
    %v2206 = vld [vmem:[%s9] sm:$0xff]
    %v2207 = vld [vmem:[%s9 + $0x8] sm:$0xff]
    %v2208 = vld [vmem:[%s25] sm:$0x1]
    %2210 = vset.pattern.permute.xlu0 0
    %2211 = vperm.xlu0 %2210, %v2206
    %v2212 = vpop.permute.xlu0 %2211
    %2215 = vset.pattern.permute.xlu0 0
    %2216 = vperm.xlu0 %2215, %v2207
    %v2217 = vpop.permute.xlu0 %2216
    %v2220 = vlaneseq
    %v2221 = vshrl.u32 %v2220, 7
    %v2222 = vsub.s32 0, %v2221
    %v2223 = vrot.slane %v2208, %v2222
    %v2225 = vmul.f32 %v2212, %v2223
    %v2226 = vmul.f32 %v2217, %v2223
    %v2231 = vunpack.c.l.b16 %v2202
    %v2232 = vunpack.c.l.b16 %v2203
    %v2233 = vunpack.c.l.b16 %v2204
    %v2234 = vunpack.c.l.b16 %v2205
    %v2235 = vpack.c.b16 %v2232, %v2231
    %v2236 = vpack.c.b16 %v2234, %v2233
    %v2240 = vsel %vm1960, %v2201, 0
    %2242 = vmatprep.subr.bf16.mxu0 0
    %2243 = vmatpush1.bf16.msra.mxu0 0
    %2244 = vmatprep.subr.bf16.mxu0 0
    %2245 = vmatpush1.bf16.msra.mxu0 0
    %2246 = vmatprep.subr.bf16.mxu0 0
    %2247 = vmatpush1.bf16.msra.mxu0 0
    %2248 = vmatprep.subr.bf16.mxu0 0
    %2249 = vmatpush1.bf16.msra.mxu0 0
    %2250 = vmatprep.subr.bf16.mxu0 0
    %2251 = vmatpush1.bf16.msra.mxu0 0
    %2252 = vmatprep.subr.bf16.mxu0 0
    %2253 = vmatpush1.bf16.msra.mxu0 0
    %2254 = vmatprep.subr.bf16.mxu0 0
    %2255 = vmatpush1.bf16.msra.mxu0 %v2236
    %2256 = vmatprep.subr.bf16.mxu0 0
    %2257 = vmatpush1.bf16.msra.mxu0 %v2235
    %2258 = vmatprep.subr.bf16.mxu0 0
    %2259 = vmatpush2.bf16.msra.mxu0 0
    %2260 = vmatprep.subr.bf16.mxu0 0
    %2261 = vmatpush2.bf16.msra.mxu0 0
    %2262 = vmatprep.subr.bf16.mxu0 0
    %2263 = vmatpush2.bf16.msra.mxu0 0
    %2264 = vmatprep.subr.bf16.mxu0 0
    %2265 = vmatpush2.bf16.msra.mxu0 0
    %2266 = vmatprep.subr.bf16.mxu0 0
    %2267 = vmatpush2.bf16.msra.mxu0 0
    %2268 = vmatprep.subr.bf16.mxu0 0
    %2269 = vmatpush2.bf16.msra.mxu0 0
    %2270 = vmatprep.subr.bf16.mxu0 0
    %2271 = vmatpush2.bf16.msra.mxu0 0
    %2272 = vmatprep.subr.bf16.mxu0 0
    %2273 = vmatpush2.bf16.msra.mxu0 0
    %2274 = vmatprep.mubr.bf16.mxu0 0
    %2275 = vmatmul.mubr.bf16.gmra.mxu0 %v2240
    %v2276 = vpop.f32.mrf.mxu0
    %v2277 = vadd.f32 %v2225, %v2276
    %v2278 = vpop.f32.mrf.mxu0
    %v2279 = vpop.f32.mrf.mxu0
    %v2280 = vadd.f32 %v2226, %v2279
    %v2281 = vpop.f32.mrf.mxu0
    %2282 = vdwg.mxu0
    %v2283 = vpack.c.bf16 %v2196, %v2193
    %v2284 = vld [vmem:[%s17] sm:$0xf]
    %v2285 = vld [vmem:[%s17 + $0x4] sm:$0xf]
    %v2288 = vunpack.c.l.b16 %v2284
    %v2289 = vunpack.c.l.b16 %v2285
    %v2290 = vpack.c.b16 %v2289, %v2288
    %v2293 = vsel %vm1827, %v2283, 0
    %2295 = vmatprep.subr.bf16.mxu0 0
    %2296 = vmatpush1.bf16.msra.mxu0 0
    %2297 = vmatprep.subr.bf16.mxu0 0
    %2298 = vmatpush1.bf16.msra.mxu0 0
    %2299 = vmatprep.subr.bf16.mxu0 0
    %2300 = vmatpush1.bf16.msra.mxu0 0
    %2301 = vmatprep.subr.bf16.mxu0 0
    %2302 = vmatpush1.bf16.msra.mxu0 0
    %2303 = vmatprep.subr.bf16.mxu0 0
    %2304 = vmatpush1.bf16.msra.mxu0 0
    %2305 = vmatprep.subr.bf16.mxu0 0
    %2306 = vmatpush1.bf16.msra.mxu0 0
    %2307 = vmatprep.subr.bf16.mxu0 0
    %2308 = vmatpush1.bf16.msra.mxu0 0
    %2309 = vmatprep.subr.bf16.mxu0 0
    %2310 = vmatpush1.bf16.msra.mxu0 %v2290
    %2311 = vmatprep.subr.bf16.mxu0 0
    %2312 = vmatpush2.bf16.msra.mxu0 0
    %2313 = vmatprep.subr.bf16.mxu0 0
    %2314 = vmatpush2.bf16.msra.mxu0 0
    %2315 = vmatprep.subr.bf16.mxu0 0
    %2316 = vmatpush2.bf16.msra.mxu0 0
    %2317 = vmatprep.subr.bf16.mxu0 0
    %2318 = vmatpush2.bf16.msra.mxu0 0
    %2319 = vmatprep.subr.bf16.mxu0 0
    %2320 = vmatpush2.bf16.msra.mxu0 0
    %2321 = vmatprep.subr.bf16.mxu0 0
    %2322 = vmatpush2.bf16.msra.mxu0 0
    %2323 = vmatprep.subr.bf16.mxu0 0
    %2324 = vmatpush2.bf16.msra.mxu0 0
    %2325 = vmatprep.subr.bf16.mxu0 0
    %2326 = vmatpush2.bf16.msra.mxu0 0
    %2327 = vmatprep.mubr.bf16.mxu0 0
    %2328 = vmatmul.mubr.bf16.gmra.mxu0 %v2293
    %v2329 = vpop.f32.mrf.mxu0
    %v2330 = vadd.f32 0.0, %v2329
    %v2331 = vpop.f32.mrf.mxu0
    %v2332 = vpop.f32.mrf.mxu0
    %v2333 = vadd.f32 0.0, %v2332
    %v2334 = vpop.f32.mrf.mxu0
    %2335 = vdwg.mxu0
    %v2336 = vadd.f32 %v2277, %v2330
    %v2337 = vadd.f32 %v2280, %v2333
    %v2338 = vpack.c.bf16 %v2002, %v1999
    %v2339 = vld [vmem:[%s11] sm:$0xf]
    %v2340 = vld [vmem:[%s11 + $0x4] sm:$0xf]
    %v2343 = vunpack.c.l.b16 %v2339
    %v2344 = vunpack.c.l.b16 %v2340
    %v2345 = vpack.c.b16 %v2344, %v2343
    %v2348 = vsel %vm1827, %v2338, 0
    %2350 = vmatprep.subr.bf16.mxu0 0
    %2351 = vmatpush1.bf16.msra.mxu0 0
    %2352 = vmatprep.subr.bf16.mxu0 0
    %2353 = vmatpush1.bf16.msra.mxu0 0
    %2354 = vmatprep.subr.bf16.mxu0 0
    %2355 = vmatpush1.bf16.msra.mxu0 0
    %2356 = vmatprep.subr.bf16.mxu0 0
    %2357 = vmatpush1.bf16.msra.mxu0 0
    %2358 = vmatprep.subr.bf16.mxu0 0
    %2359 = vmatpush1.bf16.msra.mxu0 0
    %2360 = vmatprep.subr.bf16.mxu0 0
    %2361 = vmatpush1.bf16.msra.mxu0 0
    %2362 = vmatprep.subr.bf16.mxu0 0
    %2363 = vmatpush1.bf16.msra.mxu0 0
    %2364 = vmatprep.subr.bf16.mxu0 0
    %2365 = vmatpush1.bf16.msra.mxu0 %v2345
    %2366 = vmatprep.subr.bf16.mxu0 0
    %2367 = vmatpush2.bf16.msra.mxu0 0
    %2368 = vmatprep.subr.bf16.mxu0 0
    %2369 = vmatpush2.bf16.msra.mxu0 0
    %2370 = vmatprep.subr.bf16.mxu0 0
    %2371 = vmatpush2.bf16.msra.mxu0 0
    %2372 = vmatprep.subr.bf16.mxu0 0
    %2373 = vmatpush2.bf16.msra.mxu0 0
    %2374 = vmatprep.subr.bf16.mxu0 0
    %2375 = vmatpush2.bf16.msra.mxu0 0
    %2376 = vmatprep.subr.bf16.mxu0 0
    %2377 = vmatpush2.bf16.msra.mxu0 0
    %2378 = vmatprep.subr.bf16.mxu0 0
    %2379 = vmatpush2.bf16.msra.mxu0 0
    %2380 = vmatprep.subr.bf16.mxu0 0
    %2381 = vmatpush2.bf16.msra.mxu0 0
    %2382 = vmatprep.mubr.bf16.mxu0 0
    %2383 = vmatmul.mubr.bf16.gmra.mxu0 %v2348
    %v2384 = vpop.f32.mrf.mxu0
    %v2385 = vadd.f32 0.0, %v2384
    %v2386 = vpop.f32.mrf.mxu0
    %v2387 = vpop.f32.mrf.mxu0
    %v2388 = vadd.f32 0.0, %v2387
    %v2389 = vpop.f32.mrf.mxu0
    %2390 = vdwg.mxu0
    %v2391 = vadd.f32 %v2336, %v2385
    %v2392 = vadd.f32 %v2337, %v2388
    %v2393 = vpack.c.bf16 %v2392, %v2391
    %v2394 = vld [vmem:[%s45] sm:$0xf]
    %v2395 = vld [vmem:[%s45 + $0x4] sm:$0xf]
    %v2396 = vld [vmem:[%s45 + $0x8] sm:$0xf]
    %v2397 = vld [vmem:[%s45 + $0xc] sm:$0xf]
    %v2398 = vld [vmem:[%s45 + $0x10] sm:$0xf]
    %v2399 = vld [vmem:[%s45 + $0x14] sm:$0xf]
    %v2400 = vld [vmem:[%s45 + $0x18] sm:$0xf]
    %v2401 = vld [vmem:[%s45 + $0x1c] sm:$0xf]
    %v2402 = vld [vmem:[%s45 + $0x20] sm:$0x1]
    %v2403 = vld [vmem:[#allocation14] sm:$0x1]
    %v2405 = vlaneseq
    %v2406 = vshrl.u32 %v2405, 7
    %v2407 = vsub.s32 0, %v2406
    %v2408 = vrot.slane %v2403, %v2407
    %v2419 = vunpack.c.l.b16 %v2394
    %v2420 = vunpack.c.l.b16 %v2395
    %v2421 = vunpack.c.l.b16 %v2396
    %v2422 = vunpack.c.l.b16 %v2397
    %v2423 = vunpack.c.l.b16 %v2398
    %v2424 = vunpack.c.l.b16 %v2399
    %v2425 = vunpack.c.l.b16 %v2400
    %v2426 = vunpack.c.l.b16 %v2401
    %v2427 = vunpack.c.l.b16 %v2402
    %v2428 = vpack.c.b16 %v2420, %v2419
    %v2429 = vpack.c.b16 %v2422, %v2421
    %v2430 = vpack.c.b16 %v2424, %v2423
    %v2431 = vpack.c.b16 %v2426, %v2425
    %v2432 = vpack.c.b16 %v2427, %v2427
    %vm2437 = vcmask 531456
    %v2439 = vsel %vm2437, %v2393, 0
    %vm2441 = vcmask 1040384
    %v2442 = vsel 0, 4294967295, 65535
    %v2443 = vsel %vm2441, %v2442, 0
    %v2445 = vand.u32 %v2432, %v2443
    %2447 = vmatprep.subr.bf16.mxu0 0
    %2448 = vmatpush1.bf16.msra.mxu0 0
    %2449 = vmatprep.subr.bf16.mxu0 0
    %2450 = vmatpush1.bf16.msra.mxu0 0
    %2451 = vmatprep.subr.bf16.mxu0 0
    %2452 = vmatpush1.bf16.msra.mxu0 0
    %2453 = vmatprep.subr.bf16.mxu0 0
    %2454 = vmatpush1.bf16.msra.mxu0 %v2445
    %2455 = vmatprep.subr.bf16.mxu0 0
    %2456 = vmatpush1.bf16.msra.mxu0 %v2431
    %2457 = vmatprep.subr.bf16.mxu0 0
    %2458 = vmatpush1.bf16.msra.mxu0 %v2430
    %2459 = vmatprep.subr.bf16.mxu0 0
    %2460 = vmatpush1.bf16.msra.mxu0 %v2429
    %2461 = vmatprep.subr.bf16.mxu0 0
    %2462 = vmatpush1.bf16.msra.mxu0 %v2428
    %2463 = vmatprep.subr.bf16.mxu0 0
    %2464 = vmatpush2.bf16.msra.mxu0 0
    %2465 = vmatprep.subr.bf16.mxu0 0
    %2466 = vmatpush2.bf16.msra.mxu0 0
    %2467 = vmatprep.subr.bf16.mxu0 0
    %2468 = vmatpush2.bf16.msra.mxu0 0
    %2469 = vmatprep.subr.bf16.mxu0 0
    %2470 = vmatpush2.bf16.msra.mxu0 0
    %2471 = vmatprep.subr.bf16.mxu0 0
    %2472 = vmatpush2.bf16.msra.mxu0 0
    %2473 = vmatprep.subr.bf16.mxu0 0
    %2474 = vmatpush2.bf16.msra.mxu0 0
    %2475 = vmatprep.subr.bf16.mxu0 0
    %2476 = vmatpush2.bf16.msra.mxu0 0
    %2477 = vmatprep.subr.bf16.mxu0 0
    %2478 = vmatpush2.bf16.msra.mxu0 0
    %2479 = vmatprep.mubr.bf16.mxu0 0
    %2480 = vmatmul.mubr.bf16.gmra.mxu0 %v2439
    %v2481 = vpop.f32.mrf.mxu0
    %v2482 = vadd.f32 %v2408, %v2481
    %v2483 = vpop.f32.mrf.mxu0
    %v2484 = vpop.f32.mrf.mxu0
    %v2485 = vadd.f32 %v2408, %v2484
    %v2486 = vpop.f32.mrf.mxu0
    %2487 = vdwg.mxu0
    %v2488 = vmax.f32 %v2482, 0.0
    %v2489 = vmax.f32 %v2485, 0.0
    %v2490 = vpack.c.bf16 %v2489, %v2488
    %v2491 = vld [vmem:[#allocation16] sm:$0xf]
    %v2492 = vld [vmem:[#allocation16 + $0x4] sm:$0xf]
    %v2493 = vld [vmem:[#allocation16 + $0x8] sm:$0xf]
    %v2494 = vld [vmem:[#allocation16 + $0xc] sm:$0xf]
    %v2495 = vld [vmem:[#allocation16 + $0x10] sm:$0xf]
    %v2496 = vld [vmem:[#allocation16 + $0x14] sm:$0xf]
    %v2497 = vld [vmem:[#allocation16 + $0x18] sm:$0xf]
    %v2498 = vld [vmem:[#allocation16 + $0x1c] sm:$0xf]
    %v2499 = vld [vmem:[#allocation16 + $0x20] sm:$0x1]
    %v2500 = vld [vmem:[#allocation17] sm:$0x1]
    %v2502 = vlaneseq
    %v2503 = vshrl.u32 %v2502, 7
    %v2504 = vsub.s32 0, %v2503
    %v2505 = vrot.slane %v2500, %v2504
    %v2516 = vunpack.c.l.b16 %v2491
    %v2517 = vunpack.c.l.b16 %v2492
    %v2518 = vunpack.c.l.b16 %v2493
    %v2519 = vunpack.c.l.b16 %v2494
    %v2520 = vunpack.c.l.b16 %v2495
    %v2521 = vunpack.c.l.b16 %v2496
    %v2522 = vunpack.c.l.b16 %v2497
    %v2523 = vunpack.c.l.b16 %v2498
    %v2524 = vunpack.c.l.b16 %v2499
    %v2525 = vpack.c.b16 %v2517, %v2516
    %v2526 = vpack.c.b16 %v2519, %v2518
    %v2527 = vpack.c.b16 %v2521, %v2520
    %v2528 = vpack.c.b16 %v2523, %v2522
    %v2529 = vpack.c.b16 %v2524, %v2524
    %v2535 = vsel %vm2437, %v2490, 0
    %v2538 = vand.u32 %v2529, %v2443
    %2540 = vmatprep.subr.bf16.mxu0 0
    %2541 = vmatpush1.bf16.msra.mxu0 0
    %2542 = vmatprep.subr.bf16.mxu0 0
    %2543 = vmatpush1.bf16.msra.mxu0 0
    %2544 = vmatprep.subr.bf16.mxu0 0
    %2545 = vmatpush1.bf16.msra.mxu0 0
    %2546 = vmatprep.subr.bf16.mxu0 0
    %2547 = vmatpush1.bf16.msra.mxu0 %v2538
    %2548 = vmatprep.subr.bf16.mxu0 0
    %2549 = vmatpush1.bf16.msra.mxu0 %v2528
    %2550 = vmatprep.subr.bf16.mxu0 0
    %2551 = vmatpush1.bf16.msra.mxu0 %v2527
    %2552 = vmatprep.subr.bf16.mxu0 0
    %2553 = vmatpush1.bf16.msra.mxu0 %v2526
    %2554 = vmatprep.subr.bf16.mxu0 0
    %2555 = vmatpush1.bf16.msra.mxu0 %v2525
    %2556 = vmatprep.subr.bf16.mxu0 0
    %2557 = vmatpush2.bf16.msra.mxu0 0
    %2558 = vmatprep.subr.bf16.mxu0 0
    %2559 = vmatpush2.bf16.msra.mxu0 0
    %2560 = vmatprep.subr.bf16.mxu0 0
    %2561 = vmatpush2.bf16.msra.mxu0 0
    %2562 = vmatprep.subr.bf16.mxu0 0
    %2563 = vmatpush2.bf16.msra.mxu0 0
    %2564 = vmatprep.subr.bf16.mxu0 0
    %2565 = vmatpush2.bf16.msra.mxu0 0
    %2566 = vmatprep.subr.bf16.mxu0 0
    %2567 = vmatpush2.bf16.msra.mxu0 0
    %2568 = vmatprep.subr.bf16.mxu0 0
    %2569 = vmatpush2.bf16.msra.mxu0 0
    %2570 = vmatprep.subr.bf16.mxu0 0
    %2571 = vmatpush2.bf16.msra.mxu0 0
    %2572 = vmatprep.mubr.bf16.mxu0 0
    %2573 = vmatmul.mubr.bf16.gmra.mxu0 %v2535
    %v2574 = vpop.f32.mrf.mxu0
    %v2575 = vadd.f32 %v2505, %v2574
    %v2576 = vpop.f32.mrf.mxu0
    %v2577 = vpop.f32.mrf.mxu0
    %v2578 = vadd.f32 %v2505, %v2577
    %v2579 = vpop.f32.mrf.mxu0
    %2580 = vdwg.mxu0
    %v2581 = vadd.f32 %v2575, %v2391
    %v2582 = vadd.f32 %v2578, %v2392
    %v2583 = vpack.c.bf16 %v2582, %v2581
    %v2584 = vld [vmem:[#allocation19] sm:$0xf]
    %v2585 = vld [vmem:[#allocation19 + $0x4] sm:$0xf]
    %v2586 = vld [vmem:[#allocation19 + $0x8] sm:$0xf]
    %v2587 = vld [vmem:[#allocation19 + $0xc] sm:$0xf]
    %v2588 = vld [vmem:[#allocation19 + $0x10] sm:$0xf]
    %v2589 = vld [vmem:[#allocation19 + $0x14] sm:$0xf]
    %v2590 = vld [vmem:[#allocation19 + $0x18] sm:$0xf]
    %v2591 = vld [vmem:[#allocation19 + $0x1c] sm:$0xf]
    %v2592 = vld [vmem:[#allocation19 + $0x20] sm:$0x1]
    %v2593 = vld [vmem:[#allocation20] sm:$0x1]
    %v2595 = vlaneseq
    %v2596 = vshrl.u32 %v2595, 7
    %v2597 = vsub.s32 0, %v2596
    %v2598 = vrot.slane %v2593, %v2597
    %v2609 = vunpack.c.l.b16 %v2584
    %v2610 = vunpack.c.l.b16 %v2585
    %v2611 = vunpack.c.l.b16 %v2586
    %v2612 = vunpack.c.l.b16 %v2587
    %v2613 = vunpack.c.l.b16 %v2588
    %v2614 = vunpack.c.l.b16 %v2589
    %v2615 = vunpack.c.l.b16 %v2590
    %v2616 = vunpack.c.l.b16 %v2591
    %v2617 = vunpack.c.l.b16 %v2592
    %v2618 = vpack.c.b16 %v2610, %v2609
    %v2619 = vpack.c.b16 %v2612, %v2611
    %v2620 = vpack.c.b16 %v2614, %v2613
    %v2621 = vpack.c.b16 %v2616, %v2615
    %v2622 = vpack.c.b16 %v2617, %v2617
    %v2628 = vsel %vm2437, %v2583, 0
    %v2631 = vand.u32 %v2622, %v2443
    %2633 = vmatprep.subr.bf16.mxu0 0
    %2634 = vmatpush1.bf16.msra.mxu0 0
    %2635 = vmatprep.subr.bf16.mxu0 0
    %2636 = vmatpush1.bf16.msra.mxu0 0
    %2637 = vmatprep.subr.bf16.mxu0 0
    %2638 = vmatpush1.bf16.msra.mxu0 0
    %2639 = vmatprep.subr.bf16.mxu0 0
    %2640 = vmatpush1.bf16.msra.mxu0 %v2631
    %2641 = vmatprep.subr.bf16.mxu0 0
    %2642 = vmatpush1.bf16.msra.mxu0 %v2621
    %2643 = vmatprep.subr.bf16.mxu0 0
    %2644 = vmatpush1.bf16.msra.mxu0 %v2620
    %2645 = vmatprep.subr.bf16.mxu0 0
    %2646 = vmatpush1.bf16.msra.mxu0 %v2619
    %2647 = vmatprep.subr.bf16.mxu0 0
    %2648 = vmatpush1.bf16.msra.mxu0 %v2618
    %2649 = vmatprep.subr.bf16.mxu0 0
    %2650 = vmatpush2.bf16.msra.mxu0 0
    %2651 = vmatprep.subr.bf16.mxu0 0
    %2652 = vmatpush2.bf16.msra.mxu0 0
    %2653 = vmatprep.subr.bf16.mxu0 0
    %2654 = vmatpush2.bf16.msra.mxu0 0
    %2655 = vmatprep.subr.bf16.mxu0 0
    %2656 = vmatpush2.bf16.msra.mxu0 0
    %2657 = vmatprep.subr.bf16.mxu0 0
    %2658 = vmatpush2.bf16.msra.mxu0 0
    %2659 = vmatprep.subr.bf16.mxu0 0
    %2660 = vmatpush2.bf16.msra.mxu0 0
    %2661 = vmatprep.subr.bf16.mxu0 0
    %2662 = vmatpush2.bf16.msra.mxu0 0
    %2663 = vmatprep.subr.bf16.mxu0 0
    %2664 = vmatpush2.bf16.msra.mxu0 0
    %2665 = vmatprep.mubr.bf16.mxu0 0
    %2666 = vmatmul.mubr.bf16.gmra.mxu0 %v2628
    %v2667 = vpop.f32.mrf.mxu0
    %v2668 = vadd.f32 %v2598, %v2667
    %v2669 = vpop.f32.mrf.mxu0
    %v2670 = vpop.f32.mrf.mxu0
    %v2671 = vadd.f32 %v2598, %v2670
    %v2672 = vpop.f32.mrf.mxu0
    %2673 = vdwg.mxu0
    %v2674 = vmax.f32 %v2668, 0.0
    %v2675 = vmax.f32 %v2671, 0.0
    %v2676 = vpack.c.bf16 %v2675, %v2674
    %v2677 = vld [vmem:[%s57] sm:$0xf]
    %v2678 = vld [vmem:[%s57 + $0x4] sm:$0xf]
    %v2679 = vld [vmem:[%s57 + $0x8] sm:$0xf]
    %v2680 = vld [vmem:[%s57 + $0xc] sm:$0xf]
    %v2681 = vld [vmem:[%s57 + $0x10] sm:$0xf]
    %v2682 = vld [vmem:[%s57 + $0x14] sm:$0xf]
    %v2683 = vld [vmem:[%s57 + $0x18] sm:$0xf]
    %v2684 = vld [vmem:[%s57 + $0x1c] sm:$0xf]
    %v2685 = vld [vmem:[%s57 + $0x20] sm:$0xf]
    %v2686 = vld [vmem:[%s57 + $0x24] sm:$0xf]
    %v2687 = vld [vmem:[%s57 + $0x28] sm:$0xf]
    %v2688 = vld [vmem:[%s57 + $0x2c] sm:$0xf]
    %v2689 = vld [vmem:[%s57 + $0x30] sm:$0xf]
    %v2690 = vld [vmem:[%s57 + $0x34] sm:$0xf]
    %v2691 = vld [vmem:[%s57 + $0x38] sm:$0xf]
    %v2692 = vld [vmem:[%s57 + $0x3c] sm:$0xf]
    %v2693 = vld [vmem:[#allocation22] sm:$0x1]
    %v2695 = vlaneseq
    %v2696 = vshrl.u32 %v2695, 7
    %v2697 = vsub.s32 0, %v2696
    %v2698 = vrot.slane %v2693, %v2697
    %v2716 = vunpack.c.l.b16 %v2677
    %v2717 = vunpack.c.l.b16 %v2678
    %v2718 = vunpack.c.l.b16 %v2679
    %v2719 = vunpack.c.l.b16 %v2680
    %v2720 = vunpack.c.l.b16 %v2681
    %v2721 = vunpack.c.l.b16 %v2682
    %v2722 = vunpack.c.l.b16 %v2683
    %v2723 = vunpack.c.l.b16 %v2684
    %v2724 = vunpack.c.l.b16 %v2685
    %v2725 = vunpack.c.l.b16 %v2686
    %v2726 = vunpack.c.l.b16 %v2687
    %v2727 = vunpack.c.l.b16 %v2688
    %v2728 = vunpack.c.l.b16 %v2689
    %v2729 = vunpack.c.l.b16 %v2690
    %v2730 = vunpack.c.l.b16 %v2691
    %v2731 = vunpack.c.l.b16 %v2692
    %v2732 = vpack.c.b16 %v2717, %v2716
    %v2733 = vpack.c.b16 %v2719, %v2718
    %v2734 = vpack.c.b16 %v2721, %v2720
    %v2735 = vpack.c.b16 %v2723, %v2722
    %v2736 = vpack.c.b16 %v2725, %v2724
    %v2737 = vpack.c.b16 %v2727, %v2726
    %v2738 = vpack.c.b16 %v2729, %v2728
    %v2739 = vpack.c.b16 %v2731, %v2730
    %2748 = vmatprep.subr.bf16.mxu0 0
    %2749 = vmatpush1.bf16.msra.mxu0 %v2739
    %2750 = vmatprep.subr.bf16.mxu0 0
    %2751 = vmatpush1.bf16.msra.mxu0 %v2738
    %2752 = vmatprep.subr.bf16.mxu0 0
    %2753 = vmatpush1.bf16.msra.mxu0 %v2737
    %2754 = vmatprep.subr.bf16.mxu0 0
    %2755 = vmatpush1.bf16.msra.mxu0 %v2736
    %2756 = vmatprep.subr.bf16.mxu0 0
    %2757 = vmatpush1.bf16.msra.mxu0 %v2735
    %2758 = vmatprep.subr.bf16.mxu0 0
    %2759 = vmatpush1.bf16.msra.mxu0 %v2734
    %2760 = vmatprep.subr.bf16.mxu0 0
    %2761 = vmatpush1.bf16.msra.mxu0 %v2733
    %2762 = vmatprep.subr.bf16.mxu0 0
    %2763 = vmatpush1.bf16.msra.mxu0 %v2732
    %2764 = vmatprep.subr.bf16.mxu0 0
    %2765 = vmatpush2.bf16.msra.mxu0 0
    %2766 = vmatprep.subr.bf16.mxu0 0
    %2767 = vmatpush2.bf16.msra.mxu0 0
    %2768 = vmatprep.subr.bf16.mxu0 0
    %2769 = vmatpush2.bf16.msra.mxu0 0
    %2770 = vmatprep.subr.bf16.mxu0 0
    %2771 = vmatpush2.bf16.msra.mxu0 0
    %2772 = vmatprep.subr.bf16.mxu0 0
    %2773 = vmatpush2.bf16.msra.mxu0 0
    %2774 = vmatprep.subr.bf16.mxu0 0
    %2775 = vmatpush2.bf16.msra.mxu0 0
    %2776 = vmatprep.subr.bf16.mxu0 0
    %2777 = vmatpush2.bf16.msra.mxu0 0
    %2778 = vmatprep.subr.bf16.mxu0 0
    %2779 = vmatpush2.bf16.msra.mxu0 0
    %2780 = vmatprep.mubr.bf16.mxu0 0
    %2781 = vmatmul.mubr.bf16.gmra.mxu0 %v2676
    %v2782 = vpop.f32.mrf.mxu0
    %v2783 = vadd.f32 %v2698, %v2782
    %v2784 = vpop.f32.mrf.mxu0
    %v2785 = vpop.f32.mrf.mxu0
    %v2786 = vadd.f32 %v2698, %v2785
    %v2787 = vpop.f32.mrf.mxu0
    %2788 = vdwg.mxu0
    %v2789 = vld [vmem:[#allocation23] sm:$0xf]
    %v2790 = vld [vmem:[#allocation23 + $0x4] sm:$0xf]
    %v2791 = vld [vmem:[#allocation23 + $0x8] sm:$0xf]
    %v2792 = vld [vmem:[#allocation23 + $0xc] sm:$0xf]
    %v2793 = vld [vmem:[#allocation23 + $0x10] sm:$0xf]
    %v2794 = vld [vmem:[#allocation23 + $0x14] sm:$0xf]
    %v2795 = vld [vmem:[#allocation23 + $0x18] sm:$0xf]
    %v2796 = vld [vmem:[#allocation23 + $0x1c] sm:$0xf]
    %v2797 = vld [vmem:[#allocation23 + $0x20] sm:$0x1]
    %v2798 = vld [vmem:[#allocation25] sm:$0x1]
    %v2800 = vlaneseq
    %v2801 = vshrl.u32 %v2800, 7
    %v2802 = vsub.s32 0, %v2801
    %v2803 = vrot.slane %v2798, %v2802
    %v2814 = vunpack.c.l.b16 %v2789
    %v2815 = vunpack.c.l.b16 %v2790
    %v2816 = vunpack.c.l.b16 %v2791
    %v2817 = vunpack.c.l.b16 %v2792
    %v2818 = vunpack.c.l.b16 %v2793
    %v2819 = vunpack.c.l.b16 %v2794
    %v2820 = vunpack.c.l.b16 %v2795
    %v2821 = vunpack.c.l.b16 %v2796
    %v2822 = vunpack.c.l.b16 %v2797
    %v2823 = vpack.c.b16 %v2815, %v2814
    %v2824 = vpack.c.b16 %v2817, %v2816
    %v2825 = vpack.c.b16 %v2819, %v2818
    %v2826 = vpack.c.b16 %v2821, %v2820
    %v2827 = vpack.c.b16 %v2822, %v2822
    %v2833 = vand.u32 %v2827, %v2443
    %2835 = vmatprep.subr.bf16.mxu0 0
    %2836 = vmatpush1.bf16.msra.mxu0 0
    %2837 = vmatprep.subr.bf16.mxu0 0
    %2838 = vmatpush1.bf16.msra.mxu0 0
    %2839 = vmatprep.subr.bf16.mxu0 0
    %2840 = vmatpush1.bf16.msra.mxu0 0
    %2841 = vmatprep.subr.bf16.mxu0 0
    %2842 = vmatpush1.bf16.msra.mxu0 %v2833
    %2843 = vmatprep.subr.bf16.mxu0 0
    %2844 = vmatpush1.bf16.msra.mxu0 %v2826
    %2845 = vmatprep.subr.bf16.mxu0 0
    %2846 = vmatpush1.bf16.msra.mxu0 %v2825
    %2847 = vmatprep.subr.bf16.mxu0 0
    %2848 = vmatpush1.bf16.msra.mxu0 %v2824
    %2849 = vmatprep.subr.bf16.mxu0 0
    %2850 = vmatpush1.bf16.msra.mxu0 %v2823
    %2851 = vmatprep.subr.bf16.mxu0 0
    %2852 = vmatpush2.bf16.msra.mxu0 0
    %2853 = vmatprep.subr.bf16.mxu0 0
    %2854 = vmatpush2.bf16.msra.mxu0 0
    %2855 = vmatprep.subr.bf16.mxu0 0
    %2856 = vmatpush2.bf16.msra.mxu0 0
    %2857 = vmatprep.subr.bf16.mxu0 0
    %2858 = vmatpush2.bf16.msra.mxu0 0
    %2859 = vmatprep.subr.bf16.mxu0 0
    %2860 = vmatpush2.bf16.msra.mxu0 0
    %2861 = vmatprep.subr.bf16.mxu0 0
    %2862 = vmatpush2.bf16.msra.mxu0 0
    %2863 = vmatprep.subr.bf16.mxu0 0
    %2864 = vmatpush2.bf16.msra.mxu0 0
    %2865 = vmatprep.subr.bf16.mxu0 0
    %2866 = vmatpush2.bf16.msra.mxu0 0
    %2867 = vmatprep.mubr.bf16.mxu0 0
    %2868 = vmatmul.mubr.bf16.gmra.mxu0 %v2628
    %v2869 = vpop.f32.mrf.mxu0
    %v2870 = vadd.f32 %v2803, %v2869
    %v2871 = vpop.f32.mrf.mxu0
    %v2872 = vpop.f32.mrf.mxu0
    %v2873 = vadd.f32 %v2803, %v2872
    %v2874 = vpop.f32.mrf.mxu0
    %2875 = vdwg.mxu0
    %v2876 = vadd.f32 %v2783, %v2870
    %v2877 = vadd.f32 %v2786, %v2873
    %v2878 = vpack.c.bf16 %v2877, %v2876
    %v2879 = vld [vmem:[%s65] sm:$0xf]
    %v2880 = vld [vmem:[%s65 + $0x4] sm:$0xf]
    %v2881 = vld [vmem:[%s65 + $0x8] sm:$0xf]
    %v2882 = vld [vmem:[%s65 + $0xc] sm:$0xf]
    %v2883 = vld [vmem:[%s65 + $0x10] sm:$0xf]
    %v2884 = vld [vmem:[%s65 + $0x14] sm:$0xf]
    %v2885 = vld [vmem:[%s65 + $0x18] sm:$0xf]
    %v2886 = vld [vmem:[%s65 + $0x1c] sm:$0xf]
    %v2887 = vld [vmem:[%s65 + $0x20] sm:$0xf]
    %v2888 = vld [vmem:[%s65 + $0x24] sm:$0xf]
    %v2889 = vld [vmem:[%s65 + $0x28] sm:$0xf]
    %v2890 = vld [vmem:[%s65 + $0x2c] sm:$0xf]
    %v2891 = vld [vmem:[%s65 + $0x30] sm:$0xf]
    %v2892 = vld [vmem:[%s65 + $0x34] sm:$0xf]
    %v2893 = vld [vmem:[%s65 + $0x38] sm:$0xf]
    %v2894 = vld [vmem:[%s65 + $0x3c] sm:$0xf]
    %v2895 = vld [vmem:[#allocation26] sm:$0x1]
    %v2897 = vlaneseq
    %v2898 = vshrl.u32 %v2897, 7
    %v2899 = vsub.s32 0, %v2898
    %v2900 = vrot.slane %v2895, %v2899
    %v2918 = vunpack.c.l.b16 %v2879
    %v2919 = vunpack.c.l.b16 %v2880
    %v2920 = vunpack.c.l.b16 %v2881
    %v2921 = vunpack.c.l.b16 %v2882
    %v2922 = vunpack.c.l.b16 %v2883
    %v2923 = vunpack.c.l.b16 %v2884
    %v2924 = vunpack.c.l.b16 %v2885
    %v2925 = vunpack.c.l.b16 %v2886
    %v2926 = vunpack.c.l.b16 %v2887
    %v2927 = vunpack.c.l.b16 %v2888
    %v2928 = vunpack.c.l.b16 %v2889
    %v2929 = vunpack.c.l.b16 %v2890
    %v2930 = vunpack.c.l.b16 %v2891
    %v2931 = vunpack.c.l.b16 %v2892
    %v2932 = vunpack.c.l.b16 %v2893
    %v2933 = vunpack.c.l.b16 %v2894
    %v2934 = vpack.c.b16 %v2919, %v2918
    %v2935 = vpack.c.b16 %v2921, %v2920
    %v2936 = vpack.c.b16 %v2923, %v2922
    %v2937 = vpack.c.b16 %v2925, %v2924
    %v2938 = vpack.c.b16 %v2927, %v2926
    %v2939 = vpack.c.b16 %v2929, %v2928
    %v2940 = vpack.c.b16 %v2931, %v2930
    %v2941 = vpack.c.b16 %v2933, %v2932
    %2950 = vmatprep.subr.bf16.mxu0 0
    %2951 = vmatpush1.bf16.msra.mxu0 %v2941
    %2952 = vmatprep.subr.bf16.mxu0 0
    %2953 = vmatpush1.bf16.msra.mxu0 %v2940
    %2954 = vmatprep.subr.bf16.mxu0 0
    %2955 = vmatpush1.bf16.msra.mxu0 %v2939
    %2956 = vmatprep.subr.bf16.mxu0 0
    %2957 = vmatpush1.bf16.msra.mxu0 %v2938
    %2958 = vmatprep.subr.bf16.mxu0 0
    %2959 = vmatpush1.bf16.msra.mxu0 %v2937
    %2960 = vmatprep.subr.bf16.mxu0 0
    %2961 = vmatpush1.bf16.msra.mxu0 %v2936
    %2962 = vmatprep.subr.bf16.mxu0 0
    %2963 = vmatpush1.bf16.msra.mxu0 %v2935
    %2964 = vmatprep.subr.bf16.mxu0 0
    %2965 = vmatpush1.bf16.msra.mxu0 %v2934
    %2966 = vmatprep.subr.bf16.mxu0 0
    %2967 = vmatpush2.bf16.msra.mxu0 0
    %2968 = vmatprep.subr.bf16.mxu0 0
    %2969 = vmatpush2.bf16.msra.mxu0 0
    %2970 = vmatprep.subr.bf16.mxu0 0
    %2971 = vmatpush2.bf16.msra.mxu0 0
    %2972 = vmatprep.subr.bf16.mxu0 0
    %2973 = vmatpush2.bf16.msra.mxu0 0
    %2974 = vmatprep.subr.bf16.mxu0 0
    %2975 = vmatpush2.bf16.msra.mxu0 0
    %2976 = vmatprep.subr.bf16.mxu0 0
    %2977 = vmatpush2.bf16.msra.mxu0 0
    %2978 = vmatprep.subr.bf16.mxu0 0
    %2979 = vmatpush2.bf16.msra.mxu0 0
    %2980 = vmatprep.subr.bf16.mxu0 0
    %2981 = vmatpush2.bf16.msra.mxu0 0
    %2982 = vmatprep.mubr.bf16.mxu0 0
    %2983 = vmatmul.mubr.bf16.gmra.mxu0 %v2878
    %v2984 = vpop.f32.mrf.mxu0
    %v2985 = vadd.f32 %v2900, %v2984
    %v2986 = vpop.f32.mrf.mxu0
    %v2987 = vpop.f32.mrf.mxu0
    %v2988 = vadd.f32 %v2900, %v2987
    %v2989 = vpop.f32.mrf.mxu0
    %2990 = vdwg.mxu0
    %v2991 = vmax.f32 %v2985, 0.0
    %v2992 = vmax.f32 %v2988, 0.0
    %v2993 = vpack.c.bf16 %v2992, %v2991
    %v2994 = vld [vmem:[#allocation28] sm:$0xf]
    %v2995 = vld [vmem:[#allocation28 + $0x4] sm:$0xf]
    %v2996 = vld [vmem:[#allocation28 + $0x8] sm:$0xf]
    %v2997 = vld [vmem:[#allocation28 + $0xc] sm:$0xf]
    %v2998 = vld [vmem:[#allocation28 + $0x10] sm:$0xf]
    %v2999 = vld [vmem:[#allocation28 + $0x14] sm:$0xf]
    %v3000 = vld [vmem:[#allocation28 + $0x18] sm:$0xf]
    %v3001 = vld [vmem:[#allocation28 + $0x1c] sm:$0xf]
    %v3002 = vld [vmem:[#allocation29] sm:$0x1]
    %v3004 = vlaneseq
    %v3005 = vshrl.u32 %v3004, 7
    %v3006 = vsub.s32 0, %v3005
    %v3007 = vrot.slane %v3002, %v3006
    %v3017 = vunpack.c.l.b16 %v2994
    %v3018 = vunpack.c.l.b16 %v2995
    %v3019 = vunpack.c.l.b16 %v2996
    %v3020 = vunpack.c.l.b16 %v2997
    %v3021 = vunpack.c.l.b16 %v2998
    %v3022 = vunpack.c.l.b16 %v2999
    %v3023 = vunpack.c.l.b16 %v3000
    %v3024 = vunpack.c.l.b16 %v3001
    %v3025 = vpack.c.b16 %v3018, %v3017
    %v3026 = vpack.c.b16 %v3020, %v3019
    %v3027 = vpack.c.b16 %v3022, %v3021
    %v3028 = vpack.c.b16 %v3024, %v3023
    %vm3033 = vcmask 523264
    %v3035 = vsel %vm3033, %v2993, 0
    %3037 = vmatprep.subr.bf16.mxu0 0
    %3038 = vmatpush1.bf16.msra.mxu0 0
    %3039 = vmatprep.subr.bf16.mxu0 0
    %3040 = vmatpush1.bf16.msra.mxu0 0
    %3041 = vmatprep.subr.bf16.mxu0 0
    %3042 = vmatpush1.bf16.msra.mxu0 0
    %3043 = vmatprep.subr.bf16.mxu0 0
    %3044 = vmatpush1.bf16.msra.mxu0 0
    %3045 = vmatprep.subr.bf16.mxu0 0
    %3046 = vmatpush1.bf16.msra.mxu0 %v3028
    %3047 = vmatprep.subr.bf16.mxu0 0
    %3048 = vmatpush1.bf16.msra.mxu0 %v3027
    %3049 = vmatprep.subr.bf16.mxu0 0
    %3050 = vmatpush1.bf16.msra.mxu0 %v3026
    %3051 = vmatprep.subr.bf16.mxu0 0
    %3052 = vmatpush1.bf16.msra.mxu0 %v3025
    %3053 = vmatprep.subr.bf16.mxu0 0
    %3054 = vmatpush2.bf16.msra.mxu0 0
    %3055 = vmatprep.subr.bf16.mxu0 0
    %3056 = vmatpush2.bf16.msra.mxu0 0
    %3057 = vmatprep.subr.bf16.mxu0 0
    %3058 = vmatpush2.bf16.msra.mxu0 0
    %3059 = vmatprep.subr.bf16.mxu0 0
    %3060 = vmatpush2.bf16.msra.mxu0 0
    %3061 = vmatprep.subr.bf16.mxu0 0
    %3062 = vmatpush2.bf16.msra.mxu0 0
    %3063 = vmatprep.subr.bf16.mxu0 0
    %3064 = vmatpush2.bf16.msra.mxu0 0
    %3065 = vmatprep.subr.bf16.mxu0 0
    %3066 = vmatpush2.bf16.msra.mxu0 0
    %3067 = vmatprep.subr.bf16.mxu0 0
    %3068 = vmatpush2.bf16.msra.mxu0 0
    %3069 = vmatprep.mubr.bf16.mxu0 0
    %3070 = vmatmul.mubr.bf16.gmra.mxu0 %v3035
    %v3071 = vpop.f32.mrf.mxu0
    %v3072 = vadd.f32 %v3007, %v3071
    %v3073 = vpop.f32.mrf.mxu0
    %v3074 = vpop.f32.mrf.mxu0
    %v3075 = vadd.f32 %v3007, %v3074
    %v3076 = vpop.f32.mrf.mxu0
    %3077 = vdwg.mxu0
    %v3078 = vld [vmem:[#allocation31] sm:$0xf]
    %v3079 = vld [vmem:[#allocation31 + $0x4] sm:$0xf]
    %v3080 = vld [vmem:[#allocation31 + $0x8] sm:$0xf]
    %v3081 = vld [vmem:[#allocation31 + $0xc] sm:$0xf]
    %v3082 = vld [vmem:[#allocation31 + $0x10] sm:$0xf]
    %v3083 = vld [vmem:[#allocation31 + $0x14] sm:$0xf]
    %v3084 = vld [vmem:[#allocation31 + $0x18] sm:$0xf]
    %v3085 = vld [vmem:[#allocation31 + $0x1c] sm:$0xf]
    %v3086 = vld [vmem:[#allocation31 + $0x20] sm:$0xf]
    %v3087 = vld [vmem:[#allocation31 + $0x24] sm:$0xf]
    %v3088 = vld [vmem:[#allocation31 + $0x28] sm:$0xf]
    %v3089 = vld [vmem:[#allocation31 + $0x2c] sm:$0xf]
    %v3090 = vld [vmem:[#allocation31 + $0x30] sm:$0xf]
    %v3091 = vld [vmem:[#allocation31 + $0x34] sm:$0xf]
    %v3092 = vld [vmem:[#allocation31 + $0x38] sm:$0xf]
    %v3093 = vld [vmem:[#allocation31 + $0x3c] sm:$0xf]
    %v3094 = vld [vmem:[#allocation32] sm:$0x1]
    %v3096 = vlaneseq
    %v3097 = vshrl.u32 %v3096, 7
    %v3098 = vsub.s32 0, %v3097
    %v3099 = vrot.slane %v3094, %v3098
    %v3117 = vunpack.c.l.b16 %v3078
    %v3118 = vunpack.c.l.b16 %v3079
    %v3119 = vunpack.c.l.b16 %v3080
    %v3120 = vunpack.c.l.b16 %v3081
    %v3121 = vunpack.c.l.b16 %v3082
    %v3122 = vunpack.c.l.b16 %v3083
    %v3123 = vunpack.c.l.b16 %v3084
    %v3124 = vunpack.c.l.b16 %v3085
    %v3125 = vunpack.c.l.b16 %v3086
    %v3126 = vunpack.c.l.b16 %v3087
    %v3127 = vunpack.c.l.b16 %v3088
    %v3128 = vunpack.c.l.b16 %v3089
    %v3129 = vunpack.c.l.b16 %v3090
    %v3130 = vunpack.c.l.b16 %v3091
    %v3131 = vunpack.c.l.b16 %v3092
    %v3132 = vunpack.c.l.b16 %v3093
    %v3133 = vpack.c.b16 %v3118, %v3117
    %v3134 = vpack.c.b16 %v3120, %v3119
    %v3135 = vpack.c.b16 %v3122, %v3121
    %v3136 = vpack.c.b16 %v3124, %v3123
    %v3137 = vpack.c.b16 %v3126, %v3125
    %v3138 = vpack.c.b16 %v3128, %v3127
    %v3139 = vpack.c.b16 %v3130, %v3129
    %v3140 = vpack.c.b16 %v3132, %v3131
    %3149 = vmatprep.subr.bf16.mxu0 0
    %3150 = vmatpush1.bf16.msra.mxu0 %v3140
    %3151 = vmatprep.subr.bf16.mxu0 0
    %3152 = vmatpush1.bf16.msra.mxu0 %v3139
    %3153 = vmatprep.subr.bf16.mxu0 0
    %3154 = vmatpush1.bf16.msra.mxu0 %v3138
    %3155 = vmatprep.subr.bf16.mxu0 0
    %3156 = vmatpush1.bf16.msra.mxu0 %v3137
    %3157 = vmatprep.subr.bf16.mxu0 0
    %3158 = vmatpush1.bf16.msra.mxu0 %v3136
    %3159 = vmatprep.subr.bf16.mxu0 0
    %3160 = vmatpush1.bf16.msra.mxu0 %v3135
    %3161 = vmatprep.subr.bf16.mxu0 0
    %3162 = vmatpush1.bf16.msra.mxu0 %v3134
    %3163 = vmatprep.subr.bf16.mxu0 0
    %3164 = vmatpush1.bf16.msra.mxu0 %v3133
    %3165 = vmatprep.subr.bf16.mxu0 0
    %3166 = vmatpush2.bf16.msra.mxu0 0
    %3167 = vmatprep.subr.bf16.mxu0 0
    %3168 = vmatpush2.bf16.msra.mxu0 0
    %3169 = vmatprep.subr.bf16.mxu0 0
    %3170 = vmatpush2.bf16.msra.mxu0 0
    %3171 = vmatprep.subr.bf16.mxu0 0
    %3172 = vmatpush2.bf16.msra.mxu0 0
    %3173 = vmatprep.subr.bf16.mxu0 0
    %3174 = vmatpush2.bf16.msra.mxu0 0
    %3175 = vmatprep.subr.bf16.mxu0 0
    %3176 = vmatpush2.bf16.msra.mxu0 0
    %3177 = vmatprep.subr.bf16.mxu0 0
    %3178 = vmatpush2.bf16.msra.mxu0 0
    %3179 = vmatprep.subr.bf16.mxu0 0
    %3180 = vmatpush2.bf16.msra.mxu0 0
    %3181 = vmatprep.mubr.bf16.mxu0 0
    %3182 = vmatmul.mubr.bf16.gmra.mxu0 %v2878
    %v3183 = vpop.f32.mrf.mxu0
    %v3184 = vadd.f32 %v3099, %v3183
    %v3185 = vpop.f32.mrf.mxu0
    %v3186 = vpop.f32.mrf.mxu0
    %v3187 = vadd.f32 %v3099, %v3186
    %v3188 = vpop.f32.mrf.mxu0
    %3189 = vdwg.mxu0
    %v3190 = vadd.f32 %v3072, %v3184
    %v3191 = vadd.f32 %v3075, %v3187
    %v3192 = vpack.c.bf16 %v3191, %v3190
    %v3193 = vld [vmem:[#allocation34] sm:$0xf]
    %v3194 = vld [vmem:[#allocation34 + $0x4] sm:$0xf]
    %v3195 = vld [vmem:[#allocation34 + $0x8] sm:$0xf]
    %v3196 = vld [vmem:[#allocation34 + $0xc] sm:$0xf]
    %v3197 = vld [vmem:[#allocation34 + $0x10] sm:$0xf]
    %v3198 = vld [vmem:[#allocation34 + $0x14] sm:$0xf]
    %v3199 = vld [vmem:[#allocation34 + $0x18] sm:$0xf]
    %v3200 = vld [vmem:[#allocation34 + $0x1c] sm:$0xf]
    %v3201 = vld [vmem:[#allocation35] sm:$0x1]
    %v3203 = vlaneseq
    %v3204 = vshrl.u32 %v3203, 7
    %v3205 = vsub.s32 0, %v3204
    %v3206 = vrot.slane %v3201, %v3205
    %v3216 = vunpack.c.l.b16 %v3193
    %v3217 = vunpack.c.l.b16 %v3194
    %v3218 = vunpack.c.l.b16 %v3195
    %v3219 = vunpack.c.l.b16 %v3196
    %v3220 = vunpack.c.l.b16 %v3197
    %v3221 = vunpack.c.l.b16 %v3198
    %v3222 = vunpack.c.l.b16 %v3199
    %v3223 = vunpack.c.l.b16 %v3200
    %v3224 = vpack.c.b16 %v3217, %v3216
    %v3225 = vpack.c.b16 %v3219, %v3218
    %v3226 = vpack.c.b16 %v3221, %v3220
    %v3227 = vpack.c.b16 %v3223, %v3222
    %v3233 = vsel %vm3033, %v3192, 0
    %3235 = vmatprep.subr.bf16.mxu0 0
    %3236 = vmatpush1.bf16.msra.mxu0 0
    %3237 = vmatprep.subr.bf16.mxu0 0
    %3238 = vmatpush1.bf16.msra.mxu0 0
    %3239 = vmatprep.subr.bf16.mxu0 0
    %3240 = vmatpush1.bf16.msra.mxu0 0
    %3241 = vmatprep.subr.bf16.mxu0 0
    %3242 = vmatpush1.bf16.msra.mxu0 0
    %3243 = vmatprep.subr.bf16.mxu0 0
    %3244 = vmatpush1.bf16.msra.mxu0 %v3227
    %3245 = vmatprep.subr.bf16.mxu0 0
    %3246 = vmatpush1.bf16.msra.mxu0 %v3226
    %3247 = vmatprep.subr.bf16.mxu0 0
    %3248 = vmatpush1.bf16.msra.mxu0 %v3225
    %3249 = vmatprep.subr.bf16.mxu0 0
    %3250 = vmatpush1.bf16.msra.mxu0 %v3224
    %3251 = vmatprep.subr.bf16.mxu0 0
    %3252 = vmatpush2.bf16.msra.mxu0 0
    %3253 = vmatprep.subr.bf16.mxu0 0
    %3254 = vmatpush2.bf16.msra.mxu0 0
    %3255 = vmatprep.subr.bf16.mxu0 0
    %3256 = vmatpush2.bf16.msra.mxu0 0
    %3257 = vmatprep.subr.bf16.mxu0 0
    %3258 = vmatpush2.bf16.msra.mxu0 0
    %3259 = vmatprep.subr.bf16.mxu0 0
    %3260 = vmatpush2.bf16.msra.mxu0 0
    %3261 = vmatprep.subr.bf16.mxu0 0
    %3262 = vmatpush2.bf16.msra.mxu0 0
    %3263 = vmatprep.subr.bf16.mxu0 0
    %3264 = vmatpush2.bf16.msra.mxu0 0
    %3265 = vmatprep.subr.bf16.mxu0 0
    %3266 = vmatpush2.bf16.msra.mxu0 0
    %3267 = vmatprep.mubr.bf16.mxu0 0
    %3268 = vmatmul.mubr.bf16.gmra.mxu0 %v3233
    %v3269 = vpop.f32.mrf.mxu0
    %v3270 = vadd.f32 %v3206, %v3269
    %v3271 = vpop.f32.mrf.mxu0
    %v3272 = vpop.f32.mrf.mxu0
    %v3273 = vadd.f32 %v3206, %v3272
    %v3274 = vpop.f32.mrf.mxu0
    %3275 = vdwg.mxu0
    %v3276 = vmax.f32 %v3270, 0.0
    %v3277 = vmax.f32 %v3273, 0.0
    %v3278 = vpack.c.bf16 %v3277, %v3276
    %v3279 = vld [vmem:[#allocation37] sm:$0xf]
    %v3280 = vld [vmem:[#allocation37 + $0x4] sm:$0xf]
    %v3281 = vld [vmem:[#allocation37 + $0x8] sm:$0xf]
    %v3282 = vld [vmem:[#allocation37 + $0xc] sm:$0xf]
    %v3283 = vld [vmem:[#allocation38] sm:$0x1]
    %v3285 = vlaneseq
    %v3286 = vshrl.u32 %v3285, 7
    %v3287 = vsub.s32 0, %v3286
    %v3288 = vrot.slane %v3283, %v3287
    %v3294 = vunpack.c.l.b16 %v3279
    %v3295 = vunpack.c.l.b16 %v3280
    %v3296 = vunpack.c.l.b16 %v3281
    %v3297 = vunpack.c.l.b16 %v3282
    %v3298 = vpack.c.b16 %v3295, %v3294
    %v3299 = vpack.c.b16 %v3297, %v3296
    %v3303 = vsel %vm1960, %v3278, 0
    %3305 = vmatprep.subr.bf16.mxu0 0
    %3306 = vmatpush1.bf16.msra.mxu0 0
    %3307 = vmatprep.subr.bf16.mxu0 0
    %3308 = vmatpush1.bf16.msra.mxu0 0
    %3309 = vmatprep.subr.bf16.mxu0 0
    %3310 = vmatpush1.bf16.msra.mxu0 0
    %3311 = vmatprep.subr.bf16.mxu0 0
    %3312 = vmatpush1.bf16.msra.mxu0 0
    %3313 = vmatprep.subr.bf16.mxu0 0
    %3314 = vmatpush1.bf16.msra.mxu0 0
    %3315 = vmatprep.subr.bf16.mxu0 0
    %3316 = vmatpush1.bf16.msra.mxu0 0
    %3317 = vmatprep.subr.bf16.mxu0 0
    %3318 = vmatpush1.bf16.msra.mxu0 %v3299
    %3319 = vmatprep.subr.bf16.mxu0 0
    %3320 = vmatpush1.bf16.msra.mxu0 %v3298
    %3321 = vmatprep.subr.bf16.mxu0 0
    %3322 = vmatpush2.bf16.msra.mxu0 0
    %3323 = vmatprep.subr.bf16.mxu0 0
    %3324 = vmatpush2.bf16.msra.mxu0 0
    %3325 = vmatprep.subr.bf16.mxu0 0
    %3326 = vmatpush2.bf16.msra.mxu0 0
    %3327 = vmatprep.subr.bf16.mxu0 0
    %3328 = vmatpush2.bf16.msra.mxu0 0
    %3329 = vmatprep.subr.bf16.mxu0 0
    %3330 = vmatpush2.bf16.msra.mxu0 0
    %3331 = vmatprep.subr.bf16.mxu0 0
    %3332 = vmatpush2.bf16.msra.mxu0 0
    %3333 = vmatprep.subr.bf16.mxu0 0
    %3334 = vmatpush2.bf16.msra.mxu0 0
    %3335 = vmatprep.subr.bf16.mxu0 0
    %3336 = vmatpush2.bf16.msra.mxu0 0
    %3337 = vmatprep.mubr.bf16.mxu0 0
    %3338 = vmatmul.mubr.bf16.gmra.mxu0 %v3303
    %v3339 = vpop.f32.mrf.mxu0
    %v3340 = vadd.f32 %v3288, %v3339
    %v3341 = vpop.f32.mrf.mxu0
    %v3342 = vpop.f32.mrf.mxu0
    %v3343 = vadd.f32 %v3288, %v3342
    %v3344 = vpop.f32.mrf.mxu0
    %3345 = vdwg.mxu0
    %v3346 = vld [vmem:[#allocation40] sm:$0xf]
    %v3347 = vld [vmem:[#allocation40 + $0x4] sm:$0xf]
    %v3348 = vld [vmem:[#allocation40 + $0x8] sm:$0xf]
    %v3349 = vld [vmem:[#allocation40 + $0xc] sm:$0xf]
    %v3350 = vld [vmem:[#allocation40 + $0x10] sm:$0xf]
    %v3351 = vld [vmem:[#allocation40 + $0x14] sm:$0xf]
    %v3352 = vld [vmem:[#allocation40 + $0x18] sm:$0xf]
    %v3353 = vld [vmem:[#allocation40 + $0x1c] sm:$0xf]
    %v3354 = vld [vmem:[#allocation41] sm:$0x1]
    %v3356 = vlaneseq
    %v3357 = vshrl.u32 %v3356, 7
    %v3358 = vsub.s32 0, %v3357
    %v3359 = vrot.slane %v3354, %v3358
    %v3369 = vunpack.c.l.b16 %v3346
    %v3370 = vunpack.c.l.b16 %v3347
    %v3371 = vunpack.c.l.b16 %v3348
    %v3372 = vunpack.c.l.b16 %v3349
    %v3373 = vunpack.c.l.b16 %v3350
    %v3374 = vunpack.c.l.b16 %v3351
    %v3375 = vunpack.c.l.b16 %v3352
    %v3376 = vunpack.c.l.b16 %v3353
    %v3377 = vpack.c.b16 %v3370, %v3369
    %v3378 = vpack.c.b16 %v3372, %v3371
    %v3379 = vpack.c.b16 %v3374, %v3373
    %v3380 = vpack.c.b16 %v3376, %v3375
    %3385 = vmatprep.subr.bf16.mxu0 0
    %3386 = vmatpush1.bf16.msra.mxu0 0
    %3387 = vmatprep.subr.bf16.mxu0 0
    %3388 = vmatpush1.bf16.msra.mxu0 0
    %3389 = vmatprep.subr.bf16.mxu0 0
    %3390 = vmatpush1.bf16.msra.mxu0 0
    %3391 = vmatprep.subr.bf16.mxu0 0
    %3392 = vmatpush1.bf16.msra.mxu0 0
    %3393 = vmatprep.subr.bf16.mxu0 0
    %3394 = vmatpush1.bf16.msra.mxu0 %v3380
    %3395 = vmatprep.subr.bf16.mxu0 0
    %3396 = vmatpush1.bf16.msra.mxu0 %v3379
    %3397 = vmatprep.subr.bf16.mxu0 0
    %3398 = vmatpush1.bf16.msra.mxu0 %v3378
    %3399 = vmatprep.subr.bf16.mxu0 0
    %3400 = vmatpush1.bf16.msra.mxu0 %v3377
    %3401 = vmatprep.subr.bf16.mxu0 0
    %3402 = vmatpush2.bf16.msra.mxu0 0
    %3403 = vmatprep.subr.bf16.mxu0 0
    %3404 = vmatpush2.bf16.msra.mxu0 0
    %3405 = vmatprep.subr.bf16.mxu0 0
    %3406 = vmatpush2.bf16.msra.mxu0 0
    %3407 = vmatprep.subr.bf16.mxu0 0
    %3408 = vmatpush2.bf16.msra.mxu0 0
    %3409 = vmatprep.subr.bf16.mxu0 0
    %3410 = vmatpush2.bf16.msra.mxu0 0
    %3411 = vmatprep.subr.bf16.mxu0 0
    %3412 = vmatpush2.bf16.msra.mxu0 0
    %3413 = vmatprep.subr.bf16.mxu0 0
    %3414 = vmatpush2.bf16.msra.mxu0 0
    %3415 = vmatprep.subr.bf16.mxu0 0
    %3416 = vmatpush2.bf16.msra.mxu0 0
    %3417 = vmatprep.mubr.bf16.mxu0 0
    %3418 = vmatmul.mubr.bf16.gmra.mxu0 %v3233
    %v3419 = vpop.f32.mrf.mxu0
    %v3420 = vadd.f32 %v3359, %v3419
    %v3421 = vpop.f32.mrf.mxu0
    %v3422 = vpop.f32.mrf.mxu0
    %v3423 = vadd.f32 %v3359, %v3422
    %v3424 = vpop.f32.mrf.mxu0
    %3425 = vdwg.mxu0
    %v3426 = vadd.f32 %v3340, %v3420
    %v3427 = vadd.f32 %v3343, %v3423
    %v3428 = vpack.c.bf16 %v3427, %v3426
    %v3429 = vld [vmem:[%s21] sm:$0xf]
    %v3430 = vld [vmem:[%s21 + $0x4] sm:$0xf]
    %v3431 = vld [vmem:[%s21 + $0x8] sm:$0xf]
    %v3432 = vld [vmem:[%s21 + $0xc] sm:$0xf]
    %v3433 = vld [vmem:[#allocation5] sm:$0xff]
    %v3434 = vld [vmem:[#allocation5 + $0x8] sm:$0xff]
    %v3435 = vpack.c.bf16 %v3434, %v3433
    %v3436 = vld [vmem:[%s23] sm:$0xf]
    %v3437 = vld [vmem:[%s23 + $0x4] sm:$0xf]
    %v3438 = vld [vmem:[%s23 + $0x8] sm:$0xf]
    %v3439 = vld [vmem:[%s23 + $0xc] sm:$0xf]
    %v3444 = vunpack.c.l.b16 %v3436
    %v3445 = vunpack.c.l.b16 %v3437
    %v3446 = vunpack.c.l.b16 %v3438
    %v3447 = vunpack.c.l.b16 %v3439
    %v3448 = vpack.c.b16 %v3445, %v3444
    %v3449 = vpack.c.b16 %v3447, %v3446
    %v3453 = vsel %vm1960, %v3435, 0
    %3455 = vmatprep.subr.bf16.mxu0 0
    %3456 = vmatpush1.bf16.msra.mxu0 0
    %3457 = vmatprep.subr.bf16.mxu0 0
    %3458 = vmatpush1.bf16.msra.mxu0 0
    %3459 = vmatprep.subr.bf16.mxu0 0
    %3460 = vmatpush1.bf16.msra.mxu0 0
    %3461 = vmatprep.subr.bf16.mxu0 0
    %3462 = vmatpush1.bf16.msra.mxu0 0
    %3463 = vmatprep.subr.bf16.mxu0 0
    %3464 = vmatpush1.bf16.msra.mxu0 0
    %3465 = vmatprep.subr.bf16.mxu0 0
    %3466 = vmatpush1.bf16.msra.mxu0 0
    %3467 = vmatprep.subr.bf16.mxu0 0
    %3468 = vmatpush1.bf16.msra.mxu0 %v3449
    %3469 = vmatprep.subr.bf16.mxu0 0
    %3470 = vmatpush1.bf16.msra.mxu0 %v3448
    %3471 = vmatprep.subr.bf16.mxu0 0
    %3472 = vmatpush2.bf16.msra.mxu0 0
    %3473 = vmatprep.subr.bf16.mxu0 0
    %3474 = vmatpush2.bf16.msra.mxu0 0
    %3475 = vmatprep.subr.bf16.mxu0 0
    %3476 = vmatpush2.bf16.msra.mxu0 0
    %3477 = vmatprep.subr.bf16.mxu0 0
    %3478 = vmatpush2.bf16.msra.mxu0 0
    %3479 = vmatprep.subr.bf16.mxu0 0
    %3480 = vmatpush2.bf16.msra.mxu0 0
    %3481 = vmatprep.subr.bf16.mxu0 0
    %3482 = vmatpush2.bf16.msra.mxu0 0
    %3483 = vmatprep.subr.bf16.mxu0 0
    %3484 = vmatpush2.bf16.msra.mxu0 0
    %3485 = vmatprep.subr.bf16.mxu0 0
    %3486 = vmatpush2.bf16.msra.mxu0 0
    %3487 = vmatprep.mubr.bf16.mxu0 0
    %3488 = vmatmul.mubr.bf16.gmra.mxu0 %v3453
    %v3489 = vpop.f32.mrf.mxu0
    %v3490 = vadd.f32 0.0, %v3489
    %v3491 = vpop.f32.mrf.mxu0
    %v3492 = vpop.f32.mrf.mxu0
    %v3493 = vadd.f32 0.0, %v3492
    %v3494 = vpop.f32.mrf.mxu0
    %3495 = vdwg.mxu0
    %v3500 = vunpack.c.l.b16 %v3429
    %v3501 = vunpack.c.l.b16 %v3430
    %v3502 = vunpack.c.l.b16 %v3431
    %v3503 = vunpack.c.l.b16 %v3432
    %v3504 = vpack.c.b16 %v3501, %v3500
    %v3505 = vpack.c.b16 %v3503, %v3502
    %v3509 = vsel %vm1960, %v3428, 0
    %3511 = vmatprep.subr.bf16.mxu0 0
    %3512 = vmatpush1.bf16.msra.mxu0 0
    %3513 = vmatprep.subr.bf16.mxu0 0
    %3514 = vmatpush1.bf16.msra.mxu0 0
    %3515 = vmatprep.subr.bf16.mxu0 0
    %3516 = vmatpush1.bf16.msra.mxu0 0
    %3517 = vmatprep.subr.bf16.mxu0 0
    %3518 = vmatpush1.bf16.msra.mxu0 0
    %3519 = vmatprep.subr.bf16.mxu0 0
    %3520 = vmatpush1.bf16.msra.mxu0 0
    %3521 = vmatprep.subr.bf16.mxu0 0
    %3522 = vmatpush1.bf16.msra.mxu0 0
    %3523 = vmatprep.subr.bf16.mxu0 0
    %3524 = vmatpush1.bf16.msra.mxu0 %v3505
    %3525 = vmatprep.subr.bf16.mxu0 0
    %3526 = vmatpush1.bf16.msra.mxu0 %v3504
    %3527 = vmatprep.subr.bf16.mxu0 0
    %3528 = vmatpush2.bf16.msra.mxu0 0
    %3529 = vmatprep.subr.bf16.mxu0 0
    %3530 = vmatpush2.bf16.msra.mxu0 0
    %3531 = vmatprep.subr.bf16.mxu0 0
    %3532 = vmatpush2.bf16.msra.mxu0 0
    %3533 = vmatprep.subr.bf16.mxu0 0
    %3534 = vmatpush2.bf16.msra.mxu0 0
    %3535 = vmatprep.subr.bf16.mxu0 0
    %3536 = vmatpush2.bf16.msra.mxu0 0
    %3537 = vmatprep.subr.bf16.mxu0 0
    %3538 = vmatpush2.bf16.msra.mxu0 0
    %3539 = vmatprep.subr.bf16.mxu0 0
    %3540 = vmatpush2.bf16.msra.mxu0 0
    %3541 = vmatprep.subr.bf16.mxu0 0
    %3542 = vmatpush2.bf16.msra.mxu0 0
    %3543 = vmatprep.mubr.bf16.mxu0 0
    %3544 = vmatmul.mubr.bf16.gmra.mxu0 %v3509
    %v3545 = vpop.f32.mrf.mxu0
    %v3546 = vadd.f32 %v3490, %v3545
    %v3547 = vpop.f32.mrf.mxu0
    %v3548 = vpop.f32.mrf.mxu0
    %v3549 = vadd.f32 %v3493, %v3548
    %v3550 = vpop.f32.mrf.mxu0
    %3551 = vdwg.mxu0
    %v3552 = vpack.c.bf16 %v3549, %v3546
    %v3553 = vld [vmem:[#allocation52] sm:$0xf]
    %v3554 = vld [vmem:[#allocation52 + $0x4] sm:$0xf]
    %v3555 = vld [vmem:[#allocation52 + $0x8] sm:$0xf]
    %v3556 = vld [vmem:[#allocation52 + $0xc] sm:$0xf]
    %v3557 = vld [vmem:[#allocation52 + $0x10] sm:$0xf]
    %v3558 = vld [vmem:[#allocation52 + $0x14] sm:$0xf]
    %v3559 = vld [vmem:[#allocation52 + $0x18] sm:$0xf]
    %v3560 = vld [vmem:[#allocation52 + $0x1c] sm:$0xf]
    %v3561 = vld [vmem:[#allocation53] sm:$0x1]
    %v3563 = vlaneseq
    %v3564 = vshrl.u32 %v3563, 7
    %v3565 = vsub.s32 0, %v3564
    %v3566 = vrot.slane %v3561, %v3565
    %v3576 = vunpack.c.l.b16 %v3553
    %v3577 = vunpack.c.l.b16 %v3554
    %v3578 = vunpack.c.l.b16 %v3555
    %v3579 = vunpack.c.l.b16 %v3556
    %v3580 = vunpack.c.l.b16 %v3557
    %v3581 = vunpack.c.l.b16 %v3558
    %v3582 = vunpack.c.l.b16 %v3559
    %v3583 = vunpack.c.l.b16 %v3560
    %v3584 = vpack.c.b16 %v3577, %v3576
    %v3585 = vpack.c.b16 %v3579, %v3578
    %v3586 = vpack.c.b16 %v3581, %v3580
    %v3587 = vpack.c.b16 %v3583, %v3582
    %v3593 = vsel %vm3033, %v3552, 0
    %3595 = vmatprep.subr.bf16.mxu0 0
    %3596 = vmatpush1.bf16.msra.mxu0 0
    %3597 = vmatprep.subr.bf16.mxu0 0
    %3598 = vmatpush1.bf16.msra.mxu0 0
    %3599 = vmatprep.subr.bf16.mxu0 0
    %3600 = vmatpush1.bf16.msra.mxu0 0
    %3601 = vmatprep.subr.bf16.mxu0 0
    %3602 = vmatpush1.bf16.msra.mxu0 0
    %3603 = vmatprep.subr.bf16.mxu0 0
    %3604 = vmatpush1.bf16.msra.mxu0 %v3587
    %3605 = vmatprep.subr.bf16.mxu0 0
    %3606 = vmatpush1.bf16.msra.mxu0 %v3586
    %3607 = vmatprep.subr.bf16.mxu0 0
    %3608 = vmatpush1.bf16.msra.mxu0 %v3585
    %3609 = vmatprep.subr.bf16.mxu0 0
    %3610 = vmatpush1.bf16.msra.mxu0 %v3584
    %3611 = vmatprep.subr.bf16.mxu0 0
    %3612 = vmatpush2.bf16.msra.mxu0 0
    %3613 = vmatprep.subr.bf16.mxu0 0
    %3614 = vmatpush2.bf16.msra.mxu0 0
    %3615 = vmatprep.subr.bf16.mxu0 0
    %3616 = vmatpush2.bf16.msra.mxu0 0
    %3617 = vmatprep.subr.bf16.mxu0 0
    %3618 = vmatpush2.bf16.msra.mxu0 0
    %3619 = vmatprep.subr.bf16.mxu0 0
    %3620 = vmatpush2.bf16.msra.mxu0 0
    %3621 = vmatprep.subr.bf16.mxu0 0
    %3622 = vmatpush2.bf16.msra.mxu0 0
    %3623 = vmatprep.subr.bf16.mxu0 0
    %3624 = vmatpush2.bf16.msra.mxu0 0
    %3625 = vmatprep.subr.bf16.mxu0 0
    %3626 = vmatpush2.bf16.msra.mxu0 0
    %3627 = vmatprep.mubr.bf16.mxu0 0
    %3628 = vmatmul.mubr.bf16.gmra.mxu0 %v3593
    %v3629 = vpop.f32.mrf.mxu0
    %v3630 = vadd.f32 %v3566, %v3629
    %v3631 = vpop.f32.mrf.mxu0
    %v3632 = vpop.f32.mrf.mxu0
    %v3633 = vadd.f32 %v3566, %v3632
    %v3634 = vpop.f32.mrf.mxu0
    %3635 = vdwg.mxu0
    %v3636 = vmax.f32 %v3630, 0.0
    %v3637 = vmax.f32 %v3633, 0.0
    %v3638 = vpack.c.bf16 %v3637, %v3636
    %v3639 = vld [vmem:[#allocation55] sm:$0xf]
    %v3640 = vld [vmem:[#allocation55 + $0x4] sm:$0xf]
    %v3641 = vld [vmem:[#allocation55 + $0x8] sm:$0xf]
    %v3642 = vld [vmem:[#allocation55 + $0xc] sm:$0xf]
    %v3643 = vld [vmem:[#allocation55 + $0x10] sm:$0xf]
    %v3644 = vld [vmem:[#allocation55 + $0x14] sm:$0xf]
    %v3645 = vld [vmem:[#allocation55 + $0x18] sm:$0xf]
    %v3646 = vld [vmem:[#allocation55 + $0x1c] sm:$0xf]
    %v3647 = vld [vmem:[#allocation56] sm:$0x1]
    %v3649 = vlaneseq
    %v3650 = vshrl.u32 %v3649, 7
    %v3651 = vsub.s32 0, %v3650
    %v3652 = vrot.slane %v3647, %v3651
    %v3662 = vunpack.c.l.b16 %v3639
    %v3663 = vunpack.c.l.b16 %v3640
    %v3664 = vunpack.c.l.b16 %v3641
    %v3665 = vunpack.c.l.b16 %v3642
    %v3666 = vunpack.c.l.b16 %v3643
    %v3667 = vunpack.c.l.b16 %v3644
    %v3668 = vunpack.c.l.b16 %v3645
    %v3669 = vunpack.c.l.b16 %v3646
    %v3670 = vpack.c.b16 %v3663, %v3662
    %v3671 = vpack.c.b16 %v3665, %v3664
    %v3672 = vpack.c.b16 %v3667, %v3666
    %v3673 = vpack.c.b16 %v3669, %v3668
    %v3679 = vsel %vm3033, %v3638, 0
    %3681 = vmatprep.subr.bf16.mxu0 0
    %3682 = vmatpush1.bf16.msra.mxu0 0
    %3683 = vmatprep.subr.bf16.mxu0 0
    %3684 = vmatpush1.bf16.msra.mxu0 0
    %3685 = vmatprep.subr.bf16.mxu0 0
    %3686 = vmatpush1.bf16.msra.mxu0 0
    %3687 = vmatprep.subr.bf16.mxu0 0
    %3688 = vmatpush1.bf16.msra.mxu0 0
    %3689 = vmatprep.subr.bf16.mxu0 0
    %3690 = vmatpush1.bf16.msra.mxu0 %v3673
    %3691 = vmatprep.subr.bf16.mxu0 0
    %3692 = vmatpush1.bf16.msra.mxu0 %v3672
    %3693 = vmatprep.subr.bf16.mxu0 0
    %3694 = vmatpush1.bf16.msra.mxu0 %v3671
    %3695 = vmatprep.subr.bf16.mxu0 0
    %3696 = vmatpush1.bf16.msra.mxu0 %v3670
    %3697 = vmatprep.subr.bf16.mxu0 0
    %3698 = vmatpush2.bf16.msra.mxu0 0
    %3699 = vmatprep.subr.bf16.mxu0 0
    %3700 = vmatpush2.bf16.msra.mxu0 0
    %3701 = vmatprep.subr.bf16.mxu0 0
    %3702 = vmatpush2.bf16.msra.mxu0 0
    %3703 = vmatprep.subr.bf16.mxu0 0
    %3704 = vmatpush2.bf16.msra.mxu0 0
    %3705 = vmatprep.subr.bf16.mxu0 0
    %3706 = vmatpush2.bf16.msra.mxu0 0
    %3707 = vmatprep.subr.bf16.mxu0 0
    %3708 = vmatpush2.bf16.msra.mxu0 0
    %3709 = vmatprep.subr.bf16.mxu0 0
    %3710 = vmatpush2.bf16.msra.mxu0 0
    %3711 = vmatprep.subr.bf16.mxu0 0
    %3712 = vmatpush2.bf16.msra.mxu0 0
    %3713 = vmatprep.mubr.bf16.mxu0 0
    %3714 = vmatmul.mubr.bf16.gmra.mxu0 %v3679
    %v3715 = vpop.f32.mrf.mxu0
    %v3716 = vadd.f32 %v3652, %v3715
    %v3717 = vpop.f32.mrf.mxu0
    %v3718 = vpop.f32.mrf.mxu0
    %v3719 = vadd.f32 %v3652, %v3718
    %v3720 = vpop.f32.mrf.mxu0
    %3721 = vdwg.mxu0
    %v3722 = vadd.f32 %v3716, %v3546
    %v3723 = vadd.f32 %v3719, %v3549
    %v3724 = vpack.c.bf16 %v3723, %v3722
    %v3725 = vld [vmem:[#allocation58] sm:$0xf]
    %v3726 = vld [vmem:[#allocation58 + $0x4] sm:$0xf]
    %v3727 = vld [vmem:[#allocation58 + $0x8] sm:$0xf]
    %v3728 = vld [vmem:[#allocation58 + $0xc] sm:$0xf]
    %v3729 = vld [vmem:[#allocation58 + $0x10] sm:$0xf]
    %v3730 = vld [vmem:[#allocation58 + $0x14] sm:$0xf]
    %v3731 = vld [vmem:[#allocation58 + $0x18] sm:$0xf]
    %v3732 = vld [vmem:[#allocation58 + $0x1c] sm:$0xf]
    %v3733 = vld [vmem:[#allocation59] sm:$0x1]
    %v3735 = vlaneseq
    %v3736 = vshrl.u32 %v3735, 7
    %v3737 = vsub.s32 0, %v3736
    %v3738 = vrot.slane %v3733, %v3737
    %v3748 = vunpack.c.l.b16 %v3725
    %v3749 = vunpack.c.l.b16 %v3726
    %v3750 = vunpack.c.l.b16 %v3727
    %v3751 = vunpack.c.l.b16 %v3728
    %v3752 = vunpack.c.l.b16 %v3729
    %v3753 = vunpack.c.l.b16 %v3730
    %v3754 = vunpack.c.l.b16 %v3731
    %v3755 = vunpack.c.l.b16 %v3732
    %v3756 = vpack.c.b16 %v3749, %v3748
    %v3757 = vpack.c.b16 %v3751, %v3750
    %v3758 = vpack.c.b16 %v3753, %v3752
    %v3759 = vpack.c.b16 %v3755, %v3754
    %v3765 = vsel %vm3033, %v3724, 0
    %3767 = vmatprep.subr.bf16.mxu0 0
    %3768 = vmatpush1.bf16.msra.mxu0 0
    %3769 = vmatprep.subr.bf16.mxu0 0
    %3770 = vmatpush1.bf16.msra.mxu0 0
    %3771 = vmatprep.subr.bf16.mxu0 0
    %3772 = vmatpush1.bf16.msra.mxu0 0
    %3773 = vmatprep.subr.bf16.mxu0 0
    %3774 = vmatpush1.bf16.msra.mxu0 0
    %3775 = vmatprep.subr.bf16.mxu0 0
    %3776 = vmatpush1.bf16.msra.mxu0 %v3759
    %3777 = vmatprep.subr.bf16.mxu0 0
    %3778 = vmatpush1.bf16.msra.mxu0 %v3758
    %3779 = vmatprep.subr.bf16.mxu0 0
    %3780 = vmatpush1.bf16.msra.mxu0 %v3757
    %3781 = vmatprep.subr.bf16.mxu0 0
    %3782 = vmatpush1.bf16.msra.mxu0 %v3756
    %3783 = vmatprep.subr.bf16.mxu0 0
    %3784 = vmatpush2.bf16.msra.mxu0 0
    %3785 = vmatprep.subr.bf16.mxu0 0
    %3786 = vmatpush2.bf16.msra.mxu0 0
    %3787 = vmatprep.subr.bf16.mxu0 0
    %3788 = vmatpush2.bf16.msra.mxu0 0
    %3789 = vmatprep.subr.bf16.mxu0 0
    %3790 = vmatpush2.bf16.msra.mxu0 0
    %3791 = vmatprep.subr.bf16.mxu0 0
    %3792 = vmatpush2.bf16.msra.mxu0 0
    %3793 = vmatprep.subr.bf16.mxu0 0
    %3794 = vmatpush2.bf16.msra.mxu0 0
    %3795 = vmatprep.subr.bf16.mxu0 0
    %3796 = vmatpush2.bf16.msra.mxu0 0
    %3797 = vmatprep.subr.bf16.mxu0 0
    %3798 = vmatpush2.bf16.msra.mxu0 0
    %3799 = vmatprep.mubr.bf16.mxu0 0
    %3800 = vmatmul.mubr.bf16.gmra.mxu0 %v3765
    %v3801 = vpop.f32.mrf.mxu0
    %v3802 = vadd.f32 %v3738, %v3801
    %v3803 = vpop.f32.mrf.mxu0
    %v3804 = vpop.f32.mrf.mxu0
    %v3805 = vadd.f32 %v3738, %v3804
    %v3806 = vpop.f32.mrf.mxu0
    %3807 = vdwg.mxu0
    %v3808 = vmax.f32 %v3802, 0.0
    %v3809 = vmax.f32 %v3805, 0.0
    %v3810 = vpack.c.bf16 %v3809, %v3808
    %v3811 = vld [vmem:[#allocation61] sm:$0xf]
    %v3812 = vld [vmem:[#allocation61 + $0x4] sm:$0xf]
    %v3813 = vld [vmem:[#allocation61 + $0x8] sm:$0xf]
    %v3814 = vld [vmem:[#allocation61 + $0xc] sm:$0xf]
    %v3815 = vld [vmem:[#allocation61 + $0x10] sm:$0xf]
    %v3816 = vld [vmem:[#allocation61 + $0x14] sm:$0xf]
    %v3817 = vld [vmem:[#allocation61 + $0x18] sm:$0xf]
    %v3818 = vld [vmem:[#allocation61 + $0x1c] sm:$0xf]
    %v3819 = vld [vmem:[#allocation61 + $0x20] sm:$0xf]
    %v3820 = vld [vmem:[#allocation61 + $0x24] sm:$0xf]
    %v3821 = vld [vmem:[#allocation61 + $0x28] sm:$0xf]
    %v3822 = vld [vmem:[#allocation61 + $0x2c] sm:$0xf]
    %v3823 = vld [vmem:[#allocation61 + $0x30] sm:$0xf]
    %v3824 = vld [vmem:[#allocation61 + $0x34] sm:$0xf]
    %v3825 = vld [vmem:[#allocation61 + $0x38] sm:$0xf]
    %v3826 = vld [vmem:[#allocation61 + $0x3c] sm:$0xf]
    %v3827 = vld [vmem:[#allocation62] sm:$0x1]
    %v3829 = vlaneseq
    %v3830 = vshrl.u32 %v3829, 7
    %v3831 = vsub.s32 0, %v3830
    %v3832 = vrot.slane %v3827, %v3831
    %v3850 = vunpack.c.l.b16 %v3811
    %v3851 = vunpack.c.l.b16 %v3812
    %v3852 = vunpack.c.l.b16 %v3813
    %v3853 = vunpack.c.l.b16 %v3814
    %v3854 = vunpack.c.l.b16 %v3815
    %v3855 = vunpack.c.l.b16 %v3816
    %v3856 = vunpack.c.l.b16 %v3817
    %v3857 = vunpack.c.l.b16 %v3818
    %v3858 = vunpack.c.l.b16 %v3819
    %v3859 = vunpack.c.l.b16 %v3820
    %v3860 = vunpack.c.l.b16 %v3821
    %v3861 = vunpack.c.l.b16 %v3822
    %v3862 = vunpack.c.l.b16 %v3823
    %v3863 = vunpack.c.l.b16 %v3824
    %v3864 = vunpack.c.l.b16 %v3825
    %v3865 = vunpack.c.l.b16 %v3826
    %v3866 = vpack.c.b16 %v3851, %v3850
    %v3867 = vpack.c.b16 %v3853, %v3852
    %v3868 = vpack.c.b16 %v3855, %v3854
    %v3869 = vpack.c.b16 %v3857, %v3856
    %v3870 = vpack.c.b16 %v3859, %v3858
    %v3871 = vpack.c.b16 %v3861, %v3860
    %v3872 = vpack.c.b16 %v3863, %v3862
    %v3873 = vpack.c.b16 %v3865, %v3864
    %3882 = vmatprep.subr.bf16.mxu0 0
    %3883 = vmatpush1.bf16.msra.mxu0 %v3873
    %3884 = vmatprep.subr.bf16.mxu0 0
    %3885 = vmatpush1.bf16.msra.mxu0 %v3872
    %3886 = vmatprep.subr.bf16.mxu0 0
    %3887 = vmatpush1.bf16.msra.mxu0 %v3871
    %3888 = vmatprep.subr.bf16.mxu0 0
    %3889 = vmatpush1.bf16.msra.mxu0 %v3870
    %3890 = vmatprep.subr.bf16.mxu0 0
    %3891 = vmatpush1.bf16.msra.mxu0 %v3869
    %3892 = vmatprep.subr.bf16.mxu0 0
    %3893 = vmatpush1.bf16.msra.mxu0 %v3868
    %3894 = vmatprep.subr.bf16.mxu0 0
    %3895 = vmatpush1.bf16.msra.mxu0 %v3867
    %3896 = vmatprep.subr.bf16.mxu0 0
    %3897 = vmatpush1.bf16.msra.mxu0 %v3866
    %3898 = vmatprep.subr.bf16.mxu0 0
    %3899 = vmatpush2.bf16.msra.mxu0 0
    %3900 = vmatprep.subr.bf16.mxu0 0
    %3901 = vmatpush2.bf16.msra.mxu0 0
    %3902 = vmatprep.subr.bf16.mxu0 0
    %3903 = vmatpush2.bf16.msra.mxu0 0
    %3904 = vmatprep.subr.bf16.mxu0 0
    %3905 = vmatpush2.bf16.msra.mxu0 0
    %3906 = vmatprep.subr.bf16.mxu0 0
    %3907 = vmatpush2.bf16.msra.mxu0 0
    %3908 = vmatprep.subr.bf16.mxu0 0
    %3909 = vmatpush2.bf16.msra.mxu0 0
    %3910 = vmatprep.subr.bf16.mxu0 0
    %3911 = vmatpush2.bf16.msra.mxu0 0
    %3912 = vmatprep.subr.bf16.mxu0 0
    %3913 = vmatpush2.bf16.msra.mxu0 0
    %3914 = vmatprep.mubr.bf16.mxu0 0
    %3915 = vmatmul.mubr.bf16.gmra.mxu0 %v3810
    %v3916 = vpop.f32.mrf.mxu0
    %v3917 = vadd.f32 %v3832, %v3916
    %v3918 = vpop.f32.mrf.mxu0
    %v3919 = vpop.f32.mrf.mxu0
    %v3920 = vadd.f32 %v3832, %v3919
    %v3921 = vpop.f32.mrf.mxu0
    %3922 = vdwg.mxu0
    %v3923 = vld [vmem:[#allocation64] sm:$0xf]
    %v3924 = vld [vmem:[#allocation64 + $0x4] sm:$0xf]
    %v3925 = vld [vmem:[#allocation64 + $0x8] sm:$0xf]
    %v3926 = vld [vmem:[#allocation64 + $0xc] sm:$0xf]
    %v3927 = vld [vmem:[#allocation64 + $0x10] sm:$0xf]
    %v3928 = vld [vmem:[#allocation64 + $0x14] sm:$0xf]
    %v3929 = vld [vmem:[#allocation64 + $0x18] sm:$0xf]
    %v3930 = vld [vmem:[#allocation64 + $0x1c] sm:$0xf]
    %v3931 = vld [vmem:[#allocation65] sm:$0x1]
    %v3933 = vlaneseq
    %v3934 = vshrl.u32 %v3933, 7
    %v3935 = vsub.s32 0, %v3934
    %v3936 = vrot.slane %v3931, %v3935
    %v3946 = vunpack.c.l.b16 %v3923
    %v3947 = vunpack.c.l.b16 %v3924
    %v3948 = vunpack.c.l.b16 %v3925
    %v3949 = vunpack.c.l.b16 %v3926
    %v3950 = vunpack.c.l.b16 %v3927
    %v3951 = vunpack.c.l.b16 %v3928
    %v3952 = vunpack.c.l.b16 %v3929
    %v3953 = vunpack.c.l.b16 %v3930
    %v3954 = vpack.c.b16 %v3947, %v3946
    %v3955 = vpack.c.b16 %v3949, %v3948
    %v3956 = vpack.c.b16 %v3951, %v3950
    %v3957 = vpack.c.b16 %v3953, %v3952
    %3962 = vmatprep.subr.bf16.mxu0 0
    %3963 = vmatpush1.bf16.msra.mxu0 0
    %3964 = vmatprep.subr.bf16.mxu0 0
    %3965 = vmatpush1.bf16.msra.mxu0 0
    %3966 = vmatprep.subr.bf16.mxu0 0
    %3967 = vmatpush1.bf16.msra.mxu0 0
    %3968 = vmatprep.subr.bf16.mxu0 0
    %3969 = vmatpush1.bf16.msra.mxu0 0
    %3970 = vmatprep.subr.bf16.mxu0 0
    %3971 = vmatpush1.bf16.msra.mxu0 %v3957
    %3972 = vmatprep.subr.bf16.mxu0 0
    %3973 = vmatpush1.bf16.msra.mxu0 %v3956
    %3974 = vmatprep.subr.bf16.mxu0 0
    %3975 = vmatpush1.bf16.msra.mxu0 %v3955
    %3976 = vmatprep.subr.bf16.mxu0 0
    %3977 = vmatpush1.bf16.msra.mxu0 %v3954
    %3978 = vmatprep.subr.bf16.mxu0 0
    %3979 = vmatpush2.bf16.msra.mxu0 0
    %3980 = vmatprep.subr.bf16.mxu0 0
    %3981 = vmatpush2.bf16.msra.mxu0 0
    %3982 = vmatprep.subr.bf16.mxu0 0
    %3983 = vmatpush2.bf16.msra.mxu0 0
    %3984 = vmatprep.subr.bf16.mxu0 0
    %3985 = vmatpush2.bf16.msra.mxu0 0
    %3986 = vmatprep.subr.bf16.mxu0 0
    %3987 = vmatpush2.bf16.msra.mxu0 0
    %3988 = vmatprep.subr.bf16.mxu0 0
    %3989 = vmatpush2.bf16.msra.mxu0 0
    %3990 = vmatprep.subr.bf16.mxu0 0
    %3991 = vmatpush2.bf16.msra.mxu0 0
    %3992 = vmatprep.subr.bf16.mxu0 0
    %3993 = vmatpush2.bf16.msra.mxu0 0
    %3994 = vmatprep.mubr.bf16.mxu0 0
    %3995 = vmatmul.mubr.bf16.gmra.mxu0 %v3765
    %v3996 = vpop.f32.mrf.mxu0
    %v3997 = vadd.f32 %v3936, %v3996
    %v3998 = vpop.f32.mrf.mxu0
    %v3999 = vpop.f32.mrf.mxu0
    %v4000 = vadd.f32 %v3936, %v3999
    %v4001 = vpop.f32.mrf.mxu0
    %4002 = vdwg.mxu0
    %v4003 = vadd.f32 %v3917, %v3997
    %v4004 = vadd.f32 %v3920, %v4000
    %v4005 = vpack.c.bf16 %v4004, %v4003
    %v4006 = vld [vmem:[#allocation67] sm:$0xf]
    %v4007 = vld [vmem:[#allocation67 + $0x4] sm:$0xf]
    %v4008 = vld [vmem:[#allocation67 + $0x8] sm:$0xf]
    %v4009 = vld [vmem:[#allocation67 + $0xc] sm:$0xf]
    %v4010 = vld [vmem:[#allocation67 + $0x10] sm:$0xf]
    %v4011 = vld [vmem:[#allocation67 + $0x14] sm:$0xf]
    %v4012 = vld [vmem:[#allocation67 + $0x18] sm:$0xf]
    %v4013 = vld [vmem:[#allocation67 + $0x1c] sm:$0xf]
    %v4014 = vld [vmem:[#allocation67 + $0x20] sm:$0xf]
    %v4015 = vld [vmem:[#allocation67 + $0x24] sm:$0xf]
    %v4016 = vld [vmem:[#allocation67 + $0x28] sm:$0xf]
    %v4017 = vld [vmem:[#allocation67 + $0x2c] sm:$0xf]
    %v4018 = vld [vmem:[#allocation67 + $0x30] sm:$0xf]
    %v4019 = vld [vmem:[#allocation67 + $0x34] sm:$0xf]
    %v4020 = vld [vmem:[#allocation67 + $0x38] sm:$0xf]
    %v4021 = vld [vmem:[#allocation67 + $0x3c] sm:$0xf]
    %v4022 = vld [vmem:[#allocation68] sm:$0x1]
    %v4024 = vlaneseq
    %v4025 = vshrl.u32 %v4024, 7
    %v4026 = vsub.s32 0, %v4025
    %v4027 = vrot.slane %v4022, %v4026
    %v4045 = vunpack.c.l.b16 %v4006
    %v4046 = vunpack.c.l.b16 %v4007
    %v4047 = vunpack.c.l.b16 %v4008
    %v4048 = vunpack.c.l.b16 %v4009
    %v4049 = vunpack.c.l.b16 %v4010
    %v4050 = vunpack.c.l.b16 %v4011
    %v4051 = vunpack.c.l.b16 %v4012
    %v4052 = vunpack.c.l.b16 %v4013
    %v4053 = vunpack.c.l.b16 %v4014
    %v4054 = vunpack.c.l.b16 %v4015
    %v4055 = vunpack.c.l.b16 %v4016
    %v4056 = vunpack.c.l.b16 %v4017
    %v4057 = vunpack.c.l.b16 %v4018
    %v4058 = vunpack.c.l.b16 %v4019
    %v4059 = vunpack.c.l.b16 %v4020
    %v4060 = vunpack.c.l.b16 %v4021
    %v4061 = vpack.c.b16 %v4046, %v4045
    %v4062 = vpack.c.b16 %v4048, %v4047
    %v4063 = vpack.c.b16 %v4050, %v4049
    %v4064 = vpack.c.b16 %v4052, %v4051
    %v4065 = vpack.c.b16 %v4054, %v4053
    %v4066 = vpack.c.b16 %v4056, %v4055
    %v4067 = vpack.c.b16 %v4058, %v4057
    %v4068 = vpack.c.b16 %v4060, %v4059
    %4077 = vmatprep.subr.bf16.mxu0 0
    %4078 = vmatpush1.bf16.msra.mxu0 %v4068
    %4079 = vmatprep.subr.bf16.mxu0 0
    %4080 = vmatpush1.bf16.msra.mxu0 %v4067
    %4081 = vmatprep.subr.bf16.mxu0 0
    %4082 = vmatpush1.bf16.msra.mxu0 %v4066
    %4083 = vmatprep.subr.bf16.mxu0 0
    %4084 = vmatpush1.bf16.msra.mxu0 %v4065
    %4085 = vmatprep.subr.bf16.mxu0 0
    %4086 = vmatpush1.bf16.msra.mxu0 %v4064
    %4087 = vmatprep.subr.bf16.mxu0 0
    %4088 = vmatpush1.bf16.msra.mxu0 %v4063
    %4089 = vmatprep.subr.bf16.mxu0 0
    %4090 = vmatpush1.bf16.msra.mxu0 %v4062
    %4091 = vmatprep.subr.bf16.mxu0 0
    %4092 = vmatpush1.bf16.msra.mxu0 %v4061
    %4093 = vmatprep.subr.bf16.mxu0 0
    %4094 = vmatpush2.bf16.msra.mxu0 0
    %4095 = vmatprep.subr.bf16.mxu0 0
    %4096 = vmatpush2.bf16.msra.mxu0 0
    %4097 = vmatprep.subr.bf16.mxu0 0
    %4098 = vmatpush2.bf16.msra.mxu0 0
    %4099 = vmatprep.subr.bf16.mxu0 0
    %4100 = vmatpush2.bf16.msra.mxu0 0
    %4101 = vmatprep.subr.bf16.mxu0 0
    %4102 = vmatpush2.bf16.msra.mxu0 0
    %4103 = vmatprep.subr.bf16.mxu0 0
    %4104 = vmatpush2.bf16.msra.mxu0 0
    %4105 = vmatprep.subr.bf16.mxu0 0
    %4106 = vmatpush2.bf16.msra.mxu0 0
    %4107 = vmatprep.subr.bf16.mxu0 0
    %4108 = vmatpush2.bf16.msra.mxu0 0
    %4109 = vmatprep.mubr.bf16.mxu0 0
    %4110 = vmatmul.mubr.bf16.gmra.mxu0 %v4005
    %v4111 = vpop.f32.mrf.mxu0
    %v4112 = vadd.f32 %v4027, %v4111
    %v4113 = vpop.f32.mrf.mxu0
    %v4114 = vpop.f32.mrf.mxu0
    %v4115 = vadd.f32 %v4027, %v4114
    %v4116 = vpop.f32.mrf.mxu0
    %4117 = vdwg.mxu0
    %v4118 = vmax.f32 %v4112, 0.0
    %v4119 = vmax.f32 %v4115, 0.0
    %v4120 = vpack.c.bf16 %v4119, %v4118
    %v4121 = vld [vmem:[#allocation70] sm:$0xf]
    %v4122 = vld [vmem:[#allocation70 + $0x4] sm:$0xf]
    %v4123 = vld [vmem:[#allocation70 + $0x8] sm:$0xf]
    %v4124 = vld [vmem:[#allocation70 + $0xc] sm:$0xf]
    %v4125 = vld [vmem:[#allocation70 + $0x10] sm:$0xf]
    %v4126 = vld [vmem:[#allocation70 + $0x14] sm:$0xf]
    %v4127 = vld [vmem:[#allocation70 + $0x18] sm:$0xf]
    %v4128 = vld [vmem:[#allocation70 + $0x1c] sm:$0xf]
    %v4129 = vld [vmem:[#allocation71] sm:$0x1]
    %v4131 = vlaneseq
    %v4132 = vshrl.u32 %v4131, 7
    %v4133 = vsub.s32 0, %v4132
    %v4134 = vrot.slane %v4129, %v4133
    %v4144 = vunpack.c.l.b16 %v4121
    %v4145 = vunpack.c.l.b16 %v4122
    %v4146 = vunpack.c.l.b16 %v4123
    %v4147 = vunpack.c.l.b16 %v4124
    %v4148 = vunpack.c.l.b16 %v4125
    %v4149 = vunpack.c.l.b16 %v4126
    %v4150 = vunpack.c.l.b16 %v4127
    %v4151 = vunpack.c.l.b16 %v4128
    %v4152 = vpack.c.b16 %v4145, %v4144
    %v4153 = vpack.c.b16 %v4147, %v4146
    %v4154 = vpack.c.b16 %v4149, %v4148
    %v4155 = vpack.c.b16 %v4151, %v4150
    %v4161 = vsel %vm3033, %v4120, 0
    %4163 = vmatprep.subr.bf16.mxu0 0
    %4164 = vmatpush1.bf16.msra.mxu0 0
    %4165 = vmatprep.subr.bf16.mxu0 0
    %4166 = vmatpush1.bf16.msra.mxu0 0
    %4167 = vmatprep.subr.bf16.mxu0 0
    %4168 = vmatpush1.bf16.msra.mxu0 0
    %4169 = vmatprep.subr.bf16.mxu0 0
    %4170 = vmatpush1.bf16.msra.mxu0 0
    %4171 = vmatprep.subr.bf16.mxu0 0
    %4172 = vmatpush1.bf16.msra.mxu0 %v4155
    %4173 = vmatprep.subr.bf16.mxu0 0
    %4174 = vmatpush1.bf16.msra.mxu0 %v4154
    %4175 = vmatprep.subr.bf16.mxu0 0
    %4176 = vmatpush1.bf16.msra.mxu0 %v4153
    %4177 = vmatprep.subr.bf16.mxu0 0
    %4178 = vmatpush1.bf16.msra.mxu0 %v4152
    %4179 = vmatprep.subr.bf16.mxu0 0
    %4180 = vmatpush2.bf16.msra.mxu0 0
    %4181 = vmatprep.subr.bf16.mxu0 0
    %4182 = vmatpush2.bf16.msra.mxu0 0
    %4183 = vmatprep.subr.bf16.mxu0 0
    %4184 = vmatpush2.bf16.msra.mxu0 0
    %4185 = vmatprep.subr.bf16.mxu0 0
    %4186 = vmatpush2.bf16.msra.mxu0 0
    %4187 = vmatprep.subr.bf16.mxu0 0
    %4188 = vmatpush2.bf16.msra.mxu0 0
    %4189 = vmatprep.subr.bf16.mxu0 0
    %4190 = vmatpush2.bf16.msra.mxu0 0
    %4191 = vmatprep.subr.bf16.mxu0 0
    %4192 = vmatpush2.bf16.msra.mxu0 0
    %4193 = vmatprep.subr.bf16.mxu0 0
    %4194 = vmatpush2.bf16.msra.mxu0 0
    %4195 = vmatprep.mubr.bf16.mxu0 0
    %4196 = vmatmul.mubr.bf16.gmra.mxu0 %v4161
    %v4197 = vpop.f32.mrf.mxu0
    %v4198 = vadd.f32 %v4134, %v4197
    %v4199 = vpop.f32.mrf.mxu0
    %v4200 = vpop.f32.mrf.mxu0
    %v4201 = vadd.f32 %v4134, %v4200
    %v4202 = vpop.f32.mrf.mxu0
    %4203 = vdwg.mxu0
    %v4204 = vld [vmem:[#allocation73] sm:$0xf]
    %v4205 = vld [vmem:[#allocation73 + $0x4] sm:$0xf]
    %v4206 = vld [vmem:[#allocation73 + $0x8] sm:$0xf]
    %v4207 = vld [vmem:[#allocation73 + $0xc] sm:$0xf]
    %v4208 = vld [vmem:[#allocation73 + $0x10] sm:$0xf]
    %v4209 = vld [vmem:[#allocation73 + $0x14] sm:$0xf]
    %v4210 = vld [vmem:[#allocation73 + $0x18] sm:$0xf]
    %v4211 = vld [vmem:[#allocation73 + $0x1c] sm:$0xf]
    %v4212 = vld [vmem:[#allocation73 + $0x20] sm:$0xf]
    %v4213 = vld [vmem:[#allocation73 + $0x24] sm:$0xf]
    %v4214 = vld [vmem:[#allocation73 + $0x28] sm:$0xf]
    %v4215 = vld [vmem:[#allocation73 + $0x2c] sm:$0xf]
    %v4216 = vld [vmem:[#allocation73 + $0x30] sm:$0xf]
    %v4217 = vld [vmem:[#allocation73 + $0x34] sm:$0xf]
    %v4218 = vld [vmem:[#allocation73 + $0x38] sm:$0xf]
    %v4219 = vld [vmem:[#allocation73 + $0x3c] sm:$0xf]
    %v4220 = vld [vmem:[#allocation74] sm:$0x1]
    %v4222 = vlaneseq
    %v4223 = vshrl.u32 %v4222, 7
    %v4224 = vsub.s32 0, %v4223
    %v4225 = vrot.slane %v4220, %v4224
    %v4243 = vunpack.c.l.b16 %v4204
    %v4244 = vunpack.c.l.b16 %v4205
    %v4245 = vunpack.c.l.b16 %v4206
    %v4246 = vunpack.c.l.b16 %v4207
    %v4247 = vunpack.c.l.b16 %v4208
    %v4248 = vunpack.c.l.b16 %v4209
    %v4249 = vunpack.c.l.b16 %v4210
    %v4250 = vunpack.c.l.b16 %v4211
    %v4251 = vunpack.c.l.b16 %v4212
    %v4252 = vunpack.c.l.b16 %v4213
    %v4253 = vunpack.c.l.b16 %v4214
    %v4254 = vunpack.c.l.b16 %v4215
    %v4255 = vunpack.c.l.b16 %v4216
    %v4256 = vunpack.c.l.b16 %v4217
    %v4257 = vunpack.c.l.b16 %v4218
    %v4258 = vunpack.c.l.b16 %v4219
    %v4259 = vpack.c.b16 %v4244, %v4243
    %v4260 = vpack.c.b16 %v4246, %v4245
    %v4261 = vpack.c.b16 %v4248, %v4247
    %v4262 = vpack.c.b16 %v4250, %v4249
    %v4263 = vpack.c.b16 %v4252, %v4251
    %v4264 = vpack.c.b16 %v4254, %v4253
    %v4265 = vpack.c.b16 %v4256, %v4255
    %v4266 = vpack.c.b16 %v4258, %v4257
    %4275 = vmatprep.subr.bf16.mxu0 0
    %4276 = vmatpush1.bf16.msra.mxu0 %v4266
    %4277 = vmatprep.subr.bf16.mxu0 0
    %4278 = vmatpush1.bf16.msra.mxu0 %v4265
    %4279 = vmatprep.subr.bf16.mxu0 0
    %4280 = vmatpush1.bf16.msra.mxu0 %v4264
    %4281 = vmatprep.subr.bf16.mxu0 0
    %4282 = vmatpush1.bf16.msra.mxu0 %v4263
    %4283 = vmatprep.subr.bf16.mxu0 0
    %4284 = vmatpush1.bf16.msra.mxu0 %v4262
    %4285 = vmatprep.subr.bf16.mxu0 0
    %4286 = vmatpush1.bf16.msra.mxu0 %v4261
    %4287 = vmatprep.subr.bf16.mxu0 0
    %4288 = vmatpush1.bf16.msra.mxu0 %v4260
    %4289 = vmatprep.subr.bf16.mxu0 0
    %4290 = vmatpush1.bf16.msra.mxu0 %v4259
    %4291 = vmatprep.subr.bf16.mxu0 0
    %4292 = vmatpush2.bf16.msra.mxu0 0
    %4293 = vmatprep.subr.bf16.mxu0 0
    %4294 = vmatpush2.bf16.msra.mxu0 0
    %4295 = vmatprep.subr.bf16.mxu0 0
    %4296 = vmatpush2.bf16.msra.mxu0 0
    %4297 = vmatprep.subr.bf16.mxu0 0
    %4298 = vmatpush2.bf16.msra.mxu0 0
    %4299 = vmatprep.subr.bf16.mxu0 0
    %4300 = vmatpush2.bf16.msra.mxu0 0
    %4301 = vmatprep.subr.bf16.mxu0 0
    %4302 = vmatpush2.bf16.msra.mxu0 0
    %4303 = vmatprep.subr.bf16.mxu0 0
    %4304 = vmatpush2.bf16.msra.mxu0 0
    %4305 = vmatprep.subr.bf16.mxu0 0
    %4306 = vmatpush2.bf16.msra.mxu0 0
    %4307 = vmatprep.mubr.bf16.mxu0 0
    %4308 = vmatmul.mubr.bf16.gmra.mxu0 %v4005
    %v4309 = vpop.f32.mrf.mxu0
    %v4310 = vadd.f32 %v4225, %v4309
    %v4311 = vpop.f32.mrf.mxu0
    %v4312 = vpop.f32.mrf.mxu0
    %v4313 = vadd.f32 %v4225, %v4312
    %v4314 = vpop.f32.mrf.mxu0
    %4315 = vdwg.mxu0
    %v4316 = vadd.f32 %v4198, %v4310
    %v4317 = vadd.f32 %v4201, %v4313
    %v4318 = vpack.c.bf16 %v4317, %v4316
    %v4319 = vld [vmem:[#allocation76] sm:$0xf]
    %v4320 = vld [vmem:[#allocation76 + $0x4] sm:$0xf]
    %v4321 = vld [vmem:[#allocation76 + $0x8] sm:$0xf]
    %v4322 = vld [vmem:[#allocation76 + $0xc] sm:$0xf]
    %v4323 = vld [vmem:[#allocation76 + $0x10] sm:$0xf]
    %v4324 = vld [vmem:[#allocation76 + $0x14] sm:$0xf]
    %v4325 = vld [vmem:[#allocation76 + $0x18] sm:$0xf]
    %v4326 = vld [vmem:[#allocation76 + $0x1c] sm:$0xf]
    %v4327 = vld [vmem:[#allocation77] sm:$0x1]
    %v4329 = vlaneseq
    %v4330 = vshrl.u32 %v4329, 7
    %v4331 = vsub.s32 0, %v4330
    %v4332 = vrot.slane %v4327, %v4331
    %v4342 = vunpack.c.l.b16 %v4319
    %v4343 = vunpack.c.l.b16 %v4320
    %v4344 = vunpack.c.l.b16 %v4321
    %v4345 = vunpack.c.l.b16 %v4322
    %v4346 = vunpack.c.l.b16 %v4323
    %v4347 = vunpack.c.l.b16 %v4324
    %v4348 = vunpack.c.l.b16 %v4325
    %v4349 = vunpack.c.l.b16 %v4326
    %v4350 = vpack.c.b16 %v4343, %v4342
    %v4351 = vpack.c.b16 %v4345, %v4344
    %v4352 = vpack.c.b16 %v4347, %v4346
    %v4353 = vpack.c.b16 %v4349, %v4348
    %v4359 = vsel %vm3033, %v4318, 0
    %4361 = vmatprep.subr.bf16.mxu0 0
    %4362 = vmatpush1.bf16.msra.mxu0 0
    %4363 = vmatprep.subr.bf16.mxu0 0
    %4364 = vmatpush1.bf16.msra.mxu0 0
    %4365 = vmatprep.subr.bf16.mxu0 0
    %4366 = vmatpush1.bf16.msra.mxu0 0
    %4367 = vmatprep.subr.bf16.mxu0 0
    %4368 = vmatpush1.bf16.msra.mxu0 0
    %4369 = vmatprep.subr.bf16.mxu0 0
    %4370 = vmatpush1.bf16.msra.mxu0 %v4353
    %4371 = vmatprep.subr.bf16.mxu0 0
    %4372 = vmatpush1.bf16.msra.mxu0 %v4352
    %4373 = vmatprep.subr.bf16.mxu0 0
    %4374 = vmatpush1.bf16.msra.mxu0 %v4351
    %4375 = vmatprep.subr.bf16.mxu0 0
    %4376 = vmatpush1.bf16.msra.mxu0 %v4350
    %4377 = vmatprep.subr.bf16.mxu0 0
    %4378 = vmatpush2.bf16.msra.mxu0 0
    %4379 = vmatprep.subr.bf16.mxu0 0
    %4380 = vmatpush2.bf16.msra.mxu0 0
    %4381 = vmatprep.subr.bf16.mxu0 0
    %4382 = vmatpush2.bf16.msra.mxu0 0
    %4383 = vmatprep.subr.bf16.mxu0 0
    %4384 = vmatpush2.bf16.msra.mxu0 0
    %4385 = vmatprep.subr.bf16.mxu0 0
    %4386 = vmatpush2.bf16.msra.mxu0 0
    %4387 = vmatprep.subr.bf16.mxu0 0
    %4388 = vmatpush2.bf16.msra.mxu0 0
    %4389 = vmatprep.subr.bf16.mxu0 0
    %4390 = vmatpush2.bf16.msra.mxu0 0
    %4391 = vmatprep.subr.bf16.mxu0 0
    %4392 = vmatpush2.bf16.msra.mxu0 0
    %4393 = vmatprep.mubr.bf16.mxu0 0
    %4394 = vmatmul.mubr.bf16.gmra.mxu0 %v4359
    %v4395 = vpop.f32.mrf.mxu0
    %v4396 = vadd.f32 %v4332, %v4395
    %v4397 = vpop.f32.mrf.mxu0
    %v4398 = vpop.f32.mrf.mxu0
    %v4399 = vadd.f32 %v4332, %v4398
    %v4400 = vpop.f32.mrf.mxu0
    %4401 = vdwg.mxu0
    %v4402 = vmax.f32 %v4396, 0.0
    %v4403 = vmax.f32 %v4399, 0.0
    %v4404 = vpack.c.bf16 %v4403, %v4402
    %v4405 = vld [vmem:[#allocation79] sm:$0xf]
    %v4406 = vld [vmem:[#allocation79 + $0x4] sm:$0xf]
    %v4407 = vld [vmem:[#allocation79 + $0x8] sm:$0xf]
    %v4408 = vld [vmem:[#allocation79 + $0xc] sm:$0xf]
    %v4409 = vld [vmem:[#allocation80] sm:$0x1]
    %v4411 = vlaneseq
    %v4412 = vshrl.u32 %v4411, 7
    %v4413 = vsub.s32 0, %v4412
    %v4414 = vrot.slane %v4409, %v4413
    %v4420 = vunpack.c.l.b16 %v4405
    %v4421 = vunpack.c.l.b16 %v4406
    %v4422 = vunpack.c.l.b16 %v4407
    %v4423 = vunpack.c.l.b16 %v4408
    %v4424 = vpack.c.b16 %v4421, %v4420
    %v4425 = vpack.c.b16 %v4423, %v4422
    %v4429 = vsel %vm1960, %v4404, 0
    %4431 = vmatprep.subr.bf16.mxu0 0
    %4432 = vmatpush1.bf16.msra.mxu0 0
    %4433 = vmatprep.subr.bf16.mxu0 0
    %4434 = vmatpush1.bf16.msra.mxu0 0
    %4435 = vmatprep.subr.bf16.mxu0 0
    %4436 = vmatpush1.bf16.msra.mxu0 0
    %4437 = vmatprep.subr.bf16.mxu0 0
    %4438 = vmatpush1.bf16.msra.mxu0 0
    %4439 = vmatprep.subr.bf16.mxu0 0
    %4440 = vmatpush1.bf16.msra.mxu0 0
    %4441 = vmatprep.subr.bf16.mxu0 0
    %4442 = vmatpush1.bf16.msra.mxu0 0
    %4443 = vmatprep.subr.bf16.mxu0 0
    %4444 = vmatpush1.bf16.msra.mxu0 %v4425
    %4445 = vmatprep.subr.bf16.mxu0 0
    %4446 = vmatpush1.bf16.msra.mxu0 %v4424
    %4447 = vmatprep.subr.bf16.mxu0 0
    %4448 = vmatpush2.bf16.msra.mxu0 0
    %4449 = vmatprep.subr.bf16.mxu0 0
    %4450 = vmatpush2.bf16.msra.mxu0 0
    %4451 = vmatprep.subr.bf16.mxu0 0
    %4452 = vmatpush2.bf16.msra.mxu0 0
    %4453 = vmatprep.subr.bf16.mxu0 0
    %4454 = vmatpush2.bf16.msra.mxu0 0
    %4455 = vmatprep.subr.bf16.mxu0 0
    %4456 = vmatpush2.bf16.msra.mxu0 0
    %4457 = vmatprep.subr.bf16.mxu0 0
    %4458 = vmatpush2.bf16.msra.mxu0 0
    %4459 = vmatprep.subr.bf16.mxu0 0
    %4460 = vmatpush2.bf16.msra.mxu0 0
    %4461 = vmatprep.subr.bf16.mxu0 0
    %4462 = vmatpush2.bf16.msra.mxu0 0
    %4463 = vmatprep.mubr.bf16.mxu0 0
    %4464 = vmatmul.mubr.bf16.gmra.mxu0 %v4429
    %v4465 = vpop.f32.mrf.mxu0
    %v4466 = vadd.f32 %v4414, %v4465
    %v4467 = vpop.f32.mrf.mxu0
    %v4468 = vpop.f32.mrf.mxu0
    %v4469 = vadd.f32 %v4414, %v4468
    %v4470 = vpop.f32.mrf.mxu0
    %4471 = vdwg.mxu0
    %v4472 = vld [vmem:[#allocation82] sm:$0xf]
    %v4473 = vld [vmem:[#allocation82 + $0x4] sm:$0xf]
    %v4474 = vld [vmem:[#allocation82 + $0x8] sm:$0xf]
    %v4475 = vld [vmem:[#allocation82 + $0xc] sm:$0xf]
    %v4476 = vld [vmem:[#allocation82 + $0x10] sm:$0xf]
    %v4477 = vld [vmem:[#allocation82 + $0x14] sm:$0xf]
    %v4478 = vld [vmem:[#allocation82 + $0x18] sm:$0xf]
    %v4479 = vld [vmem:[#allocation82 + $0x1c] sm:$0xf]
    %v4480 = vld [vmem:[#allocation83] sm:$0x1]
    %v4482 = vlaneseq
    %v4483 = vshrl.u32 %v4482, 7
    %v4484 = vsub.s32 0, %v4483
    %v4485 = vrot.slane %v4480, %v4484
    %v4495 = vunpack.c.l.b16 %v4472
    %v4496 = vunpack.c.l.b16 %v4473
    %v4497 = vunpack.c.l.b16 %v4474
    %v4498 = vunpack.c.l.b16 %v4475
    %v4499 = vunpack.c.l.b16 %v4476
    %v4500 = vunpack.c.l.b16 %v4477
    %v4501 = vunpack.c.l.b16 %v4478
    %v4502 = vunpack.c.l.b16 %v4479
    %v4503 = vpack.c.b16 %v4496, %v4495
    %v4504 = vpack.c.b16 %v4498, %v4497
    %v4505 = vpack.c.b16 %v4500, %v4499
    %v4506 = vpack.c.b16 %v4502, %v4501
    %4511 = vmatprep.subr.bf16.mxu0 0
    %4512 = vmatpush1.bf16.msra.mxu0 0
    %4513 = vmatprep.subr.bf16.mxu0 0
    %4514 = vmatpush1.bf16.msra.mxu0 0
    %4515 = vmatprep.subr.bf16.mxu0 0
    %4516 = vmatpush1.bf16.msra.mxu0 0
    %4517 = vmatprep.subr.bf16.mxu0 0
    %4518 = vmatpush1.bf16.msra.mxu0 0
    %4519 = vmatprep.subr.bf16.mxu0 0
    %4520 = vmatpush1.bf16.msra.mxu0 %v4506
    %4521 = vmatprep.subr.bf16.mxu0 0
    %4522 = vmatpush1.bf16.msra.mxu0 %v4505
    %4523 = vmatprep.subr.bf16.mxu0 0
    %4524 = vmatpush1.bf16.msra.mxu0 %v4504
    %4525 = vmatprep.subr.bf16.mxu0 0
    %4526 = vmatpush1.bf16.msra.mxu0 %v4503
    %4527 = vmatprep.subr.bf16.mxu0 0
    %4528 = vmatpush2.bf16.msra.mxu0 0
    %4529 = vmatprep.subr.bf16.mxu0 0
    %4530 = vmatpush2.bf16.msra.mxu0 0
    %4531 = vmatprep.subr.bf16.mxu0 0
    %4532 = vmatpush2.bf16.msra.mxu0 0
    %4533 = vmatprep.subr.bf16.mxu0 0
    %4534 = vmatpush2.bf16.msra.mxu0 0
    %4535 = vmatprep.subr.bf16.mxu0 0
    %4536 = vmatpush2.bf16.msra.mxu0 0
    %4537 = vmatprep.subr.bf16.mxu0 0
    %4538 = vmatpush2.bf16.msra.mxu0 0
    %4539 = vmatprep.subr.bf16.mxu0 0
    %4540 = vmatpush2.bf16.msra.mxu0 0
    %4541 = vmatprep.subr.bf16.mxu0 0
    %4542 = vmatpush2.bf16.msra.mxu0 0
    %4543 = vmatprep.mubr.bf16.mxu0 0
    %4544 = vmatmul.mubr.bf16.gmra.mxu0 %v4359
    %v4545 = vpop.f32.mrf.mxu0
    %v4546 = vadd.f32 %v4485, %v4545
    %v4547 = vpop.f32.mrf.mxu0
    %v4548 = vpop.f32.mrf.mxu0
    %v4549 = vadd.f32 %v4485, %v4548
    %v4550 = vpop.f32.mrf.mxu0
    %4551 = vdwg.mxu0
    %v4552 = vadd.f32 %v4466, %v4546
    %v4553 = vadd.f32 %v4469, %v4549
    %v4554 = vpack.c.bf16 %v4553, %v4552
    %v4555 = vld [vmem:[%s31] sm:$0x1]
    %v4557 = vsel %vm1827, %v4555, 0
    %4559 = vmatprep.subr.bf16.mxu0 0
    %4560 = vmatpush1.bf16.msra.mxu0 0
    %4561 = vmatprep.subr.bf16.mxu0 0
    %4562 = vmatpush1.bf16.msra.mxu0 0
    %4563 = vmatprep.subr.bf16.mxu0 0
    %4564 = vmatpush1.bf16.msra.mxu0 0
    %4565 = vmatprep.subr.bf16.mxu0 0
    %4566 = vmatpush1.bf16.msra.mxu0 0
    %4567 = vmatprep.subr.bf16.mxu0 0
    %4568 = vmatpush1.bf16.msra.mxu0 0
    %4569 = vmatprep.subr.bf16.mxu0 0
    %4570 = vmatpush1.bf16.msra.mxu0 0
    %4571 = vmatprep.subr.bf16.mxu0 0
    %4572 = vmatpush1.bf16.msra.mxu0 0
    %4573 = vmatprep.subr.bf16.mxu0 0
    %4574 = vmatpush1.bf16.msra.mxu0 %v4554
    %4575 = vmatprep.subr.bf16.mxu0 0
    %4576 = vmatpush2.bf16.msra.mxu0 0
    %4577 = vmatprep.subr.bf16.mxu0 0
    %4578 = vmatpush2.bf16.msra.mxu0 0
    %4579 = vmatprep.subr.bf16.mxu0 0
    %4580 = vmatpush2.bf16.msra.mxu0 0
    %4581 = vmatprep.subr.bf16.mxu0 0
    %4582 = vmatpush2.bf16.msra.mxu0 0
    %4583 = vmatprep.subr.bf16.mxu0 0
    %4584 = vmatpush2.bf16.msra.mxu0 0
    %4585 = vmatprep.subr.bf16.mxu0 0
    %4586 = vmatpush2.bf16.msra.mxu0 0
    %4587 = vmatprep.subr.bf16.mxu0 0
    %4588 = vmatpush2.bf16.msra.mxu0 0
    %4589 = vmatprep.subr.bf16.mxu0 0
    %4590 = vmatpush2.bf16.msra.mxu0 0
    %4591 = vmatprep.mubr.bf16.mxu0 0
    %4592 = vmatmul.mubr.bf16.gmra.mxu0 %v4557
    %v4593 = vpop.f32.mrf.mxu0
    %v4594 = vadd.f32 0.0, %v4593
    %v4595 = vpop.f32.mrf.mxu0
    %v4596 = vpop.f32.mrf.mxu0
    %v4597 = vpop.f32.mrf.mxu0
    %4598 = vdwg.mxu0
    %v4599 = vpack.c.bf16 %v4594, %v4594
    %v4600 = vld [vmem:[%s29] sm:$0xff]
    %v4601 = vld [vmem:[%s29 + $0x8] sm:$0xff]
    %v4602 = vld [vmem:[%s29 + $0x10] sm:$0xff]
    %v4603 = vld [vmem:[%s29 + $0x18] sm:$0xff]
    %s4604 = scalar_lea.vmem %s31, 1
    %v4605 = vld [vmem:[%s4604] sm:$0x1]
    %v4607 = vsel %vm1827, %v4605, 0
    %4609 = vmatprep.subr.bf16.mxu0 0
    %4610 = vmatpush1.bf16.msra.mxu0 0
    %4611 = vmatprep.subr.bf16.mxu0 0
    %4612 = vmatpush1.bf16.msra.mxu0 0
    %4613 = vmatprep.subr.bf16.mxu0 0
    %4614 = vmatpush1.bf16.msra.mxu0 0
    %4615 = vmatprep.subr.bf16.mxu0 0
    %4616 = vmatpush1.bf16.msra.mxu0 0
    %4617 = vmatprep.subr.bf16.mxu0 0
    %4618 = vmatpush1.bf16.msra.mxu0 0
    %4619 = vmatprep.subr.bf16.mxu0 0
    %4620 = vmatpush1.bf16.msra.mxu0 0
    %4621 = vmatprep.subr.bf16.mxu0 0
    %4622 = vmatpush1.bf16.msra.mxu0 0
    %4623 = vmatprep.subr.bf16.mxu0 0
    %4624 = vmatpush1.bf16.msra.mxu0 %v4554
    %4625 = vmatprep.subr.bf16.mxu0 0
    %4626 = vmatpush2.bf16.msra.mxu0 0
    %4627 = vmatprep.subr.bf16.mxu0 0
    %4628 = vmatpush2.bf16.msra.mxu0 0
    %4629 = vmatprep.subr.bf16.mxu0 0
    %4630 = vmatpush2.bf16.msra.mxu0 0
    %4631 = vmatprep.subr.bf16.mxu0 0
    %4632 = vmatpush2.bf16.msra.mxu0 0
    %4633 = vmatprep.subr.bf16.mxu0 0
    %4634 = vmatpush2.bf16.msra.mxu0 0
    %4635 = vmatprep.subr.bf16.mxu0 0
    %4636 = vmatpush2.bf16.msra.mxu0 0
    %4637 = vmatprep.subr.bf16.mxu0 0
    %4638 = vmatpush2.bf16.msra.mxu0 0
    %4639 = vmatprep.subr.bf16.mxu0 0
    %4640 = vmatpush2.bf16.msra.mxu0 0
    %4641 = vmatprep.mubr.bf16.mxu0 0
    %4642 = vmatmul.mubr.bf16.gmra.mxu0 %v4607
    %v4643 = vpop.f32.mrf.mxu0
    %v4644 = vadd.f32 0.0, %v4643
    %v4645 = vpop.f32.mrf.mxu0
    %v4646 = vpop.f32.mrf.mxu0
    %v4647 = vpop.f32.mrf.mxu0
    %4648 = vdwg.mxu0
    %v4649 = vpack.c.bf16 %v4644, %v4644
    %s4650 = scalar_lea.vmem %s29, 32
    %v4651 = vld [vmem:[%s4650] sm:$0xff]
    %v4652 = vld [vmem:[%s4650 + $0x8] sm:$0xff]
    %v4653 = vld [vmem:[%s4650 + $0x10] sm:$0xff]
    %v4654 = vld [vmem:[%s4650 + $0x18] sm:$0xff]
    %v4659 = vunpack.c.l.b16 %v4651
    %v4660 = vunpack.c.h.b16 %v4651
    %v4661 = vunpack.c.l.b16 %v4652
    %v4662 = vunpack.c.h.b16 %v4652
    %v4663 = vunpack.c.l.b16 %v4653
    %v4664 = vunpack.c.h.b16 %v4653
    %v4665 = vunpack.c.l.b16 %v4654
    %v4666 = vunpack.c.h.b16 %v4654
    %v4667 = vpack.c.b16 %v4661, %v4659
    %v4668 = vpack.c.b16 %v4662, %v4660
    %v4669 = vpack.c.b16 %v4665, %v4663
    %v4670 = vpack.c.b16 %v4666, %v4664
    %v4676 = vsel %vm1960, %v4649, 0
    %4678 = vmatprep.subr.bf16.mxu0 0
    %4679 = vmatpush1.bf16.msra.mxu0 0
    %4680 = vmatprep.subr.bf16.mxu0 0
    %4681 = vmatpush1.bf16.msra.mxu0 0
    %4682 = vmatprep.subr.bf16.mxu0 0
    %4683 = vmatpush1.bf16.msra.mxu0 0
    %4684 = vmatprep.subr.bf16.mxu0 0
    %4685 = vmatpush1.bf16.msra.mxu0 0
    %4686 = vmatprep.subr.bf16.mxu0 0
    %4687 = vmatpush1.bf16.msra.mxu0 0
    %4688 = vmatprep.subr.bf16.mxu0 0
    %4689 = vmatpush1.bf16.msra.mxu0 0
    %4690 = vmatprep.subr.bf16.mxu0 %v4670
    %4691 = vmatpush1.bf16.msra.mxu0 %v4669
    %4692 = vmatprep.subr.bf16.mxu0 %v4668
    %4693 = vmatpush1.bf16.msra.mxu0 %v4667
    %4694 = vmatprep.subr.bf16.mxu0 0
    %4695 = vmatpush2.bf16.msra.mxu0 0
    %4696 = vmatprep.subr.bf16.mxu0 0
    %4697 = vmatpush2.bf16.msra.mxu0 0
    %4698 = vmatprep.subr.bf16.mxu0 0
    %4699 = vmatpush2.bf16.msra.mxu0 0
    %4700 = vmatprep.subr.bf16.mxu0 0
    %4701 = vmatpush2.bf16.msra.mxu0 0
    %4702 = vmatprep.subr.bf16.mxu0 0
    %4703 = vmatpush2.bf16.msra.mxu0 0
    %4704 = vmatprep.subr.bf16.mxu0 0
    %4705 = vmatpush2.bf16.msra.mxu0 0
    %4706 = vmatprep.subr.bf16.mxu0 0
    %4707 = vmatpush2.bf16.msra.mxu0 0
    %4708 = vmatprep.subr.bf16.mxu0 0
    %4709 = vmatpush2.bf16.msra.mxu0 0
    %4710 = vmatprep.mubr.bf16.mxu0 0
    %4711 = vmatmul.mubr.bf16.gmra.mxu0 %v4676
    %v4712 = vpop.f32.mrf.mxu0
    %v4713 = vadd.f32 0.0, %v4712
    %v4714 = vpop.f32.mrf.mxu0
    %v4715 = vadd.f32 0.0, %v4714
    %v4716 = vpop.f32.mrf.mxu0
    %v4717 = vpop.f32.mrf.mxu0
    %4718 = vdwg.mxu0
    %v4723 = vunpack.c.l.b16 %v4600
    %v4724 = vunpack.c.h.b16 %v4600
    %v4725 = vunpack.c.l.b16 %v4601
    %v4726 = vunpack.c.h.b16 %v4601
    %v4727 = vunpack.c.l.b16 %v4602
    %v4728 = vunpack.c.h.b16 %v4602
    %v4729 = vunpack.c.l.b16 %v4603
    %v4730 = vunpack.c.h.b16 %v4603
    %v4731 = vpack.c.b16 %v4725, %v4723
    %v4732 = vpack.c.b16 %v4726, %v4724
    %v4733 = vpack.c.b16 %v4729, %v4727
    %v4734 = vpack.c.b16 %v4730, %v4728
    %v4740 = vsel %vm1960, %v4599, 0
    %4742 = vmatprep.subr.bf16.mxu0 0
    %4743 = vmatpush1.bf16.msra.mxu0 0
    %4744 = vmatprep.subr.bf16.mxu0 0
    %4745 = vmatpush1.bf16.msra.mxu0 0
    %4746 = vmatprep.subr.bf16.mxu0 0
    %4747 = vmatpush1.bf16.msra.mxu0 0
    %4748 = vmatprep.subr.bf16.mxu0 0
    %4749 = vmatpush1.bf16.msra.mxu0 0
    %4750 = vmatprep.subr.bf16.mxu0 0
    %4751 = vmatpush1.bf16.msra.mxu0 0
    %4752 = vmatprep.subr.bf16.mxu0 0
    %4753 = vmatpush1.bf16.msra.mxu0 0
    %4754 = vmatprep.subr.bf16.mxu0 %v4734
    %4755 = vmatpush1.bf16.msra.mxu0 %v4733
    %4756 = vmatprep.subr.bf16.mxu0 %v4732
    %4757 = vmatpush1.bf16.msra.mxu0 %v4731
    %4758 = vmatprep.subr.bf16.mxu0 0
    %4759 = vmatpush2.bf16.msra.mxu0 0
    %4760 = vmatprep.subr.bf16.mxu0 0
    %4761 = vmatpush2.bf16.msra.mxu0 0
    %4762 = vmatprep.subr.bf16.mxu0 0
    %4763 = vmatpush2.bf16.msra.mxu0 0
    %4764 = vmatprep.subr.bf16.mxu0 0
    %4765 = vmatpush2.bf16.msra.mxu0 0
    %4766 = vmatprep.subr.bf16.mxu0 0
    %4767 = vmatpush2.bf16.msra.mxu0 0
    %4768 = vmatprep.subr.bf16.mxu0 0
    %4769 = vmatpush2.bf16.msra.mxu0 0
    %4770 = vmatprep.subr.bf16.mxu0 0
    %4771 = vmatpush2.bf16.msra.mxu0 0
    %4772 = vmatprep.subr.bf16.mxu0 0
    %4773 = vmatpush2.bf16.msra.mxu0 0
    %4774 = vmatprep.mubr.bf16.mxu0 0
    %4775 = vmatmul.mubr.bf16.gmra.mxu0 %v4740
    %v4776 = vpop.f32.mrf.mxu0
    %v4777 = vadd.f32 %v4713, %v4776
    %v4778 = vpop.f32.mrf.mxu0
    %v4779 = vadd.f32 %v4715, %v4778
    %v4780 = vpop.f32.mrf.mxu0
    %v4781 = vpop.f32.mrf.mxu0
    %4782 = vdwg.mxu0
    %s4783 = scalar_lea.vmem %s31, 2
    %v4784 = vld [vmem:[%s4783] sm:$0x1]
    %v4786 = vsel %vm1827, %v4784, 0
    %4788 = vmatprep.subr.bf16.mxu0 0
    %4789 = vmatpush1.bf16.msra.mxu0 0
    %4790 = vmatprep.subr.bf16.mxu0 0
    %4791 = vmatpush1.bf16.msra.mxu0 0
    %4792 = vmatprep.subr.bf16.mxu0 0
    %4793 = vmatpush1.bf16.msra.mxu0 0
    %4794 = vmatprep.subr.bf16.mxu0 0
    %4795 = vmatpush1.bf16.msra.mxu0 0
    %4796 = vmatprep.subr.bf16.mxu0 0
    %4797 = vmatpush1.bf16.msra.mxu0 0
    %4798 = vmatprep.subr.bf16.mxu0 0
    %4799 = vmatpush1.bf16.msra.mxu0 0
    %4800 = vmatprep.subr.bf16.mxu0 0
    %4801 = vmatpush1.bf16.msra.mxu0 0
    %4802 = vmatprep.subr.bf16.mxu0 0
    %4803 = vmatpush1.bf16.msra.mxu0 %v4554
    %4804 = vmatprep.subr.bf16.mxu0 0
    %4805 = vmatpush2.bf16.msra.mxu0 0
    %4806 = vmatprep.subr.bf16.mxu0 0
    %4807 = vmatpush2.bf16.msra.mxu0 0
    %4808 = vmatprep.subr.bf16.mxu0 0
    %4809 = vmatpush2.bf16.msra.mxu0 0
    %4810 = vmatprep.subr.bf16.mxu0 0
    %4811 = vmatpush2.bf16.msra.mxu0 0
    %4812 = vmatprep.subr.bf16.mxu0 0
    %4813 = vmatpush2.bf16.msra.mxu0 0
    %4814 = vmatprep.subr.bf16.mxu0 0
    %4815 = vmatpush2.bf16.msra.mxu0 0
    %4816 = vmatprep.subr.bf16.mxu0 0
    %4817 = vmatpush2.bf16.msra.mxu0 0
    %4818 = vmatprep.subr.bf16.mxu0 0
    %4819 = vmatpush2.bf16.msra.mxu0 0
    %4820 = vmatprep.mubr.bf16.mxu0 0
    %4821 = vmatmul.mubr.bf16.gmra.mxu0 %v4786
    %v4822 = vpop.f32.mrf.mxu0
    %v4823 = vadd.f32 0.0, %v4822
    %v4824 = vpop.f32.mrf.mxu0
    %v4825 = vpop.f32.mrf.mxu0
    %v4826 = vpop.f32.mrf.mxu0
    %4827 = vdwg.mxu0
    %v4828 = vpack.c.bf16 %v4823, %v4823
    %s4829 = scalar_lea.vmem %s29, 64
    %v4830 = vld [vmem:[%s4829] sm:$0xff]
    %v4831 = vld [vmem:[%s4829 + $0x8] sm:$0xff]
    %v4832 = vld [vmem:[%s4829 + $0x10] sm:$0xff]
    %v4833 = vld [vmem:[%s4829 + $0x18] sm:$0xff]
    %v4838 = vunpack.c.l.b16 %v4830
    %v4839 = vunpack.c.h.b16 %v4830
    %v4840 = vunpack.c.l.b16 %v4831
    %v4841 = vunpack.c.h.b16 %v4831
    %v4842 = vunpack.c.l.b16 %v4832
    %v4843 = vunpack.c.h.b16 %v4832
    %v4844 = vunpack.c.l.b16 %v4833
    %v4845 = vunpack.c.h.b16 %v4833
    %v4846 = vpack.c.b16 %v4840, %v4838
    %v4847 = vpack.c.b16 %v4841, %v4839
    %v4848 = vpack.c.b16 %v4844, %v4842
    %v4849 = vpack.c.b16 %v4845, %v4843
    %v4855 = vsel %vm1960, %v4828, 0
    %4857 = vmatprep.subr.bf16.mxu0 0
    %4858 = vmatpush1.bf16.msra.mxu0 0
    %4859 = vmatprep.subr.bf16.mxu0 0
    %4860 = vmatpush1.bf16.msra.mxu0 0
    %4861 = vmatprep.subr.bf16.mxu0 0
    %4862 = vmatpush1.bf16.msra.mxu0 0
    %4863 = vmatprep.subr.bf16.mxu0 0
    %4864 = vmatpush1.bf16.msra.mxu0 0
    %4865 = vmatprep.subr.bf16.mxu0 0
    %4866 = vmatpush1.bf16.msra.mxu0 0
    %4867 = vmatprep.subr.bf16.mxu0 0
    %4868 = vmatpush1.bf16.msra.mxu0 0
    %4869 = vmatprep.subr.bf16.mxu0 %v4849
    %4870 = vmatpush1.bf16.msra.mxu0 %v4848
    %4871 = vmatprep.subr.bf16.mxu0 %v4847
    %4872 = vmatpush1.bf16.msra.mxu0 %v4846
    %4873 = vmatprep.subr.bf16.mxu0 0
    %4874 = vmatpush2.bf16.msra.mxu0 0
    %4875 = vmatprep.subr.bf16.mxu0 0
    %4876 = vmatpush2.bf16.msra.mxu0 0
    %4877 = vmatprep.subr.bf16.mxu0 0
    %4878 = vmatpush2.bf16.msra.mxu0 0
    %4879 = vmatprep.subr.bf16.mxu0 0
    %4880 = vmatpush2.bf16.msra.mxu0 0
    %4881 = vmatprep.subr.bf16.mxu0 0
    %4882 = vmatpush2.bf16.msra.mxu0 0
    %4883 = vmatprep.subr.bf16.mxu0 0
    %4884 = vmatpush2.bf16.msra.mxu0 0
    %4885 = vmatprep.subr.bf16.mxu0 0
    %4886 = vmatpush2.bf16.msra.mxu0 0
    %4887 = vmatprep.subr.bf16.mxu0 0
    %4888 = vmatpush2.bf16.msra.mxu0 0
    %4889 = vmatprep.mubr.bf16.mxu0 0
    %4890 = vmatmul.mubr.bf16.gmra.mxu0 %v4855
    %v4891 = vpop.f32.mrf.mxu0
    %v4892 = vadd.f32 0.0, %v4891
    %v4893 = vpop.f32.mrf.mxu0
    %v4894 = vadd.f32 0.0, %v4893
    %v4895 = vpop.f32.mrf.mxu0
    %v4896 = vpop.f32.mrf.mxu0
    %4897 = vdwg.mxu0
    %v4898 = vadd.f32 %v4777, %v4892
    %v4899 = vadd.f32 %v4779, %v4894
    %s4900 = scalar_lea.vmem %s31, 3
    %v4901 = vld [vmem:[%s4900] sm:$0x1]
    %v4903 = vsel %vm1827, %v4901, 0
    %4905 = vmatprep.subr.bf16.mxu0 0
    %4906 = vmatpush1.bf16.msra.mxu0 0
    %4907 = vmatprep.subr.bf16.mxu0 0
    %4908 = vmatpush1.bf16.msra.mxu0 0
    %4909 = vmatprep.subr.bf16.mxu0 0
    %4910 = vmatpush1.bf16.msra.mxu0 0
    %4911 = vmatprep.subr.bf16.mxu0 0
    %4912 = vmatpush1.bf16.msra.mxu0 0
    %4913 = vmatprep.subr.bf16.mxu0 0
    %4914 = vmatpush1.bf16.msra.mxu0 0
    %4915 = vmatprep.subr.bf16.mxu0 0
    %4916 = vmatpush1.bf16.msra.mxu0 0
    %4917 = vmatprep.subr.bf16.mxu0 0
    %4918 = vmatpush1.bf16.msra.mxu0 0
    %4919 = vmatprep.subr.bf16.mxu0 0
    %4920 = vmatpush1.bf16.msra.mxu0 %v4554
    %4921 = vmatprep.subr.bf16.mxu0 0
    %4922 = vmatpush2.bf16.msra.mxu0 0
    %4923 = vmatprep.subr.bf16.mxu0 0
    %4924 = vmatpush2.bf16.msra.mxu0 0
    %4925 = vmatprep.subr.bf16.mxu0 0
    %4926 = vmatpush2.bf16.msra.mxu0 0
    %4927 = vmatprep.subr.bf16.mxu0 0
    %4928 = vmatpush2.bf16.msra.mxu0 0
    %4929 = vmatprep.subr.bf16.mxu0 0
    %4930 = vmatpush2.bf16.msra.mxu0 0
    %4931 = vmatprep.subr.bf16.mxu0 0
    %4932 = vmatpush2.bf16.msra.mxu0 0
    %4933 = vmatprep.subr.bf16.mxu0 0
    %4934 = vmatpush2.bf16.msra.mxu0 0
    %4935 = vmatprep.subr.bf16.mxu0 0
    %4936 = vmatpush2.bf16.msra.mxu0 0
    %4937 = vmatprep.mubr.bf16.mxu0 0
    %4938 = vmatmul.mubr.bf16.gmra.mxu0 %v4903
    %v4939 = vpop.f32.mrf.mxu0
    %v4940 = vadd.f32 0.0, %v4939
    %v4941 = vpop.f32.mrf.mxu0
    %v4942 = vpop.f32.mrf.mxu0
    %v4943 = vpop.f32.mrf.mxu0
    %4944 = vdwg.mxu0
    %v4945 = vpack.c.bf16 %v4940, %v4940
    %s4946 = scalar_lea.vmem %s29, 96
    %v4947 = vld [vmem:[%s4946] sm:$0xff]
    %v4948 = vld [vmem:[%s4946 + $0x8] sm:$0xff]
    %v4949 = vld [vmem:[%s4946 + $0x10] sm:$0xff]
    %v4950 = vld [vmem:[%s4946 + $0x18] sm:$0xff]
    %v4955 = vunpack.c.l.b16 %v4947
    %v4956 = vunpack.c.h.b16 %v4947
    %v4957 = vunpack.c.l.b16 %v4948
    %v4958 = vunpack.c.h.b16 %v4948
    %v4959 = vunpack.c.l.b16 %v4949
    %v4960 = vunpack.c.h.b16 %v4949
    %v4961 = vunpack.c.l.b16 %v4950
    %v4962 = vunpack.c.h.b16 %v4950
    %v4963 = vpack.c.b16 %v4957, %v4955
    %v4964 = vpack.c.b16 %v4958, %v4956
    %v4965 = vpack.c.b16 %v4961, %v4959
    %v4966 = vpack.c.b16 %v4962, %v4960
    %v4972 = vsel %vm1960, %v4945, 0
    %4974 = vmatprep.subr.bf16.mxu0 0
    %4975 = vmatpush1.bf16.msra.mxu0 0
    %4976 = vmatprep.subr.bf16.mxu0 0
    %4977 = vmatpush1.bf16.msra.mxu0 0
    %4978 = vmatprep.subr.bf16.mxu0 0
    %4979 = vmatpush1.bf16.msra.mxu0 0
    %4980 = vmatprep.subr.bf16.mxu0 0
    %4981 = vmatpush1.bf16.msra.mxu0 0
    %4982 = vmatprep.subr.bf16.mxu0 0
    %4983 = vmatpush1.bf16.msra.mxu0 0
    %4984 = vmatprep.subr.bf16.mxu0 0
    %4985 = vmatpush1.bf16.msra.mxu0 0
    %4986 = vmatprep.subr.bf16.mxu0 %v4966
    %4987 = vmatpush1.bf16.msra.mxu0 %v4965
    %4988 = vmatprep.subr.bf16.mxu0 %v4964
    %4989 = vmatpush1.bf16.msra.mxu0 %v4963
    %4990 = vmatprep.subr.bf16.mxu0 0
    %4991 = vmatpush2.bf16.msra.mxu0 0
    %4992 = vmatprep.subr.bf16.mxu0 0
    %4993 = vmatpush2.bf16.msra.mxu0 0
    %4994 = vmatprep.subr.bf16.mxu0 0
    %4995 = vmatpush2.bf16.msra.mxu0 0
    %4996 = vmatprep.subr.bf16.mxu0 0
    %4997 = vmatpush2.bf16.msra.mxu0 0
    %4998 = vmatprep.subr.bf16.mxu0 0
    %4999 = vmatpush2.bf16.msra.mxu0 0
    %5000 = vmatprep.subr.bf16.mxu0 0
    %5001 = vmatpush2.bf16.msra.mxu0 0
    %5002 = vmatprep.subr.bf16.mxu0 0
    %5003 = vmatpush2.bf16.msra.mxu0 0
    %5004 = vmatprep.subr.bf16.mxu0 0
    %5005 = vmatpush2.bf16.msra.mxu0 0
    %5006 = vmatprep.mubr.bf16.mxu0 0
    %5007 = vmatmul.mubr.bf16.gmra.mxu0 %v4972
    %v5008 = vpop.f32.mrf.mxu0
    %v5009 = vadd.f32 0.0, %v5008
    %v5010 = vpop.f32.mrf.mxu0
    %v5011 = vadd.f32 0.0, %v5010
    %v5012 = vpop.f32.mrf.mxu0
    %v5013 = vpop.f32.mrf.mxu0
    %5014 = vdwg.mxu0
    %v5015 = vadd.f32 %v4898, %v5009
    %v5016 = vadd.f32 %v4899, %v5011
    %s5017 = scalar_lea.vmem %s31, 4
    %v5018 = vld [vmem:[%s5017] sm:$0x1]
    %v5020 = vsel %vm1827, %v5018, 0
    %5022 = vmatprep.subr.bf16.mxu0 0
    %5023 = vmatpush1.bf16.msra.mxu0 0
    %5024 = vmatprep.subr.bf16.mxu0 0
    %5025 = vmatpush1.bf16.msra.mxu0 0
    %5026 = vmatprep.subr.bf16.mxu0 0
    %5027 = vmatpush1.bf16.msra.mxu0 0
    %5028 = vmatprep.subr.bf16.mxu0 0
    %5029 = vmatpush1.bf16.msra.mxu0 0
    %5030 = vmatprep.subr.bf16.mxu0 0
    %5031 = vmatpush1.bf16.msra.mxu0 0
    %5032 = vmatprep.subr.bf16.mxu0 0
    %5033 = vmatpush1.bf16.msra.mxu0 0
    %5034 = vmatprep.subr.bf16.mxu0 0
    %5035 = vmatpush1.bf16.msra.mxu0 0
    %5036 = vmatprep.subr.bf16.mxu0 0
    %5037 = vmatpush1.bf16.msra.mxu0 %v4554
    %5038 = vmatprep.subr.bf16.mxu0 0
    %5039 = vmatpush2.bf16.msra.mxu0 0
    %5040 = vmatprep.subr.bf16.mxu0 0
    %5041 = vmatpush2.bf16.msra.mxu0 0
    %5042 = vmatprep.subr.bf16.mxu0 0
    %5043 = vmatpush2.bf16.msra.mxu0 0
    %5044 = vmatprep.subr.bf16.mxu0 0
    %5045 = vmatpush2.bf16.msra.mxu0 0
    %5046 = vmatprep.subr.bf16.mxu0 0
    %5047 = vmatpush2.bf16.msra.mxu0 0
    %5048 = vmatprep.subr.bf16.mxu0 0
    %5049 = vmatpush2.bf16.msra.mxu0 0
    %5050 = vmatprep.subr.bf16.mxu0 0
    %5051 = vmatpush2.bf16.msra.mxu0 0
    %5052 = vmatprep.subr.bf16.mxu0 0
    %5053 = vmatpush2.bf16.msra.mxu0 0
    %5054 = vmatprep.mubr.bf16.mxu0 0
    %5055 = vmatmul.mubr.bf16.gmra.mxu0 %v5020
    %v5056 = vpop.f32.mrf.mxu0
    %v5057 = vadd.f32 0.0, %v5056
    %v5058 = vpop.f32.mrf.mxu0
    %v5059 = vpop.f32.mrf.mxu0
    %v5060 = vpop.f32.mrf.mxu0
    %5061 = vdwg.mxu0
    %v5062 = vpack.c.bf16 %v5057, %v5057
    %s5063 = scalar_lea.vmem %s29, 128
    %v5064 = vld [vmem:[%s5063] sm:$0xff]
    %v5065 = vld [vmem:[%s5063 + $0x8] sm:$0xff]
    %v5066 = vld [vmem:[%s5063 + $0x10] sm:$0xff]
    %v5067 = vld [vmem:[%s5063 + $0x18] sm:$0xff]
    %v5072 = vunpack.c.l.b16 %v5064
    %v5073 = vunpack.c.h.b16 %v5064
    %v5074 = vunpack.c.l.b16 %v5065
    %v5075 = vunpack.c.h.b16 %v5065
    %v5076 = vunpack.c.l.b16 %v5066
    %v5077 = vunpack.c.h.b16 %v5066
    %v5078 = vunpack.c.l.b16 %v5067
    %v5079 = vunpack.c.h.b16 %v5067
    %v5080 = vpack.c.b16 %v5074, %v5072
    %v5081 = vpack.c.b16 %v5075, %v5073
    %v5082 = vpack.c.b16 %v5078, %v5076
    %v5083 = vpack.c.b16 %v5079, %v5077
    %v5089 = vsel %vm1960, %v5062, 0
    %5091 = vmatprep.subr.bf16.mxu0 0
    %5092 = vmatpush1.bf16.msra.mxu0 0
    %5093 = vmatprep.subr.bf16.mxu0 0
    %5094 = vmatpush1.bf16.msra.mxu0 0
    %5095 = vmatprep.subr.bf16.mxu0 0
    %5096 = vmatpush1.bf16.msra.mxu0 0
    %5097 = vmatprep.subr.bf16.mxu0 0
    %5098 = vmatpush1.bf16.msra.mxu0 0
    %5099 = vmatprep.subr.bf16.mxu0 0
    %5100 = vmatpush1.bf16.msra.mxu0 0
    %5101 = vmatprep.subr.bf16.mxu0 0
    %5102 = vmatpush1.bf16.msra.mxu0 0
    %5103 = vmatprep.subr.bf16.mxu0 %v5083
    %5104 = vmatpush1.bf16.msra.mxu0 %v5082
    %5105 = vmatprep.subr.bf16.mxu0 %v5081
    %5106 = vmatpush1.bf16.msra.mxu0 %v5080
    %5107 = vmatprep.subr.bf16.mxu0 0
    %5108 = vmatpush2.bf16.msra.mxu0 0
    %5109 = vmatprep.subr.bf16.mxu0 0
    %5110 = vmatpush2.bf16.msra.mxu0 0
    %5111 = vmatprep.subr.bf16.mxu0 0
    %5112 = vmatpush2.bf16.msra.mxu0 0
    %5113 = vmatprep.subr.bf16.mxu0 0
    %5114 = vmatpush2.bf16.msra.mxu0 0
    %5115 = vmatprep.subr.bf16.mxu0 0
    %5116 = vmatpush2.bf16.msra.mxu0 0
    %5117 = vmatprep.subr.bf16.mxu0 0
    %5118 = vmatpush2.bf16.msra.mxu0 0
    %5119 = vmatprep.subr.bf16.mxu0 0
    %5120 = vmatpush2.bf16.msra.mxu0 0
    %5121 = vmatprep.subr.bf16.mxu0 0
    %5122 = vmatpush2.bf16.msra.mxu0 0
    %5123 = vmatprep.mubr.bf16.mxu0 0
    %5124 = vmatmul.mubr.bf16.gmra.mxu0 %v5089
    %v5125 = vpop.f32.mrf.mxu0
    %v5126 = vadd.f32 0.0, %v5125
    %v5127 = vpop.f32.mrf.mxu0
    %v5128 = vadd.f32 0.0, %v5127
    %v5129 = vpop.f32.mrf.mxu0
    %v5130 = vpop.f32.mrf.mxu0
    %5131 = vdwg.mxu0
    %v5132 = vadd.f32 %v5015, %v5126
    %v5133 = vadd.f32 %v5016, %v5128
    %s5134 = scalar_lea.vmem %s31, 5
    %v5135 = vld [vmem:[%s5134] sm:$0x1]
    %v5137 = vsel %vm1827, %v5135, 0
    %5139 = vmatprep.subr.bf16.mxu0 0
    %5140 = vmatpush1.bf16.msra.mxu0 0
    %5141 = vmatprep.subr.bf16.mxu0 0
    %5142 = vmatpush1.bf16.msra.mxu0 0
    %5143 = vmatprep.subr.bf16.mxu0 0
    %5144 = vmatpush1.bf16.msra.mxu0 0
    %5145 = vmatprep.subr.bf16.mxu0 0
    %5146 = vmatpush1.bf16.msra.mxu0 0
    %5147 = vmatprep.subr.bf16.mxu0 0
    %5148 = vmatpush1.bf16.msra.mxu0 0
    %5149 = vmatprep.subr.bf16.mxu0 0
    %5150 = vmatpush1.bf16.msra.mxu0 0
    %5151 = vmatprep.subr.bf16.mxu0 0
    %5152 = vmatpush1.bf16.msra.mxu0 0
    %5153 = vmatprep.subr.bf16.mxu0 0
    %5154 = vmatpush1.bf16.msra.mxu0 %v4554
    %5155 = vmatprep.subr.bf16.mxu0 0
    %5156 = vmatpush2.bf16.msra.mxu0 0
    %5157 = vmatprep.subr.bf16.mxu0 0
    %5158 = vmatpush2.bf16.msra.mxu0 0
    %5159 = vmatprep.subr.bf16.mxu0 0
    %5160 = vmatpush2.bf16.msra.mxu0 0
    %5161 = vmatprep.subr.bf16.mxu0 0
    %5162 = vmatpush2.bf16.msra.mxu0 0
    %5163 = vmatprep.subr.bf16.mxu0 0
    %5164 = vmatpush2.bf16.msra.mxu0 0
    %5165 = vmatprep.subr.bf16.mxu0 0
    %5166 = vmatpush2.bf16.msra.mxu0 0
    %5167 = vmatprep.subr.bf16.mxu0 0
    %5168 = vmatpush2.bf16.msra.mxu0 0
    %5169 = vmatprep.subr.bf16.mxu0 0
    %5170 = vmatpush2.bf16.msra.mxu0 0
    %5171 = vmatprep.mubr.bf16.mxu0 0
    %5172 = vmatmul.mubr.bf16.gmra.mxu0 %v5137
    %v5173 = vpop.f32.mrf.mxu0
    %v5174 = vadd.f32 0.0, %v5173
    %v5175 = vpop.f32.mrf.mxu0
    %v5176 = vpop.f32.mrf.mxu0
    %v5177 = vpop.f32.mrf.mxu0
    %5178 = vdwg.mxu0
    %v5179 = vpack.c.bf16 %v5174, %v5174
    %s5180 = scalar_lea.vmem %s29, 160
    %v5181 = vld [vmem:[%s5180] sm:$0xff]
    %v5182 = vld [vmem:[%s5180 + $0x8] sm:$0xff]
    %v5183 = vld [vmem:[%s5180 + $0x10] sm:$0xff]
    %v5184 = vld [vmem:[%s5180 + $0x18] sm:$0xff]
    %v5189 = vunpack.c.l.b16 %v5181
    %v5190 = vunpack.c.h.b16 %v5181
    %v5191 = vunpack.c.l.b16 %v5182
    %v5192 = vunpack.c.h.b16 %v5182
    %v5193 = vunpack.c.l.b16 %v5183
    %v5194 = vunpack.c.h.b16 %v5183
    %v5195 = vunpack.c.l.b16 %v5184
    %v5196 = vunpack.c.h.b16 %v5184
    %v5197 = vpack.c.b16 %v5191, %v5189
    %v5198 = vpack.c.b16 %v5192, %v5190
    %v5199 = vpack.c.b16 %v5195, %v5193
    %v5200 = vpack.c.b16 %v5196, %v5194
    %v5206 = vsel %vm1960, %v5179, 0
    %5208 = vmatprep.subr.bf16.mxu0 0
    %5209 = vmatpush1.bf16.msra.mxu0 0
    %5210 = vmatprep.subr.bf16.mxu0 0
    %5211 = vmatpush1.bf16.msra.mxu0 0
    %5212 = vmatprep.subr.bf16.mxu0 0
    %5213 = vmatpush1.bf16.msra.mxu0 0
    %5214 = vmatprep.subr.bf16.mxu0 0
    %5215 = vmatpush1.bf16.msra.mxu0 0
    %5216 = vmatprep.subr.bf16.mxu0 0
    %5217 = vmatpush1.bf16.msra.mxu0 0
    %5218 = vmatprep.subr.bf16.mxu0 0
    %5219 = vmatpush1.bf16.msra.mxu0 0
    %5220 = vmatprep.subr.bf16.mxu0 %v5200
    %5221 = vmatpush1.bf16.msra.mxu0 %v5199
    %5222 = vmatprep.subr.bf16.mxu0 %v5198
    %5223 = vmatpush1.bf16.msra.mxu0 %v5197
    %5224 = vmatprep.subr.bf16.mxu0 0
    %5225 = vmatpush2.bf16.msra.mxu0 0
    %5226 = vmatprep.subr.bf16.mxu0 0
    %5227 = vmatpush2.bf16.msra.mxu0 0
    %5228 = vmatprep.subr.bf16.mxu0 0
    %5229 = vmatpush2.bf16.msra.mxu0 0
    %5230 = vmatprep.subr.bf16.mxu0 0
    %5231 = vmatpush2.bf16.msra.mxu0 0
    %5232 = vmatprep.subr.bf16.mxu0 0
    %5233 = vmatpush2.bf16.msra.mxu0 0
    %5234 = vmatprep.subr.bf16.mxu0 0
    %5235 = vmatpush2.bf16.msra.mxu0 0
    %5236 = vmatprep.subr.bf16.mxu0 0
    %5237 = vmatpush2.bf16.msra.mxu0 0
    %5238 = vmatprep.subr.bf16.mxu0 0
    %5239 = vmatpush2.bf16.msra.mxu0 0
    %5240 = vmatprep.mubr.bf16.mxu0 0
    %5241 = vmatmul.mubr.bf16.gmra.mxu0 %v5206
    %v5242 = vpop.f32.mrf.mxu0
    %v5243 = vadd.f32 0.0, %v5242
    %v5244 = vpop.f32.mrf.mxu0
    %v5245 = vadd.f32 0.0, %v5244
    %v5246 = vpop.f32.mrf.mxu0
    %v5247 = vpop.f32.mrf.mxu0
    %5248 = vdwg.mxu0
    %v5249 = vadd.f32 %v5132, %v5243
    %v5250 = vadd.f32 %v5133, %v5245
    %s5251 = scalar_lea.vmem %s31, 6
    %v5252 = vld [vmem:[%s5251] sm:$0x1]
    %v5254 = vsel %vm1827, %v5252, 0
    %5256 = vmatprep.subr.bf16.mxu0 0
    %5257 = vmatpush1.bf16.msra.mxu0 0
    %5258 = vmatprep.subr.bf16.mxu0 0
    %5259 = vmatpush1.bf16.msra.mxu0 0
    %5260 = vmatprep.subr.bf16.mxu0 0
    %5261 = vmatpush1.bf16.msra.mxu0 0
    %5262 = vmatprep.subr.bf16.mxu0 0
    %5263 = vmatpush1.bf16.msra.mxu0 0
    %5264 = vmatprep.subr.bf16.mxu0 0
    %5265 = vmatpush1.bf16.msra.mxu0 0
    %5266 = vmatprep.subr.bf16.mxu0 0
    %5267 = vmatpush1.bf16.msra.mxu0 0
    %5268 = vmatprep.subr.bf16.mxu0 0
    %5269 = vmatpush1.bf16.msra.mxu0 0
    %5270 = vmatprep.subr.bf16.mxu0 0
    %5271 = vmatpush1.bf16.msra.mxu0 %v4554
    %5272 = vmatprep.subr.bf16.mxu0 0
    %5273 = vmatpush2.bf16.msra.mxu0 0
    %5274 = vmatprep.subr.bf16.mxu0 0
    %5275 = vmatpush2.bf16.msra.mxu0 0
    %5276 = vmatprep.subr.bf16.mxu0 0
    %5277 = vmatpush2.bf16.msra.mxu0 0
    %5278 = vmatprep.subr.bf16.mxu0 0
    %5279 = vmatpush2.bf16.msra.mxu0 0
    %5280 = vmatprep.subr.bf16.mxu0 0
    %5281 = vmatpush2.bf16.msra.mxu0 0
    %5282 = vmatprep.subr.bf16.mxu0 0
    %5283 = vmatpush2.bf16.msra.mxu0 0
    %5284 = vmatprep.subr.bf16.mxu0 0
    %5285 = vmatpush2.bf16.msra.mxu0 0
    %5286 = vmatprep.subr.bf16.mxu0 0
    %5287 = vmatpush2.bf16.msra.mxu0 0
    %5288 = vmatprep.mubr.bf16.mxu0 0
    %5289 = vmatmul.mubr.bf16.gmra.mxu0 %v5254
    %v5290 = vpop.f32.mrf.mxu0
    %v5291 = vadd.f32 0.0, %v5290
    %v5292 = vpop.f32.mrf.mxu0
    %v5293 = vpop.f32.mrf.mxu0
    %v5294 = vpop.f32.mrf.mxu0
    %5295 = vdwg.mxu0
    %v5296 = vpack.c.bf16 %v5291, %v5291
    %s5297 = scalar_lea.vmem %s29, 192
    %v5298 = vld [vmem:[%s5297] sm:$0xff]
    %v5299 = vld [vmem:[%s5297 + $0x8] sm:$0xff]
    %v5300 = vld [vmem:[%s5297 + $0x10] sm:$0xff]
    %v5301 = vld [vmem:[%s5297 + $0x18] sm:$0xff]
    %v5306 = vunpack.c.l.b16 %v5298
    %v5307 = vunpack.c.h.b16 %v5298
    %v5308 = vunpack.c.l.b16 %v5299
    %v5309 = vunpack.c.h.b16 %v5299
    %v5310 = vunpack.c.l.b16 %v5300
    %v5311 = vunpack.c.h.b16 %v5300
    %v5312 = vunpack.c.l.b16 %v5301
    %v5313 = vunpack.c.h.b16 %v5301
    %v5314 = vpack.c.b16 %v5308, %v5306
    %v5315 = vpack.c.b16 %v5309, %v5307
    %v5316 = vpack.c.b16 %v5312, %v5310
    %v5317 = vpack.c.b16 %v5313, %v5311
    %v5323 = vsel %vm1960, %v5296, 0
    %5325 = vmatprep.subr.bf16.mxu0 0
    %5326 = vmatpush1.bf16.msra.mxu0 0
    %5327 = vmatprep.subr.bf16.mxu0 0
    %5328 = vmatpush1.bf16.msra.mxu0 0
    %5329 = vmatprep.subr.bf16.mxu0 0
    %5330 = vmatpush1.bf16.msra.mxu0 0
    %5331 = vmatprep.subr.bf16.mxu0 0
    %5332 = vmatpush1.bf16.msra.mxu0 0
    %5333 = vmatprep.subr.bf16.mxu0 0
    %5334 = vmatpush1.bf16.msra.mxu0 0
    %5335 = vmatprep.subr.bf16.mxu0 0
    %5336 = vmatpush1.bf16.msra.mxu0 0
    %5337 = vmatprep.subr.bf16.mxu0 %v5317
    %5338 = vmatpush1.bf16.msra.mxu0 %v5316
    %5339 = vmatprep.subr.bf16.mxu0 %v5315
    %5340 = vmatpush1.bf16.msra.mxu0 %v5314
    %5341 = vmatprep.subr.bf16.mxu0 0
    %5342 = vmatpush2.bf16.msra.mxu0 0
    %5343 = vmatprep.subr.bf16.mxu0 0
    %5344 = vmatpush2.bf16.msra.mxu0 0
    %5345 = vmatprep.subr.bf16.mxu0 0
    %5346 = vmatpush2.bf16.msra.mxu0 0
    %5347 = vmatprep.subr.bf16.mxu0 0
    %5348 = vmatpush2.bf16.msra.mxu0 0
    %5349 = vmatprep.subr.bf16.mxu0 0
    %5350 = vmatpush2.bf16.msra.mxu0 0
    %5351 = vmatprep.subr.bf16.mxu0 0
    %5352 = vmatpush2.bf16.msra.mxu0 0
    %5353 = vmatprep.subr.bf16.mxu0 0
    %5354 = vmatpush2.bf16.msra.mxu0 0
    %5355 = vmatprep.subr.bf16.mxu0 0
    %5356 = vmatpush2.bf16.msra.mxu0 0
    %5357 = vmatprep.mubr.bf16.mxu0 0
    %5358 = vmatmul.mubr.bf16.gmra.mxu0 %v5323
    %v5359 = vpop.f32.mrf.mxu0
    %v5360 = vadd.f32 0.0, %v5359
    %v5361 = vpop.f32.mrf.mxu0
    %v5362 = vadd.f32 0.0, %v5361
    %v5363 = vpop.f32.mrf.mxu0
    %v5364 = vpop.f32.mrf.mxu0
    %5365 = vdwg.mxu0
    %v5366 = vadd.f32 %v5249, %v5360
    %v5367 = vadd.f32 %v5250, %v5362
    %s5368 = scalar_lea.vmem %s31, 7
    %v5369 = vld [vmem:[%s5368] sm:$0x1]
    %v5371 = vsel %vm1827, %v5369, 0
    %5373 = vmatprep.subr.bf16.mxu0 0
    %5374 = vmatpush1.bf16.msra.mxu0 0
    %5375 = vmatprep.subr.bf16.mxu0 0
    %5376 = vmatpush1.bf16.msra.mxu0 0
    %5377 = vmatprep.subr.bf16.mxu0 0
    %5378 = vmatpush1.bf16.msra.mxu0 0
    %5379 = vmatprep.subr.bf16.mxu0 0
    %5380 = vmatpush1.bf16.msra.mxu0 0
    %5381 = vmatprep.subr.bf16.mxu0 0
    %5382 = vmatpush1.bf16.msra.mxu0 0
    %5383 = vmatprep.subr.bf16.mxu0 0
    %5384 = vmatpush1.bf16.msra.mxu0 0
    %5385 = vmatprep.subr.bf16.mxu0 0
    %5386 = vmatpush1.bf16.msra.mxu0 0
    %5387 = vmatprep.subr.bf16.mxu0 0
    %5388 = vmatpush1.bf16.msra.mxu0 %v4554
    %5389 = vmatprep.subr.bf16.mxu0 0
    %5390 = vmatpush2.bf16.msra.mxu0 0
    %5391 = vmatprep.subr.bf16.mxu0 0
    %5392 = vmatpush2.bf16.msra.mxu0 0
    %5393 = vmatprep.subr.bf16.mxu0 0
    %5394 = vmatpush2.bf16.msra.mxu0 0
    %5395 = vmatprep.subr.bf16.mxu0 0
    %5396 = vmatpush2.bf16.msra.mxu0 0
    %5397 = vmatprep.subr.bf16.mxu0 0
    %5398 = vmatpush2.bf16.msra.mxu0 0
    %5399 = vmatprep.subr.bf16.mxu0 0
    %5400 = vmatpush2.bf16.msra.mxu0 0
    %5401 = vmatprep.subr.bf16.mxu0 0
    %5402 = vmatpush2.bf16.msra.mxu0 0
    %5403 = vmatprep.subr.bf16.mxu0 0
    %5404 = vmatpush2.bf16.msra.mxu0 0
    %5405 = vmatprep.mubr.bf16.mxu0 0
    %5406 = vmatmul.mubr.bf16.gmra.mxu0 %v5371
    %v5407 = vpop.f32.mrf.mxu0
    %v5408 = vadd.f32 0.0, %v5407
    %v5409 = vpop.f32.mrf.mxu0
    %v5410 = vpop.f32.mrf.mxu0
    %v5411 = vpop.f32.mrf.mxu0
    %5412 = vdwg.mxu0
    %v5413 = vpack.c.bf16 %v5408, %v5408
    %s5414 = scalar_lea.vmem %s29, 224
    %v5415 = vld [vmem:[%s5414] sm:$0xff]
    %v5416 = vld [vmem:[%s5414 + $0x8] sm:$0xff]
    %v5417 = vld [vmem:[%s5414 + $0x10] sm:$0xff]
    %v5418 = vld [vmem:[%s5414 + $0x18] sm:$0xff]
    %v5423 = vunpack.c.l.b16 %v5415
    %v5424 = vunpack.c.h.b16 %v5415
    %v5425 = vunpack.c.l.b16 %v5416
    %v5426 = vunpack.c.h.b16 %v5416
    %v5427 = vunpack.c.l.b16 %v5417
    %v5428 = vunpack.c.h.b16 %v5417
    %v5429 = vunpack.c.l.b16 %v5418
    %v5430 = vunpack.c.h.b16 %v5418
    %v5431 = vpack.c.b16 %v5425, %v5423
    %v5432 = vpack.c.b16 %v5426, %v5424
    %v5433 = vpack.c.b16 %v5429, %v5427
    %v5434 = vpack.c.b16 %v5430, %v5428
    %v5440 = vsel %vm1960, %v5413, 0
    %5442 = vmatprep.subr.bf16.mxu0 0
    %5443 = vmatpush1.bf16.msra.mxu0 0
    %5444 = vmatprep.subr.bf16.mxu0 0
    %5445 = vmatpush1.bf16.msra.mxu0 0
    %5446 = vmatprep.subr.bf16.mxu0 0
    %5447 = vmatpush1.bf16.msra.mxu0 0
    %5448 = vmatprep.subr.bf16.mxu0 0
    %5449 = vmatpush1.bf16.msra.mxu0 0
    %5450 = vmatprep.subr.bf16.mxu0 0
    %5451 = vmatpush1.bf16.msra.mxu0 0
    %5452 = vmatprep.subr.bf16.mxu0 0
    %5453 = vmatpush1.bf16.msra.mxu0 0
    %5454 = vmatprep.subr.bf16.mxu0 %v5434
    %5455 = vmatpush1.bf16.msra.mxu0 %v5433
    %5456 = vmatprep.subr.bf16.mxu0 %v5432
    %5457 = vmatpush1.bf16.msra.mxu0 %v5431
    %5458 = vmatprep.subr.bf16.mxu0 0
    %5459 = vmatpush2.bf16.msra.mxu0 0
    %5460 = vmatprep.subr.bf16.mxu0 0
    %5461 = vmatpush2.bf16.msra.mxu0 0
    %5462 = vmatprep.subr.bf16.mxu0 0
    %5463 = vmatpush2.bf16.msra.mxu0 0
    %5464 = vmatprep.subr.bf16.mxu0 0
    %5465 = vmatpush2.bf16.msra.mxu0 0
    %5466 = vmatprep.subr.bf16.mxu0 0
    %5467 = vmatpush2.bf16.msra.mxu0 0
    %5468 = vmatprep.subr.bf16.mxu0 0
    %5469 = vmatpush2.bf16.msra.mxu0 0
    %5470 = vmatprep.subr.bf16.mxu0 0
    %5471 = vmatpush2.bf16.msra.mxu0 0
    %5472 = vmatprep.subr.bf16.mxu0 0
    %5473 = vmatpush2.bf16.msra.mxu0 0
    %5474 = vmatprep.mubr.bf16.mxu0 0
    %5475 = vmatmul.mubr.bf16.gmra.mxu0 %v5440
    %v5476 = vpop.f32.mrf.mxu0
    %v5477 = vadd.f32 0.0, %v5476
    %v5478 = vpop.f32.mrf.mxu0
    %v5479 = vadd.f32 0.0, %v5478
    %v5480 = vpop.f32.mrf.mxu0
    %v5481 = vpop.f32.mrf.mxu0
    %5482 = vdwg.mxu0
    %v5483 = vadd.f32 %v5366, %v5477
    %v5484 = vadd.f32 %v5367, %v5479
    %v5485 = vpack.c.bf16 %v5483, %v5483
    %v5486 = vpack.c.bf16 %v5484, %v5484
    %v5487 = vld [vmem:[%s209] sm:$0xff]
    %v5488 = vld [vmem:[%s209 + $0x8] sm:$0xff]
    %v5489 = vld [vmem:[%s209 + $0x10] sm:$0xff]
    %v5490 = vld [vmem:[%s209 + $0x18] sm:$0xff]
    %v5491 = vld [vmem:[%s209 + $0x20] sm:$0xff]
    %v5492 = vld [vmem:[%s209 + $0x28] sm:$0xff]
    %v5493 = vld [vmem:[%s209 + $0x30] sm:$0xff]
    %v5494 = vld [vmem:[%s209 + $0x38] sm:$0xff]
    %v5495 = vld [vmem:[%s209 + $0x40] sm:$0xff]
    %v5496 = vld [vmem:[%s209 + $0x48] sm:$0xff]
    %v5497 = vld [vmem:[%s209 + $0x50] sm:$0xff]
    %v5498 = vld [vmem:[%s209 + $0x58] sm:$0xff]
    %v5499 = vld [vmem:[%s209 + $0x60] sm:$0xff]
    %v5500 = vld [vmem:[%s209 + $0x68] sm:$0xff]
    %v5501 = vld [vmem:[%s209 + $0x70] sm:$0xff]
    %v5502 = vld [vmem:[%s209 + $0x78] sm:$0xff]
    %v5503 = vld [vmem:[%s209 + $0x80] sm:$0xff]
    %v5504 = vld [vmem:[%s209 + $0x88] sm:$0xff]
    %v5505 = vld [vmem:[%s209 + $0x90] sm:$0xff]
    %v5506 = vld [vmem:[%s209 + $0x98] sm:$0xff]
    %v5507 = vld [vmem:[%s209 + $0xa0] sm:$0xff]
    %v5508 = vld [vmem:[%s209 + $0xa8] sm:$0xff]
    %v5509 = vld [vmem:[%s209 + $0xb0] sm:$0xff]
    %v5510 = vld [vmem:[%s209 + $0xb8] sm:$0xff]
    %v5511 = vld [vmem:[%s209 + $0xc0] sm:$0xff]
    %v5512 = vld [vmem:[%s209 + $0xc8] sm:$0xff]
    %v5513 = vld [vmem:[%s209 + $0xd0] sm:$0xff]
    %v5514 = vld [vmem:[%s209 + $0xd8] sm:$0xff]
    %v5515 = vld [vmem:[%s209 + $0xe0] sm:$0xff]
    %v5516 = vld [vmem:[%s209 + $0xe8] sm:$0xff]
    %v5517 = vld [vmem:[%s209 + $0xf0] sm:$0xff]
    %v5518 = vld [vmem:[%s209 + $0xf8] sm:$0xff]
    %v5519 = vld [vmem:[#allocation133] sm:$0x3]
    %v5521 = vlaneseq
    %v5522 = vshrl.u32 %v5521, 7
    %v5523 = vsub.s32 0, %v5522
    %v5524 = vrot.slane %v5519, %v5523
    %v5525 = vlaneseq
    %v5526 = vshrl.u32 %v5525, 7
    %v5527 = vsub.s32 1, %v5526
    %v5528 = vrot.slane %v5519, %v5527
    %v5563 = vunpack.c.l.b16 %v5487
    %v5564 = vunpack.c.h.b16 %v5487
    %v5565 = vunpack.c.l.b16 %v5488
    %v5566 = vunpack.c.h.b16 %v5488
    %v5567 = vunpack.c.l.b16 %v5489
    %v5568 = vunpack.c.h.b16 %v5489
    %v5569 = vunpack.c.l.b16 %v5490
    %v5570 = vunpack.c.h.b16 %v5490
    %v5571 = vunpack.c.l.b16 %v5491
    %v5572 = vunpack.c.h.b16 %v5491
    %v5573 = vunpack.c.l.b16 %v5492
    %v5574 = vunpack.c.h.b16 %v5492
    %v5575 = vunpack.c.l.b16 %v5493
    %v5576 = vunpack.c.h.b16 %v5493
    %v5577 = vunpack.c.l.b16 %v5494
    %v5578 = vunpack.c.h.b16 %v5494
    %v5579 = vunpack.c.l.b16 %v5495
    %v5580 = vunpack.c.h.b16 %v5495
    %v5581 = vunpack.c.l.b16 %v5496
    %v5582 = vunpack.c.h.b16 %v5496
    %v5583 = vunpack.c.l.b16 %v5497
    %v5584 = vunpack.c.h.b16 %v5497
    %v5585 = vunpack.c.l.b16 %v5498
    %v5586 = vunpack.c.h.b16 %v5498
    %v5587 = vunpack.c.l.b16 %v5499
    %v5588 = vunpack.c.h.b16 %v5499
    %v5589 = vunpack.c.l.b16 %v5500
    %v5590 = vunpack.c.h.b16 %v5500
    %v5591 = vunpack.c.l.b16 %v5501
    %v5592 = vunpack.c.h.b16 %v5501
    %v5593 = vunpack.c.l.b16 %v5502
    %v5594 = vunpack.c.h.b16 %v5502
    %v5595 = vunpack.c.l.b16 %v5503
    %v5596 = vunpack.c.h.b16 %v5503
    %v5597 = vunpack.c.l.b16 %v5504
    %v5598 = vunpack.c.h.b16 %v5504
    %v5599 = vunpack.c.l.b16 %v5505
    %v5600 = vunpack.c.h.b16 %v5505
    %v5601 = vunpack.c.l.b16 %v5506
    %v5602 = vunpack.c.h.b16 %v5506
    %v5603 = vunpack.c.l.b16 %v5507
    %v5604 = vunpack.c.h.b16 %v5507
    %v5605 = vunpack.c.l.b16 %v5508
    %v5606 = vunpack.c.h.b16 %v5508
    %v5607 = vunpack.c.l.b16 %v5509
    %v5608 = vunpack.c.h.b16 %v5509
    %v5609 = vunpack.c.l.b16 %v5510
    %v5610 = vunpack.c.h.b16 %v5510
    %v5611 = vunpack.c.l.b16 %v5511
    %v5612 = vunpack.c.h.b16 %v5511
    %v5613 = vunpack.c.l.b16 %v5512
    %v5614 = vunpack.c.h.b16 %v5512
    %v5615 = vunpack.c.l.b16 %v5513
    %v5616 = vunpack.c.h.b16 %v5513
    %v5617 = vunpack.c.l.b16 %v5514
    %v5618 = vunpack.c.h.b16 %v5514
    %v5619 = vunpack.c.l.b16 %v5515
    %v5620 = vunpack.c.h.b16 %v5515
    %v5621 = vunpack.c.l.b16 %v5516
    %v5622 = vunpack.c.h.b16 %v5516
    %v5623 = vunpack.c.l.b16 %v5517
    %v5624 = vunpack.c.h.b16 %v5517
    %v5625 = vunpack.c.l.b16 %v5518
    %v5626 = vunpack.c.h.b16 %v5518
    %v5627 = vpack.c.b16 %v5565, %v5563
    %v5628 = vpack.c.b16 %v5566, %v5564
    %v5629 = vpack.c.b16 %v5569, %v5567
    %v5630 = vpack.c.b16 %v5570, %v5568
    %v5631 = vpack.c.b16 %v5573, %v5571
    %v5632 = vpack.c.b16 %v5574, %v5572
    %v5633 = vpack.c.b16 %v5577, %v5575
    %v5634 = vpack.c.b16 %v5578, %v5576
    %v5635 = vpack.c.b16 %v5581, %v5579
    %v5636 = vpack.c.b16 %v5582, %v5580
    %v5637 = vpack.c.b16 %v5585, %v5583
    %v5638 = vpack.c.b16 %v5586, %v5584
    %v5639 = vpack.c.b16 %v5589, %v5587
    %v5640 = vpack.c.b16 %v5590, %v5588
    %v5641 = vpack.c.b16 %v5593, %v5591
    %v5642 = vpack.c.b16 %v5594, %v5592
    %v5643 = vpack.c.b16 %v5597, %v5595
    %v5644 = vpack.c.b16 %v5598, %v5596
    %v5645 = vpack.c.b16 %v5601, %v5599
    %v5646 = vpack.c.b16 %v5602, %v5600
    %v5647 = vpack.c.b16 %v5605, %v5603
    %v5648 = vpack.c.b16 %v5606, %v5604
    %v5649 = vpack.c.b16 %v5609, %v5607
    %v5650 = vpack.c.b16 %v5610, %v5608
    %v5651 = vpack.c.b16 %v5613, %v5611
    %v5652 = vpack.c.b16 %v5614, %v5612
    %v5653 = vpack.c.b16 %v5617, %v5615
    %v5654 = vpack.c.b16 %v5618, %v5616
    %v5655 = vpack.c.b16 %v5621, %v5619
    %v5656 = vpack.c.b16 %v5622, %v5620
    %v5657 = vpack.c.b16 %v5625, %v5623
    %v5658 = vpack.c.b16 %v5626, %v5624
    %5691 = vmatprep.subr.bf16.mxu0 %v5642
    %5692 = vmatpush1.bf16.msra.mxu0 %v5641
    %5693 = vmatprep.subr.bf16.mxu0 %v5640
    %5694 = vmatpush1.bf16.msra.mxu0 %v5639
    %5695 = vmatprep.subr.bf16.mxu0 %v5638
    %5696 = vmatpush1.bf16.msra.mxu0 %v5637
    %5697 = vmatprep.subr.bf16.mxu0 %v5636
    %5698 = vmatpush1.bf16.msra.mxu0 %v5635
    %5699 = vmatprep.subr.bf16.mxu0 %v5634
    %5700 = vmatpush1.bf16.msra.mxu0 %v5633
    %5701 = vmatprep.subr.bf16.mxu0 %v5632
    %5702 = vmatpush1.bf16.msra.mxu0 %v5631
    %5703 = vmatprep.subr.bf16.mxu0 %v5630
    %5704 = vmatpush1.bf16.msra.mxu0 %v5629
    %5705 = vmatprep.subr.bf16.mxu0 %v5628
    %5706 = vmatpush1.bf16.msra.mxu0 %v5627
    %5707 = vmatprep.subr.bf16.mxu0 %v5658
    %5708 = vmatpush2.bf16.msra.mxu0 %v5657
    %5709 = vmatprep.subr.bf16.mxu0 %v5656
    %5710 = vmatpush2.bf16.msra.mxu0 %v5655
    %5711 = vmatprep.subr.bf16.mxu0 %v5654
    %5712 = vmatpush2.bf16.msra.mxu0 %v5653
    %5713 = vmatprep.subr.bf16.mxu0 %v5652
    %5714 = vmatpush2.bf16.msra.mxu0 %v5651
    %5715 = vmatprep.subr.bf16.mxu0 %v5650
    %5716 = vmatpush2.bf16.msra.mxu0 %v5649
    %5717 = vmatprep.subr.bf16.mxu0 %v5648
    %5718 = vmatpush2.bf16.msra.mxu0 %v5647
    %5719 = vmatprep.subr.bf16.mxu0 %v5646
    %5720 = vmatpush2.bf16.msra.mxu0 %v5645
    %5721 = vmatprep.subr.bf16.mxu0 %v5644
    %5722 = vmatpush2.bf16.msra.mxu0 %v5643
    %5723 = vmatprep.mubr.bf16.mxu0 %v5486
    %5724 = vmatmul.mubr.bf16.gmra.mxu0 %v5485
    %v5725 = vpop.f32.mrf.mxu0
    %v5726 = vadd.f32 %v5524, %v5725
    %v5727 = vpop.f32.mrf.mxu0
    %v5728 = vadd.f32 %v5528, %v5727
    %v5729 = vpop.f32.mrf.mxu0
    %v5730 = vpop.f32.mrf.mxu0
    %5731 = vdwg.mxu0
    %v5732 = vmax.f32 %v5726, 0.0
    %v5733 = vmax.f32 %v5728, 0.0
    %v5734 = vpack.c.bf16 %v5732, %v5732
    %v5735 = vpack.c.bf16 %v5733, %v5733
    %v5736 = vld [vmem:[%s213] sm:$0xff]
    %v5737 = vld [vmem:[%s213 + $0x8] sm:$0xff]
    %v5738 = vld [vmem:[%s213 + $0x10] sm:$0xff]
    %v5739 = vld [vmem:[%s213 + $0x18] sm:$0xff]
    %v5740 = vld [vmem:[%s213 + $0x20] sm:$0xff]
    %v5741 = vld [vmem:[%s213 + $0x28] sm:$0xff]
    %v5742 = vld [vmem:[%s213 + $0x30] sm:$0xff]
    %v5743 = vld [vmem:[%s213 + $0x38] sm:$0xff]
    %v5744 = vld [vmem:[%s213 + $0x40] sm:$0xff]
    %v5745 = vld [vmem:[%s213 + $0x48] sm:$0xff]
    %v5746 = vld [vmem:[%s213 + $0x50] sm:$0xff]
    %v5747 = vld [vmem:[%s213 + $0x58] sm:$0xff]
    %v5748 = vld [vmem:[%s213 + $0x60] sm:$0xff]
    %v5749 = vld [vmem:[%s213 + $0x68] sm:$0xff]
    %v5750 = vld [vmem:[%s213 + $0x70] sm:$0xff]
    %v5751 = vld [vmem:[%s213 + $0x78] sm:$0xff]
    %v5752 = vld [vmem:[%s213 + $0x80] sm:$0xff]
    %v5753 = vld [vmem:[%s213 + $0x88] sm:$0xff]
    %v5754 = vld [vmem:[%s213 + $0x90] sm:$0xff]
    %v5755 = vld [vmem:[%s213 + $0x98] sm:$0xff]
    %v5756 = vld [vmem:[%s213 + $0xa0] sm:$0xff]
    %v5757 = vld [vmem:[%s213 + $0xa8] sm:$0xff]
    %v5758 = vld [vmem:[%s213 + $0xb0] sm:$0xff]
    %v5759 = vld [vmem:[%s213 + $0xb8] sm:$0xff]
    %v5760 = vld [vmem:[%s213 + $0xc0] sm:$0xff]
    %v5761 = vld [vmem:[%s213 + $0xc8] sm:$0xff]
    %v5762 = vld [vmem:[%s213 + $0xd0] sm:$0xff]
    %v5763 = vld [vmem:[%s213 + $0xd8] sm:$0xff]
    %v5764 = vld [vmem:[%s213 + $0xe0] sm:$0xff]
    %v5765 = vld [vmem:[%s213 + $0xe8] sm:$0xff]
    %v5766 = vld [vmem:[%s213 + $0xf0] sm:$0xff]
    %v5767 = vld [vmem:[%s213 + $0xf8] sm:$0xff]
    %v5768 = vld [vmem:[#allocation134] sm:$0x3]
    %v5770 = vlaneseq
    %v5771 = vshrl.u32 %v5770, 7
    %v5772 = vsub.s32 0, %v5771
    %v5773 = vrot.slane %v5768, %v5772
    %v5774 = vlaneseq
    %v5775 = vshrl.u32 %v5774, 7
    %v5776 = vsub.s32 1, %v5775
    %v5777 = vrot.slane %v5768, %v5776
    %v5812 = vunpack.c.l.b16 %v5736
    %v5813 = vunpack.c.h.b16 %v5736
    %v5814 = vunpack.c.l.b16 %v5737
    %v5815 = vunpack.c.h.b16 %v5737
    %v5816 = vunpack.c.l.b16 %v5738
    %v5817 = vunpack.c.h.b16 %v5738
    %v5818 = vunpack.c.l.b16 %v5739
    %v5819 = vunpack.c.h.b16 %v5739
    %v5820 = vunpack.c.l.b16 %v5740
    %v5821 = vunpack.c.h.b16 %v5740
    %v5822 = vunpack.c.l.b16 %v5741
    %v5823 = vunpack.c.h.b16 %v5741
    %v5824 = vunpack.c.l.b16 %v5742
    %v5825 = vunpack.c.h.b16 %v5742
    %v5826 = vunpack.c.l.b16 %v5743
    %v5827 = vunpack.c.h.b16 %v5743
    %v5828 = vunpack.c.l.b16 %v5744
    %v5829 = vunpack.c.h.b16 %v5744
    %v5830 = vunpack.c.l.b16 %v5745
    %v5831 = vunpack.c.h.b16 %v5745
    %v5832 = vunpack.c.l.b16 %v5746
    %v5833 = vunpack.c.h.b16 %v5746
    %v5834 = vunpack.c.l.b16 %v5747
    %v5835 = vunpack.c.h.b16 %v5747
    %v5836 = vunpack.c.l.b16 %v5748
    %v5837 = vunpack.c.h.b16 %v5748
    %v5838 = vunpack.c.l.b16 %v5749
    %v5839 = vunpack.c.h.b16 %v5749
    %v5840 = vunpack.c.l.b16 %v5750
    %v5841 = vunpack.c.h.b16 %v5750
    %v5842 = vunpack.c.l.b16 %v5751
    %v5843 = vunpack.c.h.b16 %v5751
    %v5844 = vunpack.c.l.b16 %v5752
    %v5845 = vunpack.c.h.b16 %v5752
    %v5846 = vunpack.c.l.b16 %v5753
    %v5847 = vunpack.c.h.b16 %v5753
    %v5848 = vunpack.c.l.b16 %v5754
    %v5849 = vunpack.c.h.b16 %v5754
    %v5850 = vunpack.c.l.b16 %v5755
    %v5851 = vunpack.c.h.b16 %v5755
    %v5852 = vunpack.c.l.b16 %v5756
    %v5853 = vunpack.c.h.b16 %v5756
    %v5854 = vunpack.c.l.b16 %v5757
    %v5855 = vunpack.c.h.b16 %v5757
    %v5856 = vunpack.c.l.b16 %v5758
    %v5857 = vunpack.c.h.b16 %v5758
    %v5858 = vunpack.c.l.b16 %v5759
    %v5859 = vunpack.c.h.b16 %v5759
    %v5860 = vunpack.c.l.b16 %v5760
    %v5861 = vunpack.c.h.b16 %v5760
    %v5862 = vunpack.c.l.b16 %v5761
    %v5863 = vunpack.c.h.b16 %v5761
    %v5864 = vunpack.c.l.b16 %v5762
    %v5865 = vunpack.c.h.b16 %v5762
    %v5866 = vunpack.c.l.b16 %v5763
    %v5867 = vunpack.c.h.b16 %v5763
    %v5868 = vunpack.c.l.b16 %v5764
    %v5869 = vunpack.c.h.b16 %v5764
    %v5870 = vunpack.c.l.b16 %v5765
    %v5871 = vunpack.c.h.b16 %v5765
    %v5872 = vunpack.c.l.b16 %v5766
    %v5873 = vunpack.c.h.b16 %v5766
    %v5874 = vunpack.c.l.b16 %v5767
    %v5875 = vunpack.c.h.b16 %v5767
    %v5876 = vpack.c.b16 %v5814, %v5812
    %v5877 = vpack.c.b16 %v5815, %v5813
    %v5878 = vpack.c.b16 %v5818, %v5816
    %v5879 = vpack.c.b16 %v5819, %v5817
    %v5880 = vpack.c.b16 %v5822, %v5820
    %v5881 = vpack.c.b16 %v5823, %v5821
    %v5882 = vpack.c.b16 %v5826, %v5824
    %v5883 = vpack.c.b16 %v5827, %v5825
    %v5884 = vpack.c.b16 %v5830, %v5828
    %v5885 = vpack.c.b16 %v5831, %v5829
    %v5886 = vpack.c.b16 %v5834, %v5832
    %v5887 = vpack.c.b16 %v5835, %v5833
    %v5888 = vpack.c.b16 %v5838, %v5836
    %v5889 = vpack.c.b16 %v5839, %v5837
    %v5890 = vpack.c.b16 %v5842, %v5840
    %v5891 = vpack.c.b16 %v5843, %v5841
    %v5892 = vpack.c.b16 %v5846, %v5844
    %v5893 = vpack.c.b16 %v5847, %v5845
    %v5894 = vpack.c.b16 %v5850, %v5848
    %v5895 = vpack.c.b16 %v5851, %v5849
    %v5896 = vpack.c.b16 %v5854, %v5852
    %v5897 = vpack.c.b16 %v5855, %v5853
    %v5898 = vpack.c.b16 %v5858, %v5856
    %v5899 = vpack.c.b16 %v5859, %v5857
    %v5900 = vpack.c.b16 %v5862, %v5860
    %v5901 = vpack.c.b16 %v5863, %v5861
    %v5902 = vpack.c.b16 %v5866, %v5864
    %v5903 = vpack.c.b16 %v5867, %v5865
    %v5904 = vpack.c.b16 %v5870, %v5868
    %v5905 = vpack.c.b16 %v5871, %v5869
    %v5906 = vpack.c.b16 %v5874, %v5872
    %v5907 = vpack.c.b16 %v5875, %v5873
    %5940 = vmatprep.subr.bf16.mxu0 %v5891
    %5941 = vmatpush1.bf16.msra.mxu0 %v5890
    %5942 = vmatprep.subr.bf16.mxu0 %v5889
    %5943 = vmatpush1.bf16.msra.mxu0 %v5888
    %5944 = vmatprep.subr.bf16.mxu0 %v5887
    %5945 = vmatpush1.bf16.msra.mxu0 %v5886
    %5946 = vmatprep.subr.bf16.mxu0 %v5885
    %5947 = vmatpush1.bf16.msra.mxu0 %v5884
    %5948 = vmatprep.subr.bf16.mxu0 %v5883
    %5949 = vmatpush1.bf16.msra.mxu0 %v5882
    %5950 = vmatprep.subr.bf16.mxu0 %v5881
    %5951 = vmatpush1.bf16.msra.mxu0 %v5880
    %5952 = vmatprep.subr.bf16.mxu0 %v5879
    %5953 = vmatpush1.bf16.msra.mxu0 %v5878
    %5954 = vmatprep.subr.bf16.mxu0 %v5877
    %5955 = vmatpush1.bf16.msra.mxu0 %v5876
    %5956 = vmatprep.subr.bf16.mxu0 %v5907
    %5957 = vmatpush2.bf16.msra.mxu0 %v5906
    %5958 = vmatprep.subr.bf16.mxu0 %v5905
    %5959 = vmatpush2.bf16.msra.mxu0 %v5904
    %5960 = vmatprep.subr.bf16.mxu0 %v5903
    %5961 = vmatpush2.bf16.msra.mxu0 %v5902
    %5962 = vmatprep.subr.bf16.mxu0 %v5901
    %5963 = vmatpush2.bf16.msra.mxu0 %v5900
    %5964 = vmatprep.subr.bf16.mxu0 %v5899
    %5965 = vmatpush2.bf16.msra.mxu0 %v5898
    %5966 = vmatprep.subr.bf16.mxu0 %v5897
    %5967 = vmatpush2.bf16.msra.mxu0 %v5896
    %5968 = vmatprep.subr.bf16.mxu0 %v5895
    %5969 = vmatpush2.bf16.msra.mxu0 %v5894
    %5970 = vmatprep.subr.bf16.mxu0 %v5893
    %5971 = vmatpush2.bf16.msra.mxu0 %v5892
    %5972 = vmatprep.mubr.bf16.mxu0 %v5735
    %5973 = vmatmul.mubr.bf16.gmra.mxu0 %v5734
    %v5974 = vpop.f32.mrf.mxu0
    %v5975 = vadd.f32 %v5773, %v5974
    %v5976 = vpop.f32.mrf.mxu0
    %v5977 = vadd.f32 %v5777, %v5976
    %v5978 = vpop.f32.mrf.mxu0
    %v5979 = vpop.f32.mrf.mxu0
    %5980 = vdwg.mxu0
    %v5981 = vadd.f32 %v5975, %v5483
    %v5982 = vadd.f32 %v5977, %v5484
    %v5983 = vpack.c.bf16 %v5981, %v5981
    %v5984 = vpack.c.bf16 %v5982, %v5982
    %v5985 = vld [vmem:[%s217] sm:$0xf]
    %v5986 = vld [vmem:[%s217 + $0x4] sm:$0xf]
    %v5987 = vld [vmem:[%s217 + $0x8] sm:$0xf]
    %v5988 = vld [vmem:[%s217 + $0xc] sm:$0xf]
    %v5989 = vld [vmem:[%s217 + $0x10] sm:$0xf]
    %v5990 = vld [vmem:[%s217 + $0x14] sm:$0xf]
    %v5991 = vld [vmem:[%s217 + $0x18] sm:$0xf]
    %v5992 = vld [vmem:[%s217 + $0x1c] sm:$0xf]
    %v5993 = vld [vmem:[%s217 + $0x20] sm:$0xf]
    %v5994 = vld [vmem:[%s217 + $0x24] sm:$0xf]
    %v5995 = vld [vmem:[%s217 + $0x28] sm:$0xf]
    %v5996 = vld [vmem:[%s217 + $0x2c] sm:$0xf]
    %v5997 = vld [vmem:[%s217 + $0x30] sm:$0xf]
    %v5998 = vld [vmem:[%s217 + $0x34] sm:$0xf]
    %v5999 = vld [vmem:[%s217 + $0x38] sm:$0xf]
    %v6000 = vld [vmem:[%s217 + $0x3c] sm:$0xf]
    %v6001 = vld [vmem:[%s217 + $0x40] sm:$0xf]
    %v6002 = vld [vmem:[%s217 + $0x44] sm:$0xf]
    %v6003 = vld [vmem:[%s217 + $0x48] sm:$0xf]
    %v6004 = vld [vmem:[%s217 + $0x4c] sm:$0xf]
    %v6005 = vld [vmem:[%s217 + $0x50] sm:$0xf]
    %v6006 = vld [vmem:[%s217 + $0x54] sm:$0xf]
    %v6007 = vld [vmem:[%s217 + $0x58] sm:$0xf]
    %v6008 = vld [vmem:[%s217 + $0x5c] sm:$0xf]
    %v6009 = vld [vmem:[%s217 + $0x60] sm:$0xf]
    %v6010 = vld [vmem:[%s217 + $0x64] sm:$0xf]
    %v6011 = vld [vmem:[%s217 + $0x68] sm:$0xf]
    %v6012 = vld [vmem:[%s217 + $0x6c] sm:$0xf]
    %v6013 = vld [vmem:[%s217 + $0x70] sm:$0xf]
    %v6014 = vld [vmem:[%s217 + $0x74] sm:$0xf]
    %v6015 = vld [vmem:[%s217 + $0x78] sm:$0xf]
    %v6016 = vld [vmem:[%s217 + $0x7c] sm:$0xf]
    %v6017 = vld [vmem:[#allocation136] sm:$0x1]
    %v6019 = vlaneseq
    %v6020 = vshrl.u32 %v6019, 7
    %v6021 = vsub.s32 0, %v6020
    %v6022 = vrot.slane %v6017, %v6021
    %v6056 = vunpack.c.l.b16 %v5985
    %v6057 = vunpack.c.l.b16 %v5986
    %v6058 = vunpack.c.l.b16 %v5987
    %v6059 = vunpack.c.l.b16 %v5988
    %v6060 = vunpack.c.l.b16 %v5989
    %v6061 = vunpack.c.l.b16 %v5990
    %v6062 = vunpack.c.l.b16 %v5991
    %v6063 = vunpack.c.l.b16 %v5992
    %v6064 = vunpack.c.l.b16 %v5993
    %v6065 = vunpack.c.l.b16 %v5994
    %v6066 = vunpack.c.l.b16 %v5995
    %v6067 = vunpack.c.l.b16 %v5996
    %v6068 = vunpack.c.l.b16 %v5997
    %v6069 = vunpack.c.l.b16 %v5998
    %v6070 = vunpack.c.l.b16 %v5999
    %v6071 = vunpack.c.l.b16 %v6000
    %v6072 = vunpack.c.l.b16 %v6001
    %v6073 = vunpack.c.l.b16 %v6002
    %v6074 = vunpack.c.l.b16 %v6003
    %v6075 = vunpack.c.l.b16 %v6004
    %v6076 = vunpack.c.l.b16 %v6005
    %v6077 = vunpack.c.l.b16 %v6006
    %v6078 = vunpack.c.l.b16 %v6007
    %v6079 = vunpack.c.l.b16 %v6008
    %v6080 = vunpack.c.l.b16 %v6009
    %v6081 = vunpack.c.l.b16 %v6010
    %v6082 = vunpack.c.l.b16 %v6011
    %v6083 = vunpack.c.l.b16 %v6012
    %v6084 = vunpack.c.l.b16 %v6013
    %v6085 = vunpack.c.l.b16 %v6014
    %v6086 = vunpack.c.l.b16 %v6015
    %v6087 = vunpack.c.l.b16 %v6016
    %v6088 = vpack.c.b16 %v6057, %v6056
    %v6089 = vpack.c.b16 %v6059, %v6058
    %v6090 = vpack.c.b16 %v6061, %v6060
    %v6091 = vpack.c.b16 %v6063, %v6062
    %v6092 = vpack.c.b16 %v6065, %v6064
    %v6093 = vpack.c.b16 %v6067, %v6066
    %v6094 = vpack.c.b16 %v6069, %v6068
    %v6095 = vpack.c.b16 %v6071, %v6070
    %v6096 = vpack.c.b16 %v6073, %v6072
    %v6097 = vpack.c.b16 %v6075, %v6074
    %v6098 = vpack.c.b16 %v6077, %v6076
    %v6099 = vpack.c.b16 %v6079, %v6078
    %v6100 = vpack.c.b16 %v6081, %v6080
    %v6101 = vpack.c.b16 %v6083, %v6082
    %v6102 = vpack.c.b16 %v6085, %v6084
    %v6103 = vpack.c.b16 %v6087, %v6086
    %6120 = vmatprep.subr.bf16.mxu0 0
    %6121 = vmatpush1.bf16.msra.mxu0 %v6095
    %6122 = vmatprep.subr.bf16.mxu0 0
    %6123 = vmatpush1.bf16.msra.mxu0 %v6094
    %6124 = vmatprep.subr.bf16.mxu0 0
    %6125 = vmatpush1.bf16.msra.mxu0 %v6093
    %6126 = vmatprep.subr.bf16.mxu0 0
    %6127 = vmatpush1.bf16.msra.mxu0 %v6092
    %6128 = vmatprep.subr.bf16.mxu0 0
    %6129 = vmatpush1.bf16.msra.mxu0 %v6091
    %6130 = vmatprep.subr.bf16.mxu0 0
    %6131 = vmatpush1.bf16.msra.mxu0 %v6090
    %6132 = vmatprep.subr.bf16.mxu0 0
    %6133 = vmatpush1.bf16.msra.mxu0 %v6089
    %6134 = vmatprep.subr.bf16.mxu0 0
    %6135 = vmatpush1.bf16.msra.mxu0 %v6088
    %6136 = vmatprep.subr.bf16.mxu0 0
    %6137 = vmatpush2.bf16.msra.mxu0 %v6103
    %6138 = vmatprep.subr.bf16.mxu0 0
    %6139 = vmatpush2.bf16.msra.mxu0 %v6102
    %6140 = vmatprep.subr.bf16.mxu0 0
    %6141 = vmatpush2.bf16.msra.mxu0 %v6101
    %6142 = vmatprep.subr.bf16.mxu0 0
    %6143 = vmatpush2.bf16.msra.mxu0 %v6100
    %6144 = vmatprep.subr.bf16.mxu0 0
    %6145 = vmatpush2.bf16.msra.mxu0 %v6099
    %6146 = vmatprep.subr.bf16.mxu0 0
    %6147 = vmatpush2.bf16.msra.mxu0 %v6098
    %6148 = vmatprep.subr.bf16.mxu0 0
    %6149 = vmatpush2.bf16.msra.mxu0 %v6097
    %6150 = vmatprep.subr.bf16.mxu0 0
    %6151 = vmatpush2.bf16.msra.mxu0 %v6096
    %6152 = vmatprep.mubr.bf16.mxu0 %v5984
    %6153 = vmatmul.mubr.bf16.gmra.mxu0 %v5983
    %v6154 = vpop.f32.mrf.mxu0
    %v6155 = vadd.f32 %v6022, %v6154
    %v6156 = vpop.f32.mrf.mxu0
    %v6157 = vpop.f32.mrf.mxu0
    %v6158 = vpop.f32.mrf.mxu0
    %6159 = vdwg.mxu0
    %v6160 = vmax.f32 %v6155, 0.0
    %v6161 = vpack.c.bf16 %v6160, %v6160
    %v6162 = vld [vmem:[#allocation137] sm:$0xf]
    %v6163 = vld [vmem:[#allocation137 + $0x4] sm:$0xf]
    %v6164 = vld [vmem:[#allocation137 + $0x8] sm:$0xf]
    %v6165 = vld [vmem:[#allocation137 + $0xc] sm:$0xf]
    %v6166 = vld [vmem:[#allocation137 + $0x10] sm:$0xf]
    %v6167 = vld [vmem:[#allocation137 + $0x14] sm:$0xf]
    %v6168 = vld [vmem:[#allocation137 + $0x18] sm:$0xf]
    %v6169 = vld [vmem:[#allocation137 + $0x1c] sm:$0xf]
    %v6170 = vld [vmem:[#allocation137 + $0x20] sm:$0xf]
    %v6171 = vld [vmem:[#allocation137 + $0x24] sm:$0xf]
    %v6172 = vld [vmem:[#allocation137 + $0x28] sm:$0xf]
    %v6173 = vld [vmem:[#allocation137 + $0x2c] sm:$0xf]
    %v6174 = vld [vmem:[#allocation137 + $0x30] sm:$0xf]
    %v6175 = vld [vmem:[#allocation137 + $0x34] sm:$0xf]
    %v6176 = vld [vmem:[#allocation137 + $0x38] sm:$0xf]
    %v6177 = vld [vmem:[#allocation137 + $0x3c] sm:$0xf]
    %v6178 = vld [vmem:[#allocation139] sm:$0x1]
    %v6180 = vlaneseq
    %v6181 = vshrl.u32 %v6180, 7
    %v6182 = vsub.s32 0, %v6181
    %v6183 = vrot.slane %v6178, %v6182
    %v6201 = vunpack.c.l.b16 %v6162
    %v6202 = vunpack.c.l.b16 %v6163
    %v6203 = vunpack.c.l.b16 %v6164
    %v6204 = vunpack.c.l.b16 %v6165
    %v6205 = vunpack.c.l.b16 %v6166
    %v6206 = vunpack.c.l.b16 %v6167
    %v6207 = vunpack.c.l.b16 %v6168
    %v6208 = vunpack.c.l.b16 %v6169
    %v6209 = vunpack.c.l.b16 %v6170
    %v6210 = vunpack.c.l.b16 %v6171
    %v6211 = vunpack.c.l.b16 %v6172
    %v6212 = vunpack.c.l.b16 %v6173
    %v6213 = vunpack.c.l.b16 %v6174
    %v6214 = vunpack.c.l.b16 %v6175
    %v6215 = vunpack.c.l.b16 %v6176
    %v6216 = vunpack.c.l.b16 %v6177
    %v6217 = vpack.c.b16 %v6202, %v6201
    %v6218 = vpack.c.b16 %v6204, %v6203
    %v6219 = vpack.c.b16 %v6206, %v6205
    %v6220 = vpack.c.b16 %v6208, %v6207
    %v6221 = vpack.c.b16 %v6210, %v6209
    %v6222 = vpack.c.b16 %v6212, %v6211
    %v6223 = vpack.c.b16 %v6214, %v6213
    %v6224 = vpack.c.b16 %v6216, %v6215
    %6233 = vmatprep.subr.bf16.mxu0 0
    %6234 = vmatpush1.bf16.msra.mxu0 %v6224
    %6235 = vmatprep.subr.bf16.mxu0 0
    %6236 = vmatpush1.bf16.msra.mxu0 %v6223
    %6237 = vmatprep.subr.bf16.mxu0 0
    %6238 = vmatpush1.bf16.msra.mxu0 %v6222
    %6239 = vmatprep.subr.bf16.mxu0 0
    %6240 = vmatpush1.bf16.msra.mxu0 %v6221
    %6241 = vmatprep.subr.bf16.mxu0 0
    %6242 = vmatpush1.bf16.msra.mxu0 %v6220
    %6243 = vmatprep.subr.bf16.mxu0 0
    %6244 = vmatpush1.bf16.msra.mxu0 %v6219
    %6245 = vmatprep.subr.bf16.mxu0 0
    %6246 = vmatpush1.bf16.msra.mxu0 %v6218
    %6247 = vmatprep.subr.bf16.mxu0 0
    %6248 = vmatpush1.bf16.msra.mxu0 %v6217
    %6249 = vmatprep.subr.bf16.mxu0 0
    %6250 = vmatpush2.bf16.msra.mxu0 0
    %6251 = vmatprep.subr.bf16.mxu0 0
    %6252 = vmatpush2.bf16.msra.mxu0 0
    %6253 = vmatprep.subr.bf16.mxu0 0
    %6254 = vmatpush2.bf16.msra.mxu0 0
    %6255 = vmatprep.subr.bf16.mxu0 0
    %6256 = vmatpush2.bf16.msra.mxu0 0
    %6257 = vmatprep.subr.bf16.mxu0 0
    %6258 = vmatpush2.bf16.msra.mxu0 0
    %6259 = vmatprep.subr.bf16.mxu0 0
    %6260 = vmatpush2.bf16.msra.mxu0 0
    %6261 = vmatprep.subr.bf16.mxu0 0
    %6262 = vmatpush2.bf16.msra.mxu0 0
    %6263 = vmatprep.subr.bf16.mxu0 0
    %6264 = vmatpush2.bf16.msra.mxu0 0
    %6265 = vmatprep.mubr.bf16.mxu0 0
    %6266 = vmatmul.mubr.bf16.gmra.mxu0 %v6161
    %v6267 = vpop.f32.mrf.mxu0
    %v6268 = vadd.f32 %v6183, %v6267
    %v6269 = vpop.f32.mrf.mxu0
    %v6270 = vpop.f32.mrf.mxu0
    %v6271 = vpop.f32.mrf.mxu0
    %6272 = vdwg.mxu0
    %v6273 = vld [vmem:[%s225] sm:$0xf]
    %v6274 = vld [vmem:[%s225 + $0x4] sm:$0xf]
    %v6275 = vld [vmem:[%s225 + $0x8] sm:$0xf]
    %v6276 = vld [vmem:[%s225 + $0xc] sm:$0xf]
    %v6277 = vld [vmem:[%s225 + $0x10] sm:$0xf]
    %v6278 = vld [vmem:[%s225 + $0x14] sm:$0xf]
    %v6279 = vld [vmem:[%s225 + $0x18] sm:$0xf]
    %v6280 = vld [vmem:[%s225 + $0x1c] sm:$0xf]
    %v6281 = vld [vmem:[%s225 + $0x20] sm:$0xf]
    %v6282 = vld [vmem:[%s225 + $0x24] sm:$0xf]
    %v6283 = vld [vmem:[%s225 + $0x28] sm:$0xf]
    %v6284 = vld [vmem:[%s225 + $0x2c] sm:$0xf]
    %v6285 = vld [vmem:[%s225 + $0x30] sm:$0xf]
    %v6286 = vld [vmem:[%s225 + $0x34] sm:$0xf]
    %v6287 = vld [vmem:[%s225 + $0x38] sm:$0xf]
    %v6288 = vld [vmem:[%s225 + $0x3c] sm:$0xf]
    %v6289 = vld [vmem:[%s225 + $0x40] sm:$0xf]
    %v6290 = vld [vmem:[%s225 + $0x44] sm:$0xf]
    %v6291 = vld [vmem:[%s225 + $0x48] sm:$0xf]
    %v6292 = vld [vmem:[%s225 + $0x4c] sm:$0xf]
    %v6293 = vld [vmem:[%s225 + $0x50] sm:$0xf]
    %v6294 = vld [vmem:[%s225 + $0x54] sm:$0xf]
    %v6295 = vld [vmem:[%s225 + $0x58] sm:$0xf]
    %v6296 = vld [vmem:[%s225 + $0x5c] sm:$0xf]
    %v6297 = vld [vmem:[%s225 + $0x60] sm:$0xf]
    %v6298 = vld [vmem:[%s225 + $0x64] sm:$0xf]
    %v6299 = vld [vmem:[%s225 + $0x68] sm:$0xf]
    %v6300 = vld [vmem:[%s225 + $0x6c] sm:$0xf]
    %v6301 = vld [vmem:[%s225 + $0x70] sm:$0xf]
    %v6302 = vld [vmem:[%s225 + $0x74] sm:$0xf]
    %v6303 = vld [vmem:[%s225 + $0x78] sm:$0xf]
    %v6304 = vld [vmem:[%s225 + $0x7c] sm:$0xf]
    %v6305 = vld [vmem:[#allocation140] sm:$0x1]
    %v6307 = vlaneseq
    %v6308 = vshrl.u32 %v6307, 7
    %v6309 = vsub.s32 0, %v6308
    %v6310 = vrot.slane %v6305, %v6309
    %v6344 = vunpack.c.l.b16 %v6273
    %v6345 = vunpack.c.l.b16 %v6274
    %v6346 = vunpack.c.l.b16 %v6275
    %v6347 = vunpack.c.l.b16 %v6276
    %v6348 = vunpack.c.l.b16 %v6277
    %v6349 = vunpack.c.l.b16 %v6278
    %v6350 = vunpack.c.l.b16 %v6279
    %v6351 = vunpack.c.l.b16 %v6280
    %v6352 = vunpack.c.l.b16 %v6281
    %v6353 = vunpack.c.l.b16 %v6282
    %v6354 = vunpack.c.l.b16 %v6283
    %v6355 = vunpack.c.l.b16 %v6284
    %v6356 = vunpack.c.l.b16 %v6285
    %v6357 = vunpack.c.l.b16 %v6286
    %v6358 = vunpack.c.l.b16 %v6287
    %v6359 = vunpack.c.l.b16 %v6288
    %v6360 = vunpack.c.l.b16 %v6289
    %v6361 = vunpack.c.l.b16 %v6290
    %v6362 = vunpack.c.l.b16 %v6291
    %v6363 = vunpack.c.l.b16 %v6292
    %v6364 = vunpack.c.l.b16 %v6293
    %v6365 = vunpack.c.l.b16 %v6294
    %v6366 = vunpack.c.l.b16 %v6295
    %v6367 = vunpack.c.l.b16 %v6296
    %v6368 = vunpack.c.l.b16 %v6297
    %v6369 = vunpack.c.l.b16 %v6298
    %v6370 = vunpack.c.l.b16 %v6299
    %v6371 = vunpack.c.l.b16 %v6300
    %v6372 = vunpack.c.l.b16 %v6301
    %v6373 = vunpack.c.l.b16 %v6302
    %v6374 = vunpack.c.l.b16 %v6303
    %v6375 = vunpack.c.l.b16 %v6304
    %v6376 = vpack.c.b16 %v6345, %v6344
    %v6377 = vpack.c.b16 %v6347, %v6346
    %v6378 = vpack.c.b16 %v6349, %v6348
    %v6379 = vpack.c.b16 %v6351, %v6350
    %v6380 = vpack.c.b16 %v6353, %v6352
    %v6381 = vpack.c.b16 %v6355, %v6354
    %v6382 = vpack.c.b16 %v6357, %v6356
    %v6383 = vpack.c.b16 %v6359, %v6358
    %v6384 = vpack.c.b16 %v6361, %v6360
    %v6385 = vpack.c.b16 %v6363, %v6362
    %v6386 = vpack.c.b16 %v6365, %v6364
    %v6387 = vpack.c.b16 %v6367, %v6366
    %v6388 = vpack.c.b16 %v6369, %v6368
    %v6389 = vpack.c.b16 %v6371, %v6370
    %v6390 = vpack.c.b16 %v6373, %v6372
    %v6391 = vpack.c.b16 %v6375, %v6374
    %6408 = vmatprep.subr.bf16.mxu0 0
    %6409 = vmatpush1.bf16.msra.mxu0 %v6383
    %6410 = vmatprep.subr.bf16.mxu0 0
    %6411 = vmatpush1.bf16.msra.mxu0 %v6382
    %6412 = vmatprep.subr.bf16.mxu0 0
    %6413 = vmatpush1.bf16.msra.mxu0 %v6381
    %6414 = vmatprep.subr.bf16.mxu0 0
    %6415 = vmatpush1.bf16.msra.mxu0 %v6380
    %6416 = vmatprep.subr.bf16.mxu0 0
    %6417 = vmatpush1.bf16.msra.mxu0 %v6379
    %6418 = vmatprep.subr.bf16.mxu0 0
    %6419 = vmatpush1.bf16.msra.mxu0 %v6378
    %6420 = vmatprep.subr.bf16.mxu0 0
    %6421 = vmatpush1.bf16.msra.mxu0 %v6377
    %6422 = vmatprep.subr.bf16.mxu0 0
    %6423 = vmatpush1.bf16.msra.mxu0 %v6376
    %6424 = vmatprep.subr.bf16.mxu0 0
    %6425 = vmatpush2.bf16.msra.mxu0 %v6391
    %6426 = vmatprep.subr.bf16.mxu0 0
    %6427 = vmatpush2.bf16.msra.mxu0 %v6390
    %6428 = vmatprep.subr.bf16.mxu0 0
    %6429 = vmatpush2.bf16.msra.mxu0 %v6389
    %6430 = vmatprep.subr.bf16.mxu0 0
    %6431 = vmatpush2.bf16.msra.mxu0 %v6388
    %6432 = vmatprep.subr.bf16.mxu0 0
    %6433 = vmatpush2.bf16.msra.mxu0 %v6387
    %6434 = vmatprep.subr.bf16.mxu0 0
    %6435 = vmatpush2.bf16.msra.mxu0 %v6386
    %6436 = vmatprep.subr.bf16.mxu0 0
    %6437 = vmatpush2.bf16.msra.mxu0 %v6385
    %6438 = vmatprep.subr.bf16.mxu0 0
    %6439 = vmatpush2.bf16.msra.mxu0 %v6384
    %6440 = vmatprep.mubr.bf16.mxu0 %v5984
    %6441 = vmatmul.mubr.bf16.gmra.mxu0 %v5983
    %v6442 = vpop.f32.mrf.mxu0
    %v6443 = vadd.f32 %v6310, %v6442
    %v6444 = vpop.f32.mrf.mxu0
    %v6445 = vpop.f32.mrf.mxu0
    %v6446 = vpop.f32.mrf.mxu0
    %6447 = vdwg.mxu0
    %v6448 = vadd.f32 %v6268, %v6443
    %v6449 = vpack.c.bf16 %v6448, %v6448
    %v6450 = vld [vmem:[#allocation142] sm:$0xf]
    %v6451 = vld [vmem:[#allocation142 + $0x4] sm:$0xf]
    %v6452 = vld [vmem:[#allocation142 + $0x8] sm:$0xf]
    %v6453 = vld [vmem:[#allocation142 + $0xc] sm:$0xf]
    %v6454 = vld [vmem:[#allocation142 + $0x10] sm:$0xf]
    %v6455 = vld [vmem:[#allocation142 + $0x14] sm:$0xf]
    %v6456 = vld [vmem:[#allocation142 + $0x18] sm:$0xf]
    %v6457 = vld [vmem:[#allocation142 + $0x1c] sm:$0xf]
    %v6458 = vld [vmem:[#allocation142 + $0x20] sm:$0xf]
    %v6459 = vld [vmem:[#allocation142 + $0x24] sm:$0xf]
    %v6460 = vld [vmem:[#allocation142 + $0x28] sm:$0xf]
    %v6461 = vld [vmem:[#allocation142 + $0x2c] sm:$0xf]
    %v6462 = vld [vmem:[#allocation142 + $0x30] sm:$0xf]
    %v6463 = vld [vmem:[#allocation142 + $0x34] sm:$0xf]
    %v6464 = vld [vmem:[#allocation142 + $0x38] sm:$0xf]
    %v6465 = vld [vmem:[#allocation142 + $0x3c] sm:$0xf]
    %v6466 = vld [vmem:[#allocation143] sm:$0x1]
    %v6468 = vlaneseq
    %v6469 = vshrl.u32 %v6468, 7
    %v6470 = vsub.s32 0, %v6469
    %v6471 = vrot.slane %v6466, %v6470
    %v6489 = vunpack.c.l.b16 %v6450
    %v6490 = vunpack.c.l.b16 %v6451
    %v6491 = vunpack.c.l.b16 %v6452
    %v6492 = vunpack.c.l.b16 %v6453
    %v6493 = vunpack.c.l.b16 %v6454
    %v6494 = vunpack.c.l.b16 %v6455
    %v6495 = vunpack.c.l.b16 %v6456
    %v6496 = vunpack.c.l.b16 %v6457
    %v6497 = vunpack.c.l.b16 %v6458
    %v6498 = vunpack.c.l.b16 %v6459
    %v6499 = vunpack.c.l.b16 %v6460
    %v6500 = vunpack.c.l.b16 %v6461
    %v6501 = vunpack.c.l.b16 %v6462
    %v6502 = vunpack.c.l.b16 %v6463
    %v6503 = vunpack.c.l.b16 %v6464
    %v6504 = vunpack.c.l.b16 %v6465
    %v6505 = vpack.c.b16 %v6490, %v6489
    %v6506 = vpack.c.b16 %v6492, %v6491
    %v6507 = vpack.c.b16 %v6494, %v6493
    %v6508 = vpack.c.b16 %v6496, %v6495
    %v6509 = vpack.c.b16 %v6498, %v6497
    %v6510 = vpack.c.b16 %v6500, %v6499
    %v6511 = vpack.c.b16 %v6502, %v6501
    %v6512 = vpack.c.b16 %v6504, %v6503
    %6521 = vmatprep.subr.bf16.mxu0 0
    %6522 = vmatpush1.bf16.msra.mxu0 %v6512
    %6523 = vmatprep.subr.bf16.mxu0 0
    %6524 = vmatpush1.bf16.msra.mxu0 %v6511
    %6525 = vmatprep.subr.bf16.mxu0 0
    %6526 = vmatpush1.bf16.msra.mxu0 %v6510
    %6527 = vmatprep.subr.bf16.mxu0 0
    %6528 = vmatpush1.bf16.msra.mxu0 %v6509
    %6529 = vmatprep.subr.bf16.mxu0 0
    %6530 = vmatpush1.bf16.msra.mxu0 %v6508
    %6531 = vmatprep.subr.bf16.mxu0 0
    %6532 = vmatpush1.bf16.msra.mxu0 %v6507
    %6533 = vmatprep.subr.bf16.mxu0 0
    %6534 = vmatpush1.bf16.msra.mxu0 %v6506
    %6535 = vmatprep.subr.bf16.mxu0 0
    %6536 = vmatpush1.bf16.msra.mxu0 %v6505
    %6537 = vmatprep.subr.bf16.mxu0 0
    %6538 = vmatpush2.bf16.msra.mxu0 0
    %6539 = vmatprep.subr.bf16.mxu0 0
    %6540 = vmatpush2.bf16.msra.mxu0 0
    %6541 = vmatprep.subr.bf16.mxu0 0
    %6542 = vmatpush2.bf16.msra.mxu0 0
    %6543 = vmatprep.subr.bf16.mxu0 0
    %6544 = vmatpush2.bf16.msra.mxu0 0
    %6545 = vmatprep.subr.bf16.mxu0 0
    %6546 = vmatpush2.bf16.msra.mxu0 0
    %6547 = vmatprep.subr.bf16.mxu0 0
    %6548 = vmatpush2.bf16.msra.mxu0 0
    %6549 = vmatprep.subr.bf16.mxu0 0
    %6550 = vmatpush2.bf16.msra.mxu0 0
    %6551 = vmatprep.subr.bf16.mxu0 0
    %6552 = vmatpush2.bf16.msra.mxu0 0
    %6553 = vmatprep.mubr.bf16.mxu0 0
    %6554 = vmatmul.mubr.bf16.gmra.mxu0 %v6449
    %v6555 = vpop.f32.mrf.mxu0
    %v6556 = vadd.f32 %v6471, %v6555
    %v6557 = vpop.f32.mrf.mxu0
    %v6558 = vpop.f32.mrf.mxu0
    %v6559 = vpop.f32.mrf.mxu0
    %6560 = vdwg.mxu0
    %v6561 = vmax.f32 %v6556, 0.0
    %v6562 = vpack.c.bf16 %v6561, %v6561
    %v6563 = vld [vmem:[#allocation145] sm:$0xf]
    %v6564 = vld [vmem:[#allocation145 + $0x4] sm:$0xf]
    %v6565 = vld [vmem:[#allocation145 + $0x8] sm:$0xf]
    %v6566 = vld [vmem:[#allocation145 + $0xc] sm:$0xf]
    %v6567 = vld [vmem:[#allocation145 + $0x10] sm:$0xf]
    %v6568 = vld [vmem:[#allocation145 + $0x14] sm:$0xf]
    %v6569 = vld [vmem:[#allocation145 + $0x18] sm:$0xf]
    %v6570 = vld [vmem:[#allocation145 + $0x1c] sm:$0xf]
    %v6571 = vld [vmem:[#allocation146] sm:$0x1]
    %v6573 = vlaneseq
    %v6574 = vshrl.u32 %v6573, 7
    %v6575 = vsub.s32 0, %v6574
    %v6576 = vrot.slane %v6571, %v6575
    %v6586 = vunpack.c.l.b16 %v6563
    %v6587 = vunpack.c.l.b16 %v6564
    %v6588 = vunpack.c.l.b16 %v6565
    %v6589 = vunpack.c.l.b16 %v6566
    %v6590 = vunpack.c.l.b16 %v6567
    %v6591 = vunpack.c.l.b16 %v6568
    %v6592 = vunpack.c.l.b16 %v6569
    %v6593 = vunpack.c.l.b16 %v6570
    %v6594 = vpack.c.b16 %v6587, %v6586
    %v6595 = vpack.c.b16 %v6589, %v6588
    %v6596 = vpack.c.b16 %v6591, %v6590
    %v6597 = vpack.c.b16 %v6593, %v6592
    %v6603 = vsel %vm3033, %v6562, 0
    %6605 = vmatprep.subr.bf16.mxu0 0
    %6606 = vmatpush1.bf16.msra.mxu0 0
    %6607 = vmatprep.subr.bf16.mxu0 0
    %6608 = vmatpush1.bf16.msra.mxu0 0
    %6609 = vmatprep.subr.bf16.mxu0 0
    %6610 = vmatpush1.bf16.msra.mxu0 0
    %6611 = vmatprep.subr.bf16.mxu0 0
    %6612 = vmatpush1.bf16.msra.mxu0 0
    %6613 = vmatprep.subr.bf16.mxu0 0
    %6614 = vmatpush1.bf16.msra.mxu0 %v6597
    %6615 = vmatprep.subr.bf16.mxu0 0
    %6616 = vmatpush1.bf16.msra.mxu0 %v6596
    %6617 = vmatprep.subr.bf16.mxu0 0
    %6618 = vmatpush1.bf16.msra.mxu0 %v6595
    %6619 = vmatprep.subr.bf16.mxu0 0
    %6620 = vmatpush1.bf16.msra.mxu0 %v6594
    %6621 = vmatprep.subr.bf16.mxu0 0
    %6622 = vmatpush2.bf16.msra.mxu0 0
    %6623 = vmatprep.subr.bf16.mxu0 0
    %6624 = vmatpush2.bf16.msra.mxu0 0
    %6625 = vmatprep.subr.bf16.mxu0 0
    %6626 = vmatpush2.bf16.msra.mxu0 0
    %6627 = vmatprep.subr.bf16.mxu0 0
    %6628 = vmatpush2.bf16.msra.mxu0 0
    %6629 = vmatprep.subr.bf16.mxu0 0
    %6630 = vmatpush2.bf16.msra.mxu0 0
    %6631 = vmatprep.subr.bf16.mxu0 0
    %6632 = vmatpush2.bf16.msra.mxu0 0
    %6633 = vmatprep.subr.bf16.mxu0 0
    %6634 = vmatpush2.bf16.msra.mxu0 0
    %6635 = vmatprep.subr.bf16.mxu0 0
    %6636 = vmatpush2.bf16.msra.mxu0 0
    %6637 = vmatprep.mubr.bf16.mxu0 0
    %6638 = vmatmul.mubr.bf16.gmra.mxu0 %v6603
    %v6639 = vpop.f32.mrf.mxu0
    %v6640 = vadd.f32 %v6576, %v6639
    %v6641 = vpop.f32.mrf.mxu0
    %v6642 = vpop.f32.mrf.mxu0
    %v6643 = vpop.f32.mrf.mxu0
    %6644 = vdwg.mxu0
    %v6645 = vld [vmem:[#allocation148] sm:$0xf]
    %v6646 = vld [vmem:[#allocation148 + $0x4] sm:$0xf]
    %v6647 = vld [vmem:[#allocation148 + $0x8] sm:$0xf]
    %v6648 = vld [vmem:[#allocation148 + $0xc] sm:$0xf]
    %v6649 = vld [vmem:[#allocation148 + $0x10] sm:$0xf]
    %v6650 = vld [vmem:[#allocation148 + $0x14] sm:$0xf]
    %v6651 = vld [vmem:[#allocation148 + $0x18] sm:$0xf]
    %v6652 = vld [vmem:[#allocation148 + $0x1c] sm:$0xf]
    %v6653 = vld [vmem:[#allocation148 + $0x20] sm:$0xf]
    %v6654 = vld [vmem:[#allocation148 + $0x24] sm:$0xf]
    %v6655 = vld [vmem:[#allocation148 + $0x28] sm:$0xf]
    %v6656 = vld [vmem:[#allocation148 + $0x2c] sm:$0xf]
    %v6657 = vld [vmem:[#allocation148 + $0x30] sm:$0xf]
    %v6658 = vld [vmem:[#allocation148 + $0x34] sm:$0xf]
    %v6659 = vld [vmem:[#allocation148 + $0x38] sm:$0xf]
    %v6660 = vld [vmem:[#allocation148 + $0x3c] sm:$0xf]
    %v6661 = vld [vmem:[#allocation149] sm:$0x1]
    %v6663 = vlaneseq
    %v6664 = vshrl.u32 %v6663, 7
    %v6665 = vsub.s32 0, %v6664
    %v6666 = vrot.slane %v6661, %v6665
    %v6684 = vunpack.c.l.b16 %v6645
    %v6685 = vunpack.c.l.b16 %v6646
    %v6686 = vunpack.c.l.b16 %v6647
    %v6687 = vunpack.c.l.b16 %v6648
    %v6688 = vunpack.c.l.b16 %v6649
    %v6689 = vunpack.c.l.b16 %v6650
    %v6690 = vunpack.c.l.b16 %v6651
    %v6691 = vunpack.c.l.b16 %v6652
    %v6692 = vunpack.c.l.b16 %v6653
    %v6693 = vunpack.c.l.b16 %v6654
    %v6694 = vunpack.c.l.b16 %v6655
    %v6695 = vunpack.c.l.b16 %v6656
    %v6696 = vunpack.c.l.b16 %v6657
    %v6697 = vunpack.c.l.b16 %v6658
    %v6698 = vunpack.c.l.b16 %v6659
    %v6699 = vunpack.c.l.b16 %v6660
    %v6700 = vpack.c.b16 %v6685, %v6684
    %v6701 = vpack.c.b16 %v6687, %v6686
    %v6702 = vpack.c.b16 %v6689, %v6688
    %v6703 = vpack.c.b16 %v6691, %v6690
    %v6704 = vpack.c.b16 %v6693, %v6692
    %v6705 = vpack.c.b16 %v6695, %v6694
    %v6706 = vpack.c.b16 %v6697, %v6696
    %v6707 = vpack.c.b16 %v6699, %v6698
    %6716 = vmatprep.subr.bf16.mxu0 0
    %6717 = vmatpush1.bf16.msra.mxu0 %v6707
    %6718 = vmatprep.subr.bf16.mxu0 0
    %6719 = vmatpush1.bf16.msra.mxu0 %v6706
    %6720 = vmatprep.subr.bf16.mxu0 0
    %6721 = vmatpush1.bf16.msra.mxu0 %v6705
    %6722 = vmatprep.subr.bf16.mxu0 0
    %6723 = vmatpush1.bf16.msra.mxu0 %v6704
    %6724 = vmatprep.subr.bf16.mxu0 0
    %6725 = vmatpush1.bf16.msra.mxu0 %v6703
    %6726 = vmatprep.subr.bf16.mxu0 0
    %6727 = vmatpush1.bf16.msra.mxu0 %v6702
    %6728 = vmatprep.subr.bf16.mxu0 0
    %6729 = vmatpush1.bf16.msra.mxu0 %v6701
    %6730 = vmatprep.subr.bf16.mxu0 0
    %6731 = vmatpush1.bf16.msra.mxu0 %v6700
    %6732 = vmatprep.subr.bf16.mxu0 0
    %6733 = vmatpush2.bf16.msra.mxu0 0
    %6734 = vmatprep.subr.bf16.mxu0 0
    %6735 = vmatpush2.bf16.msra.mxu0 0
    %6736 = vmatprep.subr.bf16.mxu0 0
    %6737 = vmatpush2.bf16.msra.mxu0 0
    %6738 = vmatprep.subr.bf16.mxu0 0
    %6739 = vmatpush2.bf16.msra.mxu0 0
    %6740 = vmatprep.subr.bf16.mxu0 0
    %6741 = vmatpush2.bf16.msra.mxu0 0
    %6742 = vmatprep.subr.bf16.mxu0 0
    %6743 = vmatpush2.bf16.msra.mxu0 0
    %6744 = vmatprep.subr.bf16.mxu0 0
    %6745 = vmatpush2.bf16.msra.mxu0 0
    %6746 = vmatprep.subr.bf16.mxu0 0
    %6747 = vmatpush2.bf16.msra.mxu0 0
    %6748 = vmatprep.mubr.bf16.mxu0 0
    %6749 = vmatmul.mubr.bf16.gmra.mxu0 %v6449
    %v6750 = vpop.f32.mrf.mxu0
    %v6751 = vadd.f32 %v6666, %v6750
    %v6752 = vpop.f32.mrf.mxu0
    %v6753 = vpop.f32.mrf.mxu0
    %v6754 = vpop.f32.mrf.mxu0
    %6755 = vdwg.mxu0
    %v6756 = vadd.f32 %v6640, %v6751
    %v6757 = vpack.c.bf16 %v6756, %v6756
    %v6758 = vld [vmem:[#allocation151] sm:$0xf]
    %v6759 = vld [vmem:[#allocation151 + $0x4] sm:$0xf]
    %v6760 = vld [vmem:[#allocation151 + $0x8] sm:$0xf]
    %v6761 = vld [vmem:[#allocation151 + $0xc] sm:$0xf]
    %v6762 = vld [vmem:[#allocation151 + $0x10] sm:$0xf]
    %v6763 = vld [vmem:[#allocation151 + $0x14] sm:$0xf]
    %v6764 = vld [vmem:[#allocation151 + $0x18] sm:$0xf]
    %v6765 = vld [vmem:[#allocation151 + $0x1c] sm:$0xf]
    %v6766 = vld [vmem:[#allocation152] sm:$0x1]
    %v6768 = vlaneseq
    %v6769 = vshrl.u32 %v6768, 7
    %v6770 = vsub.s32 0, %v6769
    %v6771 = vrot.slane %v6766, %v6770
    %v6781 = vunpack.c.l.b16 %v6758
    %v6782 = vunpack.c.l.b16 %v6759
    %v6783 = vunpack.c.l.b16 %v6760
    %v6784 = vunpack.c.l.b16 %v6761
    %v6785 = vunpack.c.l.b16 %v6762
    %v6786 = vunpack.c.l.b16 %v6763
    %v6787 = vunpack.c.l.b16 %v6764
    %v6788 = vunpack.c.l.b16 %v6765
    %v6789 = vpack.c.b16 %v6782, %v6781
    %v6790 = vpack.c.b16 %v6784, %v6783
    %v6791 = vpack.c.b16 %v6786, %v6785
    %v6792 = vpack.c.b16 %v6788, %v6787
    %v6798 = vsel %vm3033, %v6757, 0
    %6800 = vmatprep.subr.bf16.mxu0 0
    %6801 = vmatpush1.bf16.msra.mxu0 0
    %6802 = vmatprep.subr.bf16.mxu0 0
    %6803 = vmatpush1.bf16.msra.mxu0 0
    %6804 = vmatprep.subr.bf16.mxu0 0
    %6805 = vmatpush1.bf16.msra.mxu0 0
    %6806 = vmatprep.subr.bf16.mxu0 0
    %6807 = vmatpush1.bf16.msra.mxu0 0
    %6808 = vmatprep.subr.bf16.mxu0 0
    %6809 = vmatpush1.bf16.msra.mxu0 %v6792
    %6810 = vmatprep.subr.bf16.mxu0 0
    %6811 = vmatpush1.bf16.msra.mxu0 %v6791
    %6812 = vmatprep.subr.bf16.mxu0 0
    %6813 = vmatpush1.bf16.msra.mxu0 %v6790
    %6814 = vmatprep.subr.bf16.mxu0 0
    %6815 = vmatpush1.bf16.msra.mxu0 %v6789
    %6816 = vmatprep.subr.bf16.mxu0 0
    %6817 = vmatpush2.bf16.msra.mxu0 0
    %6818 = vmatprep.subr.bf16.mxu0 0
    %6819 = vmatpush2.bf16.msra.mxu0 0
    %6820 = vmatprep.subr.bf16.mxu0 0
    %6821 = vmatpush2.bf16.msra.mxu0 0
    %6822 = vmatprep.subr.bf16.mxu0 0
    %6823 = vmatpush2.bf16.msra.mxu0 0
    %6824 = vmatprep.subr.bf16.mxu0 0
    %6825 = vmatpush2.bf16.msra.mxu0 0
    %6826 = vmatprep.subr.bf16.mxu0 0
    %6827 = vmatpush2.bf16.msra.mxu0 0
    %6828 = vmatprep.subr.bf16.mxu0 0
    %6829 = vmatpush2.bf16.msra.mxu0 0
    %6830 = vmatprep.subr.bf16.mxu0 0
    %6831 = vmatpush2.bf16.msra.mxu0 0
    %6832 = vmatprep.mubr.bf16.mxu0 0
    %6833 = vmatmul.mubr.bf16.gmra.mxu0 %v6798
    %v6834 = vpop.f32.mrf.mxu0
    %v6835 = vadd.f32 %v6771, %v6834
    %v6836 = vpop.f32.mrf.mxu0
    %v6837 = vpop.f32.mrf.mxu0
    %v6838 = vpop.f32.mrf.mxu0
    %6839 = vdwg.mxu0
    %v6840 = vmax.f32 %v6835, 0.0
    %v6841 = vpack.c.bf16 %v6840, %v6840
    %v6842 = vld [vmem:[#allocation153] sm:$0xf]
    %v6843 = vld [vmem:[#allocation153 + $0x4] sm:$0xf]
    %v6844 = vld [vmem:[#allocation153 + $0x8] sm:$0xf]
    %v6845 = vld [vmem:[#allocation153 + $0xc] sm:$0xf]
    %v6846 = vld [vmem:[#allocation153 + $0x10] sm:$0xf]
    %v6847 = vld [vmem:[#allocation153 + $0x14] sm:$0xf]
    %v6848 = vld [vmem:[#allocation153 + $0x18] sm:$0xf]
    %v6849 = vld [vmem:[#allocation153 + $0x1c] sm:$0xf]
    %v6850 = vld [vmem:[#allocation153 + $0x20] sm:$0xf]
    %v6851 = vld [vmem:[#allocation153 + $0x24] sm:$0xf]
    %v6852 = vld [vmem:[#allocation153 + $0x28] sm:$0xf]
    %v6853 = vld [vmem:[#allocation153 + $0x2c] sm:$0xf]
    %v6854 = vld [vmem:[#allocation154] sm:$0x1]
    %v6856 = vlaneseq
    %v6857 = vshrl.u32 %v6856, 7
    %v6858 = vsub.s32 0, %v6857
    %v6859 = vrot.slane %v6854, %v6858
    %v6873 = vunpack.c.l.b16 %v6842
    %v6874 = vunpack.c.l.b16 %v6843
    %v6875 = vunpack.c.l.b16 %v6844
    %v6876 = vunpack.c.l.b16 %v6845
    %v6877 = vunpack.c.l.b16 %v6846
    %v6878 = vunpack.c.l.b16 %v6847
    %v6879 = vunpack.c.l.b16 %v6848
    %v6880 = vunpack.c.l.b16 %v6849
    %v6881 = vunpack.c.l.b16 %v6850
    %v6882 = vunpack.c.l.b16 %v6851
    %v6883 = vunpack.c.l.b16 %v6852
    %v6884 = vunpack.c.l.b16 %v6853
    %v6885 = vpack.c.b16 %v6874, %v6873
    %v6886 = vpack.c.b16 %v6876, %v6875
    %v6887 = vpack.c.b16 %v6878, %v6877
    %v6888 = vpack.c.b16 %v6880, %v6879
    %v6889 = vpack.c.b16 %v6882, %v6881
    %v6890 = vpack.c.b16 %v6884, %v6883
    %vm6897 = vcmask 785408
    %v6899 = vsel %vm6897, %v6841, 0
    %6901 = vmatprep.subr.bf16.mxu0 0
    %6902 = vmatpush1.bf16.msra.mxu0 0
    %6903 = vmatprep.subr.bf16.mxu0 0
    %6904 = vmatpush1.bf16.msra.mxu0 0
    %6905 = vmatprep.subr.bf16.mxu0 0
    %6906 = vmatpush1.bf16.msra.mxu0 %v6890
    %6907 = vmatprep.subr.bf16.mxu0 0
    %6908 = vmatpush1.bf16.msra.mxu0 %v6889
    %6909 = vmatprep.subr.bf16.mxu0 0
    %6910 = vmatpush1.bf16.msra.mxu0 %v6888
    %6911 = vmatprep.subr.bf16.mxu0 0
    %6912 = vmatpush1.bf16.msra.mxu0 %v6887
    %6913 = vmatprep.subr.bf16.mxu0 0
    %6914 = vmatpush1.bf16.msra.mxu0 %v6886
    %6915 = vmatprep.subr.bf16.mxu0 0
    %6916 = vmatpush1.bf16.msra.mxu0 %v6885
    %6917 = vmatprep.subr.bf16.mxu0 0
    %6918 = vmatpush2.bf16.msra.mxu0 0
    %6919 = vmatprep.subr.bf16.mxu0 0
    %6920 = vmatpush2.bf16.msra.mxu0 0
    %6921 = vmatprep.subr.bf16.mxu0 0
    %6922 = vmatpush2.bf16.msra.mxu0 0
    %6923 = vmatprep.subr.bf16.mxu0 0
    %6924 = vmatpush2.bf16.msra.mxu0 0
    %6925 = vmatprep.subr.bf16.mxu0 0
    %6926 = vmatpush2.bf16.msra.mxu0 0
    %6927 = vmatprep.subr.bf16.mxu0 0
    %6928 = vmatpush2.bf16.msra.mxu0 0
    %6929 = vmatprep.subr.bf16.mxu0 0
    %6930 = vmatpush2.bf16.msra.mxu0 0
    %6931 = vmatprep.subr.bf16.mxu0 0
    %6932 = vmatpush2.bf16.msra.mxu0 0
    %6933 = vmatprep.mubr.bf16.mxu0 0
    %6934 = vmatmul.mubr.bf16.gmra.mxu0 %v6899
    %v6935 = vpop.f32.mrf.mxu0
    %v6936 = vadd.f32 %v6859, %v6935
    %v6937 = vpop.f32.mrf.mxu0
    %v6938 = vpop.f32.mrf.mxu0
    %v6939 = vpop.f32.mrf.mxu0
    %6940 = vdwg.mxu0
    %v6941 = vld [vmem:[#allocation155] sm:$0xf]
    %v6942 = vld [vmem:[#allocation155 + $0x4] sm:$0xf]
    %v6943 = vld [vmem:[#allocation155 + $0x8] sm:$0xf]
    %v6944 = vld [vmem:[#allocation155 + $0xc] sm:$0xf]
    %v6945 = vld [vmem:[#allocation155 + $0x10] sm:$0xf]
    %v6946 = vld [vmem:[#allocation155 + $0x14] sm:$0xf]
    %v6947 = vld [vmem:[#allocation155 + $0x18] sm:$0xf]
    %v6948 = vld [vmem:[#allocation155 + $0x1c] sm:$0xf]
    %v6949 = vld [vmem:[#allocation156] sm:$0x1]
    %v6951 = vlaneseq
    %v6952 = vshrl.u32 %v6951, 7
    %v6953 = vsub.s32 0, %v6952
    %v6954 = vrot.slane %v6949, %v6953
    %v6964 = vunpack.c.l.b16 %v6941
    %v6965 = vunpack.c.l.b16 %v6942
    %v6966 = vunpack.c.l.b16 %v6943
    %v6967 = vunpack.c.l.b16 %v6944
    %v6968 = vunpack.c.l.b16 %v6945
    %v6969 = vunpack.c.l.b16 %v6946
    %v6970 = vunpack.c.l.b16 %v6947
    %v6971 = vunpack.c.l.b16 %v6948
    %v6972 = vpack.c.b16 %v6965, %v6964
    %v6973 = vpack.c.b16 %v6967, %v6966
    %v6974 = vpack.c.b16 %v6969, %v6968
    %v6975 = vpack.c.b16 %v6971, %v6970
    %6980 = vmatprep.subr.bf16.mxu0 0
    %6981 = vmatpush1.bf16.msra.mxu0 0
    %6982 = vmatprep.subr.bf16.mxu0 0
    %6983 = vmatpush1.bf16.msra.mxu0 0
    %6984 = vmatprep.subr.bf16.mxu0 0
    %6985 = vmatpush1.bf16.msra.mxu0 0
    %6986 = vmatprep.subr.bf16.mxu0 0
    %6987 = vmatpush1.bf16.msra.mxu0 0
    %6988 = vmatprep.subr.bf16.mxu0 0
    %6989 = vmatpush1.bf16.msra.mxu0 %v6975
    %6990 = vmatprep.subr.bf16.mxu0 0
    %6991 = vmatpush1.bf16.msra.mxu0 %v6974
    %6992 = vmatprep.subr.bf16.mxu0 0
    %6993 = vmatpush1.bf16.msra.mxu0 %v6973
    %6994 = vmatprep.subr.bf16.mxu0 0
    %6995 = vmatpush1.bf16.msra.mxu0 %v6972
    %6996 = vmatprep.subr.bf16.mxu0 0
    %6997 = vmatpush2.bf16.msra.mxu0 0
    %6998 = vmatprep.subr.bf16.mxu0 0
    %6999 = vmatpush2.bf16.msra.mxu0 0
    %7000 = vmatprep.subr.bf16.mxu0 0
    %7001 = vmatpush2.bf16.msra.mxu0 0
    %7002 = vmatprep.subr.bf16.mxu0 0
    %7003 = vmatpush2.bf16.msra.mxu0 0
    %7004 = vmatprep.subr.bf16.mxu0 0
    %7005 = vmatpush2.bf16.msra.mxu0 0
    %7006 = vmatprep.subr.bf16.mxu0 0
    %7007 = vmatpush2.bf16.msra.mxu0 0
    %7008 = vmatprep.subr.bf16.mxu0 0
    %7009 = vmatpush2.bf16.msra.mxu0 0
    %7010 = vmatprep.subr.bf16.mxu0 0
    %7011 = vmatpush2.bf16.msra.mxu0 0
    %7012 = vmatprep.mubr.bf16.mxu0 0
    %7013 = vmatmul.mubr.bf16.gmra.mxu0 %v6798
    %v7014 = vpop.f32.mrf.mxu0
    %v7015 = vadd.f32 %v6954, %v7014
    %v7016 = vpop.f32.mrf.mxu0
    %v7017 = vpop.f32.mrf.mxu0
    %v7018 = vpop.f32.mrf.mxu0
    %7019 = vdwg.mxu0
    %v7020 = vadd.f32 %v6936, %v7015
    %v7021 = vld [vmem:[%s27] sm:$0xf]
    %v7022 = vld [vmem:[%s27 + $0x4] sm:$0xf]
    %v7023 = vpack.c.bf16 %v7020, %v7020
    %v7026 = vunpack.c.l.b16 %v7021
    %v7027 = vunpack.c.l.b16 %v7022
    %v7028 = vpack.c.b16 %v7027, %v7026
    %vm7029 = vcmask 15360
    %v7031 = vsel %vm7029, %v7028, 0
    %v7034 = vsel %vm2441, %v7023, 0
    %7036 = vmatprep.subr.bf16.mxu0 0
    %7037 = vmatpush1.bf16.msra.mxu0 0
    %7038 = vmatprep.subr.bf16.mxu0 0
    %7039 = vmatpush1.bf16.msra.mxu0 0
    %7040 = vmatprep.subr.bf16.mxu0 0
    %7041 = vmatpush1.bf16.msra.mxu0 0
    %7042 = vmatprep.subr.bf16.mxu0 0
    %7043 = vmatpush1.bf16.msra.mxu0 0
    %7044 = vmatprep.subr.bf16.mxu0 0
    %7045 = vmatpush1.bf16.msra.mxu0 0
    %7046 = vmatprep.subr.bf16.mxu0 0
    %7047 = vmatpush1.bf16.msra.mxu0 0
    %7048 = vmatprep.subr.bf16.mxu0 0
    %7049 = vmatpush1.bf16.msra.mxu0 0
    %7050 = vmatprep.subr.bf16.mxu0 0
    %7051 = vmatpush1.bf16.msra.mxu0 %v7034
    %7052 = vmatprep.subr.bf16.mxu0 0
    %7053 = vmatpush2.bf16.msra.mxu0 0
    %7054 = vmatprep.subr.bf16.mxu0 0
    %7055 = vmatpush2.bf16.msra.mxu0 0
    %7056 = vmatprep.subr.bf16.mxu0 0
    %7057 = vmatpush2.bf16.msra.mxu0 0
    %7058 = vmatprep.subr.bf16.mxu0 0
    %7059 = vmatpush2.bf16.msra.mxu0 0
    %7060 = vmatprep.subr.bf16.mxu0 0
    %7061 = vmatpush2.bf16.msra.mxu0 0
    %7062 = vmatprep.subr.bf16.mxu0 0
    %7063 = vmatpush2.bf16.msra.mxu0 0
    %7064 = vmatprep.subr.bf16.mxu0 0
    %7065 = vmatpush2.bf16.msra.mxu0 0
    %7066 = vmatprep.subr.bf16.mxu0 0
    %7067 = vmatpush2.bf16.msra.mxu0 0
    %7068 = vmatprep.mubr.bf16.mxu0 0
    %7069 = vmatmul.mubr.bf16.gmra.mxu0 %v7031
    %v7070 = vpop.f32.mrf.mxu0
    %v7071 = vadd.f32 0.0, %v7070
    %v7072 = vpop.f32.mrf.mxu0
    %v7073 = vpop.f32.mrf.mxu0
    %v7074 = vadd.f32 0.0, %v7073
    %v7075 = vpop.f32.mrf.mxu0
    %7076 = vdwg.mxu0
    %v7077 = vpack.c.bf16 %v7074, %v7071
    %v7078 = vld [vmem:[%s15] sm:$0xf]
    %v7079 = vld [vmem:[%s15 + $0x4] sm:$0xf]
    %v7080 = vld [vmem:[%s15 + $0x8] sm:$0xf]
    %v7081 = vld [vmem:[%s15 + $0xc] sm:$0xf]
    %v7082 = vld [vmem:[%s15 + $0x10] sm:$0xf]
    %v7083 = vld [vmem:[%s15 + $0x14] sm:$0xf]
    %v7084 = vld [vmem:[%s15 + $0x18] sm:$0xf]
    %v7085 = vld [vmem:[%s15 + $0x1c] sm:$0xf]
    %v7086 = vld [vmem:[%s15 + $0x20] sm:$0xf]
    %v7087 = vld [vmem:[%s15 + $0x24] sm:$0xf]
    %v7088 = vld [vmem:[%s15 + $0x28] sm:$0xf]
    %v7089 = vld [vmem:[%s15 + $0x2c] sm:$0xf]
    %v7090 = vld [vmem:[%s13] sm:$0xf]
    %v7091 = vld [vmem:[%s13 + $0x4] sm:$0xf]
    %v7092 = vld [vmem:[%s13 + $0x8] sm:$0xf]
    %v7093 = vld [vmem:[%s13 + $0xc] sm:$0xf]
    %v7098 = vunpack.c.l.b16 %v7090
    %v7099 = vunpack.c.l.b16 %v7091
    %v7100 = vunpack.c.l.b16 %v7092
    %v7101 = vunpack.c.l.b16 %v7093
    %v7102 = vpack.c.b16 %v7099, %v7098
    %v7103 = vpack.c.b16 %v7101, %v7100
    %v7107 = vsel %vm1960, %v4554, 0
    %7109 = vmatprep.subr.bf16.mxu0 0
    %7110 = vmatpush1.bf16.msra.mxu0 0
    %7111 = vmatprep.subr.bf16.mxu0 0
    %7112 = vmatpush1.bf16.msra.mxu0 0
    %7113 = vmatprep.subr.bf16.mxu0 0
    %7114 = vmatpush1.bf16.msra.mxu0 0
    %7115 = vmatprep.subr.bf16.mxu0 0
    %7116 = vmatpush1.bf16.msra.mxu0 0
    %7117 = vmatprep.subr.bf16.mxu0 0
    %7118 = vmatpush1.bf16.msra.mxu0 0
    %7119 = vmatprep.subr.bf16.mxu0 0
    %7120 = vmatpush1.bf16.msra.mxu0 0
    %7121 = vmatprep.subr.bf16.mxu0 0
    %7122 = vmatpush1.bf16.msra.mxu0 %v7103
    %7123 = vmatprep.subr.bf16.mxu0 0
    %7124 = vmatpush1.bf16.msra.mxu0 %v7102
    %7125 = vmatprep.subr.bf16.mxu0 0
    %7126 = vmatpush2.bf16.msra.mxu0 0
    %7127 = vmatprep.subr.bf16.mxu0 0
    %7128 = vmatpush2.bf16.msra.mxu0 0
    %7129 = vmatprep.subr.bf16.mxu0 0
    %7130 = vmatpush2.bf16.msra.mxu0 0
    %7131 = vmatprep.subr.bf16.mxu0 0
    %7132 = vmatpush2.bf16.msra.mxu0 0
    %7133 = vmatprep.subr.bf16.mxu0 0
    %7134 = vmatpush2.bf16.msra.mxu0 0
    %7135 = vmatprep.subr.bf16.mxu0 0
    %7136 = vmatpush2.bf16.msra.mxu0 0
    %7137 = vmatprep.subr.bf16.mxu0 0
    %7138 = vmatpush2.bf16.msra.mxu0 0
    %7139 = vmatprep.subr.bf16.mxu0 0
    %7140 = vmatpush2.bf16.msra.mxu0 0
    %7141 = vmatprep.mubr.bf16.mxu0 0
    %7142 = vmatmul.mubr.bf16.gmra.mxu0 %v7107
    %v7143 = vpop.f32.mrf.mxu0
    %v7144 = vadd.f32 0.0, %v7143
    %v7145 = vpop.f32.mrf.mxu0
    %v7146 = vpop.f32.mrf.mxu0
    %v7147 = vadd.f32 0.0, %v7146
    %v7148 = vpop.f32.mrf.mxu0
    %7149 = vdwg.mxu0
    %v7162 = vunpack.c.l.b16 %v7078
    %v7163 = vunpack.c.l.b16 %v7079
    %v7164 = vunpack.c.l.b16 %v7080
    %v7165 = vunpack.c.l.b16 %v7081
    %v7166 = vunpack.c.l.b16 %v7082
    %v7167 = vunpack.c.l.b16 %v7083
    %v7168 = vunpack.c.l.b16 %v7084
    %v7169 = vunpack.c.l.b16 %v7085
    %v7170 = vunpack.c.l.b16 %v7086
    %v7171 = vunpack.c.l.b16 %v7087
    %v7172 = vunpack.c.l.b16 %v7088
    %v7173 = vunpack.c.l.b16 %v7089
    %v7174 = vpack.c.b16 %v7163, %v7162
    %v7175 = vpack.c.b16 %v7165, %v7164
    %v7176 = vpack.c.b16 %v7167, %v7166
    %v7177 = vpack.c.b16 %v7169, %v7168
    %v7178 = vpack.c.b16 %v7171, %v7170
    %v7179 = vpack.c.b16 %v7173, %v7172
    %v7187 = vsel %vm6897, %v7077, 0
    %7189 = vmatprep.subr.bf16.mxu0 0
    %7190 = vmatpush1.bf16.msra.mxu0 0
    %7191 = vmatprep.subr.bf16.mxu0 0
    %7192 = vmatpush1.bf16.msra.mxu0 0
    %7193 = vmatprep.subr.bf16.mxu0 0
    %7194 = vmatpush1.bf16.msra.mxu0 %v7179
    %7195 = vmatprep.subr.bf16.mxu0 0
    %7196 = vmatpush1.bf16.msra.mxu0 %v7178
    %7197 = vmatprep.subr.bf16.mxu0 0
    %7198 = vmatpush1.bf16.msra.mxu0 %v7177
    %7199 = vmatprep.subr.bf16.mxu0 0
    %7200 = vmatpush1.bf16.msra.mxu0 %v7176
    %7201 = vmatprep.subr.bf16.mxu0 0
    %7202 = vmatpush1.bf16.msra.mxu0 %v7175
    %7203 = vmatprep.subr.bf16.mxu0 0
    %7204 = vmatpush1.bf16.msra.mxu0 %v7174
    %7205 = vmatprep.subr.bf16.mxu0 0
    %7206 = vmatpush2.bf16.msra.mxu0 0
    %7207 = vmatprep.subr.bf16.mxu0 0
    %7208 = vmatpush2.bf16.msra.mxu0 0
    %7209 = vmatprep.subr.bf16.mxu0 0
    %7210 = vmatpush2.bf16.msra.mxu0 0
    %7211 = vmatprep.subr.bf16.mxu0 0
    %7212 = vmatpush2.bf16.msra.mxu0 0
    %7213 = vmatprep.subr.bf16.mxu0 0
    %7214 = vmatpush2.bf16.msra.mxu0 0
    %7215 = vmatprep.subr.bf16.mxu0 0
    %7216 = vmatpush2.bf16.msra.mxu0 0
    %7217 = vmatprep.subr.bf16.mxu0 0
    %7218 = vmatpush2.bf16.msra.mxu0 0
    %7219 = vmatprep.subr.bf16.mxu0 0
    %7220 = vmatpush2.bf16.msra.mxu0 0
    %7221 = vmatprep.mubr.bf16.mxu0 0
    %7222 = vmatmul.mubr.bf16.gmra.mxu0 %v7187
    %v7223 = vpop.f32.mrf.mxu0
    %v7224 = vadd.f32 %v7144, %v7223
    %v7225 = vpop.f32.mrf.mxu0
    %v7226 = vpop.f32.mrf.mxu0
    %v7227 = vadd.f32 %v7147, %v7226
    %v7228 = vpop.f32.mrf.mxu0
    %7229 = vdwg.mxu0
    %v7230 = vpack.c.bf16 %v7227, %v7224
    %v7231 = vld [vmem:[#allocation85] sm:$0xf]
    %v7232 = vld [vmem:[#allocation85 + $0x4] sm:$0xf]
    %v7233 = vld [vmem:[#allocation85 + $0x8] sm:$0xf]
    %v7234 = vld [vmem:[#allocation85 + $0xc] sm:$0xf]
    %v7235 = vld [vmem:[#allocation85 + $0x10] sm:$0xf]
    %v7236 = vld [vmem:[#allocation85 + $0x14] sm:$0xf]
    %v7237 = vld [vmem:[#allocation85 + $0x18] sm:$0xf]
    %v7238 = vld [vmem:[#allocation85 + $0x1c] sm:$0xf]
    %v7239 = vld [vmem:[#allocation85 + $0x20] sm:$0xf]
    %v7240 = vld [vmem:[#allocation85 + $0x24] sm:$0xf]
    %v7241 = vld [vmem:[#allocation85 + $0x28] sm:$0xf]
    %v7242 = vld [vmem:[#allocation85 + $0x2c] sm:$0xf]
    %v7243 = vld [vmem:[#allocation85 + $0x30] sm:$0xf]
    %v7244 = vld [vmem:[#allocation85 + $0x34] sm:$0xf]
    %v7245 = vld [vmem:[#allocation85 + $0x38] sm:$0xf]
    %v7246 = vld [vmem:[#allocation85 + $0x3c] sm:$0xf]
    %v7247 = vld [vmem:[#allocation86] sm:$0x1]
    %v7249 = vlaneseq
    %v7250 = vshrl.u32 %v7249, 7
    %v7251 = vsub.s32 0, %v7250
    %v7252 = vrot.slane %v7247, %v7251
    %v7270 = vunpack.c.l.b16 %v7231
    %v7271 = vunpack.c.l.b16 %v7232
    %v7272 = vunpack.c.l.b16 %v7233
    %v7273 = vunpack.c.l.b16 %v7234
    %v7274 = vunpack.c.l.b16 %v7235
    %v7275 = vunpack.c.l.b16 %v7236
    %v7276 = vunpack.c.l.b16 %v7237
    %v7277 = vunpack.c.l.b16 %v7238
    %v7278 = vunpack.c.l.b16 %v7239
    %v7279 = vunpack.c.l.b16 %v7240
    %v7280 = vunpack.c.l.b16 %v7241
    %v7281 = vunpack.c.l.b16 %v7242
    %v7282 = vunpack.c.l.b16 %v7243
    %v7283 = vunpack.c.l.b16 %v7244
    %v7284 = vunpack.c.l.b16 %v7245
    %v7285 = vunpack.c.l.b16 %v7246
    %v7286 = vpack.c.b16 %v7271, %v7270
    %v7287 = vpack.c.b16 %v7273, %v7272
    %v7288 = vpack.c.b16 %v7275, %v7274
    %v7289 = vpack.c.b16 %v7277, %v7276
    %v7290 = vpack.c.b16 %v7279, %v7278
    %v7291 = vpack.c.b16 %v7281, %v7280
    %v7292 = vpack.c.b16 %v7283, %v7282
    %v7293 = vpack.c.b16 %v7285, %v7284
    %7302 = vmatprep.subr.bf16.mxu0 0
    %7303 = vmatpush1.bf16.msra.mxu0 %v7293
    %7304 = vmatprep.subr.bf16.mxu0 0
    %7305 = vmatpush1.bf16.msra.mxu0 %v7292
    %7306 = vmatprep.subr.bf16.mxu0 0
    %7307 = vmatpush1.bf16.msra.mxu0 %v7291
    %7308 = vmatprep.subr.bf16.mxu0 0
    %7309 = vmatpush1.bf16.msra.mxu0 %v7290
    %7310 = vmatprep.subr.bf16.mxu0 0
    %7311 = vmatpush1.bf16.msra.mxu0 %v7289
    %7312 = vmatprep.subr.bf16.mxu0 0
    %7313 = vmatpush1.bf16.msra.mxu0 %v7288
    %7314 = vmatprep.subr.bf16.mxu0 0
    %7315 = vmatpush1.bf16.msra.mxu0 %v7287
    %7316 = vmatprep.subr.bf16.mxu0 0
    %7317 = vmatpush1.bf16.msra.mxu0 %v7286
    %7318 = vmatprep.subr.bf16.mxu0 0
    %7319 = vmatpush2.bf16.msra.mxu0 0
    %7320 = vmatprep.subr.bf16.mxu0 0
    %7321 = vmatpush2.bf16.msra.mxu0 0
    %7322 = vmatprep.subr.bf16.mxu0 0
    %7323 = vmatpush2.bf16.msra.mxu0 0
    %7324 = vmatprep.subr.bf16.mxu0 0
    %7325 = vmatpush2.bf16.msra.mxu0 0
    %7326 = vmatprep.subr.bf16.mxu0 0
    %7327 = vmatpush2.bf16.msra.mxu0 0
    %7328 = vmatprep.subr.bf16.mxu0 0
    %7329 = vmatpush2.bf16.msra.mxu0 0
    %7330 = vmatprep.subr.bf16.mxu0 0
    %7331 = vmatpush2.bf16.msra.mxu0 0
    %7332 = vmatprep.subr.bf16.mxu0 0
    %7333 = vmatpush2.bf16.msra.mxu0 0
    %7334 = vmatprep.mubr.bf16.mxu0 0
    %7335 = vmatmul.mubr.bf16.gmra.mxu0 %v7230
    %v7336 = vpop.f32.mrf.mxu0
    %v7337 = vadd.f32 %v7252, %v7336
    %v7338 = vpop.f32.mrf.mxu0
    %v7339 = vpop.f32.mrf.mxu0
    %v7340 = vadd.f32 %v7252, %v7339
    %v7341 = vpop.f32.mrf.mxu0
    %7342 = vdwg.mxu0
    %v7343 = vmax.f32 %v7337, 0.0
    %v7344 = vmax.f32 %v7340, 0.0
    %v7345 = vpack.c.bf16 %v7344, %v7343
    %v7346 = vld [vmem:[#allocation88] sm:$0xf]
    %v7347 = vld [vmem:[#allocation88 + $0x4] sm:$0xf]
    %v7348 = vld [vmem:[#allocation88 + $0x8] sm:$0xf]
    %v7349 = vld [vmem:[#allocation88 + $0xc] sm:$0xf]
    %v7350 = vld [vmem:[#allocation88 + $0x10] sm:$0xf]
    %v7351 = vld [vmem:[#allocation88 + $0x14] sm:$0xf]
    %v7352 = vld [vmem:[#allocation88 + $0x18] sm:$0xf]
    %v7353 = vld [vmem:[#allocation88 + $0x1c] sm:$0xf]
    %v7354 = vld [vmem:[#allocation88 + $0x20] sm:$0xf]
    %v7355 = vld [vmem:[#allocation88 + $0x24] sm:$0xf]
    %v7356 = vld [vmem:[#allocation88 + $0x28] sm:$0xf]
    %v7357 = vld [vmem:[#allocation88 + $0x2c] sm:$0xf]
    %v7358 = vld [vmem:[#allocation88 + $0x30] sm:$0xf]
    %v7359 = vld [vmem:[#allocation88 + $0x34] sm:$0xf]
    %v7360 = vld [vmem:[#allocation88 + $0x38] sm:$0xf]
    %v7361 = vld [vmem:[#allocation88 + $0x3c] sm:$0xf]
    %v7362 = vld [vmem:[#allocation89] sm:$0x1]
    %v7364 = vlaneseq
    %v7365 = vshrl.u32 %v7364, 7
    %v7366 = vsub.s32 0, %v7365
    %v7367 = vrot.slane %v7362, %v7366
    %v7385 = vunpack.c.l.b16 %v7346
    %v7386 = vunpack.c.l.b16 %v7347
    %v7387 = vunpack.c.l.b16 %v7348
    %v7388 = vunpack.c.l.b16 %v7349
    %v7389 = vunpack.c.l.b16 %v7350
    %v7390 = vunpack.c.l.b16 %v7351
    %v7391 = vunpack.c.l.b16 %v7352
    %v7392 = vunpack.c.l.b16 %v7353
    %v7393 = vunpack.c.l.b16 %v7354
    %v7394 = vunpack.c.l.b16 %v7355
    %v7395 = vunpack.c.l.b16 %v7356
    %v7396 = vunpack.c.l.b16 %v7357
    %v7397 = vunpack.c.l.b16 %v7358
    %v7398 = vunpack.c.l.b16 %v7359
    %v7399 = vunpack.c.l.b16 %v7360
    %v7400 = vunpack.c.l.b16 %v7361
    %v7401 = vpack.c.b16 %v7386, %v7385
    %v7402 = vpack.c.b16 %v7388, %v7387
    %v7403 = vpack.c.b16 %v7390, %v7389
    %v7404 = vpack.c.b16 %v7392, %v7391
    %v7405 = vpack.c.b16 %v7394, %v7393
    %v7406 = vpack.c.b16 %v7396, %v7395
    %v7407 = vpack.c.b16 %v7398, %v7397
    %v7408 = vpack.c.b16 %v7400, %v7399
    %7417 = vmatprep.subr.bf16.mxu0 0
    %7418 = vmatpush1.bf16.msra.mxu0 %v7408
    %7419 = vmatprep.subr.bf16.mxu0 0
    %7420 = vmatpush1.bf16.msra.mxu0 %v7407
    %7421 = vmatprep.subr.bf16.mxu0 0
    %7422 = vmatpush1.bf16.msra.mxu0 %v7406
    %7423 = vmatprep.subr.bf16.mxu0 0
    %7424 = vmatpush1.bf16.msra.mxu0 %v7405
    %7425 = vmatprep.subr.bf16.mxu0 0
    %7426 = vmatpush1.bf16.msra.mxu0 %v7404
    %7427 = vmatprep.subr.bf16.mxu0 0
    %7428 = vmatpush1.bf16.msra.mxu0 %v7403
    %7429 = vmatprep.subr.bf16.mxu0 0
    %7430 = vmatpush1.bf16.msra.mxu0 %v7402
    %7431 = vmatprep.subr.bf16.mxu0 0
    %7432 = vmatpush1.bf16.msra.mxu0 %v7401
    %7433 = vmatprep.subr.bf16.mxu0 0
    %7434 = vmatpush2.bf16.msra.mxu0 0
    %7435 = vmatprep.subr.bf16.mxu0 0
    %7436 = vmatpush2.bf16.msra.mxu0 0
    %7437 = vmatprep.subr.bf16.mxu0 0
    %7438 = vmatpush2.bf16.msra.mxu0 0
    %7439 = vmatprep.subr.bf16.mxu0 0
    %7440 = vmatpush2.bf16.msra.mxu0 0
    %7441 = vmatprep.subr.bf16.mxu0 0
    %7442 = vmatpush2.bf16.msra.mxu0 0
    %7443 = vmatprep.subr.bf16.mxu0 0
    %7444 = vmatpush2.bf16.msra.mxu0 0
    %7445 = vmatprep.subr.bf16.mxu0 0
    %7446 = vmatpush2.bf16.msra.mxu0 0
    %7447 = vmatprep.subr.bf16.mxu0 0
    %7448 = vmatpush2.bf16.msra.mxu0 0
    %7449 = vmatprep.mubr.bf16.mxu0 0
    %7450 = vmatmul.mubr.bf16.gmra.mxu0 %v7345
    %v7451 = vpop.f32.mrf.mxu0
    %v7452 = vadd.f32 %v7367, %v7451
    %v7453 = vpop.f32.mrf.mxu0
    %v7454 = vpop.f32.mrf.mxu0
    %v7455 = vadd.f32 %v7367, %v7454
    %v7456 = vpop.f32.mrf.mxu0
    %7457 = vdwg.mxu0
    %v7458 = vadd.f32 %v7452, %v7224
    %v7459 = vadd.f32 %v7455, %v7227
    %v7460 = vpack.c.bf16 %v7459, %v7458
    %v7461 = vld [vmem:[#allocation91] sm:$0xf]
    %v7462 = vld [vmem:[#allocation91 + $0x4] sm:$0xf]
    %v7463 = vld [vmem:[#allocation91 + $0x8] sm:$0xf]
    %v7464 = vld [vmem:[#allocation91 + $0xc] sm:$0xf]
    %v7465 = vld [vmem:[#allocation91 + $0x10] sm:$0xf]
    %v7466 = vld [vmem:[#allocation91 + $0x14] sm:$0xf]
    %v7467 = vld [vmem:[#allocation91 + $0x18] sm:$0xf]
    %v7468 = vld [vmem:[#allocation91 + $0x1c] sm:$0xf]
    %v7469 = vld [vmem:[#allocation91 + $0x20] sm:$0xf]
    %v7470 = vld [vmem:[#allocation91 + $0x24] sm:$0xf]
    %v7471 = vld [vmem:[#allocation91 + $0x28] sm:$0xf]
    %v7472 = vld [vmem:[#allocation91 + $0x2c] sm:$0xf]
    %v7473 = vld [vmem:[#allocation91 + $0x30] sm:$0xf]
    %v7474 = vld [vmem:[#allocation91 + $0x34] sm:$0xf]
    %v7475 = vld [vmem:[#allocation91 + $0x38] sm:$0xf]
    %v7476 = vld [vmem:[#allocation91 + $0x3c] sm:$0xf]
    %v7477 = vld [vmem:[#allocation92] sm:$0x1]
    %v7479 = vlaneseq
    %v7480 = vshrl.u32 %v7479, 7
    %v7481 = vsub.s32 0, %v7480
    %v7482 = vrot.slane %v7477, %v7481
    %v7500 = vunpack.c.l.b16 %v7461
    %v7501 = vunpack.c.l.b16 %v7462
    %v7502 = vunpack.c.l.b16 %v7463
    %v7503 = vunpack.c.l.b16 %v7464
    %v7504 = vunpack.c.l.b16 %v7465
    %v7505 = vunpack.c.l.b16 %v7466
    %v7506 = vunpack.c.l.b16 %v7467
    %v7507 = vunpack.c.l.b16 %v7468
    %v7508 = vunpack.c.l.b16 %v7469
    %v7509 = vunpack.c.l.b16 %v7470
    %v7510 = vunpack.c.l.b16 %v7471
    %v7511 = vunpack.c.l.b16 %v7472
    %v7512 = vunpack.c.l.b16 %v7473
    %v7513 = vunpack.c.l.b16 %v7474
    %v7514 = vunpack.c.l.b16 %v7475
    %v7515 = vunpack.c.l.b16 %v7476
    %v7516 = vpack.c.b16 %v7501, %v7500
    %v7517 = vpack.c.b16 %v7503, %v7502
    %v7518 = vpack.c.b16 %v7505, %v7504
    %v7519 = vpack.c.b16 %v7507, %v7506
    %v7520 = vpack.c.b16 %v7509, %v7508
    %v7521 = vpack.c.b16 %v7511, %v7510
    %v7522 = vpack.c.b16 %v7513, %v7512
    %v7523 = vpack.c.b16 %v7515, %v7514
    %7532 = vmatprep.subr.bf16.mxu0 0
    %7533 = vmatpush1.bf16.msra.mxu0 %v7523
    %7534 = vmatprep.subr.bf16.mxu0 0
    %7535 = vmatpush1.bf16.msra.mxu0 %v7522
    %7536 = vmatprep.subr.bf16.mxu0 0
    %7537 = vmatpush1.bf16.msra.mxu0 %v7521
    %7538 = vmatprep.subr.bf16.mxu0 0
    %7539 = vmatpush1.bf16.msra.mxu0 %v7520
    %7540 = vmatprep.subr.bf16.mxu0 0
    %7541 = vmatpush1.bf16.msra.mxu0 %v7519
    %7542 = vmatprep.subr.bf16.mxu0 0
    %7543 = vmatpush1.bf16.msra.mxu0 %v7518
    %7544 = vmatprep.subr.bf16.mxu0 0
    %7545 = vmatpush1.bf16.msra.mxu0 %v7517
    %7546 = vmatprep.subr.bf16.mxu0 0
    %7547 = vmatpush1.bf16.msra.mxu0 %v7516
    %7548 = vmatprep.subr.bf16.mxu0 0
    %7549 = vmatpush2.bf16.msra.mxu0 0
    %7550 = vmatprep.subr.bf16.mxu0 0
    %7551 = vmatpush2.bf16.msra.mxu0 0
    %7552 = vmatprep.subr.bf16.mxu0 0
    %7553 = vmatpush2.bf16.msra.mxu0 0
    %7554 = vmatprep.subr.bf16.mxu0 0
    %7555 = vmatpush2.bf16.msra.mxu0 0
    %7556 = vmatprep.subr.bf16.mxu0 0
    %7557 = vmatpush2.bf16.msra.mxu0 0
    %7558 = vmatprep.subr.bf16.mxu0 0
    %7559 = vmatpush2.bf16.msra.mxu0 0
    %7560 = vmatprep.subr.bf16.mxu0 0
    %7561 = vmatpush2.bf16.msra.mxu0 0
    %7562 = vmatprep.subr.bf16.mxu0 0
    %7563 = vmatpush2.bf16.msra.mxu0 0
    %7564 = vmatprep.mubr.bf16.mxu0 0
    %7565 = vmatmul.mubr.bf16.gmra.mxu0 %v7460
    %v7566 = vpop.f32.mrf.mxu0
    %v7567 = vadd.f32 %v7482, %v7566
    %v7568 = vpop.f32.mrf.mxu0
    %v7569 = vpop.f32.mrf.mxu0
    %v7570 = vadd.f32 %v7482, %v7569
    %v7571 = vpop.f32.mrf.mxu0
    %7572 = vdwg.mxu0
    %v7573 = vmax.f32 %v7567, 0.0
    %v7574 = vmax.f32 %v7570, 0.0
    %v7575 = vpack.c.bf16 %v7574, %v7573
    %v7576 = vld [vmem:[#allocation94] sm:$0xf]
    %v7577 = vld [vmem:[#allocation94 + $0x4] sm:$0xf]
    %v7578 = vld [vmem:[#allocation94 + $0x8] sm:$0xf]
    %v7579 = vld [vmem:[#allocation94 + $0xc] sm:$0xf]
    %v7580 = vld [vmem:[#allocation94 + $0x10] sm:$0xf]
    %v7581 = vld [vmem:[#allocation94 + $0x14] sm:$0xf]
    %v7582 = vld [vmem:[#allocation94 + $0x18] sm:$0xf]
    %v7583 = vld [vmem:[#allocation94 + $0x1c] sm:$0xf]
    %v7584 = vld [vmem:[#allocation94 + $0x20] sm:$0xf]
    %v7585 = vld [vmem:[#allocation94 + $0x24] sm:$0xf]
    %v7586 = vld [vmem:[#allocation94 + $0x28] sm:$0xf]
    %v7587 = vld [vmem:[#allocation94 + $0x2c] sm:$0xf]
    %v7588 = vld [vmem:[#allocation94 + $0x30] sm:$0xf]
    %v7589 = vld [vmem:[#allocation94 + $0x34] sm:$0xf]
    %v7590 = vld [vmem:[#allocation94 + $0x38] sm:$0xf]
    %v7591 = vld [vmem:[#allocation94 + $0x3c] sm:$0xf]
    %v7592 = vld [vmem:[#allocation95] sm:$0x1]
    %v7594 = vlaneseq
    %v7595 = vshrl.u32 %v7594, 7
    %v7596 = vsub.s32 0, %v7595
    %v7597 = vrot.slane %v7592, %v7596
    %v7615 = vunpack.c.l.b16 %v7576
    %v7616 = vunpack.c.l.b16 %v7577
    %v7617 = vunpack.c.l.b16 %v7578
    %v7618 = vunpack.c.l.b16 %v7579
    %v7619 = vunpack.c.l.b16 %v7580
    %v7620 = vunpack.c.l.b16 %v7581
    %v7621 = vunpack.c.l.b16 %v7582
    %v7622 = vunpack.c.l.b16 %v7583
    %v7623 = vunpack.c.l.b16 %v7584
    %v7624 = vunpack.c.l.b16 %v7585
    %v7625 = vunpack.c.l.b16 %v7586
    %v7626 = vunpack.c.l.b16 %v7587
    %v7627 = vunpack.c.l.b16 %v7588
    %v7628 = vunpack.c.l.b16 %v7589
    %v7629 = vunpack.c.l.b16 %v7590
    %v7630 = vunpack.c.l.b16 %v7591
    %v7631 = vpack.c.b16 %v7616, %v7615
    %v7632 = vpack.c.b16 %v7618, %v7617
    %v7633 = vpack.c.b16 %v7620, %v7619
    %v7634 = vpack.c.b16 %v7622, %v7621
    %v7635 = vpack.c.b16 %v7624, %v7623
    %v7636 = vpack.c.b16 %v7626, %v7625
    %v7637 = vpack.c.b16 %v7628, %v7627
    %v7638 = vpack.c.b16 %v7630, %v7629
    %7647 = vmatprep.subr.bf16.mxu0 0
    %7648 = vmatpush1.bf16.msra.mxu0 %v7638
    %7649 = vmatprep.subr.bf16.mxu0 0
    %7650 = vmatpush1.bf16.msra.mxu0 %v7637
    %7651 = vmatprep.subr.bf16.mxu0 0
    %7652 = vmatpush1.bf16.msra.mxu0 %v7636
    %7653 = vmatprep.subr.bf16.mxu0 0
    %7654 = vmatpush1.bf16.msra.mxu0 %v7635
    %7655 = vmatprep.subr.bf16.mxu0 0
    %7656 = vmatpush1.bf16.msra.mxu0 %v7634
    %7657 = vmatprep.subr.bf16.mxu0 0
    %7658 = vmatpush1.bf16.msra.mxu0 %v7633
    %7659 = vmatprep.subr.bf16.mxu0 0
    %7660 = vmatpush1.bf16.msra.mxu0 %v7632
    %7661 = vmatprep.subr.bf16.mxu0 0
    %7662 = vmatpush1.bf16.msra.mxu0 %v7631
    %7663 = vmatprep.subr.bf16.mxu0 0
    %7664 = vmatpush2.bf16.msra.mxu0 0
    %7665 = vmatprep.subr.bf16.mxu0 0
    %7666 = vmatpush2.bf16.msra.mxu0 0
    %7667 = vmatprep.subr.bf16.mxu0 0
    %7668 = vmatpush2.bf16.msra.mxu0 0
    %7669 = vmatprep.subr.bf16.mxu0 0
    %7670 = vmatpush2.bf16.msra.mxu0 0
    %7671 = vmatprep.subr.bf16.mxu0 0
    %7672 = vmatpush2.bf16.msra.mxu0 0
    %7673 = vmatprep.subr.bf16.mxu0 0
    %7674 = vmatpush2.bf16.msra.mxu0 0
    %7675 = vmatprep.subr.bf16.mxu0 0
    %7676 = vmatpush2.bf16.msra.mxu0 0
    %7677 = vmatprep.subr.bf16.mxu0 0
    %7678 = vmatpush2.bf16.msra.mxu0 0
    %7679 = vmatprep.mubr.bf16.mxu0 0
    %7680 = vmatmul.mubr.bf16.gmra.mxu0 %v7575
    %v7681 = vpop.f32.mrf.mxu0
    %v7682 = vadd.f32 %v7597, %v7681
    %v7683 = vpop.f32.mrf.mxu0
    %v7684 = vpop.f32.mrf.mxu0
    %v7685 = vadd.f32 %v7597, %v7684
    %v7686 = vpop.f32.mrf.mxu0
    %7687 = vdwg.mxu0
    %v7688 = vadd.f32 %v7682, %v7458
    %v7689 = vadd.f32 %v7685, %v7459
    %v7690 = vpack.c.bf16 %v7689, %v7688
    %v7691 = vld [vmem:[#allocation97] sm:$0xf]
    %v7692 = vld [vmem:[#allocation97 + $0x4] sm:$0xf]
    %v7693 = vld [vmem:[#allocation97 + $0x8] sm:$0xf]
    %v7694 = vld [vmem:[#allocation97 + $0xc] sm:$0xf]
    %v7695 = vld [vmem:[#allocation97 + $0x10] sm:$0xf]
    %v7696 = vld [vmem:[#allocation97 + $0x14] sm:$0xf]
    %v7697 = vld [vmem:[#allocation97 + $0x18] sm:$0xf]
    %v7698 = vld [vmem:[#allocation97 + $0x1c] sm:$0xf]
    %v7699 = vld [vmem:[#allocation97 + $0x20] sm:$0xf]
    %v7700 = vld [vmem:[#allocation97 + $0x24] sm:$0xf]
    %v7701 = vld [vmem:[#allocation97 + $0x28] sm:$0xf]
    %v7702 = vld [vmem:[#allocation97 + $0x2c] sm:$0xf]
    %v7703 = vld [vmem:[#allocation97 + $0x30] sm:$0xf]
    %v7704 = vld [vmem:[#allocation97 + $0x34] sm:$0xf]
    %v7705 = vld [vmem:[#allocation97 + $0x38] sm:$0xf]
    %v7706 = vld [vmem:[#allocation97 + $0x3c] sm:$0xf]
    %v7707 = vld [vmem:[#allocation98] sm:$0x1]
    %v7709 = vlaneseq
    %v7710 = vshrl.u32 %v7709, 7
    %v7711 = vsub.s32 0, %v7710
    %v7712 = vrot.slane %v7707, %v7711
    %v7730 = vunpack.c.l.b16 %v7691
    %v7731 = vunpack.c.l.b16 %v7692
    %v7732 = vunpack.c.l.b16 %v7693
    %v7733 = vunpack.c.l.b16 %v7694
    %v7734 = vunpack.c.l.b16 %v7695
    %v7735 = vunpack.c.l.b16 %v7696
    %v7736 = vunpack.c.l.b16 %v7697
    %v7737 = vunpack.c.l.b16 %v7698
    %v7738 = vunpack.c.l.b16 %v7699
    %v7739 = vunpack.c.l.b16 %v7700
    %v7740 = vunpack.c.l.b16 %v7701
    %v7741 = vunpack.c.l.b16 %v7702
    %v7742 = vunpack.c.l.b16 %v7703
    %v7743 = vunpack.c.l.b16 %v7704
    %v7744 = vunpack.c.l.b16 %v7705
    %v7745 = vunpack.c.l.b16 %v7706
    %v7746 = vpack.c.b16 %v7731, %v7730
    %v7747 = vpack.c.b16 %v7733, %v7732
    %v7748 = vpack.c.b16 %v7735, %v7734
    %v7749 = vpack.c.b16 %v7737, %v7736
    %v7750 = vpack.c.b16 %v7739, %v7738
    %v7751 = vpack.c.b16 %v7741, %v7740
    %v7752 = vpack.c.b16 %v7743, %v7742
    %v7753 = vpack.c.b16 %v7745, %v7744
    %7762 = vmatprep.subr.bf16.mxu0 0
    %7763 = vmatpush1.bf16.msra.mxu0 %v7753
    %7764 = vmatprep.subr.bf16.mxu0 0
    %7765 = vmatpush1.bf16.msra.mxu0 %v7752
    %7766 = vmatprep.subr.bf16.mxu0 0
    %7767 = vmatpush1.bf16.msra.mxu0 %v7751
    %7768 = vmatprep.subr.bf16.mxu0 0
    %7769 = vmatpush1.bf16.msra.mxu0 %v7750
    %7770 = vmatprep.subr.bf16.mxu0 0
    %7771 = vmatpush1.bf16.msra.mxu0 %v7749
    %7772 = vmatprep.subr.bf16.mxu0 0
    %7773 = vmatpush1.bf16.msra.mxu0 %v7748
    %7774 = vmatprep.subr.bf16.mxu0 0
    %7775 = vmatpush1.bf16.msra.mxu0 %v7747
    %7776 = vmatprep.subr.bf16.mxu0 0
    %7777 = vmatpush1.bf16.msra.mxu0 %v7746
    %7778 = vmatprep.subr.bf16.mxu0 0
    %7779 = vmatpush2.bf16.msra.mxu0 0
    %7780 = vmatprep.subr.bf16.mxu0 0
    %7781 = vmatpush2.bf16.msra.mxu0 0
    %7782 = vmatprep.subr.bf16.mxu0 0
    %7783 = vmatpush2.bf16.msra.mxu0 0
    %7784 = vmatprep.subr.bf16.mxu0 0
    %7785 = vmatpush2.bf16.msra.mxu0 0
    %7786 = vmatprep.subr.bf16.mxu0 0
    %7787 = vmatpush2.bf16.msra.mxu0 0
    %7788 = vmatprep.subr.bf16.mxu0 0
    %7789 = vmatpush2.bf16.msra.mxu0 0
    %7790 = vmatprep.subr.bf16.mxu0 0
    %7791 = vmatpush2.bf16.msra.mxu0 0
    %7792 = vmatprep.subr.bf16.mxu0 0
    %7793 = vmatpush2.bf16.msra.mxu0 0
    %7794 = vmatprep.mubr.bf16.mxu0 0
    %7795 = vmatmul.mubr.bf16.gmra.mxu0 %v7690
    %v7796 = vpop.f32.mrf.mxu0
    %v7797 = vadd.f32 %v7712, %v7796
    %v7798 = vpop.f32.mrf.mxu0
    %v7799 = vpop.f32.mrf.mxu0
    %v7800 = vadd.f32 %v7712, %v7799
    %v7801 = vpop.f32.mrf.mxu0
    %7802 = vdwg.mxu0
    %v7803 = vmax.f32 %v7797, 0.0
    %v7804 = vmax.f32 %v7800, 0.0
    %v7805 = vpack.c.bf16 %v7804, %v7803
    %v7806 = vld [vmem:[#allocation100] sm:$0xf]
    %v7807 = vld [vmem:[#allocation100 + $0x4] sm:$0xf]
    %v7808 = vld [vmem:[#allocation100 + $0x8] sm:$0xf]
    %v7809 = vld [vmem:[#allocation100 + $0xc] sm:$0xf]
    %v7810 = vld [vmem:[#allocation100 + $0x10] sm:$0xf]
    %v7811 = vld [vmem:[#allocation100 + $0x14] sm:$0xf]
    %v7812 = vld [vmem:[#allocation100 + $0x18] sm:$0xf]
    %v7813 = vld [vmem:[#allocation100 + $0x1c] sm:$0xf]
    %v7814 = vld [vmem:[#allocation101] sm:$0x1]
    %v7816 = vlaneseq
    %v7817 = vshrl.u32 %v7816, 7
    %v7818 = vsub.s32 0, %v7817
    %v7819 = vrot.slane %v7814, %v7818
    %v7829 = vunpack.c.l.b16 %v7806
    %v7830 = vunpack.c.l.b16 %v7807
    %v7831 = vunpack.c.l.b16 %v7808
    %v7832 = vunpack.c.l.b16 %v7809
    %v7833 = vunpack.c.l.b16 %v7810
    %v7834 = vunpack.c.l.b16 %v7811
    %v7835 = vunpack.c.l.b16 %v7812
    %v7836 = vunpack.c.l.b16 %v7813
    %v7837 = vpack.c.b16 %v7830, %v7829
    %v7838 = vpack.c.b16 %v7832, %v7831
    %v7839 = vpack.c.b16 %v7834, %v7833
    %v7840 = vpack.c.b16 %v7836, %v7835
    %v7846 = vsel %vm3033, %v7805, 0
    %7848 = vmatprep.subr.bf16.mxu0 0
    %7849 = vmatpush1.bf16.msra.mxu0 0
    %7850 = vmatprep.subr.bf16.mxu0 0
    %7851 = vmatpush1.bf16.msra.mxu0 0
    %7852 = vmatprep.subr.bf16.mxu0 0
    %7853 = vmatpush1.bf16.msra.mxu0 0
    %7854 = vmatprep.subr.bf16.mxu0 0
    %7855 = vmatpush1.bf16.msra.mxu0 0
    %7856 = vmatprep.subr.bf16.mxu0 0
    %7857 = vmatpush1.bf16.msra.mxu0 %v7840
    %7858 = vmatprep.subr.bf16.mxu0 0
    %7859 = vmatpush1.bf16.msra.mxu0 %v7839
    %7860 = vmatprep.subr.bf16.mxu0 0
    %7861 = vmatpush1.bf16.msra.mxu0 %v7838
    %7862 = vmatprep.subr.bf16.mxu0 0
    %7863 = vmatpush1.bf16.msra.mxu0 %v7837
    %7864 = vmatprep.subr.bf16.mxu0 0
    %7865 = vmatpush2.bf16.msra.mxu0 0
    %7866 = vmatprep.subr.bf16.mxu0 0
    %7867 = vmatpush2.bf16.msra.mxu0 0
    %7868 = vmatprep.subr.bf16.mxu0 0
    %7869 = vmatpush2.bf16.msra.mxu0 0
    %7870 = vmatprep.subr.bf16.mxu0 0
    %7871 = vmatpush2.bf16.msra.mxu0 0
    %7872 = vmatprep.subr.bf16.mxu0 0
    %7873 = vmatpush2.bf16.msra.mxu0 0
    %7874 = vmatprep.subr.bf16.mxu0 0
    %7875 = vmatpush2.bf16.msra.mxu0 0
    %7876 = vmatprep.subr.bf16.mxu0 0
    %7877 = vmatpush2.bf16.msra.mxu0 0
    %7878 = vmatprep.subr.bf16.mxu0 0
    %7879 = vmatpush2.bf16.msra.mxu0 0
    %7880 = vmatprep.mubr.bf16.mxu0 0
    %7881 = vmatmul.mubr.bf16.gmra.mxu0 %v7846
    %v7882 = vpop.f32.mrf.mxu0
    %v7883 = vadd.f32 %v7819, %v7882
    %v7884 = vpop.f32.mrf.mxu0
    %v7885 = vpop.f32.mrf.mxu0
    %v7886 = vadd.f32 %v7819, %v7885
    %v7887 = vpop.f32.mrf.mxu0
    %7888 = vdwg.mxu0
    %v7889 = vld [vmem:[#allocation103] sm:$0xf]
    %v7890 = vld [vmem:[#allocation103 + $0x4] sm:$0xf]
    %v7891 = vld [vmem:[#allocation103 + $0x8] sm:$0xf]
    %v7892 = vld [vmem:[#allocation103 + $0xc] sm:$0xf]
    %v7893 = vld [vmem:[#allocation103 + $0x10] sm:$0xf]
    %v7894 = vld [vmem:[#allocation103 + $0x14] sm:$0xf]
    %v7895 = vld [vmem:[#allocation103 + $0x18] sm:$0xf]
    %v7896 = vld [vmem:[#allocation103 + $0x1c] sm:$0xf]
    %v7897 = vld [vmem:[#allocation103 + $0x20] sm:$0xf]
    %v7898 = vld [vmem:[#allocation103 + $0x24] sm:$0xf]
    %v7899 = vld [vmem:[#allocation103 + $0x28] sm:$0xf]
    %v7900 = vld [vmem:[#allocation103 + $0x2c] sm:$0xf]
    %v7901 = vld [vmem:[#allocation103 + $0x30] sm:$0xf]
    %v7902 = vld [vmem:[#allocation103 + $0x34] sm:$0xf]
    %v7903 = vld [vmem:[#allocation103 + $0x38] sm:$0xf]
    %v7904 = vld [vmem:[#allocation103 + $0x3c] sm:$0xf]
    %v7905 = vld [vmem:[#allocation104] sm:$0x1]
    %v7907 = vlaneseq
    %v7908 = vshrl.u32 %v7907, 7
    %v7909 = vsub.s32 0, %v7908
    %v7910 = vrot.slane %v7905, %v7909
    %v7928 = vunpack.c.l.b16 %v7889
    %v7929 = vunpack.c.l.b16 %v7890
    %v7930 = vunpack.c.l.b16 %v7891
    %v7931 = vunpack.c.l.b16 %v7892
    %v7932 = vunpack.c.l.b16 %v7893
    %v7933 = vunpack.c.l.b16 %v7894
    %v7934 = vunpack.c.l.b16 %v7895
    %v7935 = vunpack.c.l.b16 %v7896
    %v7936 = vunpack.c.l.b16 %v7897
    %v7937 = vunpack.c.l.b16 %v7898
    %v7938 = vunpack.c.l.b16 %v7899
    %v7939 = vunpack.c.l.b16 %v7900
    %v7940 = vunpack.c.l.b16 %v7901
    %v7941 = vunpack.c.l.b16 %v7902
    %v7942 = vunpack.c.l.b16 %v7903
    %v7943 = vunpack.c.l.b16 %v7904
    %v7944 = vpack.c.b16 %v7929, %v7928
    %v7945 = vpack.c.b16 %v7931, %v7930
    %v7946 = vpack.c.b16 %v7933, %v7932
    %v7947 = vpack.c.b16 %v7935, %v7934
    %v7948 = vpack.c.b16 %v7937, %v7936
    %v7949 = vpack.c.b16 %v7939, %v7938
    %v7950 = vpack.c.b16 %v7941, %v7940
    %v7951 = vpack.c.b16 %v7943, %v7942
    %7960 = vmatprep.subr.bf16.mxu0 0
    %7961 = vmatpush1.bf16.msra.mxu0 %v7951
    %7962 = vmatprep.subr.bf16.mxu0 0
    %7963 = vmatpush1.bf16.msra.mxu0 %v7950
    %7964 = vmatprep.subr.bf16.mxu0 0
    %7965 = vmatpush1.bf16.msra.mxu0 %v7949
    %7966 = vmatprep.subr.bf16.mxu0 0
    %7967 = vmatpush1.bf16.msra.mxu0 %v7948
    %7968 = vmatprep.subr.bf16.mxu0 0
    %7969 = vmatpush1.bf16.msra.mxu0 %v7947
    %7970 = vmatprep.subr.bf16.mxu0 0
    %7971 = vmatpush1.bf16.msra.mxu0 %v7946
    %7972 = vmatprep.subr.bf16.mxu0 0
    %7973 = vmatpush1.bf16.msra.mxu0 %v7945
    %7974 = vmatprep.subr.bf16.mxu0 0
    %7975 = vmatpush1.bf16.msra.mxu0 %v7944
    %7976 = vmatprep.subr.bf16.mxu0 0
    %7977 = vmatpush2.bf16.msra.mxu0 0
    %7978 = vmatprep.subr.bf16.mxu0 0
    %7979 = vmatpush2.bf16.msra.mxu0 0
    %7980 = vmatprep.subr.bf16.mxu0 0
    %7981 = vmatpush2.bf16.msra.mxu0 0
    %7982 = vmatprep.subr.bf16.mxu0 0
    %7983 = vmatpush2.bf16.msra.mxu0 0
    %7984 = vmatprep.subr.bf16.mxu0 0
    %7985 = vmatpush2.bf16.msra.mxu0 0
    %7986 = vmatprep.subr.bf16.mxu0 0
    %7987 = vmatpush2.bf16.msra.mxu0 0
    %7988 = vmatprep.subr.bf16.mxu0 0
    %7989 = vmatpush2.bf16.msra.mxu0 0
    %7990 = vmatprep.subr.bf16.mxu0 0
    %7991 = vmatpush2.bf16.msra.mxu0 0
    %7992 = vmatprep.mubr.bf16.mxu0 0
    %7993 = vmatmul.mubr.bf16.gmra.mxu0 %v7690
    %v7994 = vpop.f32.mrf.mxu0
    %v7995 = vadd.f32 %v7910, %v7994
    %v7996 = vpop.f32.mrf.mxu0
    %v7997 = vpop.f32.mrf.mxu0
    %v7998 = vadd.f32 %v7910, %v7997
    %v7999 = vpop.f32.mrf.mxu0
    %8000 = vdwg.mxu0
    %v8001 = vadd.f32 %v7883, %v7995
    %v8002 = vadd.f32 %v7886, %v7998
    %v8003 = vpack.c.bf16 %v8002, %v8001
    %v8004 = vld [vmem:[#allocation106] sm:$0xf]
    %v8005 = vld [vmem:[#allocation106 + $0x4] sm:$0xf]
    %v8006 = vld [vmem:[#allocation106 + $0x8] sm:$0xf]
    %v8007 = vld [vmem:[#allocation106 + $0xc] sm:$0xf]
    %v8008 = vld [vmem:[#allocation106 + $0x10] sm:$0xf]
    %v8009 = vld [vmem:[#allocation106 + $0x14] sm:$0xf]
    %v8010 = vld [vmem:[#allocation106 + $0x18] sm:$0xf]
    %v8011 = vld [vmem:[#allocation106 + $0x1c] sm:$0xf]
    %v8012 = vld [vmem:[#allocation107] sm:$0x1]
    %v8014 = vlaneseq
    %v8015 = vshrl.u32 %v8014, 7
    %v8016 = vsub.s32 0, %v8015
    %v8017 = vrot.slane %v8012, %v8016
    %v8027 = vunpack.c.l.b16 %v8004
    %v8028 = vunpack.c.l.b16 %v8005
    %v8029 = vunpack.c.l.b16 %v8006
    %v8030 = vunpack.c.l.b16 %v8007
    %v8031 = vunpack.c.l.b16 %v8008
    %v8032 = vunpack.c.l.b16 %v8009
    %v8033 = vunpack.c.l.b16 %v8010
    %v8034 = vunpack.c.l.b16 %v8011
    %v8035 = vpack.c.b16 %v8028, %v8027
    %v8036 = vpack.c.b16 %v8030, %v8029
    %v8037 = vpack.c.b16 %v8032, %v8031
    %v8038 = vpack.c.b16 %v8034, %v8033
    %v8044 = vsel %vm3033, %v8003, 0
    %8046 = vmatprep.subr.bf16.mxu0 0
    %8047 = vmatpush1.bf16.msra.mxu0 0
    %8048 = vmatprep.subr.bf16.mxu0 0
    %8049 = vmatpush1.bf16.msra.mxu0 0
    %8050 = vmatprep.subr.bf16.mxu0 0
    %8051 = vmatpush1.bf16.msra.mxu0 0
    %8052 = vmatprep.subr.bf16.mxu0 0
    %8053 = vmatpush1.bf16.msra.mxu0 0
    %8054 = vmatprep.subr.bf16.mxu0 0
    %8055 = vmatpush1.bf16.msra.mxu0 %v8038
    %8056 = vmatprep.subr.bf16.mxu0 0
    %8057 = vmatpush1.bf16.msra.mxu0 %v8037
    %8058 = vmatprep.subr.bf16.mxu0 0
    %8059 = vmatpush1.bf16.msra.mxu0 %v8036
    %8060 = vmatprep.subr.bf16.mxu0 0
    %8061 = vmatpush1.bf16.msra.mxu0 %v8035
    %8062 = vmatprep.subr.bf16.mxu0 0
    %8063 = vmatpush2.bf16.msra.mxu0 0
    %8064 = vmatprep.subr.bf16.mxu0 0
    %8065 = vmatpush2.bf16.msra.mxu0 0
    %8066 = vmatprep.subr.bf16.mxu0 0
    %8067 = vmatpush2.bf16.msra.mxu0 0
    %8068 = vmatprep.subr.bf16.mxu0 0
    %8069 = vmatpush2.bf16.msra.mxu0 0
    %8070 = vmatprep.subr.bf16.mxu0 0
    %8071 = vmatpush2.bf16.msra.mxu0 0
    %8072 = vmatprep.subr.bf16.mxu0 0
    %8073 = vmatpush2.bf16.msra.mxu0 0
    %8074 = vmatprep.subr.bf16.mxu0 0
    %8075 = vmatpush2.bf16.msra.mxu0 0
    %8076 = vmatprep.subr.bf16.mxu0 0
    %8077 = vmatpush2.bf16.msra.mxu0 0
    %8078 = vmatprep.mubr.bf16.mxu0 0
    %8079 = vmatmul.mubr.bf16.gmra.mxu0 %v8044
    %v8080 = vpop.f32.mrf.mxu0
    %v8081 = vadd.f32 %v8017, %v8080
    %v8082 = vpop.f32.mrf.mxu0
    %v8083 = vpop.f32.mrf.mxu0
    %v8084 = vadd.f32 %v8017, %v8083
    %v8085 = vpop.f32.mrf.mxu0
    %8086 = vdwg.mxu0
    %v8087 = vmax.f32 %v8081, 0.0
    %v8088 = vmax.f32 %v8084, 0.0
    %v8089 = vpack.c.bf16 %v8088, %v8087
    %v8090 = vld [vmem:[#allocation109] sm:$0xf]
    %v8091 = vld [vmem:[#allocation109 + $0x4] sm:$0xf]
    %v8092 = vld [vmem:[#allocation109 + $0x8] sm:$0xf]
    %v8093 = vld [vmem:[#allocation109 + $0xc] sm:$0xf]
    %v8094 = vld [vmem:[#allocation110] sm:$0x1]
    %v8096 = vlaneseq
    %v8097 = vshrl.u32 %v8096, 7
    %v8098 = vsub.s32 0, %v8097
    %v8099 = vrot.slane %v8094, %v8098
    %v8105 = vunpack.c.l.b16 %v8090
    %v8106 = vunpack.c.l.b16 %v8091
    %v8107 = vunpack.c.l.b16 %v8092
    %v8108 = vunpack.c.l.b16 %v8093
    %v8109 = vpack.c.b16 %v8106, %v8105
    %v8110 = vpack.c.b16 %v8108, %v8107
    %v8114 = vsel %vm1960, %v8089, 0
    %8116 = vmatprep.subr.bf16.mxu0 0
    %8117 = vmatpush1.bf16.msra.mxu0 0
    %8118 = vmatprep.subr.bf16.mxu0 0
    %8119 = vmatpush1.bf16.msra.mxu0 0
    %8120 = vmatprep.subr.bf16.mxu0 0
    %8121 = vmatpush1.bf16.msra.mxu0 0
    %8122 = vmatprep.subr.bf16.mxu0 0
    %8123 = vmatpush1.bf16.msra.mxu0 0
    %8124 = vmatprep.subr.bf16.mxu0 0
    %8125 = vmatpush1.bf16.msra.mxu0 0
    %8126 = vmatprep.subr.bf16.mxu0 0
    %8127 = vmatpush1.bf16.msra.mxu0 0
    %8128 = vmatprep.subr.bf16.mxu0 0
    %8129 = vmatpush1.bf16.msra.mxu0 %v8110
    %8130 = vmatprep.subr.bf16.mxu0 0
    %8131 = vmatpush1.bf16.msra.mxu0 %v8109
    %8132 = vmatprep.subr.bf16.mxu0 0
    %8133 = vmatpush2.bf16.msra.mxu0 0
    %8134 = vmatprep.subr.bf16.mxu0 0
    %8135 = vmatpush2.bf16.msra.mxu0 0
    %8136 = vmatprep.subr.bf16.mxu0 0
    %8137 = vmatpush2.bf16.msra.mxu0 0
    %8138 = vmatprep.subr.bf16.mxu0 0
    %8139 = vmatpush2.bf16.msra.mxu0 0
    %8140 = vmatprep.subr.bf16.mxu0 0
    %8141 = vmatpush2.bf16.msra.mxu0 0
    %8142 = vmatprep.subr.bf16.mxu0 0
    %8143 = vmatpush2.bf16.msra.mxu0 0
    %8144 = vmatprep.subr.bf16.mxu0 0
    %8145 = vmatpush2.bf16.msra.mxu0 0
    %8146 = vmatprep.subr.bf16.mxu0 0
    %8147 = vmatpush2.bf16.msra.mxu0 0
    %8148 = vmatprep.mubr.bf16.mxu0 0
    %8149 = vmatmul.mubr.bf16.gmra.mxu0 %v8114
    %v8150 = vpop.f32.mrf.mxu0
    %v8151 = vadd.f32 %v8099, %v8150
    %v8152 = vpop.f32.mrf.mxu0
    %v8153 = vpop.f32.mrf.mxu0
    %v8154 = vadd.f32 %v8099, %v8153
    %v8155 = vpop.f32.mrf.mxu0
    %8156 = vdwg.mxu0
    %v8157 = vld [vmem:[#allocation112] sm:$0xf]
    %v8158 = vld [vmem:[#allocation112 + $0x4] sm:$0xf]
    %v8159 = vld [vmem:[#allocation112 + $0x8] sm:$0xf]
    %v8160 = vld [vmem:[#allocation112 + $0xc] sm:$0xf]
    %v8161 = vld [vmem:[#allocation112 + $0x10] sm:$0xf]
    %v8162 = vld [vmem:[#allocation112 + $0x14] sm:$0xf]
    %v8163 = vld [vmem:[#allocation112 + $0x18] sm:$0xf]
    %v8164 = vld [vmem:[#allocation112 + $0x1c] sm:$0xf]
    %v8165 = vld [vmem:[#allocation113] sm:$0x1]
    %v8167 = vlaneseq
    %v8168 = vshrl.u32 %v8167, 7
    %v8169 = vsub.s32 0, %v8168
    %v8170 = vrot.slane %v8165, %v8169
    %v8180 = vunpack.c.l.b16 %v8157
    %v8181 = vunpack.c.l.b16 %v8158
    %v8182 = vunpack.c.l.b16 %v8159
    %v8183 = vunpack.c.l.b16 %v8160
    %v8184 = vunpack.c.l.b16 %v8161
    %v8185 = vunpack.c.l.b16 %v8162
    %v8186 = vunpack.c.l.b16 %v8163
    %v8187 = vunpack.c.l.b16 %v8164
    %v8188 = vpack.c.b16 %v8181, %v8180
    %v8189 = vpack.c.b16 %v8183, %v8182
    %v8190 = vpack.c.b16 %v8185, %v8184
    %v8191 = vpack.c.b16 %v8187, %v8186
    %8196 = vmatprep.subr.bf16.mxu0 0
    %8197 = vmatpush1.bf16.msra.mxu0 0
    %8198 = vmatprep.subr.bf16.mxu0 0
    %8199 = vmatpush1.bf16.msra.mxu0 0
    %8200 = vmatprep.subr.bf16.mxu0 0
    %8201 = vmatpush1.bf16.msra.mxu0 0
    %8202 = vmatprep.subr.bf16.mxu0 0
    %8203 = vmatpush1.bf16.msra.mxu0 0
    %8204 = vmatprep.subr.bf16.mxu0 0
    %8205 = vmatpush1.bf16.msra.mxu0 %v8191
    %8206 = vmatprep.subr.bf16.mxu0 0
    %8207 = vmatpush1.bf16.msra.mxu0 %v8190
    %8208 = vmatprep.subr.bf16.mxu0 0
    %8209 = vmatpush1.bf16.msra.mxu0 %v8189
    %8210 = vmatprep.subr.bf16.mxu0 0
    %8211 = vmatpush1.bf16.msra.mxu0 %v8188
    %8212 = vmatprep.subr.bf16.mxu0 0
    %8213 = vmatpush2.bf16.msra.mxu0 0
    %8214 = vmatprep.subr.bf16.mxu0 0
    %8215 = vmatpush2.bf16.msra.mxu0 0
    %8216 = vmatprep.subr.bf16.mxu0 0
    %8217 = vmatpush2.bf16.msra.mxu0 0
    %8218 = vmatprep.subr.bf16.mxu0 0
    %8219 = vmatpush2.bf16.msra.mxu0 0
    %8220 = vmatprep.subr.bf16.mxu0 0
    %8221 = vmatpush2.bf16.msra.mxu0 0
    %8222 = vmatprep.subr.bf16.mxu0 0
    %8223 = vmatpush2.bf16.msra.mxu0 0
    %8224 = vmatprep.subr.bf16.mxu0 0
    %8225 = vmatpush2.bf16.msra.mxu0 0
    %8226 = vmatprep.subr.bf16.mxu0 0
    %8227 = vmatpush2.bf16.msra.mxu0 0
    %8228 = vmatprep.mubr.bf16.mxu0 0
    %8229 = vmatmul.mubr.bf16.gmra.mxu0 %v8044
    %v8230 = vpop.f32.mrf.mxu0
    %v8231 = vadd.f32 %v8170, %v8230
    %v8232 = vpop.f32.mrf.mxu0
    %v8233 = vpop.f32.mrf.mxu0
    %v8234 = vadd.f32 %v8170, %v8233
    %v8235 = vpop.f32.mrf.mxu0
    %8236 = vdwg.mxu0
    %v8237 = vadd.f32 %v8151, %v8231
    %v8238 = vadd.f32 %v8154, %v8234
    %v8239 = vpack.c.bf16 %v8238, %v8237
    %v8240 = vld [vmem:[#allocation115] sm:$0xf]
    %v8241 = vld [vmem:[#allocation115 + $0x4] sm:$0xf]
    %v8242 = vld [vmem:[#allocation115 + $0x8] sm:$0xf]
    %v8243 = vld [vmem:[#allocation115 + $0xc] sm:$0xf]
    %v8244 = vld [vmem:[#allocation116] sm:$0x1]
    %v8246 = vlaneseq
    %v8247 = vshrl.u32 %v8246, 7
    %v8248 = vsub.s32 0, %v8247
    %v8249 = vrot.slane %v8244, %v8248
    %v8255 = vunpack.c.l.b16 %v8240
    %v8256 = vunpack.c.l.b16 %v8241
    %v8257 = vunpack.c.l.b16 %v8242
    %v8258 = vunpack.c.l.b16 %v8243
    %v8259 = vpack.c.b16 %v8256, %v8255
    %v8260 = vpack.c.b16 %v8258, %v8257
    %v8264 = vsel %vm1960, %v8239, 0
    %8266 = vmatprep.subr.bf16.mxu0 0
    %8267 = vmatpush1.bf16.msra.mxu0 0
    %8268 = vmatprep.subr.bf16.mxu0 0
    %8269 = vmatpush1.bf16.msra.mxu0 0
    %8270 = vmatprep.subr.bf16.mxu0 0
    %8271 = vmatpush1.bf16.msra.mxu0 0
    %8272 = vmatprep.subr.bf16.mxu0 0
    %8273 = vmatpush1.bf16.msra.mxu0 0
    %8274 = vmatprep.subr.bf16.mxu0 0
    %8275 = vmatpush1.bf16.msra.mxu0 0
    %8276 = vmatprep.subr.bf16.mxu0 0
    %8277 = vmatpush1.bf16.msra.mxu0 0
    %8278 = vmatprep.subr.bf16.mxu0 0
    %8279 = vmatpush1.bf16.msra.mxu0 %v8260
    %8280 = vmatprep.subr.bf16.mxu0 0
    %8281 = vmatpush1.bf16.msra.mxu0 %v8259
    %8282 = vmatprep.subr.bf16.mxu0 0
    %8283 = vmatpush2.bf16.msra.mxu0 0
    %8284 = vmatprep.subr.bf16.mxu0 0
    %8285 = vmatpush2.bf16.msra.mxu0 0
    %8286 = vmatprep.subr.bf16.mxu0 0
    %8287 = vmatpush2.bf16.msra.mxu0 0
    %8288 = vmatprep.subr.bf16.mxu0 0
    %8289 = vmatpush2.bf16.msra.mxu0 0
    %8290 = vmatprep.subr.bf16.mxu0 0
    %8291 = vmatpush2.bf16.msra.mxu0 0
    %8292 = vmatprep.subr.bf16.mxu0 0
    %8293 = vmatpush2.bf16.msra.mxu0 0
    %8294 = vmatprep.subr.bf16.mxu0 0
    %8295 = vmatpush2.bf16.msra.mxu0 0
    %8296 = vmatprep.subr.bf16.mxu0 0
    %8297 = vmatpush2.bf16.msra.mxu0 0
    %8298 = vmatprep.mubr.bf16.mxu0 0
    %8299 = vmatmul.mubr.bf16.gmra.mxu0 %v8264
    %v8300 = vpop.f32.mrf.mxu0
    %v8301 = vadd.f32 %v8249, %v8300
    %v8302 = vpop.f32.mrf.mxu0
    %v8303 = vpop.f32.mrf.mxu0
    %v8304 = vadd.f32 %v8249, %v8303
    %v8305 = vpop.f32.mrf.mxu0
    %8306 = vdwg.mxu0
    %v8307 = vmax.f32 %v8301, 0.0
    %v8308 = vmax.f32 %v8304, 0.0
    %v8309 = vpack.c.bf16 %v8308, %v8307
    %v8310 = vld [vmem:[#allocation118] sm:$0xf]
    %v8311 = vld [vmem:[#allocation118 + $0x4] sm:$0xf]
    %v8312 = vld [vmem:[#allocation119] sm:$0x1]
    %v8314 = vlaneseq
    %v8315 = vshrl.u32 %v8314, 7
    %v8316 = vsub.s32 0, %v8315
    %v8317 = vrot.slane %v8312, %v8316
    %v8321 = vunpack.c.l.b16 %v8310
    %v8322 = vunpack.c.l.b16 %v8311
    %v8323 = vpack.c.b16 %v8322, %v8321
    %v8326 = vsel %vm1827, %v8309, 0
    %8328 = vmatprep.subr.bf16.mxu0 0
    %8329 = vmatpush1.bf16.msra.mxu0 0
    %8330 = vmatprep.subr.bf16.mxu0 0
    %8331 = vmatpush1.bf16.msra.mxu0 0
    %8332 = vmatprep.subr.bf16.mxu0 0
    %8333 = vmatpush1.bf16.msra.mxu0 0
    %8334 = vmatprep.subr.bf16.mxu0 0
    %8335 = vmatpush1.bf16.msra.mxu0 0
    %8336 = vmatprep.subr.bf16.mxu0 0
    %8337 = vmatpush1.bf16.msra.mxu0 0
    %8338 = vmatprep.subr.bf16.mxu0 0
    %8339 = vmatpush1.bf16.msra.mxu0 0
    %8340 = vmatprep.subr.bf16.mxu0 0
    %8341 = vmatpush1.bf16.msra.mxu0 0
    %8342 = vmatprep.subr.bf16.mxu0 0
    %8343 = vmatpush1.bf16.msra.mxu0 %v8323
    %8344 = vmatprep.subr.bf16.mxu0 0
    %8345 = vmatpush2.bf16.msra.mxu0 0
    %8346 = vmatprep.subr.bf16.mxu0 0
    %8347 = vmatpush2.bf16.msra.mxu0 0
    %8348 = vmatprep.subr.bf16.mxu0 0
    %8349 = vmatpush2.bf16.msra.mxu0 0
    %8350 = vmatprep.subr.bf16.mxu0 0
    %8351 = vmatpush2.bf16.msra.mxu0 0
    %8352 = vmatprep.subr.bf16.mxu0 0
    %8353 = vmatpush2.bf16.msra.mxu0 0
    %8354 = vmatprep.subr.bf16.mxu0 0
    %8355 = vmatpush2.bf16.msra.mxu0 0
    %8356 = vmatprep.subr.bf16.mxu0 0
    %8357 = vmatpush2.bf16.msra.mxu0 0
    %8358 = vmatprep.subr.bf16.mxu0 0
    %8359 = vmatpush2.bf16.msra.mxu0 0
    %8360 = vmatprep.mubr.bf16.mxu0 0
    %8361 = vmatmul.mubr.bf16.gmra.mxu0 %v8326
    %v8362 = vpop.f32.mrf.mxu0
    %v8363 = vadd.f32 %v8317, %v8362
    %v8364 = vpop.f32.mrf.mxu0
    %v8365 = vpop.f32.mrf.mxu0
    %v8366 = vadd.f32 %v8317, %v8365
    %v8367 = vpop.f32.mrf.mxu0
    %8368 = vdwg.mxu0
    %v8369 = vld [vmem:[#allocation121] sm:$0xf]
    %v8370 = vld [vmem:[#allocation121 + $0x4] sm:$0xf]
    %v8371 = vld [vmem:[#allocation121 + $0x8] sm:$0xf]
    %v8372 = vld [vmem:[#allocation121 + $0xc] sm:$0xf]
    %v8373 = vld [vmem:[#allocation122] sm:$0x1]
    %v8375 = vlaneseq
    %v8376 = vshrl.u32 %v8375, 7
    %v8377 = vsub.s32 0, %v8376
    %v8378 = vrot.slane %v8373, %v8377
    %v8384 = vunpack.c.l.b16 %v8369
    %v8385 = vunpack.c.l.b16 %v8370
    %v8386 = vunpack.c.l.b16 %v8371
    %v8387 = vunpack.c.l.b16 %v8372
    %v8388 = vpack.c.b16 %v8385, %v8384
    %v8389 = vpack.c.b16 %v8387, %v8386
    %8392 = vmatprep.subr.bf16.mxu0 0
    %8393 = vmatpush1.bf16.msra.mxu0 0
    %8394 = vmatprep.subr.bf16.mxu0 0
    %8395 = vmatpush1.bf16.msra.mxu0 0
    %8396 = vmatprep.subr.bf16.mxu0 0
    %8397 = vmatpush1.bf16.msra.mxu0 0
    %8398 = vmatprep.subr.bf16.mxu0 0
    %8399 = vmatpush1.bf16.msra.mxu0 0
    %8400 = vmatprep.subr.bf16.mxu0 0
    %8401 = vmatpush1.bf16.msra.mxu0 0
    %8402 = vmatprep.subr.bf16.mxu0 0
    %8403 = vmatpush1.bf16.msra.mxu0 0
    %8404 = vmatprep.subr.bf16.mxu0 0
    %8405 = vmatpush1.bf16.msra.mxu0 %v8389
    %8406 = vmatprep.subr.bf16.mxu0 0
    %8407 = vmatpush1.bf16.msra.mxu0 %v8388
    %8408 = vmatprep.subr.bf16.mxu0 0
    %8409 = vmatpush2.bf16.msra.mxu0 0
    %8410 = vmatprep.subr.bf16.mxu0 0
    %8411 = vmatpush2.bf16.msra.mxu0 0
    %8412 = vmatprep.subr.bf16.mxu0 0
    %8413 = vmatpush2.bf16.msra.mxu0 0
    %8414 = vmatprep.subr.bf16.mxu0 0
    %8415 = vmatpush2.bf16.msra.mxu0 0
    %8416 = vmatprep.subr.bf16.mxu0 0
    %8417 = vmatpush2.bf16.msra.mxu0 0
    %8418 = vmatprep.subr.bf16.mxu0 0
    %8419 = vmatpush2.bf16.msra.mxu0 0
    %8420 = vmatprep.subr.bf16.mxu0 0
    %8421 = vmatpush2.bf16.msra.mxu0 0
    %8422 = vmatprep.subr.bf16.mxu0 0
    %8423 = vmatpush2.bf16.msra.mxu0 0
    %8424 = vmatprep.mubr.bf16.mxu0 0
    %8425 = vmatmul.mubr.bf16.gmra.mxu0 %v8264
    %v8426 = vpop.f32.mrf.mxu0
    %v8427 = vadd.f32 %v8378, %v8426
    %v8428 = vpop.f32.mrf.mxu0
    %v8429 = vpop.f32.mrf.mxu0
    %v8430 = vadd.f32 %v8378, %v8429
    %v8431 = vpop.f32.mrf.mxu0
    %8432 = vdwg.mxu0
    %v8433 = vadd.f32 %v8363, %v8427
    %v8434 = vadd.f32 %v8366, %v8430
    %v8435 = vpack.c.bf16 %v8434, %v8433
    %v8436 = vld [vmem:[#allocation124] sm:$0xf]
    %v8437 = vld [vmem:[#allocation124 + $0x4] sm:$0xf]
    %v8438 = vld [vmem:[#allocation125] sm:$0x1]
    %v8440 = vlaneseq
    %v8441 = vshrl.u32 %v8440, 7
    %v8442 = vsub.s32 0, %v8441
    %v8443 = vrot.slane %v8438, %v8442
    %v8447 = vunpack.c.l.b16 %v8436
    %v8448 = vunpack.c.l.b16 %v8437
    %v8449 = vpack.c.b16 %v8448, %v8447
    %v8452 = vsel %vm1827, %v8435, 0
    %8454 = vmatprep.subr.bf16.mxu0 0
    %8455 = vmatpush1.bf16.msra.mxu0 0
    %8456 = vmatprep.subr.bf16.mxu0 0
    %8457 = vmatpush1.bf16.msra.mxu0 0
    %8458 = vmatprep.subr.bf16.mxu0 0
    %8459 = vmatpush1.bf16.msra.mxu0 0
    %8460 = vmatprep.subr.bf16.mxu0 0
    %8461 = vmatpush1.bf16.msra.mxu0 0
    %8462 = vmatprep.subr.bf16.mxu0 0
    %8463 = vmatpush1.bf16.msra.mxu0 0
    %8464 = vmatprep.subr.bf16.mxu0 0
    %8465 = vmatpush1.bf16.msra.mxu0 0
    %8466 = vmatprep.subr.bf16.mxu0 0
    %8467 = vmatpush1.bf16.msra.mxu0 0
    %8468 = vmatprep.subr.bf16.mxu0 0
    %8469 = vmatpush1.bf16.msra.mxu0 %v8449
    %8470 = vmatprep.subr.bf16.mxu0 0
    %8471 = vmatpush2.bf16.msra.mxu0 0
    %8472 = vmatprep.subr.bf16.mxu0 0
    %8473 = vmatpush2.bf16.msra.mxu0 0
    %8474 = vmatprep.subr.bf16.mxu0 0
    %8475 = vmatpush2.bf16.msra.mxu0 0
    %8476 = vmatprep.subr.bf16.mxu0 0
    %8477 = vmatpush2.bf16.msra.mxu0 0
    %8478 = vmatprep.subr.bf16.mxu0 0
    %8479 = vmatpush2.bf16.msra.mxu0 0
    %8480 = vmatprep.subr.bf16.mxu0 0
    %8481 = vmatpush2.bf16.msra.mxu0 0
    %8482 = vmatprep.subr.bf16.mxu0 0
    %8483 = vmatpush2.bf16.msra.mxu0 0
    %8484 = vmatprep.subr.bf16.mxu0 0
    %8485 = vmatpush2.bf16.msra.mxu0 0
    %8486 = vmatprep.mubr.bf16.mxu0 0
    %8487 = vmatmul.mubr.bf16.gmra.mxu0 %v8452
    %v8488 = vpop.f32.mrf.mxu0
    %v8489 = vadd.f32 %v8443, %v8488
    %v8490 = vpop.f32.mrf.mxu0
    %v8491 = vpop.f32.mrf.mxu0
    %v8492 = vadd.f32 %v8443, %v8491
    %v8493 = vpop.f32.mrf.mxu0
    %8494 = vdwg.mxu0
    %v8495 = vmax.f32 %v8489, 0.0
    %v8496 = vmax.f32 %v8492, 0.0
    %v8497 = vpack.c.bf16 %v8496, %v8495
    %v8498 = vld [vmem:[#allocation127] sm:$0xf]
    %v8499 = vld [vmem:[#allocation128] sm:$0x1]
    %v8501 = vlaneseq
    %v8502 = vshrl.u32 %v8501, 7
    %v8503 = vsub.s32 0, %v8502
    %v8504 = vrot.slane %v8499, %v8503
    %vm8506 = vcmask 64512
    %v8508 = vsel %vm8506, %v8497, 0
    %vm8510 = vcmask 1043456
    %v8512 = vsel %vm8510, %v8498, 0
    %8514 = vmatprep.subr.bf16.mxu0 0
    %8515 = vmatpush1.bf16.msra.mxu0 0
    %8516 = vmatprep.subr.bf16.mxu0 0
    %8517 = vmatpush1.bf16.msra.mxu0 0
    %8518 = vmatprep.subr.bf16.mxu0 0
    %8519 = vmatpush1.bf16.msra.mxu0 0
    %8520 = vmatprep.subr.bf16.mxu0 0
    %8521 = vmatpush1.bf16.msra.mxu0 0
    %8522 = vmatprep.subr.bf16.mxu0 0
    %8523 = vmatpush1.bf16.msra.mxu0 0
    %8524 = vmatprep.subr.bf16.mxu0 0
    %8525 = vmatpush1.bf16.msra.mxu0 0
    %8526 = vmatprep.subr.bf16.mxu0 0
    %8527 = vmatpush1.bf16.msra.mxu0 0
    %8528 = vmatprep.subr.bf16.mxu0 0
    %8529 = vmatpush1.bf16.msra.mxu0 %v8512
    %8530 = vmatprep.subr.bf16.mxu0 0
    %8531 = vmatpush2.bf16.msra.mxu0 0
    %8532 = vmatprep.subr.bf16.mxu0 0
    %8533 = vmatpush2.bf16.msra.mxu0 0
    %8534 = vmatprep.subr.bf16.mxu0 0
    %8535 = vmatpush2.bf16.msra.mxu0 0
    %8536 = vmatprep.subr.bf16.mxu0 0
    %8537 = vmatpush2.bf16.msra.mxu0 0
    %8538 = vmatprep.subr.bf16.mxu0 0
    %8539 = vmatpush2.bf16.msra.mxu0 0
    %8540 = vmatprep.subr.bf16.mxu0 0
    %8541 = vmatpush2.bf16.msra.mxu0 0
    %8542 = vmatprep.subr.bf16.mxu0 0
    %8543 = vmatpush2.bf16.msra.mxu0 0
    %8544 = vmatprep.subr.bf16.mxu0 0
    %8545 = vmatpush2.bf16.msra.mxu0 0
    %8546 = vmatprep.mubr.bf16.mxu0 0
    %8547 = vmatmul.mubr.bf16.gmra.mxu0 %v8508
    %v8548 = vpop.f32.mrf.mxu0
    %v8549 = vadd.f32 %v8504, %v8548
    %v8550 = vpop.f32.mrf.mxu0
    %v8551 = vpop.f32.mrf.mxu0
    %v8552 = vadd.f32 %v8504, %v8551
    %v8553 = vpop.f32.mrf.mxu0
    %8554 = vdwg.mxu0
    %v8555 = vld [vmem:[#allocation130] sm:$0xf]
    %v8556 = vld [vmem:[#allocation130 + $0x4] sm:$0xf]
    %v8557 = vld [vmem:[#allocation131] sm:$0x1]
    %v8559 = vlaneseq
    %v8560 = vshrl.u32 %v8559, 7
    %v8561 = vsub.s32 0, %v8560
    %v8562 = vrot.slane %v8557, %v8561
    %v8566 = vunpack.c.l.b16 %v8555
    %v8567 = vunpack.c.l.b16 %v8556
    %v8568 = vpack.c.b16 %v8567, %v8566
    %8570 = vmatprep.subr.bf16.mxu0 0
    %8571 = vmatpush1.bf16.msra.mxu0 0
    %8572 = vmatprep.subr.bf16.mxu0 0
    %8573 = vmatpush1.bf16.msra.mxu0 0
    %8574 = vmatprep.subr.bf16.mxu0 0
    %8575 = vmatpush1.bf16.msra.mxu0 0
    %8576 = vmatprep.subr.bf16.mxu0 0
    %8577 = vmatpush1.bf16.msra.mxu0 0
    %8578 = vmatprep.subr.bf16.mxu0 0
    %8579 = vmatpush1.bf16.msra.mxu0 0
    %8580 = vmatprep.subr.bf16.mxu0 0
    %8581 = vmatpush1.bf16.msra.mxu0 0
    %8582 = vmatprep.subr.bf16.mxu0 0
    %8583 = vmatpush1.bf16.msra.mxu0 0
    %8584 = vmatprep.subr.bf16.mxu0 0
    %8585 = vmatpush1.bf16.msra.mxu0 %v8568
    %8586 = vmatprep.subr.bf16.mxu0 0
    %8587 = vmatpush2.bf16.msra.mxu0 0
    %8588 = vmatprep.subr.bf16.mxu0 0
    %8589 = vmatpush2.bf16.msra.mxu0 0
    %8590 = vmatprep.subr.bf16.mxu0 0
    %8591 = vmatpush2.bf16.msra.mxu0 0
    %8592 = vmatprep.subr.bf16.mxu0 0
    %8593 = vmatpush2.bf16.msra.mxu0 0
    %8594 = vmatprep.subr.bf16.mxu0 0
    %8595 = vmatpush2.bf16.msra.mxu0 0
    %8596 = vmatprep.subr.bf16.mxu0 0
    %8597 = vmatpush2.bf16.msra.mxu0 0
    %8598 = vmatprep.subr.bf16.mxu0 0
    %8599 = vmatpush2.bf16.msra.mxu0 0
    %8600 = vmatprep.subr.bf16.mxu0 0
    %8601 = vmatpush2.bf16.msra.mxu0 0
    %8602 = vmatprep.mubr.bf16.mxu0 0
    %8603 = vmatmul.mubr.bf16.gmra.mxu0 %v8452
    %v8604 = vpop.f32.mrf.mxu0
    %v8605 = vadd.f32 %v8562, %v8604
    %v8606 = vpop.f32.mrf.mxu0
    %v8607 = vpop.f32.mrf.mxu0
    %v8608 = vadd.f32 %v8562, %v8607
    %v8609 = vpop.f32.mrf.mxu0
    %8610 = vdwg.mxu0
    %v8611 = vadd.f32 %v8549, %v8605
    %v8612 = vadd.f32 %v8552, %v8608
    %8613 = vst.msk [vmem:[%s253] sm:$0xff] %vm8506, %v8611
    %8614 = vst.msk [vmem:[%s253 + $0x8] sm:$0xff] %vm8506, %v8612
    %8615 = vst.msk [vmem:[#allocation157] sm:$0xff] %vm1960, %v3426
    %8616 = vst.msk [vmem:[#allocation157 + $0x8] sm:$0xff] %vm1960, %v3427
    %8617 = vst.msk [vmem:[#allocation158] sm:$0xff] %vm1960, %v4552
    %8618 = vst.msk [vmem:[#allocation158 + $0x8] sm:$0xff] %vm1960, %v4553
    // Predicated region
    $region922: #{base_horse_race_predictor_forward.1} parent=1 // pred_check
      _
    $region923: #{base_horse_race_predictor_forward.1} parent=1 // pred_check_branch
      %8620 = sbr.rel (0) target = $region925
    $region924: #{base_horse_race_predictor_forward.1} parent=1 // pred_region
      _
    $region925: #{base_horse_race_predictor_forward.1} parent=1 // pred_fallthru
      _
    // Predicated region
    $region926: #{base_horse_race_predictor_forward.1} parent=1 // pred_check
      _
    $region927: #{base_horse_race_predictor_forward.1} parent=1 // pred_check_branch
      %8622 = sbr.rel (0) target = $region929
    $region928: #{base_horse_race_predictor_forward.1} parent=1 // pred_region
      %s8624 = ssub.s32 256, 256
      %8625 = vsyncadd [#allocation4], %s8624
      %s8626 = sshll.u32 [#allocation157], 4
      %s8627 = int_to_ptr.vmem [resolvable:$true] %s8626
      %8632 = dma.vmem_to_hbm [thread:$0]  %s8627, 256, %s255, [#allocation4], 128, 128, 8
    $region929: #{base_horse_race_predictor_forward.1} parent=1 // pred_fallthru
      _
    // Predicated region
    $region930: #{base_horse_race_predictor_forward.1} parent=1 // pred_check
      _
    $region931: #{base_horse_race_predictor_forward.1} parent=1 // pred_check_branch
      %8634 = sbr.rel (0) target = $region933
    $region932: #{base_horse_race_predictor_forward.1} parent=1 // pred_region
      %s8636 = ssub.s32 256, 256
      %8637 = vsyncadd [#allocation4], %s8636
      %s8638 = sshll.u32 [#allocation158], 4
      %s8639 = int_to_ptr.vmem [resolvable:$true] %s8638
      %8644 = dma.vmem_to_hbm [thread:$0]  %s8639, 256, %s257, [#allocation4], 128, 128, 8
    $region933: #{base_horse_race_predictor_forward.1} parent=1 // pred_fallthru
      _
    // Predicated region
    $region934: #{base_horse_race_predictor_forward.1} parent=1 // pred_check
      _
    $region935: #{base_horse_race_predictor_forward.1} parent=1 // pred_check_branch
      %8646 = sbr.rel (0) target = $region937
    $region936: #{base_horse_race_predictor_forward.1} parent=1 // pred_region
      _
    $region937: #{base_horse_race_predictor_forward.1} parent=1 // pred_fallthru
      _
    // Predicated region
    $region938: #{base_horse_race_predictor_forward.1} parent=1 // pred_check
      _
    $region939: #{base_horse_race_predictor_forward.1} parent=1 // pred_check_branch
      %8648 = sbr.rel (0) target = $region941
    $region940: #{base_horse_race_predictor_forward.1} parent=1 // pred_region
      %8649 = dma.done [#allocation4], 256
    $region941: #{base_horse_race_predictor_forward.1} parent=1 // pred_fallthru
      _
    // Predicated region
    $region942: #{base_horse_race_predictor_forward.1} parent=1 // pred_check
      _
    $region943: #{base_horse_race_predictor_forward.1} parent=1 // pred_check_branch
      %8651 = sbr.rel (0) target = $region945
    $region944: #{base_horse_race_predictor_forward.1} parent=1 // pred_region
      %8652 = dma.done [#allocation4], 256
    $region945: #{base_horse_race_predictor_forward.1} parent=1 // pred_fallthru
      _
    %8653 = vsyncpa [#allocation3], 1
    %8654 = vsyncpa [#allocation6], 1
    %8655 = vsyncpa [#allocation9], 1
    %8656 = vsyncpa [#allocation12], 1
    %8657 = vsyncpa [#allocation15], 1
    %8658 = vsyncpa [#allocation18], 1
    %8659 = vsyncpa [#allocation21], 1
    %8660 = vsyncpa [#allocation24], 1
    %8661 = vsyncpa [#allocation27], 1
    %8662 = vsyncpa [#allocation30], 1
    %8663 = vsyncpa [#allocation33], 1
    %8664 = vsyncpa [#allocation36], 1
    %8665 = vsyncpa [#allocation39], 1
    %8666 = vsyncpa [#allocation42], 1
    %8667 = vsyncpa [#allocation45], 1
    %8668 = vsyncpa [#allocation48], 1
    %8669 = vsyncpa [#allocation51], 1
    %8670 = vsyncpa [#allocation54], 1
    %8671 = vsyncpa [#allocation57], 1
    %8672 = vsyncpa [#allocation60], 1
    %8673 = vsyncpa [#allocation63], 1
    %8674 = vsyncpa [#allocation66], 1
    %8675 = vsyncpa [#allocation69], 1
    %8676 = vsyncpa [#allocation72], 1
    %8677 = vsyncpa [#allocation75], 1
    %8678 = vsyncpa [#allocation78], 1
    %8679 = vsyncpa [#allocation81], 1
    %8680 = vsyncpa [#allocation84], 1
    %8681 = vsyncpa [#allocation87], 1
    %8682 = vsyncpa [#allocation90], 1
    %8683 = vsyncpa [#allocation93], 1
    %8684 = vsyncpa [#allocation96], 1
    %8685 = vsyncpa [#allocation99], 1
    %8686 = vsyncpa [#allocation102], 1
    %8687 = vsyncpa [#allocation105], 1
    %8688 = vsyncpa [#allocation108], 1
    %8689 = vsyncpa [#allocation111], 1
    %8690 = vsyncpa [#allocation114], 1
    %8691 = vsyncpa [#allocation117], 1
    %8692 = vsyncpa [#allocation120], 1
    %8693 = vsyncpa [#allocation123], 1
    %8694 = vsyncpa [#allocation126], 1
    %8695 = vsyncpa [#allocation129], 1
    %8696 = vsyncpa [#allocation132], 1
    %8697 = vsyncpa [#allocation135], 1
    %8698 = vsyncpa [#allocation138], 1
    %8699 = vsyncpa [#allocation141], 1
    %8700 = vsyncpa [#allocation144], 1
    %8701 = vsyncpa [#allocation147], 1
    %8702 = vsyncpa [#allocation150], 1
    %8703 = vsyncpa [#allocation4], 1

</llo_original>
